<compile_context>
chip_gen: v5e
topology: v5e:2x2
jax: 0.10.0
libtpu: 0.0.40
codegen_flags: <defaults>
</compile_context>

<pallas_src>
import functools

import jax
import jax.numpy as jnp
import numpy as np
from jax import lax
from jax.experimental import pallas as pl
from jax.experimental.pallas import tpu as pltpu

_LN_EPS = 1e-5
_BN_EPS = 1e-5
_KERNEL_EPS = 1e-3             # FAVOR+ generalized-kernel epsilon
_ROW_BLOCK_CAP = 256           # row tile for the (rows, D) kernels (v5e/v7x safe)
_TIME_BLOCK_CAP = 256          # time tile for the conv front-end
_VMEM_LIMIT = 64 * 1024 * 1024


def _cparams(*sems):
    return pltpu.CompilerParams(dimension_semantics=tuple(sems),
                                vmem_limit_bytes=_VMEM_LIMIT)


# ---------------------------------------------------------------------------
# tiling plans (no padding: blocks divide the array exactly)
# ---------------------------------------------------------------------------
def _row_plan(rows, cap=_ROW_BLOCK_CAP):
    """Largest row block (multiple of 8) dividing `rows`, preferring >=2 steps."""
    if rows % 8 == 0 and rows >= 16:
        limit = min(cap, rows // 2)
        limit -= limit % 8
        for cand in range(limit, 7, -8):
            if rows % cand == 0:
                return cand, rows // cand
    # single full-extent block (block dims equal to array dims are always legal)
    return rows, 1


def _time_plan(t, cap=_TIME_BLOCK_CAP):
    if t <= cap:
        tb = ((t + 7) // 8) * 8
        return tb, 1, tb
    tb = cap
    n = -(-t // tb)
    return tb, n, n * tb


# ---------------------------------------------------------------------------
# fused conv front-end + neck
#   stage 1: conv1(1->4) . dw3x3 . pw(->C1) . BN . ReLU   (folded to 9 taps)
#   stage 2: dw3x3 . pw(->D) . BN . ReLU                   (per mel row)
#   neck   : mel-mean . proj Linear . LayerNorm . +pos
# grid = (batch, time blocks); halos come from host-built overlapping windows.
# ---------------------------------------------------------------------------
def _frontend_kernel(n_mels, t_blk, t_real,
                     x_ref, w1_ref, b1_ref, wdw2_ref, bdw2_ref,
                     wpw2_ref, bpw2_ref, pw_ref, pb_ref,
                     g_ref, bb_ref, pos_ref, o_ref):
    c1 = w1_ref.shape[1]
    d = o_ref.shape[-1]
    tpb = t_blk + 2
    jb = pl.program_id(1)

    xfull = x_ref[...].astype(jnp.float32)          # (t_blk+4, n_mels+2), time x mel
    w1 = w1_ref[...]                                # (9, c1)  folded stage-1 taps
    b1 = b1_ref[...]                                # (1, c1)
    wdw2 = wdw2_ref[...]                            # (9, c1)  stage-2 depthwise taps
    bdw2 = bdw2_ref[...]                            # (1, c1)
    bpw2 = bpw2_ref[...]                            # (1, d)

    # stage-1 columns whose *global* time index falls outside [0, t_real) are
    # the zero padding seen by the second depthwise conv -> mask them to zero.
    g_t = jb * t_blk - 1 + lax.broadcasted_iota(jnp.int32, (tpb, 1), 0)
    tmask = ((g_t >= 0) & (g_t < t_real)).astype(jnp.float32)

    # stage-1 rows, computed lazily and memoised (each row traced exactly once;
    # liveness is only ~3 rows thanks to the stage-2 sweep below).
    s1_rows = {}

    def stage1_row(r):
        if r not in s1_rows:
            acc = jnp.zeros((tpb, c1), jnp.float32) + b1
            for i in range(3):                      # mel tap
                for j in range(3):                  # time tap
                    xs = xfull[j:j + tpb, r + i:r + i + 1]          # (tpb, 1)
                    acc = acc + xs * w1[3 * i + j:3 * i + j + 1, :]  # (1, c1)
            s1_rows[r] = jnp.maximum(acc, 0.0) * tmask
        return s1_rows[r]

    # stage-2 + running mel-mean: the (M, T, D) activation never materialises.
    acc = jnp.zeros((t_blk, d), jnp.float32)
    for m in range(n_mels):
        dw = jnp.zeros((t_blk, c1), jnp.float32) + bdw2
        for i in range(3):
            r = m + i - 1
            if r < 0 or r >= n_mels:                # zero padding along mel axis
                continue
            row = stage1_row(r)
            for j in range(3):
                dw = dw + row[j:j + t_blk, :] * wdw2[3 * i + j:3 * i + j + 1, :]
        pw = jnp.dot(dw.astype(jnp.bfloat16), wpw2_ref[...],
                     preferred_element_type=jnp.float32) + bpw2
        acc = acc + jnp.maximum(pw, 0.0)

    # neck: mel mean + projection + LayerNorm + positional embedding
    xm = acc * (1.0 / n_mels)
    h = jnp.dot(xm.astype(jnp.bfloat16), pw_ref[...],
                preferred_element_type=jnp.float32) + pb_ref[...]
    mu = jnp.mean(h, axis=-1, keepdims=True)
    var = jnp.mean(jnp.square(h - mu), axis=-1, keepdims=True)
    h = (h - mu) * lax.rsqrt(var + _LN_EPS) * g_ref[...] + bb_ref[...]
    o_ref[...] = (h + pos_ref[...]).astype(o_ref.dtype)


def pl_frontend(x_win, w1, b1, wdw2, bdw2, wpw2, bpw2, proj_w, proj_b,
                ln_g, ln_b, pos_full, *, n_mels, t_blk, t_real):
    bsz, n_tb, tw, mw = x_win.shape
    c1 = w1.shape[1]
    d = proj_w.shape[1]
    tp = pos_full.shape[0]
    # TODO(synk): constant-index weight blocks could use pipeline_mode=pl.Buffered(1)
    # to halve their VMEM residency on v7x.
    return pl.pallas_call(
        functools.partial(_frontend_kernel, n_mels, t_blk, t_real),
        out_shape=jax.ShapeDtypeStruct((bsz, tp, d), jnp.float32),
        grid=(bsz, n_tb),
        in_specs=[
            pl.BlockSpec((None, None, tw, mw), lambda b, j: (b, j, 0, 0)),
            pl.BlockSpec((9, c1), lambda b, j: (0, 0)),
            pl.BlockSpec((1, c1), lambda b, j: (0, 0)),
            pl.BlockSpec((9, c1), lambda b, j: (0, 0)),
            pl.BlockSpec((1, c1), lambda b, j: (0, 0)),
            pl.BlockSpec((c1, d), lambda b, j: (0, 0)),
            pl.BlockSpec((1, d), lambda b, j: (0, 0)),
            pl.BlockSpec((d, d), lambda b, j: (0, 0)),
            pl.BlockSpec((1, d), lambda b, j: (0, 0)),
            pl.BlockSpec((1, d), lambda b, j: (0, 0)),
            pl.BlockSpec((1, d), lambda b, j: (0, 0)),
            pl.BlockSpec((t_blk, d), lambda b, j: (j, 0)),
        ],
        out_specs=pl.BlockSpec((None, t_blk, d), lambda b, j: (b, j, 0)),
        compiler_params=_cparams("parallel", "parallel"),
    )(x_win, w1, b1.reshape(1, c1), wdw2, bdw2.reshape(1, c1), wpw2,
      bpw2.reshape(1, d), proj_w, proj_b.reshape(1, d),
      ln_g.reshape(1, d), ln_b.reshape(1, d), pos_full)


# ---------------------------------------------------------------------------
# fused LayerNorm + Linear (used for the QKV projection)
# ---------------------------------------------------------------------------
def _ln_linear_kernel(x_ref, g_ref, b_ref, w_ref, bias_ref, o_ref):
    x = x_ref[...].astype(jnp.float32)
    mu = jnp.mean(x, axis=-1, keepdims=True)
    var = jnp.mean(jnp.square(x - mu), axis=-1, keepdims=True)
    h = (x - mu) * lax.rsqrt(var + _LN_EPS) * g_ref[...] + b_ref[...]
    out = jnp.dot(h.astype(jnp.bfloat16), w_ref[...],
                  preferred_element_type=jnp.float32) + bias_ref[...]
    o_ref[...] = out.astype(o_ref.dtype)


def pl_ln_linear(x, gamma, beta, w, bias):
    rows, d = x.shape
    n = w.shape[1]
    tb, steps = _row_plan(rows)
    return pl.pallas_call(
        _ln_linear_kernel,
        out_shape=jax.ShapeDtypeStruct((rows, n), jnp.float32),
        grid=(steps,),
        in_specs=[
            pl.BlockSpec((tb, d), lambda i: (i, 0)),
            pl.BlockSpec((1, d), lambda i: (0, 0)),
            pl.BlockSpec((1, d), lambda i: (0, 0)),
            pl.BlockSpec((d, n), lambda i: (0, 0)),
            pl.BlockSpec((1, n), lambda i: (0, 0)),
        ],
        out_specs=pl.BlockSpec((tb, n), lambda i: (i, 0)),
        compiler_params=_cparams("parallel"),
    )(x, gamma.reshape(1, d), beta.reshape(1, d), w, bias.reshape(1, n))


# ---------------------------------------------------------------------------
# FAVOR+ (ReLU-kernel) non-causal linear attention, heads looped in-kernel,
# fused output projection + reversible residual.  One grid step per batch.
# ---------------------------------------------------------------------------
def _attn_kernel(heads, scale, qkv_ref, x1_ref, proj_ref, wo_ref, bo_ref, o_ref):
    d = x1_ref.shape[-1]
    dh = d // heads
    seq = qkv_ref.shape[0]
    ones = jnp.ones((seq, 1), jnp.float32)
    head_outs = []
    for h in range(heads):
        q = qkv_ref[:, h * dh:(h + 1) * dh].astype(jnp.float32) * scale
        k = qkv_ref[:, d + h * dh:d + (h + 1) * dh].astype(jnp.float32) * scale
        v = qkv_ref[:, 2 * d + h * dh:2 * d + (h + 1) * dh].astype(jnp.float32)
        qp = jnp.maximum(jnp.dot(q.astype(jnp.bfloat16), proj_ref[...],
                                 preferred_element_type=jnp.float32), 0.0) + _KERNEL_EPS
        kp = jnp.maximum(jnp.dot(k.astype(jnp.bfloat16), proj_ref[...],
                                 preferred_element_type=jnp.float32), 0.0) + _KERNEL_EPS
        # fold the denominator into the numerator GEMM via an appended ones column
        v_aug = jnp.concatenate([v, ones], axis=-1)                     # (S, dh+1)
        ctx = lax.dot_general(kp.astype(jnp.bfloat16), v_aug.astype(jnp.bfloat16),
                              (((0,), (0,)), ((), ())),
                              preferred_element_type=jnp.float32)       # (m, dh+1)
        out_aug = jnp.dot(qp.astype(jnp.bfloat16), ctx.astype(jnp.bfloat16),
                          preferred_element_type=jnp.float32)           # (S, dh+1)
        den = out_aug[:, dh:dh + 1]
        head_outs.append(out_aug[:, :dh] * pl.reciprocal(den, approx=True))
    attn = jnp.concatenate(head_outs, axis=-1)                          # (S, D) lane-dense
    y1 = jnp.dot(attn.astype(jnp.bfloat16), wo_ref[...],
                 preferred_element_type=jnp.float32) + bo_ref[...]
    o_ref[...] = (y1 + x1_ref[...].astype(jnp.float32)).astype(o_ref.dtype)


def pl_attention(qkv, x1, proj, w_o, b_o, *, heads):
    bsz, seq, d3 = qkv.shape
    d = d3 // 3
    dh, m = proj.shape
    # TODO(synk): for very long sequences the q-side of the linear attention
    # should additionally be row-tiled through the grid to bound VMEM.
    return pl.pallas_call(
        functools.partial(_attn_kernel, heads, float(dh) ** -0.25),
        out_shape=jax.ShapeDtypeStruct((bsz, seq, d), jnp.float32),
        grid=(bsz,),
        in_specs=[
            pl.BlockSpec((None, seq, d3), lambda b: (b, 0, 0)),
            pl.BlockSpec((None, seq, d), lambda b: (b, 0, 0)),
            pl.BlockSpec((dh, m), lambda b: (0, 0)),
            pl.BlockSpec((d, d), lambda b: (0, 0)),
            pl.BlockSpec((1, d), lambda b: (0, 0)),
        ],
        out_specs=pl.BlockSpec((None, seq, d), lambda b: (b, 0, 0)),
        compiler_params=_cparams("parallel"),
    )(qkv, x1, proj, w_o, b_o.reshape(1, d))


# ---------------------------------------------------------------------------
# fused LayerNorm + GLU feed-forward (w1 -> gelu*gate -> w2) + reversible residual
# ---------------------------------------------------------------------------
def _ln_ff_glu_kernel(dff, x_ref, g_ref, b_ref, w1_ref, b1_ref, w2_ref, b2_ref,
                      r_ref, o_ref):
    x = x_ref[...].astype(jnp.float32)
    mu = jnp.mean(x, axis=-1, keepdims=True)
    var = jnp.mean(jnp.square(x - mu), axis=-1, keepdims=True)
    hn = (x - mu) * lax.rsqrt(var + _LN_EPS) * g_ref[...] + b_ref[...]
    h = jnp.dot(hn.astype(jnp.bfloat16), w1_ref[...],
                preferred_element_type=jnp.float32) + b1_ref[...]
    # GLU: gelu(first half) * second half (tanh-approx GELU, same in the reference)
    h = jax.nn.gelu(h[:, :dff], approximate=True) * h[:, dff:]
    out = jnp.dot(h.astype(jnp.bfloat16), w2_ref[...],
                  preferred_element_type=jnp.float32) + b2_ref[...]
    o_ref[...] = (out + r_ref[...].astype(jnp.float32)).astype(o_ref.dtype)


def pl_ln_ff_glu(x, gamma, beta, w1, b1, w2, b2, residual):
    rows, d = x.shape
    two_dff = w1.shape[1]
    dff = two_dff // 2
    tb, steps = _row_plan(rows)
    return pl.pallas_call(
        functools.partial(_ln_ff_glu_kernel, dff),
        out_shape=jax.ShapeDtypeStruct((rows, d), jnp.float32),
        grid=(steps,),
        in_specs=[
            pl.BlockSpec((tb, d), lambda i: (i, 0)),
            pl.BlockSpec((1, d), lambda i: (0, 0)),
            pl.BlockSpec((1, d), lambda i: (0, 0)),
            pl.BlockSpec((d, two_dff), lambda i: (0, 0)),
            pl.BlockSpec((1, two_dff), lambda i: (0, 0)),
            pl.BlockSpec((dff, d), lambda i: (0, 0)),
            pl.BlockSpec((1, d), lambda i: (0, 0)),
            pl.BlockSpec((tb, d), lambda i: (i, 0)),
        ],
        out_specs=pl.BlockSpec((tb, d), lambda i: (i, 0)),
        compiler_params=_cparams("parallel"),
    )(x, gamma.reshape(1, d), beta.reshape(1, d), w1, b1.reshape(1, two_dff),
      w2, b2.reshape(1, d), residual)


# ---------------------------------------------------------------------------
# classifier head: (y1 + y2) -> Linear -> LayerNorm -> ReLU -> Linear(1)
# ---------------------------------------------------------------------------
def _clf_kernel(y1_ref, y2_ref, w1_ref, b1_ref, g_ref, bb_ref, w2_ref, b2_ref, o_ref):
    # the reversible sequence merges its two streams with a sum (reformer convention)
    x = y1_ref[...].astype(jnp.float32) + y2_ref[...].astype(jnp.float32)
    h = jnp.dot(x.astype(jnp.bfloat16), w1_ref[...],
                preferred_element_type=jnp.float32) + b1_ref[...]
    mu = jnp.mean(h, axis=-1, keepdims=True)
    var = jnp.mean(jnp.square(h - mu), axis=-1, keepdims=True)
    h = (h - mu) * lax.rsqrt(var + _LN_EPS) * g_ref[...] + bb_ref[...]
    h = jnp.maximum(h, 0.0)
    out = jnp.dot(h.astype(jnp.bfloat16), w2_ref[...],
                  preferred_element_type=jnp.float32) + b2_ref[...]
    # TODO(synk): emitting the logits transposed (rows on lanes) would make this
    # final store lane-dense instead of a masked (tb, 1) column store.
    o_ref[...] = out.astype(o_ref.dtype)


def pl_classifier(y1, y2, w1, b1, ln_g, ln_b, w2, b2):
    rows, d = y1.shape
    dh = w1.shape[1]
    tb, steps = _row_plan(rows)
    return pl.pallas_call(
        _clf_kernel,
        out_shape=jax.ShapeDtypeStruct((rows, 1), jnp.float32),
        grid=(steps,),
        in_specs=[
            pl.BlockSpec((tb, d), lambda i: (i, 0)),
            pl.BlockSpec((tb, d), lambda i: (i, 0)),
            pl.BlockSpec((d, dh), lambda i: (0, 0)),
            pl.BlockSpec((1, dh), lambda i: (0, 0)),
            pl.BlockSpec((1, dh), lambda i: (0, 0)),
            pl.BlockSpec((1, dh), lambda i: (0, 0)),
            pl.BlockSpec((dh, 1), lambda i: (0, 0)),
            pl.BlockSpec((1, 1), lambda i: (0, 0)),
        ],
        out_specs=pl.BlockSpec((tb, 1), lambda i: (i, 0)),
        compiler_params=_cparams("parallel"),
    )(y1, y2, w1, b1.reshape(1, dh), ln_g.reshape(1, dh), ln_b.reshape(1, dh),
      w2, b2.reshape(1, 1))


# ---------------------------------------------------------------------------
# full MelPerformer forward (Pallas path)
# ---------------------------------------------------------------------------
@functools.partial(jax.jit, static_argnames=("heads",))
def mel_performer_forward(params, x, *, heads):
    """x: (B, T, n_mels) -> frame-level logits (B, seq)."""
    bsz, t, n_mels = x.shape
    d = params["proj_w"].shape[0]
    c1 = params["pw1_w"].shape[1]
    seq = min(t, params["pos"].shape[1])

    # ---- fold conv1 / BatchNorm (eval stats) into the conv weights ----
    dw1f = params["dw1_w"] * params["conv1_w"][:, None, None]              # (4,3,3)
    s1 = params["bn1_g"] * lax.rsqrt(params["bn1_v"] + _BN_EPS)
    wpw1 = params["pw1_w"] * s1[None, :]                                   # (4,c1)
    bpw1 = (params["pw1_b"] - params["bn1_m"]) * s1 + params["bn1_b"]
    w1 = jnp.einsum("cij,cd->ijd", dw1f, wpw1).reshape(9, c1)              # stage 1 fully folded
    b1 = params["dw1_b"] @ wpw1 + bpw1

    wdw2 = jnp.transpose(params["dw2_w"], (1, 2, 0)).reshape(9, c1)
    s2 = params["bn2_g"] * lax.rsqrt(params["bn2_v"] + _BN_EPS)
    wpw2 = (params["pw2_w"] * s2[None, :]).astype(jnp.bfloat16)
    bpw2 = (params["pw2_b"] - params["bn2_m"]) * s2 + params["bn2_b"]

    # ---- time-tiled, fused conv front-end + neck ----
    t_blk, n_tb, tp = _time_plan(t)
    # raw input is already (time, mel): time on sublanes, mel on lanes, halo of 2/1
    x_pad = jnp.pad(x.astype(jnp.float32), ((0, 0), (2, 2 + tp - t), (1, 1)))
    x_win = jnp.stack(
        [lax.dynamic_slice_in_dim(x_pad, j * t_blk, t_blk + 4, axis=1)
         for j in range(n_tb)], axis=1)                                    # (B,nT,tb+4,M+2)
    pos_full = jnp.zeros((tp, d), jnp.float32).at[:seq].set(params["pos"][0, :seq])

    h = pl_frontend(x_win, w1, b1, wdw2, params["dw2_b"], wpw2, bpw2,
                    params["proj_w"].astype(jnp.bfloat16), params["proj_b"],
                    params["norm_g"], params["norm_b"], pos_full,
                    n_mels=n_mels, t_blk=t_blk, t_real=t)
    h = h[:, :seq]                                                         # (B, S, D)

    rows = bsz * seq
    x1 = h.reshape(rows, d)
    x2 = x1

    # ---- reversible Performer encoder ----
    #   y1 = x1 + W_o . FAVOR(LN1(x2));   y2 = x2 + GLU-FF(LN2(y1))
    for lp in params["layers"]:
        qkv = pl_ln_linear(x2, lp["ln1_g"], lp["ln1_b"],
                           lp["w_qkv"].astype(jnp.bfloat16), lp["b_qkv"])
        y1 = pl_attention(qkv.reshape(bsz, seq, 3 * d), x1.reshape(bsz, seq, d),
                          lp["proj"].astype(jnp.bfloat16),
                          lp["w_o"].astype(jnp.bfloat16), lp["b_o"], heads=heads)
        y1 = y1.reshape(rows, d)
        y2 = pl_ln_ff_glu(y1, lp["ln2_g"], lp["ln2_b"],
                          lp["ff_w1"].astype(jnp.bfloat16), lp["ff_b1"],
                          lp["ff_w2"].astype(jnp.bfloat16), lp["ff_b2"], x2)
        x1, x2 = y1, y2

    logits = pl_classifier(x1, x2,
                           params["clf_w1"].astype(jnp.bfloat16), params["clf_b1"],
                           params["clf_ln_g"], params["clf_ln_b"],
                           params["clf_w2"].astype(jnp.bfloat16), params["clf_b2"])
    return logits.reshape(bsz, seq)


# ---------------------------------------------------------------------------
# pure-JAX (XLA) reference, NCHW like the PyTorch module — for validation.
# The transformer / classifier matmuls mirror the kernels' bf16 MXU operands
# (f32 accumulation) so the check validates layout/indexing/fusion tightly.
# ---------------------------------------------------------------------------
def _ln_ref(x, g, b):
    mu = x.mean(axis=-1, keepdims=True)
    var = jnp.mean(jnp.square(x - mu), axis=-1, keepdims=True)
    return (x - mu) * lax.rsqrt(var + _LN_EPS) * g + b


def _mm(a, b):
    return jnp.dot(a.astype(jnp.bfloat16), b.astype(jnp.bfloat16),
                   preferred_element_type=jnp.float32)


def mel_performer_reference(params, x, *, heads):
    bsz, t, _ = x.shape
    d = params["proj_w"].shape[0]
    dh = d // heads

    h = jnp.transpose(x, (0, 2, 1))[:, None].astype(jnp.float32)           # (B,1,M,T)
    h = h * params["conv1_w"][None, :, None, None]                         # 1x1 conv 1->4

    def ds_block(h, wdw, bdw, wpw, bpw, bng, bnb, bnm, bnv):
        c = h.shape[1]
        h = lax.conv_general_dilated(h, wdw[:, None], (1, 1), ((1, 1), (1, 1)),
                                     dimension_numbers=("NCHW", "OIHW", "NCHW"),
                                     feature_group_count=c)
        h = h + bdw[None, :, None, None]
        h = jnp.einsum("bcmt,cd->bdmt", h, wpw) + bpw[None, :, None, None]
        scale = bng / jnp.sqrt(bnv + _BN_EPS)
        h = (h - bnm[None, :, None, None]) * scale[None, :, None, None] + bnb[None, :, None, None]
        return jnp.maximum(h, 0.0)

    h = ds_block(h, params["dw1_w"], params["dw1_b"], params["pw1_w"], params["pw1_b"],
                 params["bn1_g"], params["bn1_b"], params["bn1_m"], params["bn1_v"])
    h = ds_block(h, params["dw2_w"], params["dw2_b"], params["pw2_w"], params["pw2_b"],
                 params["bn2_g"], params["bn2_b"], params["bn2_m"], params["bn2_v"])

    h = h.mean(axis=2)                                   # (B, D, T)
    h = jnp.transpose(h, (0, 2, 1))                      # (B, T, D)
    h = _mm(h, params["proj_w"]) + params["proj_b"]
    h = _ln_ref(h, params["norm_g"], params["norm_b"])
    seq = min(t, params["pos"].shape[1])
    h = h[:, :seq] + params["pos"][:, :seq]

    def em(spec, a, b):
        return jnp.einsum(spec, a.astype(jnp.bfloat16), b.astype(jnp.bfloat16),
                          preferred_element_type=jnp.float32)

    x1, x2 = h, h
    for lp in params["layers"]:
        a_in = _ln_ref(x2, lp["ln1_g"], lp["ln1_b"])
        qkv = _mm(a_in, lp["w_qkv"]) + lp["b_qkv"]
        q, k, v = jnp.split(qkv, 3, axis=-1)
        split = lambda z: z.reshape(bsz, seq, heads, dh).transpose(0, 2, 1, 3)
        qh, kh, vh = split(q), split(k), split(v)
        scale = float(dh) ** -0.25
        qp = jnp.maximum(em("bhtd,dm->bhtm", qh * scale, lp["proj"]), 0.0) + _KERNEL_EPS
        kp = jnp.maximum(em("bhtd,dm->bhtm", kh * scale, lp["proj"]), 0.0) + _KERNEL_EPS
        ctx = em("bhtm,bhtd->bhmd", kp, vh)
        num = em("bhtm,bhmd->bhtd", qp, ctx)
        den = em("bhtm,bhm->bht", qp, kp.sum(axis=2))[..., None]
        attn = (num / den).transpose(0, 2, 1, 3).reshape(bsz, seq, d)
        y1 = x1 + (_mm(attn, lp["w_o"]) + lp["b_o"])
        f_in = _ln_ref(y1, lp["ln2_g"], lp["ln2_b"])
        ff = _mm(f_in, lp["ff_w1"]) + lp["ff_b1"]
        gate_in, gate = jnp.split(ff, 2, axis=-1)
        ff = jax.nn.gelu(gate_in, approximate=True) * gate
        y2 = x2 + (_mm(ff, lp["ff_w2"]) + lp["ff_b2"])
        x1, x2 = y1, y2

    h = x1 + x2
    c = _mm(h, params["clf_w1"]) + params["clf_b1"]
    c = _ln_ref(c, params["clf_ln_g"], params["clf_ln_b"])
    c = jnp.maximum(c, 0.0)
    c = _mm(c, params["clf_w2"]) + params["clf_b2"]
    return c[..., 0]


# ---------------------------------------------------------------------------
# parameter construction (deterministic, mirrors the PyTorch module's shapes)
# ---------------------------------------------------------------------------
def init_params(key, *, n_mels, dim, layers, heads, nb_features, max_seq_len):
    del n_mels  # the conv front-end is shape-agnostic in the mel axis
    c1 = dim // 2
    dh = dim // heads
    keys = iter(jax.random.split(key, 32 + 8 * layers))
    nk = lambda: next(keys)
    normal = lambda shape, s: s * jax.random.normal(nk(), shape, jnp.float32)

    params = {
        "conv1_w": normal((4,), 0.5),
        "dw1_w": normal((4, 3, 3), 0.3),
        "dw1_b": normal((4,), 0.1),
        "pw1_w": normal((4, c1), 0.5),
        "pw1_b": normal((c1,), 0.1),
        "bn1_g": 1.0 + normal((c1,), 0.1),
        "bn1_b": normal((c1,), 0.1),
        "bn1_m": normal((c1,), 0.1),
        "bn1_v": jax.random.uniform(nk(), (c1,), jnp.float32, 0.5, 1.5),
        "dw2_w": normal((c1, 3, 3), 0.3),
        "dw2_b": normal((c1,), 0.1),
        "pw2_w": normal((c1, dim), 1.0 / np.sqrt(c1)),
        "pw2_b": normal((dim,), 0.1),
        "bn2_g": 1.0 + normal((dim,), 0.1),
        "bn2_b": normal((dim,), 0.1),
        "bn2_m": normal((dim,), 0.1),
        "bn2_v": jax.random.uniform(nk(), (dim,), jnp.float32, 0.5, 1.5),
        "proj_w": normal((dim, dim), 1.0 / np.sqrt(dim)),
        "proj_b": normal((dim,), 0.02),
        "norm_g": jnp.ones((dim,), jnp.float32),
        "norm_b": jnp.zeros((dim,), jnp.float32),
        "pos": normal((1, max_seq_len, dim), 0.02),
        "clf_w1": normal((dim, dim // 2), 1.0 / np.sqrt(dim)),
        "clf_b1": jnp.zeros((dim // 2,), jnp.float32),
        "clf_ln_g": jnp.ones((dim // 2,), jnp.float32),
        "clf_ln_b": jnp.zeros((dim // 2,), jnp.float32),
        "clf_w2": normal((dim // 2, 1), 1.0 / np.sqrt(dim // 2)),
        "clf_b2": jnp.zeros((1,), jnp.float32),
        "layers": [],
    }
    for _ in range(layers):
        # TODO(synk): performer_pytorch redraws a Gaussian-orthogonal random-feature
        # matrix every feature_redraw_interval steps; a fixed Gaussian projection
        # gives the same FAVOR+ forward math (not bit-identical RNG).
        params["layers"].append({
            "ln1_g": jnp.ones((dim,), jnp.float32),
            "ln1_b": jnp.zeros((dim,), jnp.float32),
            "w_qkv": normal((dim, 3 * dim), 1.0 / np.sqrt(dim)),
            "b_qkv": normal((3 * dim,), 0.02),
            "proj": normal((dh, nb_features), 1.0),
            "w_o": normal((dim, dim), 1.0 / np.sqrt(dim)),
            "b_o": jnp.zeros((dim,), jnp.float32),
            "ln2_g": jnp.ones((dim,), jnp.float32),
            "ln2_b": jnp.zeros((dim,), jnp.float32),
            "ff_w1": normal((dim, 8 * dim), 1.0 / np.sqrt(dim)),
            "ff_b1": normal((8 * dim,), 0.02),
            "ff_w2": normal((4 * dim, dim), 1.0 / np.sqrt(4 * dim)),
            "ff_b2": jnp.zeros((dim,), jnp.float32),
        })
    return params


if __name__ == "__main__":
    B, T, N_MELS = 2, 8, 16
    DIM, LAYERS, HEADS = 32, 2, 4
    NB_FEATURES, MAX_SEQ_LEN = 32, 16

    key = jax.random.PRNGKey(0)
    k_params, k_x = jax.random.split(key)
    params = init_params(k_params, n_mels=N_MELS, dim=DIM, layers=LAYERS,
                         heads=HEADS, nb_features=NB_FEATURES,
                         max_seq_len=MAX_SEQ_LEN)
    x = jax.random.normal(k_x, (B, T, N_MELS), jnp.float32)

    out = mel_performer_forward(params, x, heads=HEADS)
    out = jax.block_until_ready(out)
    assert out.shape == (B, T), out.shape

    ref = jax.block_until_ready(mel_performer_reference(params, x, heads=HEADS))
    np.testing.assert_allclose(np.asarray(out), np.asarray(ref),
                               rtol=2.5e-2, atol=2.5e-2)
    print("KERNEL_OK")
</pallas_src>

<mosaic_0001>
module attributes {stable_mosaic.version = 11 : i64} {
  func.func @_ln_linear_kernel(%arg0: i32, %arg1: memref<8x32xf32, #tpu.memory_space<vmem>>, %arg2: memref<1x32xf32, #tpu.memory_space<vmem>>, %arg3: memref<1x32xf32, #tpu.memory_space<vmem>>, %arg4: memref<32x96xbf16, #tpu.memory_space<vmem>>, %arg5: memref<1x96xf32, #tpu.memory_space<vmem>>, %arg6: memref<8x96xf32, #tpu.memory_space<vmem>>) attributes {dimension_semantics = [#tpu.dimension_semantics<parallel>], iteration_bounds = array<i64: 2>, scalar_prefetch = 0 : i64, scratch_operands = 0 : i64, tpu.core_type = #tpu.core_type<tc>, window_params = [{transform_indices = @transform_0, window_bounds = array<i64: 8, 32>}, {pipeline_mode = #tpu.pipeline_mode<synchronous>, transform_indices = @transform_1, window_bounds = array<i64: 1, 32>}, {pipeline_mode = #tpu.pipeline_mode<synchronous>, transform_indices = @transform_2, window_bounds = array<i64: 1, 32>}, {pipeline_mode = #tpu.pipeline_mode<synchronous>, transform_indices = @transform_3, window_bounds = array<i64: 32, 96>}, {pipeline_mode = #tpu.pipeline_mode<synchronous>, transform_indices = @transform_4, window_bounds = array<i64: 1, 96>}, {transform_indices = @transform_5, window_bounds = array<i64: 8, 96>}]} {
    %c0 = arith.constant 0 : index
    %c0_0 = arith.constant 0 : index
    %0 = vector.load %arg1[%c0, %c0_0] : memref<8x32xf32, #tpu.memory_space<vmem>>, vector<8x32xf32>
    %cst = arith.constant dense<0.000000e+00> : vector<8xf32>
    %1 = vector.multi_reduction <add>, %0, %cst [1] : vector<8x32xf32> to vector<8xf32>
    %2 = vector.shape_cast %1 : vector<8xf32> to vector<8x1xf32>
    %cst_1 = arith.constant 3.200000e+01 : f32
    %3 = vector.broadcast %cst_1 : f32 to vector<8x1xf32>
    %4 = arith.divf %2, %3 : vector<8x1xf32>
    %5 = vector.broadcast %4 : vector<8x1xf32> to vector<8x32xf32>
    %6 = arith.subf %0, %5 : vector<8x32xf32>
    %7 = arith.mulf %6, %6 : vector<8x32xf32>
    %cst_2 = arith.constant dense<0.000000e+00> : vector<8xf32>
    %8 = vector.multi_reduction <add>, %7, %cst_2 [1] : vector<8x32xf32> to vector<8xf32>
    %9 = vector.shape_cast %8 : vector<8xf32> to vector<8x1xf32>
    %cst_3 = arith.constant 3.200000e+01 : f32
    %10 = vector.broadcast %cst_3 : f32 to vector<8x1xf32>
    %11 = arith.divf %9, %10 : vector<8x1xf32>
    %12 = vector.broadcast %4 : vector<8x1xf32> to vector<8x32xf32>
    %13 = arith.subf %0, %12 : vector<8x32xf32>
    %cst_4 = arith.constant 9.99999974E-6 : f32
    %14 = vector.broadcast %cst_4 : f32 to vector<8x1xf32>
    %15 = arith.addf %11, %14 : vector<8x1xf32>
    %16 = math.rsqrt %15 : vector<8x1xf32>
    %17 = vector.broadcast %16 : vector<8x1xf32> to vector<8x32xf32>
    %18 = arith.mulf %13, %17 : vector<8x32xf32>
    %c0_5 = arith.constant 0 : index
    %c0_6 = arith.constant 0 : index
    %19 = vector.load %arg2[%c0_5, %c0_6] : memref<1x32xf32, #tpu.memory_space<vmem>>, vector<1x32xf32>
    %20 = vector.broadcast %19 : vector<1x32xf32> to vector<8x32xf32>
    %21 = arith.mulf %18, %20 : vector<8x32xf32>
    %c0_7 = arith.constant 0 : index
    %c0_8 = arith.constant 0 : index
    %22 = vector.load %arg3[%c0_7, %c0_8] : memref<1x32xf32, #tpu.memory_space<vmem>>, vector<1x32xf32>
    %23 = vector.broadcast %22 : vector<1x32xf32> to vector<8x32xf32>
    %24 = arith.addf %21, %23 : vector<8x32xf32>
    %25 = arith.truncf %24 : vector<8x32xf32> to vector<8x32xbf16>
    %c0_9 = arith.constant 0 : index
    %c0_10 = arith.constant 0 : index
    %26 = vector.load %arg4[%c0_9, %c0_10] : memref<32x96xbf16, #tpu.memory_space<vmem>>, vector<32x96xbf16>
    %cst_11 = arith.constant dense<0.000000e+00> : vector<8x96xf32>
    %27 = tpu.matmul %25, %26, %cst_11 {dimension_numbers = #tpu.dot_dimension_numbers<[1], [0], [0], [1], [0, 0, 1, 1], [], []>} : vector<8x32xbf16>, vector<32x96xbf16>, vector<8x96xf32> -> vector<8x96xf32>
    %c0_12 = arith.constant 0 : index
    %c0_13 = arith.constant 0 : index
    %28 = vector.load %arg5[%c0_12, %c0_13] : memref<1x96xf32, #tpu.memory_space<vmem>>, vector<1x96xf32>
    %29 = vector.broadcast %28 : vector<1x96xf32> to vector<8x96xf32>
    %30 = arith.addf %27, %29 : vector<8x96xf32>
    %c0_14 = arith.constant 0 : index
    %c0_15 = arith.constant 0 : index
    %31 = vector.load %arg6[%c0_14, %c0_15] : memref<8x96xf32, #tpu.memory_space<vmem>>, vector<8x96xf32>
    tpu.vector_store %arg6[%c0_14, %c0_15], %30 {strides = array<i32>} : memref<8x96xf32, #tpu.memory_space<vmem>>, vector<8x96xf32>,
    return
  }
  func.func @transform_0(%arg0: i32) -> (i32, i32) {
    %c0_i32 = arith.constant 0 : i32
    %c0_i32_0 = arith.constant 0 : i32
    return %arg0, %c0_i32 : i32, i32
  }
  func.func @transform_1(%arg0: i32) -> (i32, i32) {
    %c0_i32 = arith.constant 0 : i32
    %c0_i32_0 = arith.constant 0 : i32
    %c0_i32_1 = arith.constant 0 : i32
    return %c0_i32, %c0_i32_0 : i32, i32
  }
  func.func @transform_2(%arg0: i32) -> (i32, i32) {
    %c0_i32 = arith.constant 0 : i32
    %c0_i32_0 = arith.constant 0 : i32
    %c0_i32_1 = arith.constant 0 : i32
    return %c0_i32, %c0_i32_0 : i32, i32
  }
  func.func @transform_3(%arg0: i32) -> (i32, i32) {
    %c0_i32 = arith.constant 0 : i32
    %c0_i32_0 = arith.constant 0 : i32
    %c0_i32_1 = arith.constant 0 : i32
    return %c0_i32, %c0_i32_0 : i32, i32
  }
  func.func @transform_4(%arg0: i32) -> (i32, i32) {
    %c0_i32 = arith.constant 0 : i32
    %c0_i32_0 = arith.constant 0 : i32
    %c0_i32_1 = arith.constant 0 : i32
    return %c0_i32, %c0_i32_0 : i32, i32
  }
  func.func @transform_5(%arg0: i32) -> (i32, i32) {
    %c0_i32 = arith.constant 0 : i32
    %c0_i32_0 = arith.constant 0 : i32
    return %arg0, %c0_i32 : i32, i32
  }
}

module attributes {stable_mosaic.version = 11 : i64} {
  func.func @_attn_kernel(%arg0: i32, %arg1: memref<1x8x96xf32, #tpu.memory_space<vmem>>, %arg2: memref<1x8x32xf32, #tpu.memory_space<vmem>>, %arg3: memref<8x32xbf16, #tpu.memory_space<vmem>>, %arg4: memref<32x32xbf16, #tpu.memory_space<vmem>>, %arg5: memref<1x32xf32, #tpu.memory_space<vmem>>, %arg6: memref<1x8x32xf32, #tpu.memory_space<vmem>>) attributes {dimension_semantics = [#tpu.dimension_semantics<parallel>], iteration_bounds = array<i64: 2>, scalar_prefetch = 0 : i64, scratch_operands = 0 : i64, tpu.core_type = #tpu.core_type<tc>, window_params = [{transform_indices = @transform_0, window_bounds = array<i64: 1, 8, 96>}, {transform_indices = @transform_1, window_bounds = array<i64: 1, 8, 32>}, {pipeline_mode = #tpu.pipeline_mode<synchronous>, transform_indices = @transform_2, window_bounds = array<i64: 8, 32>}, {pipeline_mode = #tpu.pipeline_mode<synchronous>, transform_indices = @transform_3, window_bounds = array<i64: 32, 32>}, {pipeline_mode = #tpu.pipeline_mode<synchronous>, transform_indices = @transform_4, window_bounds = array<i64: 1, 32>}, {transform_indices = @transform_5, window_bounds = array<i64: 1, 8, 32>}]} {
    %cst = arith.constant 1.000000e+00 : f32
    %0 = vector.broadcast %cst : f32 to vector<8x1xf32>
    %c0 = arith.constant 0 : index
    %c0_0 = arith.constant 0 : index
    %c0_1 = arith.constant 0 : index
    %1 = vector.load %arg1[%c0, %c0_0, %c0_1] : memref<1x8x96xf32, #tpu.memory_space<vmem>>, vector<1x8x8xf32>
    %2 = vector.shape_cast %1 : vector<1x8x8xf32> to vector<8x8xf32>
    %cst_2 = arith.constant 0.594603539 : f32
    %3 = vector.broadcast %cst_2 : f32 to vector<8x8xf32>
    %4 = arith.mulf %2, %3 : vector<8x8xf32>
    %c0_3 = arith.constant 0 : index
    %c0_4 = arith.constant 0 : index
    %c32 = arith.constant 32 : index
    %5 = vector.load %arg1[%c0_3, %c0_4, %c32] : memref<1x8x96xf32, #tpu.memory_space<vmem>>, vector<1x8x8xf32>
    %6 = vector.shape_cast %5 : vector<1x8x8xf32> to vector<8x8xf32>
    %cst_5 = arith.constant 0.594603539 : f32
    %7 = vector.broadcast %cst_5 : f32 to vector<8x8xf32>
    %8 = arith.mulf %6, %7 : vector<8x8xf32>
    %c0_6 = arith.constant 0 : index
    %c0_7 = arith.constant 0 : index
    %c64 = arith.constant 64 : index
    %9 = vector.load %arg1[%c0_6, %c0_7, %c64] : memref<1x8x96xf32, #tpu.memory_space<vmem>>, vector<1x8x8xf32>
    %10 = vector.shape_cast %9 : vector<1x8x8xf32> to vector<8x8xf32>
    %11 = arith.truncf %4 : vector<8x8xf32> to vector<8x8xbf16>
    %c0_8 = arith.constant 0 : index
    %c0_9 = arith.constant 0 : index
    %12 = vector.load %arg3[%c0_8, %c0_9] : memref<8x32xbf16, #tpu.memory_space<vmem>>, vector<8x32xbf16>
    %cst_10 = arith.constant dense<0.000000e+00> : vector<8x32xf32>
    %13 = tpu.matmul %11, %12, %cst_10 {dimension_numbers = #tpu.dot_dimension_numbers<[1], [0], [0], [1], [0, 0, 1, 1], [], []>} : vector<8x8xbf16>, vector<8x32xbf16>, vector<8x32xf32> -> vector<8x32xf32>
    %cst_11 = arith.constant 0.000000e+00 : f32
    %14 = vector.broadcast %cst_11 : f32 to vector<8x32xf32>
    %15 = arith.maximumf %13, %14 : vector<8x32xf32>
    %cst_12 = arith.constant 1.000000e-03 : f32
    %16 = vector.broadcast %cst_12 : f32 to vector<8x32xf32>
    %17 = arith.addf %15, %16 : vector<8x32xf32>
    %18 = arith.truncf %8 : vector<8x8xf32> to vector<8x8xbf16>
    %c0_13 = arith.constant 0 : index
    %c0_14 = arith.constant 0 : index
    %19 = vector.load %arg3[%c0_13, %c0_14] : memref<8x32xbf16, #tpu.memory_space<vmem>>, vector<8x32xbf16>
    %cst_15 = arith.constant dense<0.000000e+00> : vector<8x32xf32>
    %20 = tpu.matmul %18, %19, %cst_15 {dimension_numbers = #tpu.dot_dimension_numbers<[1], [0], [0], [1], [0, 0, 1, 1], [], []>} : vector<8x8xbf16>, vector<8x32xbf16>, vector<8x32xf32> -> vector<8x32xf32>
    %cst_16 = arith.constant 0.000000e+00 : f32
    %21 = vector.broadcast %cst_16 : f32 to vector<8x32xf32>
    %22 = arith.maximumf %20, %21 : vector<8x32xf32>
    %cst_17 = arith.constant 1.000000e-03 : f32
    %23 = vector.broadcast %cst_17 : f32 to vector<8x32xf32>
    %24 = arith.addf %22, %23 : vector<8x32xf32>
    %25 = tpu.concatenate %10, %0 in 1 : vector<8x8xf32>, vector<8x1xf32> -> vector<8x9xf32>
    %26 = arith.truncf %24 : vector<8x32xf32> to vector<8x32xbf16>
    %27 = arith.truncf %25 : vector<8x9xf32> to vector<8x9xbf16>
    %cst_18 = arith.constant dense<0.000000e+00> : vector<32x9xf32>
    %28 = tpu.matmul %26, %27, %cst_18 {dimension_numbers = #tpu.dot_dimension_numbers<[0], [0], [1], [1], [0, 1, 1, 1], [], []>} : vector<8x32xbf16>, vector<8x9xbf16>, vector<32x9xf32> -> vector<32x9xf32>
    %29 = arith.truncf %17 : vector<8x32xf32> to vector<8x32xbf16>
    %30 = arith.truncf %28 : vector<32x9xf32> to vector<32x9xbf16>
    %cst_19 = arith.constant dense<0.000000e+00> : vector<8x9xf32>
    %31 = tpu.matmul %29, %30, %cst_19 {dimension_numbers = #tpu.dot_dimension_numbers<[1], [0], [0], [1], [0, 0, 1, 1], [], []>} : vector<8x32xbf16>, vector<32x9xbf16>, vector<8x9xf32> -> vector<8x9xf32>
    %32 = vector.extract_strided_slice %31 {offsets = [0, 8], sizes = [8, 1], strides = [1, 1]} : vector<8x9xf32> to vector<8x1xf32>
    %33 = vector.extract_strided_slice %31 {offsets = [0, 0], sizes = [8, 8], strides = [1, 1]} : vector<8x9xf32> to vector<8x8xf32>
    %34 = tpu.reciprocal %32 {approx = true} : vector<8x1xf32> -> vector<8x1xf32>
    %35 = vector.broadcast %34 : vector<8x1xf32> to vector<8x8xf32>
    %36 = arith.mulf %33, %35 : vector<8x8xf32>
    %c0_20 = arith.constant 0 : index
    %c0_21 = arith.constant 0 : index
    %c8 = arith.constant 8 : index
    %37 = vector.load %arg1[%c0_20, %c0_21, %c8] : memref<1x8x96xf32, #tpu.memory_space<vmem>>, vector<1x8x8xf32>
    %38 = vector.shape_cast %37 : vector<1x8x8xf32> to vector<8x8xf32>
    %cst_22 = arith.constant 0.594603539 : f32
    %39 = vector.broadcast %cst_22 : f32 to vector<8x8xf32>
    %40 = arith.mulf %38, %39 : vector<8x8xf32>
    %c0_23 = arith.constant 0 : index
    %c0_24 = arith.constant 0 : index
    %c40 = arith.constant 40 : index
    %41 = vector.load %arg1[%c0_23, %c0_24, %c40] : memref<1x8x96xf32, #tpu.memory_space<vmem>>, vector<1x8x8xf32>
    %42 = vector.shape_cast %41 : vector<1x8x8xf32> to vector<8x8xf32>
    %cst_25 = arith.constant 0.594603539 : f32
    %43 = vector.broadcast %cst_25 : f32 to vector<8x8xf32>
    %44 = arith.mulf %42, %43 : vector<8x8xf32>
    %c0_26 = arith.constant 0 : index
    %c0_27 = arith.constant 0 : index
    %c72 = arith.constant 72 : index
    %45 = vector.load %arg1[%c0_26, %c0_27, %c72] : memref<1x8x96xf32, #tpu.memory_space<vmem>>, vector<1x8x8xf32>
    %46 = vector.shape_cast %45 : vector<1x8x8xf32> to vector<8x8xf32>
    %47 = arith.truncf %40 : vector<8x8xf32> to vector<8x8xbf16>
    %c0_28 = arith.constant 0 : index
    %c0_29 = arith.constant 0 : index
    %48 = vector.load %arg3[%c0_28, %c0_29] : memref<8x32xbf16, #tpu.memory_space<vmem>>, vector<8x32xbf16>
    %cst_30 = arith.constant dense<0.000000e+00> : vector<8x32xf32>
    %49 = tpu.matmul %47, %48, %cst_30 {dimension_numbers = #tpu.dot_dimension_numbers<[1], [0], [0], [1], [0, 0, 1, 1], [], []>} : vector<8x8xbf16>, vector<8x32xbf16>, vector<8x32xf32> -> vector<8x32xf32>
    %cst_31 = arith.constant 0.000000e+00 : f32
    %50 = vector.broadcast %cst_31 : f32 to vector<8x32xf32>
    %51 = arith.maximumf %49, %50 : vector<8x32xf32>
    %cst_32 = arith.constant 1.000000e-03 : f32
    %52 = vector.broadcast %cst_32 : f32 to vector<8x32xf32>
    %53 = arith.addf %51, %52 : vector<8x32xf32>
    %54 = arith.truncf %44 : vector<8x8xf32> to vector<8x8xbf16>
    %c0_33 = arith.constant 0 : index
    %c0_34 = arith.constant 0 : index
    %55 = vector.load %arg3[%c0_33, %c0_34] : memref<8x32xbf16, #tpu.memory_space<vmem>>, vector<8x32xbf16>
    %cst_35 = arith.constant dense<0.000000e+00> : vector<8x32xf32>
    %56 = tpu.matmul %54, %55, %cst_35 {dimension_numbers = #tpu.dot_dimension_numbers<[1], [0], [0], [1], [0, 0, 1, 1], [], []>} : vector<8x8xbf16>, vector<8x32xbf16>, vector<8x32xf32> -> vector<8x32xf32>
    %cst_36 = arith.constant 0.000000e+00 : f32
    %57 = vector.broadcast %cst_36 : f32 to vector<8x32xf32>
    %58 = arith.maximumf %56, %57 : vector<8x32xf32>
    %cst_37 = arith.constant 1.000000e-03 : f32
    %59 = vector.broadcast %cst_37 : f32 to vector<8x32xf32>
    %60 = arith.addf %58, %59 : vector<8x32xf32>
    %61 = tpu.concatenate %46, %0 in 1 : vector<8x8xf32>, vector<8x1xf32> -> vector<8x9xf32>
    %62 = arith.truncf %60 : vector<8x32xf32> to vector<8x32xbf16>
    %63 = arith.truncf %61 : vector<8x9xf32> to vector<8x9xbf16>
    %cst_38 = arith.constant dense<0.000000e+00> : vector<32x9xf32>
    %64 = tpu.matmul %62, %63, %cst_38 {dimension_numbers = #tpu.dot_dimension_numbers<[0], [0], [1], [1], [0, 1, 1, 1], [], []>} : vector<8x32xbf16>, vector<8x9xbf16>, vector<32x9xf32> -> vector<32x9xf32>
    %65 = arith.truncf %53 : vector<8x32xf32> to vector<8x32xbf16>
    %66 = arith.truncf %64 : vector<32x9xf32> to vector<32x9xbf16>
    %cst_39 = arith.constant dense<0.000000e+00> : vector<8x9xf32>
    %67 = tpu.matmul %65, %66, %cst_39 {dimension_numbers = #tpu.dot_dimension_numbers<[1], [0], [0], [1], [0, 0, 1, 1], [], []>} : vector<8x32xbf16>, vector<32x9xbf16>, vector<8x9xf32> -> vector<8x9xf32>
    %68 = vector.extract_strided_slice %67 {offsets = [0, 8], sizes = [8, 1], strides = [1, 1]} : vector<8x9xf32> to vector<8x1xf32>
    %69 = vector.extract_strided_slice %67 {offsets = [0, 0], sizes = [8, 8], strides = [1, 1]} : vector<8x9xf32> to vector<8x8xf32>
    %70 = tpu.reciprocal %68 {approx = true} : vector<8x1xf32> -> vector<8x1xf32>
    %71 = vector.broadcast %70 : vector<8x1xf32> to vector<8x8xf32>
    %72 = arith.mulf %69, %71 : vector<8x8xf32>
    %c0_40 = arith.constant 0 : index
    %c0_41 = arith.constant 0 : index
    %c16 = arith.constant 16 : index
    %73 = vector.load %arg1[%c0_40, %c0_41, %c16] : memref<1x8x96xf32, #tpu.memory_space<vmem>>, vector<1x8x8xf32>
    %74 = vector.shape_cast %73 : vector<1x8x8xf32> to vector<8x8xf32>
    %cst_42 = arith.constant 0.594603539 : f32
    %75 = vector.broadcast %cst_42 : f32 to vector<8x8xf32>
    %76 = arith.mulf %74, %75 : vector<8x8xf32>
    %c0_43 = arith.constant 0 : index
    %c0_44 = arith.constant 0 : index
    %c48 = arith.constant 48 : index
    %77 = vector.load %arg1[%c0_43, %c0_44, %c48] : memref<1x8x96xf32, #tpu.memory_space<vmem>>, vector<1x8x8xf32>
    %78 = vector.shape_cast %77 : vector<1x8x8xf32> to vector<8x8xf32>
    %cst_45 = arith.constant 0.594603539 : f32
    %79 = vector.broadcast %cst_45 : f32 to vector<8x8xf32>
    %80 = arith.mulf %78, %79 : vector<8x8xf32>
    %c0_46 = arith.constant 0 : index
    %c0_47 = arith.constant 0 : index
    %c80 = arith.constant 80 : index
    %81 = vector.load %arg1[%c0_46, %c0_47, %c80] : memref<1x8x96xf32, #tpu.memory_space<vmem>>, vector<1x8x8xf32>
    %82 = vector.shape_cast %81 : vector<1x8x8xf32> to vector<8x8xf32>
    %83 = arith.truncf %76 : vector<8x8xf32> to vector<8x8xbf16>
    %c0_48 = arith.constant 0 : index
    %c0_49 = arith.constant 0 : index
    %84 = vector.load %arg3[%c0_48, %c0_49] : memref<8x32xbf16, #tpu.memory_space<vmem>>, vector<8x32xbf16>
    %cst_50 = arith.constant dense<0.000000e+00> : vector<8x32xf32>
    %85 = tpu.matmul %83, %84, %cst_50 {dimension_numbers = #tpu.dot_dimension_numbers<[1], [0], [0], [1], [0, 0, 1, 1], [], []>} : vector<8x8xbf16>, vector<8x32xbf16>, vector<8x32xf32> -> vector<8x32xf32>
    %cst_51 = arith.constant 0.000000e+00 : f32
    %86 = vector.broadcast %cst_51 : f32 to vector<8x32xf32>
    %87 = arith.maximumf %85, %86 : vector<8x32xf32>
    %cst_52 = arith.constant 1.000000e-03 : f32
    %88 = vector.broadcast %cst_52 : f32 to vector<8x32xf32>
    %89 = arith.addf %87, %88 : vector<8x32xf32>
    %90 = arith.truncf %80 : vector<8x8xf32> to vector<8x8xbf16>
    %c0_53 = arith.constant 0 : index
    %c0_54 = arith.constant 0 : index
    %91 = vector.load %arg3[%c0_53, %c0_54] : memref<8x32xbf16, #tpu.memory_space<vmem>>, vector<8x32xbf16>
    %cst_55 = arith.constant dense<0.000000e+00> : vector<8x32xf32>
    %92 = tpu.matmul %90, %91, %cst_55 {dimension_numbers = #tpu.dot_dimension_numbers<[1], [0], [0], [1], [0, 0, 1, 1], [], []>} : vector<8x8xbf16>, vector<8x32xbf16>, vector<8x32xf32> -> vector<8x32xf32>
    %cst_56 = arith.constant 0.000000e+00 : f32
    %93 = vector.broadcast %cst_56 : f32 to vector<8x32xf32>
    %94 = arith.maximumf %92, %93 : vector<8x32xf32>
    %cst_57 = arith.constant 1.000000e-03 : f32
    %95 = vector.broadcast %cst_57 : f32 to vector<8x32xf32>
    %96 = arith.addf %94, %95 : vector<8x32xf32>
    %97 = tpu.concatenate %82, %0 in 1 : vector<8x8xf32>, vector<8x1xf32> -> vector<8x9xf32>
    %98 = arith.truncf %96 : vector<8x32xf32> to vector<8x32xbf16>
    %99 = arith.truncf %97 : vector<8x9xf32> to vector<8x9xbf16>
    %cst_58 = arith.constant dense<0.000000e+00> : vector<32x9xf32>
    %100 = tpu.matmul %98, %99, %cst_58 {dimension_numbers = #tpu.dot_dimension_numbers<[0], [0], [1], [1], [0, 1, 1, 1], [], []>} : vector<8x32xbf16>, vector<8x9xbf16>, vector<32x9xf32> -> vector<32x9xf32>
    %101 = arith.truncf %89 : vector<8x32xf32> to vector<8x32xbf16>
    %102 = arith.truncf %100 : vector<32x9xf32> to vector<32x9xbf16>
    %cst_59 = arith.constant dense<0.000000e+00> : vector<8x9xf32>
    %103 = tpu.matmul %101, %102, %cst_59 {dimension_numbers = #tpu.dot_dimension_numbers<[1], [0], [0], [1], [0, 0, 1, 1], [], []>} : vector<8x32xbf16>, vector<32x9xbf16>, vector<8x9xf32> -> vector<8x9xf32>
    %104 = vector.extract_strided_slice %103 {offsets = [0, 8], sizes = [8, 1], strides = [1, 1]} : vector<8x9xf32> to vector<8x1xf32>
    %105 = vector.extract_strided_slice %103 {offsets = [0, 0], sizes = [8, 8], strides = [1, 1]} : vector<8x9xf32> to vector<8x8xf32>
    %106 = tpu.reciprocal %104 {approx = true} : vector<8x1xf32> -> vector<8x1xf32>
    %107 = vector.broadcast %106 : vector<8x1xf32> to vector<8x8xf32>
    %108 = arith.mulf %105, %107 : vector<8x8xf32>
    %c0_60 = arith.constant 0 : index
    %c0_61 = arith.constant 0 : index
    %c24 = arith.constant 24 : index
    %109 = vector.load %arg1[%c0_60, %c0_61, %c24] : memref<1x8x96xf32, #tpu.memory_space<vmem>>, vector<1x8x8xf32>
    %110 = vector.shape_cast %109 : vector<1x8x8xf32> to vector<8x8xf32>
    %cst_62 = arith.constant 0.594603539 : f32
    %111 = vector.broadcast %cst_62 : f32 to vector<8x8xf32>
    %112 = arith.mulf %110, %111 : vector<8x8xf32>
    %c0_63 = arith.constant 0 : index
    %c0_64 = arith.constant 0 : index
    %c56 = arith.constant 56 : index
    %113 = vector.load %arg1[%c0_63, %c0_64, %c56] : memref<1x8x96xf32, #tpu.memory_space<vmem>>, vector<1x8x8xf32>
    %114 = vector.shape_cast %113 : vector<1x8x8xf32> to vector<8x8xf32>
    %cst_65 = arith.constant 0.594603539 : f32
    %115 = vector.broadcast %cst_65 : f32 to vector<8x8xf32>
    %116 = arith.mulf %114, %115 : vector<8x8xf32>
    %c0_66 = arith.constant 0 : index
    %c0_67 = arith.constant 0 : index
    %c88 = arith.constant 88 : index
    %117 = vector.load %arg1[%c0_66, %c0_67, %c88] : memref<1x8x96xf32, #tpu.memory_space<vmem>>, vector<1x8x8xf32>
    %118 = vector.shape_cast %117 : vector<1x8x8xf32> to vector<8x8xf32>
    %119 = arith.truncf %112 : vector<8x8xf32> to vector<8x8xbf16>
    %c0_68 = arith.constant 0 : index
    %c0_69 = arith.constant 0 : index
    %120 = vector.load %arg3[%c0_68, %c0_69] : memref<8x32xbf16, #tpu.memory_space<vmem>>, vector<8x32xbf16>
    %cst_70 = arith.constant dense<0.000000e+00> : vector<8x32xf32>
    %121 = tpu.matmul %119, %120, %cst_70 {dimension_numbers = #tpu.dot_dimension_numbers<[1], [0], [0], [1], [0, 0, 1, 1], [], []>} : vector<8x8xbf16>, vector<8x32xbf16>, vector<8x32xf32> -> vector<8x32xf32>
    %cst_71 = arith.constant 0.000000e+00 : f32
    %122 = vector.broadcast %cst_71 : f32 to vector<8x32xf32>
    %123 = arith.maximumf %121, %122 : vector<8x32xf32>
    %cst_72 = arith.constant 1.000000e-03 : f32
    %124 = vector.broadcast %cst_72 : f32 to vector<8x32xf32>
    %125 = arith.addf %123, %124 : vector<8x32xf32>
    %126 = arith.truncf %116 : vector<8x8xf32> to vector<8x8xbf16>
    %c0_73 = arith.constant 0 : index
    %c0_74 = arith.constant 0 : index
    %127 = vector.load %arg3[%c0_73, %c0_74] : memref<8x32xbf16, #tpu.memory_space<vmem>>, vector<8x32xbf16>
    %cst_75 = arith.constant dense<0.000000e+00> : vector<8x32xf32>
    %128 = tpu.matmul %126, %127, %cst_75 {dimension_numbers = #tpu.dot_dimension_numbers<[1], [0], [0], [1], [0, 0, 1, 1], [], []>} : vector<8x8xbf16>, vector<8x32xbf16>, vector<8x32xf32> -> vector<8x32xf32>
    %cst_76 = arith.constant 0.000000e+00 : f32
    %129 = vector.broadcast %cst_76 : f32 to vector<8x32xf32>
    %130 = arith.maximumf %128, %129 : vector<8x32xf32>
    %cst_77 = arith.constant 1.000000e-03 : f32
    %131 = vector.broadcast %cst_77 : f32 to vector<8x32xf32>
    %132 = arith.addf %130, %131 : vector<8x32xf32>
    %133 = tpu.concatenate %118, %0 in 1 : vector<8x8xf32>, vector<8x1xf32> -> vector<8x9xf32>
    %134 = arith.truncf %132 : vector<8x32xf32> to vector<8x32xbf16>
    %135 = arith.truncf %133 : vector<8x9xf32> to vector<8x9xbf16>
    %cst_78 = arith.constant dense<0.000000e+00> : vector<32x9xf32>
    %136 = tpu.matmul %134, %135, %cst_78 {dimension_numbers = #tpu.dot_dimension_numbers<[0], [0], [1], [1], [0, 1, 1, 1], [], []>} : vector<8x32xbf16>, vector<8x9xbf16>, vector<32x9xf32> -> vector<32x9xf32>
    %137 = arith.truncf %125 : vector<8x32xf32> to vector<8x32xbf16>
    %138 = arith.truncf %136 : vector<32x9xf32> to vector<32x9xbf16>
    %cst_79 = arith.constant dense<0.000000e+00> : vector<8x9xf32>
    %139 = tpu.matmul %137, %138, %cst_79 {dimension_numbers = #tpu.dot_dimension_numbers<[1], [0], [0], [1], [0, 0, 1, 1], [], []>} : vector<8x32xbf16>, vector<32x9xbf16>, vector<8x9xf32> -> vector<8x9xf32>
    %140 = vector.extract_strided_slice %139 {offsets = [0, 8], sizes = [8, 1], strides = [1, 1]} : vector<8x9xf32> to vector<8x1xf32>
    %141 = vector.extract_strided_slice %139 {offsets = [0, 0], sizes = [8, 8], strides = [1, 1]} : vector<8x9xf32> to vector<8x8xf32>
    %142 = tpu.reciprocal %140 {approx = true} : vector<8x1xf32> -> vector<8x1xf32>
    %143 = vector.broadcast %142 : vector<8x1xf32> to vector<8x8xf32>
    %144 = arith.mulf %141, %143 : vector<8x8xf32>
    %145 = tpu.concatenate %36, %72, %108, %144 in 1 : vector<8x8xf32>, vector<8x8xf32>, vector<8x8xf32>, vector<8x8xf32> -> vector<8x32xf32>
    %146 = arith.truncf %145 : vector<8x32xf32> to vector<8x32xbf16>
    %c0_80 = arith.constant 0 : index
    %c0_81 = arith.constant 0 : index
    %147 = vector.load %arg4[%c0_80, %c0_81] : memref<32x32xbf16, #tpu.memory_space<vmem>>, vector<32x32xbf16>
    %cst_82 = arith.constant dense<0.000000e+00> : vector<8x32xf32>
    %148 = tpu.matmul %146, %147, %cst_82 {dimension_numbers = #tpu.dot_dimension_numbers<[1], [0], [0], [1], [0, 0, 1, 1], [], []>} : vector<8x32xbf16>, vector<32x32xbf16>, vector<8x32xf32> -> vector<8x32xf32>
    %c0_83 = arith.constant 0 : index
    %c0_84 = arith.constant 0 : index
    %149 = vector.load %arg5[%c0_83, %c0_84] : memref<1x32xf32, #tpu.memory_space<vmem>>, vector<1x32xf32>
    %150 = vector.broadcast %149 : vector<1x32xf32> to vector<8x32xf32>
    %151 = arith.addf %148, %150 : vector<8x32xf32>
    %c0_85 = arith.constant 0 : index
    %c0_86 = arith.constant 0 : index
    %c0_87 = arith.constant 0 : index
    %152 = vector.load %arg2[%c0_85, %c0_86, %c0_87] : memref<1x8x32xf32, #tpu.memory_space<vmem>>, vector<1x8x32xf32>
    %153 = vector.shape_cast %152 : vector<1x8x32xf32> to vector<8x32xf32>
    %154 = arith.addf %151, %153 : vector<8x32xf32>
    %c0_88 = arith.constant 0 : index
    %c0_89 = arith.constant 0 : index
    %c0_90 = arith.constant 0 : index
    %155 = vector.load %arg6[%c0_88, %c0_89, %c0_90] : memref<1x8x32xf32, #tpu.memory_space<vmem>>, vector<1x8x32xf32>
    %156 = vector.shape_cast %155 : vector<1x8x32xf32> to vector<8x32xf32>
    %157 = vector.shape_cast %154 : vector<8x32xf32> to vector<1x8x32xf32>
    tpu.vector_store %arg6[%c0_88, %c0_89, %c0_90], %157 {strides = array<i32>} : memref<1x8x32xf32, #tpu.memory_space<vmem>>, vector<1x8x32xf32>,
    return
  }
  func.func @transform_0(%arg0: i32) -> (i32, i32, i32) {
    %c0_i32 = arith.constant 0 : i32
    %c0_i32_0 = arith.constant 0 : i32
    %c0_i32_1 = arith.constant 0 : i32
    return %arg0, %c0_i32, %c0_i32_0 : i32, i32, i32
  }
  func.func @transform_1(%arg0: i32) -> (i32, i32, i32) {
    %c0_i32 = arith.constant 0 : i32
    %c0_i32_0 = arith.constant 0 : i32
    %c0_i32_1 = arith.constant 0 : i32
    return %arg0, %c0_i32, %c0_i32_0 : i32, i32, i32
  }
  func.func @transform_2(%arg0: i32) -> (i32, i32) {
    %c0_i32 = arith.constant 0 : i32
    %c0_i32_0 = arith.constant 0 : i32
    %c0_i32_1 = arith.constant 0 : i32
    return %c0_i32, %c0_i32_0 : i32, i32
  }
  func.func @transform_3(%arg0: i32) -> (i32, i32) {
    %c0_i32 = arith.constant 0 : i32
    %c0_i32_0 = arith.constant 0 : i32
    %c0_i32_1 = arith.constant 0 : i32
    return %c0_i32, %c0_i32_0 : i32, i32
  }
  func.func @transform_4(%arg0: i32) -> (i32, i32) {
    %c0_i32 = arith.constant 0 : i32
    %c0_i32_0 = arith.constant 0 : i32
    %c0_i32_1 = arith.constant 0 : i32
    return %c0_i32, %c0_i32_0 : i32, i32
  }
  func.func @transform_5(%arg0: i32) -> (i32, i32, i32) {
    %c0_i32 = arith.constant 0 : i32
    %c0_i32_0 = arith.constant 0 : i32
    %c0_i32_1 = arith.constant 0 : i32
    return %arg0, %c0_i32, %c0_i32_0 : i32, i32, i32
  }
}

module attributes {stable_mosaic.version = 11 : i64} {
  func.func @_frontend_kernel(%arg0: i32, %arg1: i32, %arg2: memref<1x1x12x18xf32, #tpu.memory_space<vmem>>, %arg3: memref<9x16xf32, #tpu.memory_space<vmem>>, %arg4: memref<1x16xf32, #tpu.memory_space<vmem>>, %arg5: memref<9x16xf32, #tpu.memory_space<vmem>>, %arg6: memref<1x16xf32, #tpu.memory_space<vmem>>, %arg7: memref<16x32xbf16, #tpu.memory_space<vmem>>, %arg8: memref<1x32xf32, #tpu.memory_space<vmem>>, %arg9: memref<32x32xbf16, #tpu.memory_space<vmem>>, %arg10: memref<1x32xf32, #tpu.memory_space<vmem>>, %arg11: memref<1x32xf32, #tpu.memory_space<vmem>>, %arg12: memref<1x32xf32, #tpu.memory_space<vmem>>, %arg13: memref<8x32xf32, #tpu.memory_space<vmem>>, %arg14: memref<1x8x32xf32, #tpu.memory_space<vmem>>) attributes {dimension_semantics = [#tpu.dimension_semantics<parallel>, #tpu.dimension_semantics<parallel>], iteration_bounds = array<i64: 2, 1>, scalar_prefetch = 0 : i64, scratch_operands = 0 : i64, tpu.core_type = #tpu.core_type<tc>, window_params = [{transform_indices = @transform_0, window_bounds = array<i64: 1, 1, 12, 18>}, {pipeline_mode = #tpu.pipeline_mode<synchronous>, transform_indices = @transform_1, window_bounds = array<i64: 9, 16>}, {pipeline_mode = #tpu.pipeline_mode<synchronous>, transform_indices = @transform_2, window_bounds = array<i64: 1, 16>}, {pipeline_mode = #tpu.pipeline_mode<synchronous>, transform_indices = @transform_3, window_bounds = array<i64: 9, 16>}, {pipeline_mode = #tpu.pipeline_mode<synchronous>, transform_indices = @transform_4, window_bounds = array<i64: 1, 16>}, {pipeline_mode = #tpu.pipeline_mode<synchronous>, transform_indices = @transform_5, window_bounds = array<i64: 16, 32>}, {pipeline_mode = #tpu.pipeline_mode<synchronous>, transform_indices = @transform_6, window_bounds = array<i64: 1, 32>}, {pipeline_mode = #tpu.pipeline_mode<synchronous>, transform_indices = @transform_7, window_bounds = array<i64: 32, 32>}, {pipeline_mode = #tpu.pipeline_mode<synchronous>, transform_indices = @transform_8, window_bounds = array<i64: 1, 32>}, {pipeline_mode = #tpu.pipeline_mode<synchronous>, transform_indices = @transform_9, window_bounds = array<i64: 1, 32>}, {pipeline_mode = #tpu.pipeline_mode<synchronous>, transform_indices = @transform_10, window_bounds = array<i64: 1, 32>}, {transform_indices = @transform_11, window_bounds = array<i64: 8, 32>}, {transform_indices = @transform_12, window_bounds = array<i64: 1, 8, 32>}]} {
    %c0 = arith.constant 0 : index
    %c0_0 = arith.constant 0 : index
    %c0_1 = arith.constant 0 : index
    %c0_2 = arith.constant 0 : index
    %0 = vector.load %arg2[%c0, %c0_0, %c0_1, %c0_2] : memref<1x1x12x18xf32, #tpu.memory_space<vmem>>, vector<1x1x12x18xf32>
    %1 = vector.shape_cast %0 : vector<1x1x12x18xf32> to vector<12x18xf32>
    %c0_3 = arith.constant 0 : index
    %c0_4 = arith.constant 0 : index
    %2 = vector.load %arg3[%c0_3, %c0_4] : memref<9x16xf32, #tpu.memory_space<vmem>>, vector<9x16xf32>
    %c0_5 = arith.constant 0 : index
    %c0_6 = arith.constant 0 : index
    %3 = vector.load %arg4[%c0_5, %c0_6] : memref<1x16xf32, #tpu.memory_space<vmem>>, vector<1x16xf32>
    %c0_7 = arith.constant 0 : index
    %c0_8 = arith.constant 0 : index
    %4 = vector.load %arg5[%c0_7, %c0_8] : memref<9x16xf32, #tpu.memory_space<vmem>>, vector<9x16xf32>
    %c0_9 = arith.constant 0 : index
    %c0_10 = arith.constant 0 : index
    %5 = vector.load %arg6[%c0_9, %c0_10] : memref<1x16xf32, #tpu.memory_space<vmem>>, vector<1x16xf32>
    %c0_11 = arith.constant 0 : index
    %c0_12 = arith.constant 0 : index
    %6 = vector.load %arg8[%c0_11, %c0_12] : memref<1x32xf32, #tpu.memory_space<vmem>>, vector<1x32xf32>
    %c8_i32 = arith.constant 8 : i32
    %7 = arith.muli %arg1, %c8_i32 : i32
    %c1_i32 = arith.constant 1 : i32
    %8 = arith.subi %7, %c1_i32 : i32
    %9 = tpu.iota {dimensions = array<i32: 0>} : vector<10x1xi32>
    %10 = vector.broadcast %8 : i32 to vector<10x1xi32>
    %11 = arith.addi %10, %9 : vector<10x1xi32>
    %c0_i32 = arith.constant 0 : i32
    %12 = vector.broadcast %c0_i32 : i32 to vector<10x1xi32>
    %13 = arith.cmpi sge, %11, %12 : vector<10x1xi32>
    %c8_i32_13 = arith.constant 8 : i32
    %14 = vector.broadcast %c8_i32_13 : i32 to vector<10x1xi32>
    %15 = arith.cmpi slt, %11, %14 : vector<10x1xi32>
    %16 = arith.andi %13, %15 : vector<10x1xi1>
    %17 = arith.extui %16 : vector<10x1xi1> to vector<10x1xi32>
    %18 = arith.sitofp %17 : vector<10x1xi32> to vector<10x1xf32>
    %cst = arith.constant 0.000000e+00 : f32
    %19 = vector.broadcast %cst : f32 to vector<8x32xf32>
    %cst_14 = arith.constant 0.000000e+00 : f32
    %20 = vector.broadcast %cst_14 : f32 to vector<8x16xf32>
    %21 = vector.broadcast %5 : vector<1x16xf32> to vector<8x16xf32>
    %22 = arith.addf %20, %21 : vector<8x16xf32>
    %cst_15 = arith.constant 0.000000e+00 : f32
    %23 = vector.broadcast %cst_15 : f32 to vector<10x16xf32>
    %24 = vector.broadcast %3 : vector<1x16xf32> to vector<10x16xf32>
    %25 = arith.addf %23, %24 : vector<10x16xf32>
    %26 = vector.extract_strided_slice %1 {offsets = [0, 0], sizes = [10, 1], strides = [1, 1]} : vector<12x18xf32> to vector<10x1xf32>
    %27 = vector.extract_strided_slice %2 {offsets = [0, 0], sizes = [1, 16], strides = [1, 1]} : vector<9x16xf32> to vector<1x16xf32>
    %28 = vector.broadcast %26 : vector<10x1xf32> to vector<10x16xf32>
    %29 = vector.broadcast %27 : vector<1x16xf32> to vector<10x16xf32>
    %30 = arith.mulf %28, %29 : vector<10x16xf32>
    %31 = arith.addf %25, %30 : vector<10x16xf32>
    %32 = vector.extract_strided_slice %1 {offsets = [1, 0], sizes = [10, 1], strides = [1, 1]} : vector<12x18xf32> to vector<10x1xf32>
    %33 = vector.extract_strided_slice %2 {offsets = [1, 0], sizes = [1, 16], strides = [1, 1]} : vector<9x16xf32> to vector<1x16xf32>
    %34 = vector.broadcast %32 : vector<10x1xf32> to vector<10x16xf32>
    %35 = vector.broadcast %33 : vector<1x16xf32> to vector<10x16xf32>
    %36 = arith.mulf %34, %35 : vector<10x16xf32>
    %37 = arith.addf %31, %36 : vector<10x16xf32>
    %38 = vector.extract_strided_slice %1 {offsets = [2, 0], sizes = [10, 1], strides = [1, 1]} : vector<12x18xf32> to vector<10x1xf32>
    %39 = vector.extract_strided_slice %2 {offsets = [2, 0], sizes = [1, 16], strides = [1, 1]} : vector<9x16xf32> to vector<1x16xf32>
    %40 = vector.broadcast %38 : vector<10x1xf32> to vector<10x16xf32>
    %41 = vector.broadcast %39 : vector<1x16xf32> to vector<10x16xf32>
    %42 = arith.mulf %40, %41 : vector<10x16xf32>
    %43 = arith.addf %37, %42 : vector<10x16xf32>
    %44 = vector.extract_strided_slice %1 {offsets = [0, 1], sizes = [10, 1], strides = [1, 1]} : vector<12x18xf32> to vector<10x1xf32>
    %45 = vector.extract_strided_slice %2 {offsets = [3, 0], sizes = [1, 16], strides = [1, 1]} : vector<9x16xf32> to vector<1x16xf32>
    %46 = vector.broadcast %44 : vector<10x1xf32> to vector<10x16xf32>
    %47 = vector.broadcast %45 : vector<1x16xf32> to vector<10x16xf32>
    %48 = arith.mulf %46, %47 : vector<10x16xf32>
    %49 = arith.addf %43, %48 : vector<10x16xf32>
    %50 = vector.extract_strided_slice %1 {offsets = [1, 1], sizes = [10, 1], strides = [1, 1]} : vector<12x18xf32> to vector<10x1xf32>
    %51 = vector.extract_strided_slice %2 {offsets = [4, 0], sizes = [1, 16], strides = [1, 1]} : vector<9x16xf32> to vector<1x16xf32>
    %52 = vector.broadcast %50 : vector<10x1xf32> to vector<10x16xf32>
    %53 = vector.broadcast %51 : vector<1x16xf32> to vector<10x16xf32>
    %54 = arith.mulf %52, %53 : vector<10x16xf32>
    %55 = arith.addf %49, %54 : vector<10x16xf32>
    %56 = vector.extract_strided_slice %1 {offsets = [2, 1], sizes = [10, 1], strides = [1, 1]} : vector<12x18xf32> to vector<10x1xf32>
    %57 = vector.extract_strided_slice %2 {offsets = [5, 0], sizes = [1, 16], strides = [1, 1]} : vector<9x16xf32> to vector<1x16xf32>
    %58 = vector.broadcast %56 : vector<10x1xf32> to vector<10x16xf32>
    %59 = vector.broadcast %57 : vector<1x16xf32> to vector<10x16xf32>
    %60 = arith.mulf %58, %59 : vector<10x16xf32>
    %61 = arith.addf %55, %60 : vector<10x16xf32>
    %62 = vector.extract_strided_slice %1 {offsets = [0, 2], sizes = [10, 1], strides = [1, 1]} : vector<12x18xf32> to vector<10x1xf32>
    %63 = vector.extract_strided_slice %2 {offsets = [6, 0], sizes = [1, 16], strides = [1, 1]} : vector<9x16xf32> to vector<1x16xf32>
    %64 = vector.broadcast %62 : vector<10x1xf32> to vector<10x16xf32>
    %65 = vector.broadcast %63 : vector<1x16xf32> to vector<10x16xf32>
    %66 = arith.mulf %64, %65 : vector<10x16xf32>
    %67 = arith.addf %61, %66 : vector<10x16xf32>
    %68 = vector.extract_strided_slice %1 {offsets = [1, 2], sizes = [10, 1], strides = [1, 1]} : vector<12x18xf32> to vector<10x1xf32>
    %69 = vector.extract_strided_slice %2 {offsets = [7, 0], sizes = [1, 16], strides = [1, 1]} : vector<9x16xf32> to vector<1x16xf32>
    %70 = vector.broadcast %68 : vector<10x1xf32> to vector<10x16xf32>
    %71 = vector.broadcast %69 : vector<1x16xf32> to vector<10x16xf32>
    %72 = arith.mulf %70, %71 : vector<10x16xf32>
    %73 = arith.addf %67, %72 : vector<10x16xf32>
    %74 = vector.extract_strided_slice %1 {offsets = [2, 2], sizes = [10, 1], strides = [1, 1]} : vector<12x18xf32> to vector<10x1xf32>
    %75 = vector.extract_strided_slice %2 {offsets = [8, 0], sizes = [1, 16], strides = [1, 1]} : vector<9x16xf32> to vector<1x16xf32>
    %76 = vector.broadcast %74 : vector<10x1xf32> to vector<10x16xf32>
    %77 = vector.broadcast %75 : vector<1x16xf32> to vector<10x16xf32>
    %78 = arith.mulf %76, %77 : vector<10x16xf32>
    %79 = arith.addf %73, %78 : vector<10x16xf32>
    %cst_16 = arith.constant 0.000000e+00 : f32
    %80 = vector.broadcast %cst_16 : f32 to vector<10x16xf32>
    %81 = arith.maximumf %79, %80 : vector<10x16xf32>
    %82 = vector.broadcast %18 : vector<10x1xf32> to vector<10x16xf32>
    %83 = arith.mulf %81, %82 : vector<10x16xf32>
    %84 = vector.extract_strided_slice %83 {offsets = [0, 0], sizes = [8, 16], strides = [1, 1]} : vector<10x16xf32> to vector<8x16xf32>
    %85 = vector.extract_strided_slice %4 {offsets = [3, 0], sizes = [1, 16], strides = [1, 1]} : vector<9x16xf32> to vector<1x16xf32>
    %86 = vector.broadcast %85 : vector<1x16xf32> to vector<8x16xf32>
    %87 = arith.mulf %84, %86 : vector<8x16xf32>
    %88 = arith.addf %22, %87 : vector<8x16xf32>
    %89 = vector.extract_strided_slice %83 {offsets = [1, 0], sizes = [8, 16], strides = [1, 1]} : vector<10x16xf32> to vector<8x16xf32>
    %90 = vector.extract_strided_slice %4 {offsets = [4, 0], sizes = [1, 16], strides = [1, 1]} : vector<9x16xf32> to vector<1x16xf32>
    %91 = vector.broadcast %90 : vector<1x16xf32> to vector<8x16xf32>
    %92 = arith.mulf %89, %91 : vector<8x16xf32>
    %93 = arith.addf %88, %92 : vector<8x16xf32>
    %94 = vector.extract_strided_slice %83 {offsets = [2, 0], sizes = [8, 16], strides = [1, 1]} : vector<10x16xf32> to vector<8x16xf32>
    %95 = vector.extract_strided_slice %4 {offsets = [5, 0], sizes = [1, 16], strides = [1, 1]} : vector<9x16xf32> to vector<1x16xf32>
    %96 = vector.broadcast %95 : vector<1x16xf32> to vector<8x16xf32>
    %97 = arith.mulf %94, %96 : vector<8x16xf32>
    %98 = arith.addf %93, %97 : vector<8x16xf32>
    %cst_17 = arith.constant 0.000000e+00 : f32
    %99 = vector.broadcast %cst_17 : f32 to vector<10x16xf32>
    %100 = vector.broadcast %3 : vector<1x16xf32> to vector<10x16xf32>
    %101 = arith.addf %99, %100 : vector<10x16xf32>
    %102 = vector.extract_strided_slice %1 {offsets = [0, 1], sizes = [10, 1], strides = [1, 1]} : vector<12x18xf32> to vector<10x1xf32>
    %103 = vector.extract_strided_slice %2 {offsets = [0, 0], sizes = [1, 16], strides = [1, 1]} : vector<9x16xf32> to vector<1x16xf32>
    %104 = vector.broadcast %102 : vector<10x1xf32> to vector<10x16xf32>
    %105 = vector.broadcast %103 : vector<1x16xf32> to vector<10x16xf32>
    %106 = arith.mulf %104, %105 : vector<10x16xf32>
    %107 = arith.addf %101, %106 : vector<10x16xf32>
    %108 = vector.extract_strided_slice %1 {offsets = [1, 1], sizes = [10, 1], strides = [1, 1]} : vector<12x18xf32> to vector<10x1xf32>
    %109 = vector.extract_strided_slice %2 {offsets = [1, 0], sizes = [1, 16], strides = [1, 1]} : vector<9x16xf32> to vector<1x16xf32>
    %110 = vector.broadcast %108 : vector<10x1xf32> to vector<10x16xf32>
    %111 = vector.broadcast %109 : vector<1x16xf32> to vector<10x16xf32>
    %112 = arith.mulf %110, %111 : vector<10x16xf32>
    %113 = arith.addf %107, %112 : vector<10x16xf32>
    %114 = vector.extract_strided_slice %1 {offsets = [2, 1], sizes = [10, 1], strides = [1, 1]} : vector<12x18xf32> to vector<10x1xf32>
    %115 = vector.extract_strided_slice %2 {offsets = [2, 0], sizes = [1, 16], strides = [1, 1]} : vector<9x16xf32> to vector<1x16xf32>
    %116 = vector.broadcast %114 : vector<10x1xf32> to vector<10x16xf32>
    %117 = vector.broadcast %115 : vector<1x16xf32> to vector<10x16xf32>
    %118 = arith.mulf %116, %117 : vector<10x16xf32>
    %119 = arith.addf %113, %118 : vector<10x16xf32>
    %120 = vector.extract_strided_slice %1 {offsets = [0, 2], sizes = [10, 1], strides = [1, 1]} : vector<12x18xf32> to vector<10x1xf32>
    %121 = vector.extract_strided_slice %2 {offsets = [3, 0], sizes = [1, 16], strides = [1, 1]} : vector<9x16xf32> to vector<1x16xf32>
    %122 = vector.broadcast %120 : vector<10x1xf32> to vector<10x16xf32>
    %123 = vector.broadcast %121 : vector<1x16xf32> to vector<10x16xf32>
    %124 = arith.mulf %122, %123 : vector<10x16xf32>
    %125 = arith.addf %119, %124 : vector<10x16xf32>
    %126 = vector.extract_strided_slice %1 {offsets = [1, 2], sizes = [10, 1], strides = [1, 1]} : vector<12x18xf32> to vector<10x1xf32>
    %127 = vector.extract_strided_slice %2 {offsets = [4, 0], sizes = [1, 16], strides = [1, 1]} : vector<9x16xf32> to vector<1x16xf32>
    %128 = vector.broadcast %126 : vector<10x1xf32> to vector<10x16xf32>
    %129 = vector.broadcast %127 : vector<1x16xf32> to vector<10x16xf32>
    %130 = arith.mulf %128, %129 : vector<10x16xf32>
    %131 = arith.addf %125, %130 : vector<10x16xf32>
    %132 = vector.extract_strided_slice %1 {offsets = [2, 2], sizes = [10, 1], strides = [1, 1]} : vector<12x18xf32> to vector<10x1xf32>
    %133 = vector.extract_strided_slice %2 {offsets = [5, 0], sizes = [1, 16], strides = [1, 1]} : vector<9x16xf32> to vector<1x16xf32>
    %134 = vector.broadcast %132 : vector<10x1xf32> to vector<10x16xf32>
    %135 = vector.broadcast %133 : vector<1x16xf32> to vector<10x16xf32>
    %136 = arith.mulf %134, %135 : vector<10x16xf32>
    %137 = arith.addf %131, %136 : vector<10x16xf32>
    %138 = vector.extract_strided_slice %1 {offsets = [0, 3], sizes = [10, 1], strides = [1, 1]} : vector<12x18xf32> to vector<10x1xf32>
    %139 = vector.extract_strided_slice %2 {offsets = [6, 0], sizes = [1, 16], strides = [1, 1]} : vector<9x16xf32> to vector<1x16xf32>
    %140 = vector.broadcast %138 : vector<10x1xf32> to vector<10x16xf32>
    %141 = vector.broadcast %139 : vector<1x16xf32> to vector<10x16xf32>
    %142 = arith.mulf %140, %141 : vector<10x16xf32>
    %143 = arith.addf %137, %142 : vector<10x16xf32>
    %144 = vector.extract_strided_slice %1 {offsets = [1, 3], sizes = [10, 1], strides = [1, 1]} : vector<12x18xf32> to vector<10x1xf32>
    %145 = vector.extract_strided_slice %2 {offsets = [7, 0], sizes = [1, 16], strides = [1, 1]} : vector<9x16xf32> to vector<1x16xf32>
    %146 = vector.broadcast %144 : vector<10x1xf32> to vector<10x16xf32>
    %147 = vector.broadcast %145 : vector<1x16xf32> to vector<10x16xf32>
    %148 = arith.mulf %146, %147 : vector<10x16xf32>
    %149 = arith.addf %143, %148 : vector<10x16xf32>
    %150 = vector.extract_strided_slice %1 {offsets = [2, 3], sizes = [10, 1], strides = [1, 1]} : vector<12x18xf32> to vector<10x1xf32>
    %151 = vector.extract_strided_slice %2 {offsets = [8, 0], sizes = [1, 16], strides = [1, 1]} : vector<9x16xf32> to vector<1x16xf32>
    %152 = vector.broadcast %150 : vector<10x1xf32> to vector<10x16xf32>
    %153 = vector.broadcast %151 : vector<1x16xf32> to vector<10x16xf32>
    %154 = arith.mulf %152, %153 : vector<10x16xf32>
    %155 = arith.addf %149, %154 : vector<10x16xf32>
    %cst_18 = arith.constant 0.000000e+00 : f32
    %156 = vector.broadcast %cst_18 : f32 to vector<10x16xf32>
    %157 = arith.maximumf %155, %156 : vector<10x16xf32>
    %158 = vector.broadcast %18 : vector<10x1xf32> to vector<10x16xf32>
    %159 = arith.mulf %157, %158 : vector<10x16xf32>
    %160 = vector.extract_strided_slice %159 {offsets = [0, 0], sizes = [8, 16], strides = [1, 1]} : vector<10x16xf32> to vector<8x16xf32>
    %161 = vector.extract_strided_slice %4 {offsets = [6, 0], sizes = [1, 16], strides = [1, 1]} : vector<9x16xf32> to vector<1x16xf32>
    %162 = vector.broadcast %161 : vector<1x16xf32> to vector<8x16xf32>
    %163 = arith.mulf %160, %162 : vector<8x16xf32>
    %164 = arith.addf %98, %163 : vector<8x16xf32>
    %165 = vector.extract_strided_slice %159 {offsets = [1, 0], sizes = [8, 16], strides = [1, 1]} : vector<10x16xf32> to vector<8x16xf32>
    %166 = vector.extract_strided_slice %4 {offsets = [7, 0], sizes = [1, 16], strides = [1, 1]} : vector<9x16xf32> to vector<1x16xf32>
    %167 = vector.broadcast %166 : vector<1x16xf32> to vector<8x16xf32>
    %168 = arith.mulf %165, %167 : vector<8x16xf32>
    %169 = arith.addf %164, %168 : vector<8x16xf32>
    %170 = vector.extract_strided_slice %159 {offsets = [2, 0], sizes = [8, 16], strides = [1, 1]} : vector<10x16xf32> to vector<8x16xf32>
    %171 = vector.extract_strided_slice %4 {offsets = [8, 0], sizes = [1, 16], strides = [1, 1]} : vector<9x16xf32> to vector<1x16xf32>
    %172 = vector.broadcast %171 : vector<1x16xf32> to vector<8x16xf32>
    %173 = arith.mulf %170, %172 : vector<8x16xf32>
    %174 = arith.addf %169, %173 : vector<8x16xf32>
    %175 = arith.truncf %174 : vector<8x16xf32> to vector<8x16xbf16>
    %c0_19 = arith.constant 0 : index
    %c0_20 = arith.constant 0 : index
    %176 = vector.load %arg7[%c0_19, %c0_20] : memref<16x32xbf16, #tpu.memory_space<vmem>>, vector<16x32xbf16>
    %cst_21 = arith.constant dense<0.000000e+00> : vector<8x32xf32>
    %177 = tpu.matmul %175, %176, %cst_21 {dimension_numbers = #tpu.dot_dimension_numbers<[1], [0], [0], [1], [0, 0, 1, 1], [], []>} : vector<8x16xbf16>, vector<16x32xbf16>, vector<8x32xf32> -> vector<8x32xf32>
    %178 = vector.broadcast %6 : vector<1x32xf32> to vector<8x32xf32>
    %179 = arith.addf %177, %178 : vector<8x32xf32>
    %cst_22 = arith.constant 0.000000e+00 : f32
    %180 = vector.broadcast %cst_22 : f32 to vector<8x32xf32>
    %181 = arith.maximumf %179, %180 : vector<8x32xf32>
    %182 = arith.addf %19, %181 : vector<8x32xf32>
    %cst_23 = arith.constant 0.000000e+00 : f32
    %183 = vector.broadcast %cst_23 : f32 to vector<8x16xf32>
    %184 = vector.broadcast %5 : vector<1x16xf32> to vector<8x16xf32>
    %185 = arith.addf %183, %184 : vector<8x16xf32>
    %186 = vector.extract_strided_slice %83 {offsets = [0, 0], sizes = [8, 16], strides = [1, 1]} : vector<10x16xf32> to vector<8x16xf32>
    %187 = vector.extract_strided_slice %4 {offsets = [0, 0], sizes = [1, 16], strides = [1, 1]} : vector<9x16xf32> to vector<1x16xf32>
    %188 = vector.broadcast %187 : vector<1x16xf32> to vector<8x16xf32>
    %189 = arith.mulf %186, %188 : vector<8x16xf32>
    %190 = arith.addf %185, %189 : vector<8x16xf32>
    %191 = vector.extract_strided_slice %83 {offsets = [1, 0], sizes = [8, 16], strides = [1, 1]} : vector<10x16xf32> to vector<8x16xf32>
    %192 = vector.extract_strided_slice %4 {offsets = [1, 0], sizes = [1, 16], strides = [1, 1]} : vector<9x16xf32> to vector<1x16xf32>
    %193 = vector.broadcast %192 : vector<1x16xf32> to vector<8x16xf32>
    %194 = arith.mulf %191, %193 : vector<8x16xf32>
    %195 = arith.addf %190, %194 : vector<8x16xf32>
    %196 = vector.extract_strided_slice %83 {offsets = [2, 0], sizes = [8, 16], strides = [1, 1]} : vector<10x16xf32> to vector<8x16xf32>
    %197 = vector.extract_strided_slice %4 {offsets = [2, 0], sizes = [1, 16], strides = [1, 1]} : vector<9x16xf32> to vector<1x16xf32>
    %198 = vector.broadcast %197 : vector<1x16xf32> to vector<8x16xf32>
    %199 = arith.mulf %196, %198 : vector<8x16xf32>
    %200 = arith.addf %195, %199 : vector<8x16xf32>
    %201 = vector.extract_strided_slice %159 {offsets = [0, 0], sizes = [8, 16], strides = [1, 1]} : vector<10x16xf32> to vector<8x16xf32>
    %202 = vector.extract_strided_slice %4 {offsets = [3, 0], sizes = [1, 16], strides = [1, 1]} : vector<9x16xf32> to vector<1x16xf32>
    %203 = vector.broadcast %202 : vector<1x16xf32> to vector<8x16xf32>
    %204 = arith.mulf %201, %203 : vector<8x16xf32>
    %205 = arith.addf %200, %204 : vector<8x16xf32>
    %206 = vector.extract_strided_slice %159 {offsets = [1, 0], sizes = [8, 16], strides = [1, 1]} : vector<10x16xf32> to vector<8x16xf32>
    %207 = vector.extract_strided_slice %4 {offsets = [4, 0], sizes = [1, 16], strides = [1, 1]} : vector<9x16xf32> to vector<1x16xf32>
    %208 = vector.broadcast %207 : vector<1x16xf32> to vector<8x16xf32>
    %209 = arith.mulf %206, %208 : vector<8x16xf32>
    %210 = arith.addf %205, %209 : vector<8x16xf32>
    %211 = vector.extract_strided_slice %159 {offsets = [2, 0], sizes = [8, 16], strides = [1, 1]} : vector<10x16xf32> to vector<8x16xf32>
    %212 = vector.extract_strided_slice %4 {offsets = [5, 0], sizes = [1, 16], strides = [1, 1]} : vector<9x16xf32> to vector<1x16xf32>
    %213 = vector.broadcast %212 : vector<1x16xf32> to vector<8x16xf32>
    %214 = arith.mulf %211, %213 : vector<8x16xf32>
    %215 = arith.addf %210, %214 : vector<8x16xf32>
    %cst_24 = arith.constant 0.000000e+00 : f32
    %216 = vector.broadcast %cst_24 : f32 to vector<10x16xf32>
    %217 = vector.broadcast %3 : vector<1x16xf32> to vector<10x16xf32>
    %218 = arith.addf %216, %217 : vector<10x16xf32>
    %219 = vector.extract_strided_slice %1 {offsets = [0, 2], sizes = [10, 1], strides = [1, 1]} : vector<12x18xf32> to vector<10x1xf32>
    %220 = vector.extract_strided_slice %2 {offsets = [0, 0], sizes = [1, 16], strides = [1, 1]} : vector<9x16xf32> to vector<1x16xf32>
    %221 = vector.broadcast %219 : vector<10x1xf32> to vector<10x16xf32>
    %222 = vector.broadcast %220 : vector<1x16xf32> to vector<10x16xf32>
    %223 = arith.mulf %221, %222 : vector<10x16xf32>
    %224 = arith.addf %218, %223 : vector<10x16xf32>
    %225 = vector.extract_strided_slice %1 {offsets = [1, 2], sizes = [10, 1], strides = [1, 1]} : vector<12x18xf32> to vector<10x1xf32>
    %226 = vector.extract_strided_slice %2 {offsets = [1, 0], sizes = [1, 16], strides = [1, 1]} : vector<9x16xf32> to vector<1x16xf32>
    %227 = vector.broadcast %225 : vector<10x1xf32> to vector<10x16xf32>
    %228 = vector.broadcast %226 : vector<1x16xf32> to vector<10x16xf32>
    %229 = arith.mulf %227, %228 : vector<10x16xf32>
    %230 = arith.addf %224, %229 : vector<10x16xf32>
    %231 = vector.extract_strided_slice %1 {offsets = [2, 2], sizes = [10, 1], strides = [1, 1]} : vector<12x18xf32> to vector<10x1xf32>
    %232 = vector.extract_strided_slice %2 {offsets = [2, 0], sizes = [1, 16], strides = [1, 1]} : vector<9x16xf32> to vector<1x16xf32>
    %233 = vector.broadcast %231 : vector<10x1xf32> to vector<10x16xf32>
    %234 = vector.broadcast %232 : vector<1x16xf32> to vector<10x16xf32>
    %235 = arith.mulf %233, %234 : vector<10x16xf32>
    %236 = arith.addf %230, %235 : vector<10x16xf32>
    %237 = vector.extract_strided_slice %1 {offsets = [0, 3], sizes = [10, 1], strides = [1, 1]} : vector<12x18xf32> to vector<10x1xf32>
    %238 = vector.extract_strided_slice %2 {offsets = [3, 0], sizes = [1, 16], strides = [1, 1]} : vector<9x16xf32> to vector<1x16xf32>
    %239 = vector.broadcast %237 : vector<10x1xf32> to vector<10x16xf32>
    %240 = vector.broadcast %238 : vector<1x16xf32> to vector<10x16xf32>
    %241 = arith.mulf %239, %240 : vector<10x16xf32>
    %242 = arith.addf %236, %241 : vector<10x16xf32>
    %243 = vector.extract_strided_slice %1 {offsets = [1, 3], sizes = [10, 1], strides = [1, 1]} : vector<12x18xf32> to vector<10x1xf32>
    %244 = vector.extract_strided_slice %2 {offsets = [4, 0], sizes = [1, 16], strides = [1, 1]} : vector<9x16xf32> to vector<1x16xf32>
    %245 = vector.broadcast %243 : vector<10x1xf32> to vector<10x16xf32>
    %246 = vector.broadcast %244 : vector<1x16xf32> to vector<10x16xf32>
    %247 = arith.mulf %245, %246 : vector<10x16xf32>
    %248 = arith.addf %242, %247 : vector<10x16xf32>
    %249 = vector.extract_strided_slice %1 {offsets = [2, 3], sizes = [10, 1], strides = [1, 1]} : vector<12x18xf32> to vector<10x1xf32>
    %250 = vector.extract_strided_slice %2 {offsets = [5, 0], sizes = [1, 16], strides = [1, 1]} : vector<9x16xf32> to vector<1x16xf32>
    %251 = vector.broadcast %249 : vector<10x1xf32> to vector<10x16xf32>
    %252 = vector.broadcast %250 : vector<1x16xf32> to vector<10x16xf32>
    %253 = arith.mulf %251, %252 : vector<10x16xf32>
    %254 = arith.addf %248, %253 : vector<10x16xf32>
    %255 = vector.extract_strided_slice %1 {offsets = [0, 4], sizes = [10, 1], strides = [1, 1]} : vector<12x18xf32> to vector<10x1xf32>
    %256 = vector.extract_strided_slice %2 {offsets = [6, 0], sizes = [1, 16], strides = [1, 1]} : vector<9x16xf32> to vector<1x16xf32>
    %257 = vector.broadcast %255 : vector<10x1xf32> to vector<10x16xf32>
    %258 = vector.broadcast %256 : vector<1x16xf32> to vector<10x16xf32>
    %259 = arith.mulf %257, %258 : vector<10x16xf32>
    %260 = arith.addf %254, %259 : vector<10x16xf32>
    %261 = vector.extract_strided_slice %1 {offsets = [1, 4], sizes = [10, 1], strides = [1, 1]} : vector<12x18xf32> to vector<10x1xf32>
    %262 = vector.extract_strided_slice %2 {offsets = [7, 0], sizes = [1, 16], strides = [1, 1]} : vector<9x16xf32> to vector<1x16xf32>
    %263 = vector.broadcast %261 : vector<10x1xf32> to vector<10x16xf32>
    %264 = vector.broadcast %262 : vector<1x16xf32> to vector<10x16xf32>
    %265 = arith.mulf %263, %264 : vector<10x16xf32>
    %266 = arith.addf %260, %265 : vector<10x16xf32>
    %267 = vector.extract_strided_slice %1 {offsets = [2, 4], sizes = [10, 1], strides = [1, 1]} : vector<12x18xf32> to vector<10x1xf32>
    %268 = vector.extract_strided_slice %2 {offsets = [8, 0], sizes = [1, 16], strides = [1, 1]} : vector<9x16xf32> to vector<1x16xf32>
    %269 = vector.broadcast %267 : vector<10x1xf32> to vector<10x16xf32>
    %270 = vector.broadcast %268 : vector<1x16xf32> to vector<10x16xf32>
    %271 = arith.mulf %269, %270 : vector<10x16xf32>
    %272 = arith.addf %266, %271 : vector<10x16xf32>
    %cst_25 = arith.constant 0.000000e+00 : f32
    %273 = vector.broadcast %cst_25 : f32 to vector<10x16xf32>
    %274 = arith.maximumf %272, %273 : vector<10x16xf32>
    %275 = vector.broadcast %18 : vector<10x1xf32> to vector<10x16xf32>
    %276 = arith.mulf %274, %275 : vector<10x16xf32>
    %277 = vector.extract_strided_slice %276 {offsets = [0, 0], sizes = [8, 16], strides = [1, 1]} : vector<10x16xf32> to vector<8x16xf32>
    %278 = vector.extract_strided_slice %4 {offsets = [6, 0], sizes = [1, 16], strides = [1, 1]} : vector<9x16xf32> to vector<1x16xf32>
    %279 = vector.broadcast %278 : vector<1x16xf32> to vector<8x16xf32>
    %280 = arith.mulf %277, %279 : vector<8x16xf32>
    %281 = arith.addf %215, %280 : vector<8x16xf32>
    %282 = vector.extract_strided_slice %276 {offsets = [1, 0], sizes = [8, 16], strides = [1, 1]} : vector<10x16xf32> to vector<8x16xf32>
    %283 = vector.extract_strided_slice %4 {offsets = [7, 0], sizes = [1, 16], strides = [1, 1]} : vector<9x16xf32> to vector<1x16xf32>
    %284 = vector.broadcast %283 : vector<1x16xf32> to vector<8x16xf32>
    %285 = arith.mulf %282, %284 : vector<8x16xf32>
    %286 = arith.addf %281, %285 : vector<8x16xf32>
    %287 = vector.extract_strided_slice %276 {offsets = [2, 0], sizes = [8, 16], strides = [1, 1]} : vector<10x16xf32> to vector<8x16xf32>
    %288 = vector.extract_strided_slice %4 {offsets = [8, 0], sizes = [1, 16], strides = [1, 1]} : vector<9x16xf32> to vector<1x16xf32>
    %289 = vector.broadcast %288 : vector<1x16xf32> to vector<8x16xf32>
    %290 = arith.mulf %287, %289 : vector<8x16xf32>
    %291 = arith.addf %286, %290 : vector<8x16xf32>
    %292 = arith.truncf %291 : vector<8x16xf32> to vector<8x16xbf16>
    %c0_26 = arith.constant 0 : index
    %c0_27 = arith.constant 0 : index
    %293 = vector.load %arg7[%c0_26, %c0_27] : memref<16x32xbf16, #tpu.memory_space<vmem>>, vector<16x32xbf16>
    %cst_28 = arith.constant dense<0.000000e+00> : vector<8x32xf32>
    %294 = tpu.matmul %292, %293, %cst_28 {dimension_numbers = #tpu.dot_dimension_numbers<[1], [0], [0], [1], [0, 0, 1, 1], [], []>} : vector<8x16xbf16>, vector<16x32xbf16>, vector<8x32xf32> -> vector<8x32xf32>
    %295 = vector.broadcast %6 : vector<1x32xf32> to vector<8x32xf32>
    %296 = arith.addf %294, %295 : vector<8x32xf32>
    %cst_29 = arith.constant 0.000000e+00 : f32
    %297 = vector.broadcast %cst_29 : f32 to vector<8x32xf32>
    %298 = arith.maximumf %296, %297 : vector<8x32xf32>
    %299 = arith.addf %182, %298 : vector<8x32xf32>
    %cst_30 = arith.constant 0.000000e+00 : f32
    %300 = vector.broadcast %cst_30 : f32 to vector<8x16xf32>
    %301 = vector.broadcast %5 : vector<1x16xf32> to vector<8x16xf32>
    %302 = arith.addf %300, %301 : vector<8x16xf32>
    %303 = vector.extract_strided_slice %159 {offsets = [0, 0], sizes = [8, 16], strides = [1, 1]} : vector<10x16xf32> to vector<8x16xf32>
    %304 = vector.extract_strided_slice %4 {offsets = [0, 0], sizes = [1, 16], strides = [1, 1]} : vector<9x16xf32> to vector<1x16xf32>
    %305 = vector.broadcast %304 : vector<1x16xf32> to vector<8x16xf32>
    %306 = arith.mulf %303, %305 : vector<8x16xf32>
    %307 = arith.addf %302, %306 : vector<8x16xf32>
    %308 = vector.extract_strided_slice %159 {offsets = [1, 0], sizes = [8, 16], strides = [1, 1]} : vector<10x16xf32> to vector<8x16xf32>
    %309 = vector.extract_strided_slice %4 {offsets = [1, 0], sizes = [1, 16], strides = [1, 1]} : vector<9x16xf32> to vector<1x16xf32>
    %310 = vector.broadcast %309 : vector<1x16xf32> to vector<8x16xf32>
    %311 = arith.mulf %308, %310 : vector<8x16xf32>
    %312 = arith.addf %307, %311 : vector<8x16xf32>
    %313 = vector.extract_strided_slice %159 {offsets = [2, 0], sizes = [8, 16], strides = [1, 1]} : vector<10x16xf32> to vector<8x16xf32>
    %314 = vector.extract_strided_slice %4 {offsets = [2, 0], sizes = [1, 16], strides = [1, 1]} : vector<9x16xf32> to vector<1x16xf32>
    %315 = vector.broadcast %314 : vector<1x16xf32> to vector<8x16xf32>
    %316 = arith.mulf %313, %315 : vector<8x16xf32>
    %317 = arith.addf %312, %316 : vector<8x16xf32>
    %318 = vector.extract_strided_slice %276 {offsets = [0, 0], sizes = [8, 16], strides = [1, 1]} : vector<10x16xf32> to vector<8x16xf32>
    %319 = vector.extract_strided_slice %4 {offsets = [3, 0], sizes = [1, 16], strides = [1, 1]} : vector<9x16xf32> to vector<1x16xf32>
    %320 = vector.broadcast %319 : vector<1x16xf32> to vector<8x16xf32>
    %321 = arith.mulf %318, %320 : vector<8x16xf32>
    %322 = arith.addf %317, %321 : vector<8x16xf32>
    %323 = vector.extract_strided_slice %276 {offsets = [1, 0], sizes = [8, 16], strides = [1, 1]} : vector<10x16xf32> to vector<8x16xf32>
    %324 = vector.extract_strided_slice %4 {offsets = [4, 0], sizes = [1, 16], strides = [1, 1]} : vector<9x16xf32> to vector<1x16xf32>
    %325 = vector.broadcast %324 : vector<1x16xf32> to vector<8x16xf32>
    %326 = arith.mulf %323, %325 : vector<8x16xf32>
    %327 = arith.addf %322, %326 : vector<8x16xf32>
    %328 = vector.extract_strided_slice %276 {offsets = [2, 0], sizes = [8, 16], strides = [1, 1]} : vector<10x16xf32> to vector<8x16xf32>
    %329 = vector.extract_strided_slice %4 {offsets = [5, 0], sizes = [1, 16], strides = [1, 1]} : vector<9x16xf32> to vector<1x16xf32>
    %330 = vector.broadcast %329 : vector<1x16xf32> to vector<8x16xf32>
    %331 = arith.mulf %328, %330 : vector<8x16xf32>
    %332 = arith.addf %327, %331 : vector<8x16xf32>
    %cst_31 = arith.constant 0.000000e+00 : f32
    %333 = vector.broadcast %cst_31 : f32 to vector<10x16xf32>
    %334 = vector.broadcast %3 : vector<1x16xf32> to vector<10x16xf32>
    %335 = arith.addf %333, %334 : vector<10x16xf32>
    %336 = vector.extract_strided_slice %1 {offsets = [0, 3], sizes = [10, 1], strides = [1, 1]} : vector<12x18xf32> to vector<10x1xf32>
    %337 = vector.extract_strided_slice %2 {offsets = [0, 0], sizes = [1, 16], strides = [1, 1]} : vector<9x16xf32> to vector<1x16xf32>
    %338 = vector.broadcast %336 : vector<10x1xf32> to vector<10x16xf32>
    %339 = vector.broadcast %337 : vector<1x16xf32> to vector<10x16xf32>
    %340 = arith.mulf %338, %339 : vector<10x16xf32>
    %341 = arith.addf %335, %340 : vector<10x16xf32>
    %342 = vector.extract_strided_slice %1 {offsets = [1, 3], sizes = [10, 1], strides = [1, 1]} : vector<12x18xf32> to vector<10x1xf32>
    %343 = vector.extract_strided_slice %2 {offsets = [1, 0], sizes = [1, 16], strides = [1, 1]} : vector<9x16xf32> to vector<1x16xf32>
    %344 = vector.broadcast %342 : vector<10x1xf32> to vector<10x16xf32>
    %345 = vector.broadcast %343 : vector<1x16xf32> to vector<10x16xf32>
    %346 = arith.mulf %344, %345 : vector<10x16xf32>
    %347 = arith.addf %341, %346 : vector<10x16xf32>
    %348 = vector.extract_strided_slice %1 {offsets = [2, 3], sizes = [10, 1], strides = [1, 1]} : vector<12x18xf32> to vector<10x1xf32>
    %349 = vector.extract_strided_slice %2 {offsets = [2, 0], sizes = [1, 16], strides = [1, 1]} : vector<9x16xf32> to vector<1x16xf32>
    %350 = vector.broadcast %348 : vector<10x1xf32> to vector<10x16xf32>
    %351 = vector.broadcast %349 : vector<1x16xf32> to vector<10x16xf32>
    %352 = arith.mulf %350, %351 : vector<10x16xf32>
    %353 = arith.addf %347, %352 : vector<10x16xf32>
    %354 = vector.extract_strided_slice %1 {offsets = [0, 4], sizes = [10, 1], strides = [1, 1]} : vector<12x18xf32> to vector<10x1xf32>
    %355 = vector.extract_strided_slice %2 {offsets = [3, 0], sizes = [1, 16], strides = [1, 1]} : vector<9x16xf32> to vector<1x16xf32>
    %356 = vector.broadcast %354 : vector<10x1xf32> to vector<10x16xf32>
    %357 = vector.broadcast %355 : vector<1x16xf32> to vector<10x16xf32>
    %358 = arith.mulf %356, %357 : vector<10x16xf32>
    %359 = arith.addf %353, %358 : vector<10x16xf32>
    %360 = vector.extract_strided_slice %1 {offsets = [1, 4], sizes = [10, 1], strides = [1, 1]} : vector<12x18xf32> to vector<10x1xf32>
    %361 = vector.extract_strided_slice %2 {offsets = [4, 0], sizes = [1, 16], strides = [1, 1]} : vector<9x16xf32> to vector<1x16xf32>
    %362 = vector.broadcast %360 : vector<10x1xf32> to vector<10x16xf32>
    %363 = vector.broadcast %361 : vector<1x16xf32> to vector<10x16xf32>
    %364 = arith.mulf %362, %363 : vector<10x16xf32>
    %365 = arith.addf %359, %364 : vector<10x16xf32>
    %366 = vector.extract_strided_slice %1 {offsets = [2, 4], sizes = [10, 1], strides = [1, 1]} : vector<12x18xf32> to vector<10x1xf32>
    %367 = vector.extract_strided_slice %2 {offsets = [5, 0], sizes = [1, 16], strides = [1, 1]} : vector<9x16xf32> to vector<1x16xf32>
    %368 = vector.broadcast %366 : vector<10x1xf32> to vector<10x16xf32>
    %369 = vector.broadcast %367 : vector<1x16xf32> to vector<10x16xf32>
    %370 = arith.mulf %368, %369 : vector<10x16xf32>
    %371 = arith.addf %365, %370 : vector<10x16xf32>
    %372 = vector.extract_strided_slice %1 {offsets = [0, 5], sizes = [10, 1], strides = [1, 1]} : vector<12x18xf32> to vector<10x1xf32>
    %373 = vector.extract_strided_slice %2 {offsets = [6, 0], sizes = [1, 16], strides = [1, 1]} : vector<9x16xf32> to vector<1x16xf32>
    %374 = vector.broadcast %372 : vector<10x1xf32> to vector<10x16xf32>
    %375 = vector.broadcast %373 : vector<1x16xf32> to vector<10x16xf32>
    %376 = arith.mulf %374, %375 : vector<10x16xf32>
    %377 = arith.addf %371, %376 : vector<10x16xf32>
    %378 = vector.extract_strided_slice %1 {offsets = [1, 5], sizes = [10, 1], strides = [1, 1]} : vector<12x18xf32> to vector<10x1xf32>
    %379 = vector.extract_strided_slice %2 {offsets = [7, 0], sizes = [1, 16], strides = [1, 1]} : vector<9x16xf32> to vector<1x16xf32>
    %380 = vector.broadcast %378 : vector<10x1xf32> to vector<10x16xf32>
    %381 = vector.broadcast %379 : vector<1x16xf32> to vector<10x16xf32>
    %382 = arith.mulf %380, %381 : vector<10x16xf32>
    %383 = arith.addf %377, %382 : vector<10x16xf32>
    %384 = vector.extract_strided_slice %1 {offsets = [2, 5], sizes = [10, 1], strides = [1, 1]} : vector<12x18xf32> to vector<10x1xf32>
    %385 = vector.extract_strided_slice %2 {offsets = [8, 0], sizes = [1, 16], strides = [1, 1]} : vector<9x16xf32> to vector<1x16xf32>
    %386 = vector.broadcast %384 : vector<10x1xf32> to vector<10x16xf32>
    %387 = vector.broadcast %385 : vector<1x16xf32> to vector<10x16xf32>
    %388 = arith.mulf %386, %387 : vector<10x16xf32>
    %389 = arith.addf %383, %388 : vector<10x16xf32>
    %cst_32 = arith.constant 0.000000e+00 : f32
    %390 = vector.broadcast %cst_32 : f32 to vector<10x16xf32>
    %391 = arith.maximumf %389, %390 : vector<10x16xf32>
    %392 = vector.broadcast %18 : vector<10x1xf32> to vector<10x16xf32>
    %393 = arith.mulf %391, %392 : vector<10x16xf32>
    %394 = vector.extract_strided_slice %393 {offsets = [0, 0], sizes = [8, 16], strides = [1, 1]} : vector<10x16xf32> to vector<8x16xf32>
    %395 = vector.extract_strided_slice %4 {offsets = [6, 0], sizes = [1, 16], strides = [1, 1]} : vector<9x16xf32> to vector<1x16xf32>
    %396 = vector.broadcast %395 : vector<1x16xf32> to vector<8x16xf32>
    %397 = arith.mulf %394, %396 : vector<8x16xf32>
    %398 = arith.addf %332, %397 : vector<8x16xf32>
    %399 = vector.extract_strided_slice %393 {offsets = [1, 0], sizes = [8, 16], strides = [1, 1]} : vector<10x16xf32> to vector<8x16xf32>
    %400 = vector.extract_strided_slice %4 {offsets = [7, 0], sizes = [1, 16], strides = [1, 1]} : vector<9x16xf32> to vector<1x16xf32>
    %401 = vector.broadcast %400 : vector<1x16xf32> to vector<8x16xf32>
    %402 = arith.mulf %399, %401 : vector<8x16xf32>
    %403 = arith.addf %398, %402 : vector<8x16xf32>
    %404 = vector.extract_strided_slice %393 {offsets = [2, 0], sizes = [8, 16], strides = [1, 1]} : vector<10x16xf32> to vector<8x16xf32>
    %405 = vector.extract_strided_slice %4 {offsets = [8, 0], sizes = [1, 16], strides = [1, 1]} : vector<9x16xf32> to vector<1x16xf32>
    %406 = vector.broadcast %405 : vector<1x16xf32> to vector<8x16xf32>
    %407 = arith.mulf %404, %406 : vector<8x16xf32>
    %408 = arith.addf %403, %407 : vector<8x16xf32>
    %409 = arith.truncf %408 : vector<8x16xf32> to vector<8x16xbf16>
    %c0_33 = arith.constant 0 : index
    %c0_34 = arith.constant 0 : index
    %410 = vector.load %arg7[%c0_33, %c0_34] : memref<16x32xbf16, #tpu.memory_space<vmem>>, vector<16x32xbf16>
    %cst_35 = arith.constant dense<0.000000e+00> : vector<8x32xf32>
    %411 = tpu.matmul %409, %410, %cst_35 {dimension_numbers = #tpu.dot_dimension_numbers<[1], [0], [0], [1], [0, 0, 1, 1], [], []>} : vector<8x16xbf16>, vector<16x32xbf16>, vector<8x32xf32> -> vector<8x32xf32>
    %412 = vector.broadcast %6 : vector<1x32xf32> to vector<8x32xf32>
    %413 = arith.addf %411, %412 : vector<8x32xf32>
    %cst_36 = arith.constant 0.000000e+00 : f32
    %414 = vector.broadcast %cst_36 : f32 to vector<8x32xf32>
    %415 = arith.maximumf %413, %414 : vector<8x32xf32>
    %416 = arith.addf %299, %415 : vector<8x32xf32>
    %cst_37 = arith.constant 0.000000e+00 : f32
    %417 = vector.broadcast %cst_37 : f32 to vector<8x16xf32>
    %418 = vector.broadcast %5 : vector<1x16xf32> to vector<8x16xf32>
    %419 = arith.addf %417, %418 : vector<8x16xf32>
    %420 = vector.extract_strided_slice %276 {offsets = [0, 0], sizes = [8, 16], strides = [1, 1]} : vector<10x16xf32> to vector<8x16xf32>
    %421 = vector.extract_strided_slice %4 {offsets = [0, 0], sizes = [1, 16], strides = [1, 1]} : vector<9x16xf32> to vector<1x16xf32>
    %422 = vector.broadcast %421 : vector<1x16xf32> to vector<8x16xf32>
    %423 = arith.mulf %420, %422 : vector<8x16xf32>
    %424 = arith.addf %419, %423 : vector<8x16xf32>
    %425 = vector.extract_strided_slice %276 {offsets = [1, 0], sizes = [8, 16], strides = [1, 1]} : vector<10x16xf32> to vector<8x16xf32>
    %426 = vector.extract_strided_slice %4 {offsets = [1, 0], sizes = [1, 16], strides = [1, 1]} : vector<9x16xf32> to vector<1x16xf32>
    %427 = vector.broadcast %426 : vector<1x16xf32> to vector<8x16xf32>
    %428 = arith.mulf %425, %427 : vector<8x16xf32>
    %429 = arith.addf %424, %428 : vector<8x16xf32>
    %430 = vector.extract_strided_slice %276 {offsets = [2, 0], sizes = [8, 16], strides = [1, 1]} : vector<10x16xf32> to vector<8x16xf32>
    %431 = vector.extract_strided_slice %4 {offsets = [2, 0], sizes = [1, 16], strides = [1, 1]} : vector<9x16xf32> to vector<1x16xf32>
    %432 = vector.broadcast %431 : vector<1x16xf32> to vector<8x16xf32>
    %433 = arith.mulf %430, %432 : vector<8x16xf32>
    %434 = arith.addf %429, %433 : vector<8x16xf32>
    %435 = vector.extract_strided_slice %393 {offsets = [0, 0], sizes = [8, 16], strides = [1, 1]} : vector<10x16xf32> to vector<8x16xf32>
    %436 = vector.extract_strided_slice %4 {offsets = [3, 0], sizes = [1, 16], strides = [1, 1]} : vector<9x16xf32> to vector<1x16xf32>
    %437 = vector.broadcast %436 : vector<1x16xf32> to vector<8x16xf32>
    %438 = arith.mulf %435, %437 : vector<8x16xf32>
    %439 = arith.addf %434, %438 : vector<8x16xf32>
    %440 = vector.extract_strided_slice %393 {offsets = [1, 0], sizes = [8, 16], strides = [1, 1]} : vector<10x16xf32> to vector<8x16xf32>
    %441 = vector.extract_strided_slice %4 {offsets = [4, 0], sizes = [1, 16], strides = [1, 1]} : vector<9x16xf32> to vector<1x16xf32>
    %442 = vector.broadcast %441 : vector<1x16xf32> to vector<8x16xf32>
    %443 = arith.mulf %440, %442 : vector<8x16xf32>
    %444 = arith.addf %439, %443 : vector<8x16xf32>
    %445 = vector.extract_strided_slice %393 {offsets = [2, 0], sizes = [8, 16], strides = [1, 1]} : vector<10x16xf32> to vector<8x16xf32>
    %446 = vector.extract_strided_slice %4 {offsets = [5, 0], sizes = [1, 16], strides = [1, 1]} : vector<9x16xf32> to vector<1x16xf32>
    %447 = vector.broadcast %446 : vector<1x16xf32> to vector<8x16xf32>
    %448 = arith.mulf %445, %447 : vector<8x16xf32>
    %449 = arith.addf %444, %448 : vector<8x16xf32>
    %cst_38 = arith.constant 0.000000e+00 : f32
    %450 = vector.broadcast %cst_38 : f32 to vector<10x16xf32>
    %451 = vector.broadcast %3 : vector<1x16xf32> to vector<10x16xf32>
    %452 = arith.addf %450, %451 : vector<10x16xf32>
    %453 = vector.extract_strided_slice %1 {offsets = [0, 4], sizes = [10, 1], strides = [1, 1]} : vector<12x18xf32> to vector<10x1xf32>
    %454 = vector.extract_strided_slice %2 {offsets = [0, 0], sizes = [1, 16], strides = [1, 1]} : vector<9x16xf32> to vector<1x16xf32>
    %455 = vector.broadcast %453 : vector<10x1xf32> to vector<10x16xf32>
    %456 = vector.broadcast %454 : vector<1x16xf32> to vector<10x16xf32>
    %457 = arith.mulf %455, %456 : vector<10x16xf32>
    %458 = arith.addf %452, %457 : vector<10x16xf32>
    %459 = vector.extract_strided_slice %1 {offsets = [1, 4], sizes = [10, 1], strides = [1, 1]} : vector<12x18xf32> to vector<10x1xf32>
    %460 = vector.extract_strided_slice %2 {offsets = [1, 0], sizes = [1, 16], strides = [1, 1]} : vector<9x16xf32> to vector<1x16xf32>
    %461 = vector.broadcast %459 : vector<10x1xf32> to vector<10x16xf32>
    %462 = vector.broadcast %460 : vector<1x16xf32> to vector<10x16xf32>
    %463 = arith.mulf %461, %462 : vector<10x16xf32>
    %464 = arith.addf %458, %463 : vector<10x16xf32>
    %465 = vector.extract_strided_slice %1 {offsets = [2, 4], sizes = [10, 1], strides = [1, 1]} : vector<12x18xf32> to vector<10x1xf32>
    %466 = vector.extract_strided_slice %2 {offsets = [2, 0], sizes = [1, 16], strides = [1, 1]} : vector<9x16xf32> to vector<1x16xf32>
    %467 = vector.broadcast %465 : vector<10x1xf32> to vector<10x16xf32>
    %468 = vector.broadcast %466 : vector<1x16xf32> to vector<10x16xf32>
    %469 = arith.mulf %467, %468 : vector<10x16xf32>
    %470 = arith.addf %464, %469 : vector<10x16xf32>
    %471 = vector.extract_strided_slice %1 {offsets = [0, 5], sizes = [10, 1], strides = [1, 1]} : vector<12x18xf32> to vector<10x1xf32>
    %472 = vector.extract_strided_slice %2 {offsets = [3, 0], sizes = [1, 16], strides = [1, 1]} : vector<9x16xf32> to vector<1x16xf32>
    %473 = vector.broadcast %471 : vector<10x1xf32> to vector<10x16xf32>
    %474 = vector.broadcast %472 : vector<1x16xf32> to vector<10x16xf32>
    %475 = arith.mulf %473, %474 : vector<10x16xf32>
    %476 = arith.addf %470, %475 : vector<10x16xf32>
    %477 = vector.extract_strided_slice %1 {offsets = [1, 5], sizes = [10, 1], strides = [1, 1]} : vector<12x18xf32> to vector<10x1xf32>
    %478 = vector.extract_strided_slice %2 {offsets = [4, 0], sizes = [1, 16], strides = [1, 1]} : vector<9x16xf32> to vector<1x16xf32>
    %479 = vector.broadcast %477 : vector<10x1xf32> to vector<10x16xf32>
    %480 = vector.broadcast %478 : vector<1x16xf32> to vector<10x16xf32>
    %481 = arith.mulf %479, %480 : vector<10x16xf32>
    %482 = arith.addf %476, %481 : vector<10x16xf32>
    %483 = vector.extract_strided_slice %1 {offsets = [2, 5], sizes = [10, 1], strides = [1, 1]} : vector<12x18xf32> to vector<10x1xf32>
    %484 = vector.extract_strided_slice %2 {offsets = [5, 0], sizes = [1, 16], strides = [1, 1]} : vector<9x16xf32> to vector<1x16xf32>
    %485 = vector.broadcast %483 : vector<10x1xf32> to vector<10x16xf32>
    %486 = vector.broadcast %484 : vector<1x16xf32> to vector<10x16xf32>
    %487 = arith.mulf %485, %486 : vector<10x16xf32>
    %488 = arith.addf %482, %487 : vector<10x16xf32>
    %489 = vector.extract_strided_slice %1 {offsets = [0, 6], sizes = [10, 1], strides = [1, 1]} : vector<12x18xf32> to vector<10x1xf32>
    %490 = vector.extract_strided_slice %2 {offsets = [6, 0], sizes = [1, 16], strides = [1, 1]} : vector<9x16xf32> to vector<1x16xf32>
    %491 = vector.broadcast %489 : vector<10x1xf32> to vector<10x16xf32>
    %492 = vector.broadcast %490 : vector<1x16xf32> to vector<10x16xf32>
    %493 = arith.mulf %491, %492 : vector<10x16xf32>
    %494 = arith.addf %488, %493 : vector<10x16xf32>
    %495 = vector.extract_strided_slice %1 {offsets = [1, 6], sizes = [10, 1], strides = [1, 1]} : vector<12x18xf32> to vector<10x1xf32>
    %496 = vector.extract_strided_slice %2 {offsets = [7, 0], sizes = [1, 16], strides = [1, 1]} : vector<9x16xf32> to vector<1x16xf32>
    %497 = vector.broadcast %495 : vector<10x1xf32> to vector<10x16xf32>
    %498 = vector.broadcast %496 : vector<1x16xf32> to vector<10x16xf32>
    %499 = arith.mulf %497, %498 : vector<10x16xf32>
    %500 = arith.addf %494, %499 : vector<10x16xf32>
    %501 = vector.extract_strided_slice %1 {offsets = [2, 6], sizes = [10, 1], strides = [1, 1]} : vector<12x18xf32> to vector<10x1xf32>
    %502 = vector.extract_strided_slice %2 {offsets = [8, 0], sizes = [1, 16], strides = [1, 1]} : vector<9x16xf32> to vector<1x16xf32>
    %503 = vector.broadcast %501 : vector<10x1xf32> to vector<10x16xf32>
    %504 = vector.broadcast %502 : vector<1x16xf32> to vector<10x16xf32>
    %505 = arith.mulf %503, %504 : vector<10x16xf32>
    %506 = arith.addf %500, %505 : vector<10x16xf32>
    %cst_39 = arith.constant 0.000000e+00 : f32
    %507 = vector.broadcast %cst_39 : f32 to vector<10x16xf32>
    %508 = arith.maximumf %506, %507 : vector<10x16xf32>
    %509 = vector.broadcast %18 : vector<10x1xf32> to vector<10x16xf32>
    %510 = arith.mulf %508, %509 : vector<10x16xf32>
    %511 = vector.extract_strided_slice %510 {offsets = [0, 0], sizes = [8, 16], strides = [1, 1]} : vector<10x16xf32> to vector<8x16xf32>
    %512 = vector.extract_strided_slice %4 {offsets = [6, 0], sizes = [1, 16], strides = [1, 1]} : vector<9x16xf32> to vector<1x16xf32>
    %513 = vector.broadcast %512 : vector<1x16xf32> to vector<8x16xf32>
    %514 = arith.mulf %511, %513 : vector<8x16xf32>
    %515 = arith.addf %449, %514 : vector<8x16xf32>
    %516 = vector.extract_strided_slice %510 {offsets = [1, 0], sizes = [8, 16], strides = [1, 1]} : vector<10x16xf32> to vector<8x16xf32>
    %517 = vector.extract_strided_slice %4 {offsets = [7, 0], sizes = [1, 16], strides = [1, 1]} : vector<9x16xf32> to vector<1x16xf32>
    %518 = vector.broadcast %517 : vector<1x16xf32> to vector<8x16xf32>
    %519 = arith.mulf %516, %518 : vector<8x16xf32>
    %520 = arith.addf %515, %519 : vector<8x16xf32>
    %521 = vector.extract_strided_slice %510 {offsets = [2, 0], sizes = [8, 16], strides = [1, 1]} : vector<10x16xf32> to vector<8x16xf32>
    %522 = vector.extract_strided_slice %4 {offsets = [8, 0], sizes = [1, 16], strides = [1, 1]} : vector<9x16xf32> to vector<1x16xf32>
    %523 = vector.broadcast %522 : vector<1x16xf32> to vector<8x16xf32>
    %524 = arith.mulf %521, %523 : vector<8x16xf32>
    %525 = arith.addf %520, %524 : vector<8x16xf32>
    %526 = arith.truncf %525 : vector<8x16xf32> to vector<8x16xbf16>
    %c0_40 = arith.constant 0 : index
    %c0_41 = arith.constant 0 : index
    %527 = vector.load %arg7[%c0_40, %c0_41] : memref<16x32xbf16, #tpu.memory_space<vmem>>, vector<16x32xbf16>
    %cst_42 = arith.constant dense<0.000000e+00> : vector<8x32xf32>
    %528 = tpu.matmul %526, %527, %cst_42 {dimension_numbers = #tpu.dot_dimension_numbers<[1], [0], [0], [1], [0, 0, 1, 1], [], []>} : vector<8x16xbf16>, vector<16x32xbf16>, vector<8x32xf32> -> vector<8x32xf32>
    %529 = vector.broadcast %6 : vector<1x32xf32> to vector<8x32xf32>
    %530 = arith.addf %528, %529 : vector<8x32xf32>
    %cst_43 = arith.constant 0.000000e+00 : f32
    %531 = vector.broadcast %cst_43 : f32 to vector<8x32xf32>
    %532 = arith.maximumf %530, %531 : vector<8x32xf32>
    %533 = arith.addf %416, %532 : vector<8x32xf32>
    %cst_44 = arith.constant 0.000000e+00 : f32
    %534 = vector.broadcast %cst_44 : f32 to vector<8x16xf32>
    %535 = vector.broadcast %5 : vector<1x16xf32> to vector<8x16xf32>
    %536 = arith.addf %534, %535 : vector<8x16xf32>
    %537 = vector.extract_strided_slice %393 {offsets = [0, 0], sizes = [8, 16], strides = [1, 1]} : vector<10x16xf32> to vector<8x16xf32>
    %538 = vector.extract_strided_slice %4 {offsets = [0, 0], sizes = [1, 16], strides = [1, 1]} : vector<9x16xf32> to vector<1x16xf32>
    %539 = vector.broadcast %538 : vector<1x16xf32> to vector<8x16xf32>
    %540 = arith.mulf %537, %539 : vector<8x16xf32>
    %541 = arith.addf %536, %540 : vector<8x16xf32>
    %542 = vector.extract_strided_slice %393 {offsets = [1, 0], sizes = [8, 16], strides = [1, 1]} : vector<10x16xf32> to vector<8x16xf32>
    %543 = vector.extract_strided_slice %4 {offsets = [1, 0], sizes = [1, 16], strides = [1, 1]} : vector<9x16xf32> to vector<1x16xf32>
    %544 = vector.broadcast %543 : vector<1x16xf32> to vector<8x16xf32>
    %545 = arith.mulf %542, %544 : vector<8x16xf32>
    %546 = arith.addf %541, %545 : vector<8x16xf32>
    %547 = vector.extract_strided_slice %393 {offsets = [2, 0], sizes = [8, 16], strides = [1, 1]} : vector<10x16xf32> to vector<8x16xf32>
    %548 = vector.extract_strided_slice %4 {offsets = [2, 0], sizes = [1, 16], strides = [1, 1]} : vector<9x16xf32> to vector<1x16xf32>
    %549 = vector.broadcast %548 : vector<1x16xf32> to vector<8x16xf32>
    %550 = arith.mulf %547, %549 : vector<8x16xf32>
    %551 = arith.addf %546, %550 : vector<8x16xf32>
    %552 = vector.extract_strided_slice %510 {offsets = [0, 0], sizes = [8, 16], strides = [1, 1]} : vector<10x16xf32> to vector<8x16xf32>
    %553 = vector.extract_strided_slice %4 {offsets = [3, 0], sizes = [1, 16], strides = [1, 1]} : vector<9x16xf32> to vector<1x16xf32>
    %554 = vector.broadcast %553 : vector<1x16xf32> to vector<8x16xf32>
    %555 = arith.mulf %552, %554 : vector<8x16xf32>
    %556 = arith.addf %551, %555 : vector<8x16xf32>
    %557 = vector.extract_strided_slice %510 {offsets = [1, 0], sizes = [8, 16], strides = [1, 1]} : vector<10x16xf32> to vector<8x16xf32>
    %558 = vector.extract_strided_slice %4 {offsets = [4, 0], sizes = [1, 16], strides = [1, 1]} : vector<9x16xf32> to vector<1x16xf32>
    %559 = vector.broadcast %558 : vector<1x16xf32> to vector<8x16xf32>
    %560 = arith.mulf %557, %559 : vector<8x16xf32>
    %561 = arith.addf %556, %560 : vector<8x16xf32>
    %562 = vector.extract_strided_slice %510 {offsets = [2, 0], sizes = [8, 16], strides = [1, 1]} : vector<10x16xf32> to vector<8x16xf32>
    %563 = vector.extract_strided_slice %4 {offsets = [5, 0], sizes = [1, 16], strides = [1, 1]} : vector<9x16xf32> to vector<1x16xf32>
    %564 = vector.broadcast %563 : vector<1x16xf32> to vector<8x16xf32>
    %565 = arith.mulf %562, %564 : vector<8x16xf32>
    %566 = arith.addf %561, %565 : vector<8x16xf32>
    %cst_45 = arith.constant 0.000000e+00 : f32
    %567 = vector.broadcast %cst_45 : f32 to vector<10x16xf32>
    %568 = vector.broadcast %3 : vector<1x16xf32> to vector<10x16xf32>
    %569 = arith.addf %567, %568 : vector<10x16xf32>
    %570 = vector.extract_strided_slice %1 {offsets = [0, 5], sizes = [10, 1], strides = [1, 1]} : vector<12x18xf32> to vector<10x1xf32>
    %571 = vector.extract_strided_slice %2 {offsets = [0, 0], sizes = [1, 16], strides = [1, 1]} : vector<9x16xf32> to vector<1x16xf32>
    %572 = vector.broadcast %570 : vector<10x1xf32> to vector<10x16xf32>
    %573 = vector.broadcast %571 : vector<1x16xf32> to vector<10x16xf32>
    %574 = arith.mulf %572, %573 : vector<10x16xf32>
    %575 = arith.addf %569, %574 : vector<10x16xf32>
    %576 = vector.extract_strided_slice %1 {offsets = [1, 5], sizes = [10, 1], strides = [1, 1]} : vector<12x18xf32> to vector<10x1xf32>
    %577 = vector.extract_strided_slice %2 {offsets = [1, 0], sizes = [1, 16], strides = [1, 1]} : vector<9x16xf32> to vector<1x16xf32>
    %578 = vector.broadcast %576 : vector<10x1xf32> to vector<10x16xf32>
    %579 = vector.broadcast %577 : vector<1x16xf32> to vector<10x16xf32>
    %580 = arith.mulf %578, %579 : vector<10x16xf32>
    %581 = arith.addf %575, %580 : vector<10x16xf32>
    %582 = vector.extract_strided_slice %1 {offsets = [2, 5], sizes = [10, 1], strides = [1, 1]} : vector<12x18xf32> to vector<10x1xf32>
    %583 = vector.extract_strided_slice %2 {offsets = [2, 0], sizes = [1, 16], strides = [1, 1]} : vector<9x16xf32> to vector<1x16xf32>
    %584 = vector.broadcast %582 : vector<10x1xf32> to vector<10x16xf32>
    %585 = vector.broadcast %583 : vector<1x16xf32> to vector<10x16xf32>
    %586 = arith.mulf %584, %585 : vector<10x16xf32>
    %587 = arith.addf %581, %586 : vector<10x16xf32>
    %588 = vector.extract_strided_slice %1 {offsets = [0, 6], sizes = [10, 1], strides = [1, 1]} : vector<12x18xf32> to vector<10x1xf32>
    %589 = vector.extract_strided_slice %2 {offsets = [3, 0], sizes = [1, 16], strides = [1, 1]} : vector<9x16xf32> to vector<1x16xf32>
    %590 = vector.broadcast %588 : vector<10x1xf32> to vector<10x16xf32>
    %591 = vector.broadcast %589 : vector<1x16xf32> to vector<10x16xf32>
    %592 = arith.mulf %590, %591 : vector<10x16xf32>
    %593 = arith.addf %587, %592 : vector<10x16xf32>
    %594 = vector.extract_strided_slice %1 {offsets = [1, 6], sizes = [10, 1], strides = [1, 1]} : vector<12x18xf32> to vector<10x1xf32>
    %595 = vector.extract_strided_slice %2 {offsets = [4, 0], sizes = [1, 16], strides = [1, 1]} : vector<9x16xf32> to vector<1x16xf32>
    %596 = vector.broadcast %594 : vector<10x1xf32> to vector<10x16xf32>
    %597 = vector.broadcast %595 : vector<1x16xf32> to vector<10x16xf32>
    %598 = arith.mulf %596, %597 : vector<10x16xf32>
    %599 = arith.addf %593, %598 : vector<10x16xf32>
    %600 = vector.extract_strided_slice %1 {offsets = [2, 6], sizes = [10, 1], strides = [1, 1]} : vector<12x18xf32> to vector<10x1xf32>
    %601 = vector.extract_strided_slice %2 {offsets = [5, 0], sizes = [1, 16], strides = [1, 1]} : vector<9x16xf32> to vector<1x16xf32>
    %602 = vector.broadcast %600 : vector<10x1xf32> to vector<10x16xf32>
    %603 = vector.broadcast %601 : vector<1x16xf32> to vector<10x16xf32>
    %604 = arith.mulf %602, %603 : vector<10x16xf32>
    %605 = arith.addf %599, %604 : vector<10x16xf32>
    %606 = vector.extract_strided_slice %1 {offsets = [0, 7], sizes = [10, 1], strides = [1, 1]} : vector<12x18xf32> to vector<10x1xf32>
    %607 = vector.extract_strided_slice %2 {offsets = [6, 0], sizes = [1, 16], strides = [1, 1]} : vector<9x16xf32> to vector<1x16xf32>
    %608 = vector.broadcast %606 : vector<10x1xf32> to vector<10x16xf32>
    %609 = vector.broadcast %607 : vector<1x16xf32> to vector<10x16xf32>
    %610 = arith.mulf %608, %609 : vector<10x16xf32>
    %611 = arith.addf %605, %610 : vector<10x16xf32>
    %612 = vector.extract_strided_slice %1 {offsets = [1, 7], sizes = [10, 1], strides = [1, 1]} : vector<12x18xf32> to vector<10x1xf32>
    %613 = vector.extract_strided_slice %2 {offsets = [7, 0], sizes = [1, 16], strides = [1, 1]} : vector<9x16xf32> to vector<1x16xf32>
    %614 = vector.broadcast %612 : vector<10x1xf32> to vector<10x16xf32>
    %615 = vector.broadcast %613 : vector<1x16xf32> to vector<10x16xf32>
    %616 = arith.mulf %614, %615 : vector<10x16xf32>
    %617 = arith.addf %611, %616 : vector<10x16xf32>
    %618 = vector.extract_strided_slice %1 {offsets = [2, 7], sizes = [10, 1], strides = [1, 1]} : vector<12x18xf32> to vector<10x1xf32>
    %619 = vector.extract_strided_slice %2 {offsets = [8, 0], sizes = [1, 16], strides = [1, 1]} : vector<9x16xf32> to vector<1x16xf32>
    %620 = vector.broadcast %618 : vector<10x1xf32> to vector<10x16xf32>
    %621 = vector.broadcast %619 : vector<1x16xf32> to vector<10x16xf32>
    %622 = arith.mulf %620, %621 : vector<10x16xf32>
    %623 = arith.addf %617, %622 : vector<10x16xf32>
    %cst_46 = arith.constant 0.000000e+00 : f32
    %624 = vector.broadcast %cst_46 : f32 to vector<10x16xf32>
    %625 = arith.maximumf %623, %624 : vector<10x16xf32>
    %626 = vector.broadcast %18 : vector<10x1xf32> to vector<10x16xf32>
    %627 = arith.mulf %625, %626 : vector<10x16xf32>
    %628 = vector.extract_strided_slice %627 {offsets = [0, 0], sizes = [8, 16], strides = [1, 1]} : vector<10x16xf32> to vector<8x16xf32>
    %629 = vector.extract_strided_slice %4 {offsets = [6, 0], sizes = [1, 16], strides = [1, 1]} : vector<9x16xf32> to vector<1x16xf32>
    %630 = vector.broadcast %629 : vector<1x16xf32> to vector<8x16xf32>
    %631 = arith.mulf %628, %630 : vector<8x16xf32>
    %632 = arith.addf %566, %631 : vector<8x16xf32>
    %633 = vector.extract_strided_slice %627 {offsets = [1, 0], sizes = [8, 16], strides = [1, 1]} : vector<10x16xf32> to vector<8x16xf32>
    %634 = vector.extract_strided_slice %4 {offsets = [7, 0], sizes = [1, 16], strides = [1, 1]} : vector<9x16xf32> to vector<1x16xf32>
    %635 = vector.broadcast %634 : vector<1x16xf32> to vector<8x16xf32>
    %636 = arith.mulf %633, %635 : vector<8x16xf32>
    %637 = arith.addf %632, %636 : vector<8x16xf32>
    %638 = vector.extract_strided_slice %627 {offsets = [2, 0], sizes = [8, 16], strides = [1, 1]} : vector<10x16xf32> to vector<8x16xf32>
    %639 = vector.extract_strided_slice %4 {offsets = [8, 0], sizes = [1, 16], strides = [1, 1]} : vector<9x16xf32> to vector<1x16xf32>
    %640 = vector.broadcast %639 : vector<1x16xf32> to vector<8x16xf32>
    %641 = arith.mulf %638, %640 : vector<8x16xf32>
    %642 = arith.addf %637, %641 : vector<8x16xf32>
    %643 = arith.truncf %642 : vector<8x16xf32> to vector<8x16xbf16>
    %c0_47 = arith.constant 0 : index
    %c0_48 = arith.constant 0 : index
    %644 = vector.load %arg7[%c0_47, %c0_48] : memref<16x32xbf16, #tpu.memory_space<vmem>>, vector<16x32xbf16>
    %cst_49 = arith.constant dense<0.000000e+00> : vector<8x32xf32>
    %645 = tpu.matmul %643, %644, %cst_49 {dimension_numbers = #tpu.dot_dimension_numbers<[1], [0], [0], [1], [0, 0, 1, 1], [], []>} : vector<8x16xbf16>, vector<16x32xbf16>, vector<8x32xf32> -> vector<8x32xf32>
    %646 = vector.broadcast %6 : vector<1x32xf32> to vector<8x32xf32>
    %647 = arith.addf %645, %646 : vector<8x32xf32>
    %cst_50 = arith.constant 0.000000e+00 : f32
    %648 = vector.broadcast %cst_50 : f32 to vector<8x32xf32>
    %649 = arith.maximumf %647, %648 : vector<8x32xf32>
    %650 = arith.addf %533, %649 : vector<8x32xf32>
    %cst_51 = arith.constant 0.000000e+00 : f32
    %651 = vector.broadcast %cst_51 : f32 to vector<8x16xf32>
    %652 = vector.broadcast %5 : vector<1x16xf32> to vector<8x16xf32>
    %653 = arith.addf %651, %652 : vector<8x16xf32>
    %654 = vector.extract_strided_slice %510 {offsets = [0, 0], sizes = [8, 16], strides = [1, 1]} : vector<10x16xf32> to vector<8x16xf32>
    %655 = vector.extract_strided_slice %4 {offsets = [0, 0], sizes = [1, 16], strides = [1, 1]} : vector<9x16xf32> to vector<1x16xf32>
    %656 = vector.broadcast %655 : vector<1x16xf32> to vector<8x16xf32>
    %657 = arith.mulf %654, %656 : vector<8x16xf32>
    %658 = arith.addf %653, %657 : vector<8x16xf32>
    %659 = vector.extract_strided_slice %510 {offsets = [1, 0], sizes = [8, 16], strides = [1, 1]} : vector<10x16xf32> to vector<8x16xf32>
    %660 = vector.extract_strided_slice %4 {offsets = [1, 0], sizes = [1, 16], strides = [1, 1]} : vector<9x16xf32> to vector<1x16xf32>
    %661 = vector.broadcast %660 : vector<1x16xf32> to vector<8x16xf32>
    %662 = arith.mulf %659, %661 : vector<8x16xf32>
    %663 = arith.addf %658, %662 : vector<8x16xf32>
    %664 = vector.extract_strided_slice %510 {offsets = [2, 0], sizes = [8, 16], strides = [1, 1]} : vector<10x16xf32> to vector<8x16xf32>
    %665 = vector.extract_strided_slice %4 {offsets = [2, 0], sizes = [1, 16], strides = [1, 1]} : vector<9x16xf32> to vector<1x16xf32>
    %666 = vector.broadcast %665 : vector<1x16xf32> to vector<8x16xf32>
    %667 = arith.mulf %664, %666 : vector<8x16xf32>
    %668 = arith.addf %663, %667 : vector<8x16xf32>
    %669 = vector.extract_strided_slice %627 {offsets = [0, 0], sizes = [8, 16], strides = [1, 1]} : vector<10x16xf32> to vector<8x16xf32>
    %670 = vector.extract_strided_slice %4 {offsets = [3, 0], sizes = [1, 16], strides = [1, 1]} : vector<9x16xf32> to vector<1x16xf32>
    %671 = vector.broadcast %670 : vector<1x16xf32> to vector<8x16xf32>
    %672 = arith.mulf %669, %671 : vector<8x16xf32>
    %673 = arith.addf %668, %672 : vector<8x16xf32>
    %674 = vector.extract_strided_slice %627 {offsets = [1, 0], sizes = [8, 16], strides = [1, 1]} : vector<10x16xf32> to vector<8x16xf32>
    %675 = vector.extract_strided_slice %4 {offsets = [4, 0], sizes = [1, 16], strides = [1, 1]} : vector<9x16xf32> to vector<1x16xf32>
    %676 = vector.broadcast %675 : vector<1x16xf32> to vector<8x16xf32>
    %677 = arith.mulf %674, %676 : vector<8x16xf32>
    %678 = arith.addf %673, %677 : vector<8x16xf32>
    %679 = vector.extract_strided_slice %627 {offsets = [2, 0], sizes = [8, 16], strides = [1, 1]} : vector<10x16xf32> to vector<8x16xf32>
    %680 = vector.extract_strided_slice %4 {offsets = [5, 0], sizes = [1, 16], strides = [1, 1]} : vector<9x16xf32> to vector<1x16xf32>
    %681 = vector.broadcast %680 : vector<1x16xf32> to vector<8x16xf32>
    %682 = arith.mulf %679, %681 : vector<8x16xf32>
    %683 = arith.addf %678, %682 : vector<8x16xf32>
    %cst_52 = arith.constant 0.000000e+00 : f32
    %684 = vector.broadcast %cst_52 : f32 to vector<10x16xf32>
    %685 = vector.broadcast %3 : vector<1x16xf32> to vector<10x16xf32>
    %686 = arith.addf %684, %685 : vector<10x16xf32>
    %687 = vector.extract_strided_slice %1 {offsets = [0, 6], sizes = [10, 1], strides = [1, 1]} : vector<12x18xf32> to vector<10x1xf32>
    %688 = vector.extract_strided_slice %2 {offsets = [0, 0], sizes = [1, 16], strides = [1, 1]} : vector<9x16xf32> to vector<1x16xf32>
    %689 = vector.broadcast %687 : vector<10x1xf32> to vector<10x16xf32>
    %690 = vector.broadcast %688 : vector<1x16xf32> to vector<10x16xf32>
    %691 = arith.mulf %689, %690 : vector<10x16xf32>
    %692 = arith.addf %686, %691 : vector<10x16xf32>
    %693 = vector.extract_strided_slice %1 {offsets = [1, 6], sizes = [10, 1], strides = [1, 1]} : vector<12x18xf32> to vector<10x1xf32>
    %694 = vector.extract_strided_slice %2 {offsets = [1, 0], sizes = [1, 16], strides = [1, 1]} : vector<9x16xf32> to vector<1x16xf32>
    %695 = vector.broadcast %693 : vector<10x1xf32> to vector<10x16xf32>
    %696 = vector.broadcast %694 : vector<1x16xf32> to vector<10x16xf32>
    %697 = arith.mulf %695, %696 : vector<10x16xf32>
    %698 = arith.addf %692, %697 : vector<10x16xf32>
    %699 = vector.extract_strided_slice %1 {offsets = [2, 6], sizes = [10, 1], strides = [1, 1]} : vector<12x18xf32> to vector<10x1xf32>
    %700 = vector.extract_strided_slice %2 {offsets = [2, 0], sizes = [1, 16], strides = [1, 1]} : vector<9x16xf32> to vector<1x16xf32>
    %701 = vector.broadcast %699 : vector<10x1xf32> to vector<10x16xf32>
    %702 = vector.broadcast %700 : vector<1x16xf32> to vector<10x16xf32>
    %703 = arith.mulf %701, %702 : vector<10x16xf32>
    %704 = arith.addf %698, %703 : vector<10x16xf32>
    %705 = vector.extract_strided_slice %1 {offsets = [0, 7], sizes = [10, 1], strides = [1, 1]} : vector<12x18xf32> to vector<10x1xf32>
    %706 = vector.extract_strided_slice %2 {offsets = [3, 0], sizes = [1, 16], strides = [1, 1]} : vector<9x16xf32> to vector<1x16xf32>
    %707 = vector.broadcast %705 : vector<10x1xf32> to vector<10x16xf32>
    %708 = vector.broadcast %706 : vector<1x16xf32> to vector<10x16xf32>
    %709 = arith.mulf %707, %708 : vector<10x16xf32>
    %710 = arith.addf %704, %709 : vector<10x16xf32>
    %711 = vector.extract_strided_slice %1 {offsets = [1, 7], sizes = [10, 1], strides = [1, 1]} : vector<12x18xf32> to vector<10x1xf32>
    %712 = vector.extract_strided_slice %2 {offsets = [4, 0], sizes = [1, 16], strides = [1, 1]} : vector<9x16xf32> to vector<1x16xf32>
    %713 = vector.broadcast %711 : vector<10x1xf32> to vector<10x16xf32>
    %714 = vector.broadcast %712 : vector<1x16xf32> to vector<10x16xf32>
    %715 = arith.mulf %713, %714 : vector<10x16xf32>
    %716 = arith.addf %710, %715 : vector<10x16xf32>
    %717 = vector.extract_strided_slice %1 {offsets = [2, 7], sizes = [10, 1], strides = [1, 1]} : vector<12x18xf32> to vector<10x1xf32>
    %718 = vector.extract_strided_slice %2 {offsets = [5, 0], sizes = [1, 16], strides = [1, 1]} : vector<9x16xf32> to vector<1x16xf32>
    %719 = vector.broadcast %717 : vector<10x1xf32> to vector<10x16xf32>
    %720 = vector.broadcast %718 : vector<1x16xf32> to vector<10x16xf32>
    %721 = arith.mulf %719, %720 : vector<10x16xf32>
    %722 = arith.addf %716, %721 : vector<10x16xf32>
    %723 = vector.extract_strided_slice %1 {offsets = [0, 8], sizes = [10, 1], strides = [1, 1]} : vector<12x18xf32> to vector<10x1xf32>
    %724 = vector.extract_strided_slice %2 {offsets = [6, 0], sizes = [1, 16], strides = [1, 1]} : vector<9x16xf32> to vector<1x16xf32>
    %725 = vector.broadcast %723 : vector<10x1xf32> to vector<10x16xf32>
    %726 = vector.broadcast %724 : vector<1x16xf32> to vector<10x16xf32>
    %727 = arith.mulf %725, %726 : vector<10x16xf32>
    %728 = arith.addf %722, %727 : vector<10x16xf32>
    %729 = vector.extract_strided_slice %1 {offsets = [1, 8], sizes = [10, 1], strides = [1, 1]} : vector<12x18xf32> to vector<10x1xf32>
    %730 = vector.extract_strided_slice %2 {offsets = [7, 0], sizes = [1, 16], strides = [1, 1]} : vector<9x16xf32> to vector<1x16xf32>
    %731 = vector.broadcast %729 : vector<10x1xf32> to vector<10x16xf32>
    %732 = vector.broadcast %730 : vector<1x16xf32> to vector<10x16xf32>
    %733 = arith.mulf %731, %732 : vector<10x16xf32>
    %734 = arith.addf %728, %733 : vector<10x16xf32>
    %735 = vector.extract_strided_slice %1 {offsets = [2, 8], sizes = [10, 1], strides = [1, 1]} : vector<12x18xf32> to vector<10x1xf32>
    %736 = vector.extract_strided_slice %2 {offsets = [8, 0], sizes = [1, 16], strides = [1, 1]} : vector<9x16xf32> to vector<1x16xf32>
    %737 = vector.broadcast %735 : vector<10x1xf32> to vector<10x16xf32>
    %738 = vector.broadcast %736 : vector<1x16xf32> to vector<10x16xf32>
    %739 = arith.mulf %737, %738 : vector<10x16xf32>
    %740 = arith.addf %734, %739 : vector<10x16xf32>
    %cst_53 = arith.constant 0.000000e+00 : f32
    %741 = vector.broadcast %cst_53 : f32 to vector<10x16xf32>
    %742 = arith.maximumf %740, %741 : vector<10x16xf32>
    %743 = vector.broadcast %18 : vector<10x1xf32> to vector<10x16xf32>
    %744 = arith.mulf %742, %743 : vector<10x16xf32>
    %745 = vector.extract_strided_slice %744 {offsets = [0, 0], sizes = [8, 16], strides = [1, 1]} : vector<10x16xf32> to vector<8x16xf32>
    %746 = vector.extract_strided_slice %4 {offsets = [6, 0], sizes = [1, 16], strides = [1, 1]} : vector<9x16xf32> to vector<1x16xf32>
    %747 = vector.broadcast %746 : vector<1x16xf32> to vector<8x16xf32>
    %748 = arith.mulf %745, %747 : vector<8x16xf32>
    %749 = arith.addf %683, %748 : vector<8x16xf32>
    %750 = vector.extract_strided_slice %744 {offsets = [1, 0], sizes = [8, 16], strides = [1, 1]} : vector<10x16xf32> to vector<8x16xf32>
    %751 = vector.extract_strided_slice %4 {offsets = [7, 0], sizes = [1, 16], strides = [1, 1]} : vector<9x16xf32> to vector<1x16xf32>
    %752 = vector.broadcast %751 : vector<1x16xf32> to vector<8x16xf32>
    %753 = arith.mulf %750, %752 : vector<8x16xf32>
    %754 = arith.addf %749, %753 : vector<8x16xf32>
    %755 = vector.extract_strided_slice %744 {offsets = [2, 0], sizes = [8, 16], strides = [1, 1]} : vector<10x16xf32> to vector<8x16xf32>
    %756 = vector.extract_strided_slice %4 {offsets = [8, 0], sizes = [1, 16], strides = [1, 1]} : vector<9x16xf32> to vector<1x16xf32>
    %757 = vector.broadcast %756 : vector<1x16xf32> to vector<8x16xf32>
    %758 = arith.mulf %755, %757 : vector<8x16xf32>
    %759 = arith.addf %754, %758 : vector<8x16xf32>
    %760 = arith.truncf %759 : vector<8x16xf32> to vector<8x16xbf16>
    %c0_54 = arith.constant 0 : index
    %c0_55 = arith.constant 0 : index
    %761 = vector.load %arg7[%c0_54, %c0_55] : memref<16x32xbf16, #tpu.memory_space<vmem>>, vector<16x32xbf16>
    %cst_56 = arith.constant dense<0.000000e+00> : vector<8x32xf32>
    %762 = tpu.matmul %760, %761, %cst_56 {dimension_numbers = #tpu.dot_dimension_numbers<[1], [0], [0], [1], [0, 0, 1, 1], [], []>} : vector<8x16xbf16>, vector<16x32xbf16>, vector<8x32xf32> -> vector<8x32xf32>
    %763 = vector.broadcast %6 : vector<1x32xf32> to vector<8x32xf32>
    %764 = arith.addf %762, %763 : vector<8x32xf32>
    %cst_57 = arith.constant 0.000000e+00 : f32
    %765 = vector.broadcast %cst_57 : f32 to vector<8x32xf32>
    %766 = arith.maximumf %764, %765 : vector<8x32xf32>
    %767 = arith.addf %650, %766 : vector<8x32xf32>
    %cst_58 = arith.constant 0.000000e+00 : f32
    %768 = vector.broadcast %cst_58 : f32 to vector<8x16xf32>
    %769 = vector.broadcast %5 : vector<1x16xf32> to vector<8x16xf32>
    %770 = arith.addf %768, %769 : vector<8x16xf32>
    %771 = vector.extract_strided_slice %627 {offsets = [0, 0], sizes = [8, 16], strides = [1, 1]} : vector<10x16xf32> to vector<8x16xf32>
    %772 = vector.extract_strided_slice %4 {offsets = [0, 0], sizes = [1, 16], strides = [1, 1]} : vector<9x16xf32> to vector<1x16xf32>
    %773 = vector.broadcast %772 : vector<1x16xf32> to vector<8x16xf32>
    %774 = arith.mulf %771, %773 : vector<8x16xf32>
    %775 = arith.addf %770, %774 : vector<8x16xf32>
    %776 = vector.extract_strided_slice %627 {offsets = [1, 0], sizes = [8, 16], strides = [1, 1]} : vector<10x16xf32> to vector<8x16xf32>
    %777 = vector.extract_strided_slice %4 {offsets = [1, 0], sizes = [1, 16], strides = [1, 1]} : vector<9x16xf32> to vector<1x16xf32>
    %778 = vector.broadcast %777 : vector<1x16xf32> to vector<8x16xf32>
    %779 = arith.mulf %776, %778 : vector<8x16xf32>
    %780 = arith.addf %775, %779 : vector<8x16xf32>
    %781 = vector.extract_strided_slice %627 {offsets = [2, 0], sizes = [8, 16], strides = [1, 1]} : vector<10x16xf32> to vector<8x16xf32>
    %782 = vector.extract_strided_slice %4 {offsets = [2, 0], sizes = [1, 16], strides = [1, 1]} : vector<9x16xf32> to vector<1x16xf32>
    %783 = vector.broadcast %782 : vector<1x16xf32> to vector<8x16xf32>
    %784 = arith.mulf %781, %783 : vector<8x16xf32>
    %785 = arith.addf %780, %784 : vector<8x16xf32>
    %786 = vector.extract_strided_slice %744 {offsets = [0, 0], sizes = [8, 16], strides = [1, 1]} : vector<10x16xf32> to vector<8x16xf32>
    %787 = vector.extract_strided_slice %4 {offsets = [3, 0], sizes = [1, 16], strides = [1, 1]} : vector<9x16xf32> to vector<1x16xf32>
    %788 = vector.broadcast %787 : vector<1x16xf32> to vector<8x16xf32>
    %789 = arith.mulf %786, %788 : vector<8x16xf32>
    %790 = arith.addf %785, %789 : vector<8x16xf32>
    %791 = vector.extract_strided_slice %744 {offsets = [1, 0], sizes = [8, 16], strides = [1, 1]} : vector<10x16xf32> to vector<8x16xf32>
    %792 = vector.extract_strided_slice %4 {offsets = [4, 0], sizes = [1, 16], strides = [1, 1]} : vector<9x16xf32> to vector<1x16xf32>
    %793 = vector.broadcast %792 : vector<1x16xf32> to vector<8x16xf32>
    %794 = arith.mulf %791, %793 : vector<8x16xf32>
    %795 = arith.addf %790, %794 : vector<8x16xf32>
    %796 = vector.extract_strided_slice %744 {offsets = [2, 0], sizes = [8, 16], strides = [1, 1]} : vector<10x16xf32> to vector<8x16xf32>
    %797 = vector.extract_strided_slice %4 {offsets = [5, 0], sizes = [1, 16], strides = [1, 1]} : vector<9x16xf32> to vector<1x16xf32>
    %798 = vector.broadcast %797 : vector<1x16xf32> to vector<8x16xf32>
    %799 = arith.mulf %796, %798 : vector<8x16xf32>
    %800 = arith.addf %795, %799 : vector<8x16xf32>
    %cst_59 = arith.constant 0.000000e+00 : f32
    %801 = vector.broadcast %cst_59 : f32 to vector<10x16xf32>
    %802 = vector.broadcast %3 : vector<1x16xf32> to vector<10x16xf32>
    %803 = arith.addf %801, %802 : vector<10x16xf32>
    %804 = vector.extract_strided_slice %1 {offsets = [0, 7], sizes = [10, 1], strides = [1, 1]} : vector<12x18xf32> to vector<10x1xf32>
    %805 = vector.extract_strided_slice %2 {offsets = [0, 0], sizes = [1, 16], strides = [1, 1]} : vector<9x16xf32> to vector<1x16xf32>
    %806 = vector.broadcast %804 : vector<10x1xf32> to vector<10x16xf32>
    %807 = vector.broadcast %805 : vector<1x16xf32> to vector<10x16xf32>
    %808 = arith.mulf %806, %807 : vector<10x16xf32>
    %809 = arith.addf %803, %808 : vector<10x16xf32>
    %810 = vector.extract_strided_slice %1 {offsets = [1, 7], sizes = [10, 1], strides = [1, 1]} : vector<12x18xf32> to vector<10x1xf32>
    %811 = vector.extract_strided_slice %2 {offsets = [1, 0], sizes = [1, 16], strides = [1, 1]} : vector<9x16xf32> to vector<1x16xf32>
    %812 = vector.broadcast %810 : vector<10x1xf32> to vector<10x16xf32>
    %813 = vector.broadcast %811 : vector<1x16xf32> to vector<10x16xf32>
    %814 = arith.mulf %812, %813 : vector<10x16xf32>
    %815 = arith.addf %809, %814 : vector<10x16xf32>
    %816 = vector.extract_strided_slice %1 {offsets = [2, 7], sizes = [10, 1], strides = [1, 1]} : vector<12x18xf32> to vector<10x1xf32>
    %817 = vector.extract_strided_slice %2 {offsets = [2, 0], sizes = [1, 16], strides = [1, 1]} : vector<9x16xf32> to vector<1x16xf32>
    %818 = vector.broadcast %816 : vector<10x1xf32> to vector<10x16xf32>
    %819 = vector.broadcast %817 : vector<1x16xf32> to vector<10x16xf32>
    %820 = arith.mulf %818, %819 : vector<10x16xf32>
    %821 = arith.addf %815, %820 : vector<10x16xf32>
    %822 = vector.extract_strided_slice %1 {offsets = [0, 8], sizes = [10, 1], strides = [1, 1]} : vector<12x18xf32> to vector<10x1xf32>
    %823 = vector.extract_strided_slice %2 {offsets = [3, 0], sizes = [1, 16], strides = [1, 1]} : vector<9x16xf32> to vector<1x16xf32>
    %824 = vector.broadcast %822 : vector<10x1xf32> to vector<10x16xf32>
    %825 = vector.broadcast %823 : vector<1x16xf32> to vector<10x16xf32>
    %826 = arith.mulf %824, %825 : vector<10x16xf32>
    %827 = arith.addf %821, %826 : vector<10x16xf32>
    %828 = vector.extract_strided_slice %1 {offsets = [1, 8], sizes = [10, 1], strides = [1, 1]} : vector<12x18xf32> to vector<10x1xf32>
    %829 = vector.extract_strided_slice %2 {offsets = [4, 0], sizes = [1, 16], strides = [1, 1]} : vector<9x16xf32> to vector<1x16xf32>
    %830 = vector.broadcast %828 : vector<10x1xf32> to vector<10x16xf32>
    %831 = vector.broadcast %829 : vector<1x16xf32> to vector<10x16xf32>
    %832 = arith.mulf %830, %831 : vector<10x16xf32>
    %833 = arith.addf %827, %832 : vector<10x16xf32>
    %834 = vector.extract_strided_slice %1 {offsets = [2, 8], sizes = [10, 1], strides = [1, 1]} : vector<12x18xf32> to vector<10x1xf32>
    %835 = vector.extract_strided_slice %2 {offsets = [5, 0], sizes = [1, 16], strides = [1, 1]} : vector<9x16xf32> to vector<1x16xf32>
    %836 = vector.broadcast %834 : vector<10x1xf32> to vector<10x16xf32>
    %837 = vector.broadcast %835 : vector<1x16xf32> to vector<10x16xf32>
    %838 = arith.mulf %836, %837 : vector<10x16xf32>
    %839 = arith.addf %833, %838 : vector<10x16xf32>
    %840 = vector.extract_strided_slice %1 {offsets = [0, 9], sizes = [10, 1], strides = [1, 1]} : vector<12x18xf32> to vector<10x1xf32>
    %841 = vector.extract_strided_slice %2 {offsets = [6, 0], sizes = [1, 16], strides = [1, 1]} : vector<9x16xf32> to vector<1x16xf32>
    %842 = vector.broadcast %840 : vector<10x1xf32> to vector<10x16xf32>
    %843 = vector.broadcast %841 : vector<1x16xf32> to vector<10x16xf32>
    %844 = arith.mulf %842, %843 : vector<10x16xf32>
    %845 = arith.addf %839, %844 : vector<10x16xf32>
    %846 = vector.extract_strided_slice %1 {offsets = [1, 9], sizes = [10, 1], strides = [1, 1]} : vector<12x18xf32> to vector<10x1xf32>
    %847 = vector.extract_strided_slice %2 {offsets = [7, 0], sizes = [1, 16], strides = [1, 1]} : vector<9x16xf32> to vector<1x16xf32>
    %848 = vector.broadcast %846 : vector<10x1xf32> to vector<10x16xf32>
    %849 = vector.broadcast %847 : vector<1x16xf32> to vector<10x16xf32>
    %850 = arith.mulf %848, %849 : vector<10x16xf32>
    %851 = arith.addf %845, %850 : vector<10x16xf32>
    %852 = vector.extract_strided_slice %1 {offsets = [2, 9], sizes = [10, 1], strides = [1, 1]} : vector<12x18xf32> to vector<10x1xf32>
    %853 = vector.extract_strided_slice %2 {offsets = [8, 0], sizes = [1, 16], strides = [1, 1]} : vector<9x16xf32> to vector<1x16xf32>
    %854 = vector.broadcast %852 : vector<10x1xf32> to vector<10x16xf32>
    %855 = vector.broadcast %853 : vector<1x16xf32> to vector<10x16xf32>
    %856 = arith.mulf %854, %855 : vector<10x16xf32>
    %857 = arith.addf %851, %856 : vector<10x16xf32>
    %cst_60 = arith.constant 0.000000e+00 : f32
    %858 = vector.broadcast %cst_60 : f32 to vector<10x16xf32>
    %859 = arith.maximumf %857, %858 : vector<10x16xf32>
    %860 = vector.broadcast %18 : vector<10x1xf32> to vector<10x16xf32>
    %861 = arith.mulf %859, %860 : vector<10x16xf32>
    %862 = vector.extract_strided_slice %861 {offsets = [0, 0], sizes = [8, 16], strides = [1, 1]} : vector<10x16xf32> to vector<8x16xf32>
    %863 = vector.extract_strided_slice %4 {offsets = [6, 0], sizes = [1, 16], strides = [1, 1]} : vector<9x16xf32> to vector<1x16xf32>
    %864 = vector.broadcast %863 : vector<1x16xf32> to vector<8x16xf32>
    %865 = arith.mulf %862, %864 : vector<8x16xf32>
    %866 = arith.addf %800, %865 : vector<8x16xf32>
    %867 = vector.extract_strided_slice %861 {offsets = [1, 0], sizes = [8, 16], strides = [1, 1]} : vector<10x16xf32> to vector<8x16xf32>
    %868 = vector.extract_strided_slice %4 {offsets = [7, 0], sizes = [1, 16], strides = [1, 1]} : vector<9x16xf32> to vector<1x16xf32>
    %869 = vector.broadcast %868 : vector<1x16xf32> to vector<8x16xf32>
    %870 = arith.mulf %867, %869 : vector<8x16xf32>
    %871 = arith.addf %866, %870 : vector<8x16xf32>
    %872 = vector.extract_strided_slice %861 {offsets = [2, 0], sizes = [8, 16], strides = [1, 1]} : vector<10x16xf32> to vector<8x16xf32>
    %873 = vector.extract_strided_slice %4 {offsets = [8, 0], sizes = [1, 16], strides = [1, 1]} : vector<9x16xf32> to vector<1x16xf32>
    %874 = vector.broadcast %873 : vector<1x16xf32> to vector<8x16xf32>
    %875 = arith.mulf %872, %874 : vector<8x16xf32>
    %876 = arith.addf %871, %875 : vector<8x16xf32>
    %877 = arith.truncf %876 : vector<8x16xf32> to vector<8x16xbf16>
    %c0_61 = arith.constant 0 : index
    %c0_62 = arith.constant 0 : index
    %878 = vector.load %arg7[%c0_61, %c0_62] : memref<16x32xbf16, #tpu.memory_space<vmem>>, vector<16x32xbf16>
    %cst_63 = arith.constant dense<0.000000e+00> : vector<8x32xf32>
    %879 = tpu.matmul %877, %878, %cst_63 {dimension_numbers = #tpu.dot_dimension_numbers<[1], [0], [0], [1], [0, 0, 1, 1], [], []>} : vector<8x16xbf16>, vector<16x32xbf16>, vector<8x32xf32> -> vector<8x32xf32>
    %880 = vector.broadcast %6 : vector<1x32xf32> to vector<8x32xf32>
    %881 = arith.addf %879, %880 : vector<8x32xf32>
    %cst_64 = arith.constant 0.000000e+00 : f32
    %882 = vector.broadcast %cst_64 : f32 to vector<8x32xf32>
    %883 = arith.maximumf %881, %882 : vector<8x32xf32>
    %884 = arith.addf %767, %883 : vector<8x32xf32>
    %cst_65 = arith.constant 0.000000e+00 : f32
    %885 = vector.broadcast %cst_65 : f32 to vector<8x16xf32>
    %886 = vector.broadcast %5 : vector<1x16xf32> to vector<8x16xf32>
    %887 = arith.addf %885, %886 : vector<8x16xf32>
    %888 = vector.extract_strided_slice %744 {offsets = [0, 0], sizes = [8, 16], strides = [1, 1]} : vector<10x16xf32> to vector<8x16xf32>
    %889 = vector.extract_strided_slice %4 {offsets = [0, 0], sizes = [1, 16], strides = [1, 1]} : vector<9x16xf32> to vector<1x16xf32>
    %890 = vector.broadcast %889 : vector<1x16xf32> to vector<8x16xf32>
    %891 = arith.mulf %888, %890 : vector<8x16xf32>
    %892 = arith.addf %887, %891 : vector<8x16xf32>
    %893 = vector.extract_strided_slice %744 {offsets = [1, 0], sizes = [8, 16], strides = [1, 1]} : vector<10x16xf32> to vector<8x16xf32>
    %894 = vector.extract_strided_slice %4 {offsets = [1, 0], sizes = [1, 16], strides = [1, 1]} : vector<9x16xf32> to vector<1x16xf32>
    %895 = vector.broadcast %894 : vector<1x16xf32> to vector<8x16xf32>
    %896 = arith.mulf %893, %895 : vector<8x16xf32>
    %897 = arith.addf %892, %896 : vector<8x16xf32>
    %898 = vector.extract_strided_slice %744 {offsets = [2, 0], sizes = [8, 16], strides = [1, 1]} : vector<10x16xf32> to vector<8x16xf32>
    %899 = vector.extract_strided_slice %4 {offsets = [2, 0], sizes = [1, 16], strides = [1, 1]} : vector<9x16xf32> to vector<1x16xf32>
    %900 = vector.broadcast %899 : vector<1x16xf32> to vector<8x16xf32>
    %901 = arith.mulf %898, %900 : vector<8x16xf32>
    %902 = arith.addf %897, %901 : vector<8x16xf32>
    %903 = vector.extract_strided_slice %861 {offsets = [0, 0], sizes = [8, 16], strides = [1, 1]} : vector<10x16xf32> to vector<8x16xf32>
    %904 = vector.extract_strided_slice %4 {offsets = [3, 0], sizes = [1, 16], strides = [1, 1]} : vector<9x16xf32> to vector<1x16xf32>
    %905 = vector.broadcast %904 : vector<1x16xf32> to vector<8x16xf32>
    %906 = arith.mulf %903, %905 : vector<8x16xf32>
    %907 = arith.addf %902, %906 : vector<8x16xf32>
    %908 = vector.extract_strided_slice %861 {offsets = [1, 0], sizes = [8, 16], strides = [1, 1]} : vector<10x16xf32> to vector<8x16xf32>
    %909 = vector.extract_strided_slice %4 {offsets = [4, 0], sizes = [1, 16], strides = [1, 1]} : vector<9x16xf32> to vector<1x16xf32>
    %910 = vector.broadcast %909 : vector<1x16xf32> to vector<8x16xf32>
    %911 = arith.mulf %908, %910 : vector<8x16xf32>
    %912 = arith.addf %907, %911 : vector<8x16xf32>
    %913 = vector.extract_strided_slice %861 {offsets = [2, 0], sizes = [8, 16], strides = [1, 1]} : vector<10x16xf32> to vector<8x16xf32>
    %914 = vector.extract_strided_slice %4 {offsets = [5, 0], sizes = [1, 16], strides = [1, 1]} : vector<9x16xf32> to vector<1x16xf32>
    %915 = vector.broadcast %914 : vector<1x16xf32> to vector<8x16xf32>
    %916 = arith.mulf %913, %915 : vector<8x16xf32>
    %917 = arith.addf %912, %916 : vector<8x16xf32>
    %cst_66 = arith.constant 0.000000e+00 : f32
    %918 = vector.broadcast %cst_66 : f32 to vector<10x16xf32>
    %919 = vector.broadcast %3 : vector<1x16xf32> to vector<10x16xf32>
    %920 = arith.addf %918, %919 : vector<10x16xf32>
    %921 = vector.extract_strided_slice %1 {offsets = [0, 8], sizes = [10, 1], strides = [1, 1]} : vector<12x18xf32> to vector<10x1xf32>
    %922 = vector.extract_strided_slice %2 {offsets = [0, 0], sizes = [1, 16], strides = [1, 1]} : vector<9x16xf32> to vector<1x16xf32>
    %923 = vector.broadcast %921 : vector<10x1xf32> to vector<10x16xf32>
    %924 = vector.broadcast %922 : vector<1x16xf32> to vector<10x16xf32>
    %925 = arith.mulf %923, %924 : vector<10x16xf32>
    %926 = arith.addf %920, %925 : vector<10x16xf32>
    %927 = vector.extract_strided_slice %1 {offsets = [1, 8], sizes = [10, 1], strides = [1, 1]} : vector<12x18xf32> to vector<10x1xf32>
    %928 = vector.extract_strided_slice %2 {offsets = [1, 0], sizes = [1, 16], strides = [1, 1]} : vector<9x16xf32> to vector<1x16xf32>
    %929 = vector.broadcast %927 : vector<10x1xf32> to vector<10x16xf32>
    %930 = vector.broadcast %928 : vector<1x16xf32> to vector<10x16xf32>
    %931 = arith.mulf %929, %930 : vector<10x16xf32>
    %932 = arith.addf %926, %931 : vector<10x16xf32>
    %933 = vector.extract_strided_slice %1 {offsets = [2, 8], sizes = [10, 1], strides = [1, 1]} : vector<12x18xf32> to vector<10x1xf32>
    %934 = vector.extract_strided_slice %2 {offsets = [2, 0], sizes = [1, 16], strides = [1, 1]} : vector<9x16xf32> to vector<1x16xf32>
    %935 = vector.broadcast %933 : vector<10x1xf32> to vector<10x16xf32>
    %936 = vector.broadcast %934 : vector<1x16xf32> to vector<10x16xf32>
    %937 = arith.mulf %935, %936 : vector<10x16xf32>
    %938 = arith.addf %932, %937 : vector<10x16xf32>
    %939 = vector.extract_strided_slice %1 {offsets = [0, 9], sizes = [10, 1], strides = [1, 1]} : vector<12x18xf32> to vector<10x1xf32>
    %940 = vector.extract_strided_slice %2 {offsets = [3, 0], sizes = [1, 16], strides = [1, 1]} : vector<9x16xf32> to vector<1x16xf32>
    %941 = vector.broadcast %939 : vector<10x1xf32> to vector<10x16xf32>
    %942 = vector.broadcast %940 : vector<1x16xf32> to vector<10x16xf32>
    %943 = arith.mulf %941, %942 : vector<10x16xf32>
    %944 = arith.addf %938, %943 : vector<10x16xf32>
    %945 = vector.extract_strided_slice %1 {offsets = [1, 9], sizes = [10, 1], strides = [1, 1]} : vector<12x18xf32> to vector<10x1xf32>
    %946 = vector.extract_strided_slice %2 {offsets = [4, 0], sizes = [1, 16], strides = [1, 1]} : vector<9x16xf32> to vector<1x16xf32>
    %947 = vector.broadcast %945 : vector<10x1xf32> to vector<10x16xf32>
    %948 = vector.broadcast %946 : vector<1x16xf32> to vector<10x16xf32>
    %949 = arith.mulf %947, %948 : vector<10x16xf32>
    %950 = arith.addf %944, %949 : vector<10x16xf32>
    %951 = vector.extract_strided_slice %1 {offsets = [2, 9], sizes = [10, 1], strides = [1, 1]} : vector<12x18xf32> to vector<10x1xf32>
    %952 = vector.extract_strided_slice %2 {offsets = [5, 0], sizes = [1, 16], strides = [1, 1]} : vector<9x16xf32> to vector<1x16xf32>
    %953 = vector.broadcast %951 : vector<10x1xf32> to vector<10x16xf32>
    %954 = vector.broadcast %952 : vector<1x16xf32> to vector<10x16xf32>
    %955 = arith.mulf %953, %954 : vector<10x16xf32>
    %956 = arith.addf %950, %955 : vector<10x16xf32>
    %957 = vector.extract_strided_slice %1 {offsets = [0, 10], sizes = [10, 1], strides = [1, 1]} : vector<12x18xf32> to vector<10x1xf32>
    %958 = vector.extract_strided_slice %2 {offsets = [6, 0], sizes = [1, 16], strides = [1, 1]} : vector<9x16xf32> to vector<1x16xf32>
    %959 = vector.broadcast %957 : vector<10x1xf32> to vector<10x16xf32>
    %960 = vector.broadcast %958 : vector<1x16xf32> to vector<10x16xf32>
    %961 = arith.mulf %959, %960 : vector<10x16xf32>
    %962 = arith.addf %956, %961 : vector<10x16xf32>
    %963 = vector.extract_strided_slice %1 {offsets = [1, 10], sizes = [10, 1], strides = [1, 1]} : vector<12x18xf32> to vector<10x1xf32>
    %964 = vector.extract_strided_slice %2 {offsets = [7, 0], sizes = [1, 16], strides = [1, 1]} : vector<9x16xf32> to vector<1x16xf32>
    %965 = vector.broadcast %963 : vector<10x1xf32> to vector<10x16xf32>
    %966 = vector.broadcast %964 : vector<1x16xf32> to vector<10x16xf32>
    %967 = arith.mulf %965, %966 : vector<10x16xf32>
    %968 = arith.addf %962, %967 : vector<10x16xf32>
    %969 = vector.extract_strided_slice %1 {offsets = [2, 10], sizes = [10, 1], strides = [1, 1]} : vector<12x18xf32> to vector<10x1xf32>
    %970 = vector.extract_strided_slice %2 {offsets = [8, 0], sizes = [1, 16], strides = [1, 1]} : vector<9x16xf32> to vector<1x16xf32>
    %971 = vector.broadcast %969 : vector<10x1xf32> to vector<10x16xf32>
    %972 = vector.broadcast %970 : vector<1x16xf32> to vector<10x16xf32>
    %973 = arith.mulf %971, %972 : vector<10x16xf32>
    %974 = arith.addf %968, %973 : vector<10x16xf32>
    %cst_67 = arith.constant 0.000000e+00 : f32
    %975 = vector.broadcast %cst_67 : f32 to vector<10x16xf32>
    %976 = arith.maximumf %974, %975 : vector<10x16xf32>
    %977 = vector.broadcast %18 : vector<10x1xf32> to vector<10x16xf32>
    %978 = arith.mulf %976, %977 : vector<10x16xf32>
    %979 = vector.extract_strided_slice %978 {offsets = [0, 0], sizes = [8, 16], strides = [1, 1]} : vector<10x16xf32> to vector<8x16xf32>
    %980 = vector.extract_strided_slice %4 {offsets = [6, 0], sizes = [1, 16], strides = [1, 1]} : vector<9x16xf32> to vector<1x16xf32>
    %981 = vector.broadcast %980 : vector<1x16xf32> to vector<8x16xf32>
    %982 = arith.mulf %979, %981 : vector<8x16xf32>
    %983 = arith.addf %917, %982 : vector<8x16xf32>
    %984 = vector.extract_strided_slice %978 {offsets = [1, 0], sizes = [8, 16], strides = [1, 1]} : vector<10x16xf32> to vector<8x16xf32>
    %985 = vector.extract_strided_slice %4 {offsets = [7, 0], sizes = [1, 16], strides = [1, 1]} : vector<9x16xf32> to vector<1x16xf32>
    %986 = vector.broadcast %985 : vector<1x16xf32> to vector<8x16xf32>
    %987 = arith.mulf %984, %986 : vector<8x16xf32>
    %988 = arith.addf %983, %987 : vector<8x16xf32>
    %989 = vector.extract_strided_slice %978 {offsets = [2, 0], sizes = [8, 16], strides = [1, 1]} : vector<10x16xf32> to vector<8x16xf32>
    %990 = vector.extract_strided_slice %4 {offsets = [8, 0], sizes = [1, 16], strides = [1, 1]} : vector<9x16xf32> to vector<1x16xf32>
    %991 = vector.broadcast %990 : vector<1x16xf32> to vector<8x16xf32>
    %992 = arith.mulf %989, %991 : vector<8x16xf32>
    %993 = arith.addf %988, %992 : vector<8x16xf32>
    %994 = arith.truncf %993 : vector<8x16xf32> to vector<8x16xbf16>
    %c0_68 = arith.constant 0 : index
    %c0_69 = arith.constant 0 : index
    %995 = vector.load %arg7[%c0_68, %c0_69] : memref<16x32xbf16, #tpu.memory_space<vmem>>, vector<16x32xbf16>
    %cst_70 = arith.constant dense<0.000000e+00> : vector<8x32xf32>
    %996 = tpu.matmul %994, %995, %cst_70 {dimension_numbers = #tpu.dot_dimension_numbers<[1], [0], [0], [1], [0, 0, 1, 1], [], []>} : vector<8x16xbf16>, vector<16x32xbf16>, vector<8x32xf32> -> vector<8x32xf32>
    %997 = vector.broadcast %6 : vector<1x32xf32> to vector<8x32xf32>
    %998 = arith.addf %996, %997 : vector<8x32xf32>
    %cst_71 = arith.constant 0.000000e+00 : f32
    %999 = vector.broadcast %cst_71 : f32 to vector<8x32xf32>
    %1000 = arith.maximumf %998, %999 : vector<8x32xf32>
    %1001 = arith.addf %884, %1000 : vector<8x32xf32>
    %cst_72 = arith.constant 0.000000e+00 : f32
    %1002 = vector.broadcast %cst_72 : f32 to vector<8x16xf32>
    %1003 = vector.broadcast %5 : vector<1x16xf32> to vector<8x16xf32>
    %1004 = arith.addf %1002, %1003 : vector<8x16xf32>
    %1005 = vector.extract_strided_slice %861 {offsets = [0, 0], sizes = [8, 16], strides = [1, 1]} : vector<10x16xf32> to vector<8x16xf32>
    %1006 = vector.extract_strided_slice %4 {offsets = [0, 0], sizes = [1, 16], strides = [1, 1]} : vector<9x16xf32> to vector<1x16xf32>
    %1007 = vector.broadcast %1006 : vector<1x16xf32> to vector<8x16xf32>
    %1008 = arith.mulf %1005, %1007 : vector<8x16xf32>
    %1009 = arith.addf %1004, %1008 : vector<8x16xf32>
    %1010 = vector.extract_strided_slice %861 {offsets = [1, 0], sizes = [8, 16], strides = [1, 1]} : vector<10x16xf32> to vector<8x16xf32>
    %1011 = vector.extract_strided_slice %4 {offsets = [1, 0], sizes = [1, 16], strides = [1, 1]} : vector<9x16xf32> to vector<1x16xf32>
    %1012 = vector.broadcast %1011 : vector<1x16xf32> to vector<8x16xf32>
    %1013 = arith.mulf %1010, %1012 : vector<8x16xf32>
    %1014 = arith.addf %1009, %1013 : vector<8x16xf32>
    %1015 = vector.extract_strided_slice %861 {offsets = [2, 0], sizes = [8, 16], strides = [1, 1]} : vector<10x16xf32> to vector<8x16xf32>
    %1016 = vector.extract_strided_slice %4 {offsets = [2, 0], sizes = [1, 16], strides = [1, 1]} : vector<9x16xf32> to vector<1x16xf32>
    %1017 = vector.broadcast %1016 : vector<1x16xf32> to vector<8x16xf32>
    %1018 = arith.mulf %1015, %1017 : vector<8x16xf32>
    %1019 = arith.addf %1014, %1018 : vector<8x16xf32>
    %1020 = vector.extract_strided_slice %978 {offsets = [0, 0], sizes = [8, 16], strides = [1, 1]} : vector<10x16xf32> to vector<8x16xf32>
    %1021 = vector.extract_strided_slice %4 {offsets = [3, 0], sizes = [1, 16], strides = [1, 1]} : vector<9x16xf32> to vector<1x16xf32>
    %1022 = vector.broadcast %1021 : vector<1x16xf32> to vector<8x16xf32>
    %1023 = arith.mulf %1020, %1022 : vector<8x16xf32>
    %1024 = arith.addf %1019, %1023 : vector<8x16xf32>
    %1025 = vector.extract_strided_slice %978 {offsets = [1, 0], sizes = [8, 16], strides = [1, 1]} : vector<10x16xf32> to vector<8x16xf32>
    %1026 = vector.extract_strided_slice %4 {offsets = [4, 0], sizes = [1, 16], strides = [1, 1]} : vector<9x16xf32> to vector<1x16xf32>
    %1027 = vector.broadcast %1026 : vector<1x16xf32> to vector<8x16xf32>
    %1028 = arith.mulf %1025, %1027 : vector<8x16xf32>
    %1029 = arith.addf %1024, %1028 : vector<8x16xf32>
    %1030 = vector.extract_strided_slice %978 {offsets = [2, 0], sizes = [8, 16], strides = [1, 1]} : vector<10x16xf32> to vector<8x16xf32>
    %1031 = vector.extract_strided_slice %4 {offsets = [5, 0], sizes = [1, 16], strides = [1, 1]} : vector<9x16xf32> to vector<1x16xf32>
    %1032 = vector.broadcast %1031 : vector<1x16xf32> to vector<8x16xf32>
    %1033 = arith.mulf %1030, %1032 : vector<8x16xf32>
    %1034 = arith.addf %1029, %1033 : vector<8x16xf32>
    %cst_73 = arith.constant 0.000000e+00 : f32
    %1035 = vector.broadcast %cst_73 : f32 to vector<10x16xf32>
    %1036 = vector.broadcast %3 : vector<1x16xf32> to vector<10x16xf32>
    %1037 = arith.addf %1035, %1036 : vector<10x16xf32>
    %1038 = vector.extract_strided_slice %1 {offsets = [0, 9], sizes = [10, 1], strides = [1, 1]} : vector<12x18xf32> to vector<10x1xf32>
    %1039 = vector.extract_strided_slice %2 {offsets = [0, 0], sizes = [1, 16], strides = [1, 1]} : vector<9x16xf32> to vector<1x16xf32>
    %1040 = vector.broadcast %1038 : vector<10x1xf32> to vector<10x16xf32>
    %1041 = vector.broadcast %1039 : vector<1x16xf32> to vector<10x16xf32>
    %1042 = arith.mulf %1040, %1041 : vector<10x16xf32>
    %1043 = arith.addf %1037, %1042 : vector<10x16xf32>
    %1044 = vector.extract_strided_slice %1 {offsets = [1, 9], sizes = [10, 1], strides = [1, 1]} : vector<12x18xf32> to vector<10x1xf32>
    %1045 = vector.extract_strided_slice %2 {offsets = [1, 0], sizes = [1, 16], strides = [1, 1]} : vector<9x16xf32> to vector<1x16xf32>
    %1046 = vector.broadcast %1044 : vector<10x1xf32> to vector<10x16xf32>
    %1047 = vector.broadcast %1045 : vector<1x16xf32> to vector<10x16xf32>
    %1048 = arith.mulf %1046, %1047 : vector<10x16xf32>
    %1049 = arith.addf %1043, %1048 : vector<10x16xf32>
    %1050 = vector.extract_strided_slice %1 {offsets = [2, 9], sizes = [10, 1], strides = [1, 1]} : vector<12x18xf32> to vector<10x1xf32>
    %1051 = vector.extract_strided_slice %2 {offsets = [2, 0], sizes = [1, 16], strides = [1, 1]} : vector<9x16xf32> to vector<1x16xf32>
    %1052 = vector.broadcast %1050 : vector<10x1xf32> to vector<10x16xf32>
    %1053 = vector.broadcast %1051 : vector<1x16xf32> to vector<10x16xf32>
    %1054 = arith.mulf %1052, %1053 : vector<10x16xf32>
    %1055 = arith.addf %1049, %1054 : vector<10x16xf32>
    %1056 = vector.extract_strided_slice %1 {offsets = [0, 10], sizes = [10, 1], strides = [1, 1]} : vector<12x18xf32> to vector<10x1xf32>
    %1057 = vector.extract_strided_slice %2 {offsets = [3, 0], sizes = [1, 16], strides = [1, 1]} : vector<9x16xf32> to vector<1x16xf32>
    %1058 = vector.broadcast %1056 : vector<10x1xf32> to vector<10x16xf32>
    %1059 = vector.broadcast %1057 : vector<1x16xf32> to vector<10x16xf32>
    %1060 = arith.mulf %1058, %1059 : vector<10x16xf32>
    %1061 = arith.addf %1055, %1060 : vector<10x16xf32>
    %1062 = vector.extract_strided_slice %1 {offsets = [1, 10], sizes = [10, 1], strides = [1, 1]} : vector<12x18xf32> to vector<10x1xf32>
    %1063 = vector.extract_strided_slice %2 {offsets = [4, 0], sizes = [1, 16], strides = [1, 1]} : vector<9x16xf32> to vector<1x16xf32>
    %1064 = vector.broadcast %1062 : vector<10x1xf32> to vector<10x16xf32>
    %1065 = vector.broadcast %1063 : vector<1x16xf32> to vector<10x16xf32>
    %1066 = arith.mulf %1064, %1065 : vector<10x16xf32>
    %1067 = arith.addf %1061, %1066 : vector<10x16xf32>
    %1068 = vector.extract_strided_slice %1 {offsets = [2, 10], sizes = [10, 1], strides = [1, 1]} : vector<12x18xf32> to vector<10x1xf32>
    %1069 = vector.extract_strided_slice %2 {offsets = [5, 0], sizes = [1, 16], strides = [1, 1]} : vector<9x16xf32> to vector<1x16xf32>
    %1070 = vector.broadcast %1068 : vector<10x1xf32> to vector<10x16xf32>
    %1071 = vector.broadcast %1069 : vector<1x16xf32> to vector<10x16xf32>
    %1072 = arith.mulf %1070, %1071 : vector<10x16xf32>
    %1073 = arith.addf %1067, %1072 : vector<10x16xf32>
    %1074 = vector.extract_strided_slice %1 {offsets = [0, 11], sizes = [10, 1], strides = [1, 1]} : vector<12x18xf32> to vector<10x1xf32>
    %1075 = vector.extract_strided_slice %2 {offsets = [6, 0], sizes = [1, 16], strides = [1, 1]} : vector<9x16xf32> to vector<1x16xf32>
    %1076 = vector.broadcast %1074 : vector<10x1xf32> to vector<10x16xf32>
    %1077 = vector.broadcast %1075 : vector<1x16xf32> to vector<10x16xf32>
    %1078 = arith.mulf %1076, %1077 : vector<10x16xf32>
    %1079 = arith.addf %1073, %1078 : vector<10x16xf32>
    %1080 = vector.extract_strided_slice %1 {offsets = [1, 11], sizes = [10, 1], strides = [1, 1]} : vector<12x18xf32> to vector<10x1xf32>
    %1081 = vector.extract_strided_slice %2 {offsets = [7, 0], sizes = [1, 16], strides = [1, 1]} : vector<9x16xf32> to vector<1x16xf32>
    %1082 = vector.broadcast %1080 : vector<10x1xf32> to vector<10x16xf32>
    %1083 = vector.broadcast %1081 : vector<1x16xf32> to vector<10x16xf32>
    %1084 = arith.mulf %1082, %1083 : vector<10x16xf32>
    %1085 = arith.addf %1079, %1084 : vector<10x16xf32>
    %1086 = vector.extract_strided_slice %1 {offsets = [2, 11], sizes = [10, 1], strides = [1, 1]} : vector<12x18xf32> to vector<10x1xf32>
    %1087 = vector.extract_strided_slice %2 {offsets = [8, 0], sizes = [1, 16], strides = [1, 1]} : vector<9x16xf32> to vector<1x16xf32>
    %1088 = vector.broadcast %1086 : vector<10x1xf32> to vector<10x16xf32>
    %1089 = vector.broadcast %1087 : vector<1x16xf32> to vector<10x16xf32>
    %1090 = arith.mulf %1088, %1089 : vector<10x16xf32>
    %1091 = arith.addf %1085, %1090 : vector<10x16xf32>
    %cst_74 = arith.constant 0.000000e+00 : f32
    %1092 = vector.broadcast %cst_74 : f32 to vector<10x16xf32>
    %1093 = arith.maximumf %1091, %1092 : vector<10x16xf32>
    %1094 = vector.broadcast %18 : vector<10x1xf32> to vector<10x16xf32>
    %1095 = arith.mulf %1093, %1094 : vector<10x16xf32>
    %1096 = vector.extract_strided_slice %1095 {offsets = [0, 0], sizes = [8, 16], strides = [1, 1]} : vector<10x16xf32> to vector<8x16xf32>
    %1097 = vector.extract_strided_slice %4 {offsets = [6, 0], sizes = [1, 16], strides = [1, 1]} : vector<9x16xf32> to vector<1x16xf32>
    %1098 = vector.broadcast %1097 : vector<1x16xf32> to vector<8x16xf32>
    %1099 = arith.mulf %1096, %1098 : vector<8x16xf32>
    %1100 = arith.addf %1034, %1099 : vector<8x16xf32>
    %1101 = vector.extract_strided_slice %1095 {offsets = [1, 0], sizes = [8, 16], strides = [1, 1]} : vector<10x16xf32> to vector<8x16xf32>
    %1102 = vector.extract_strided_slice %4 {offsets = [7, 0], sizes = [1, 16], strides = [1, 1]} : vector<9x16xf32> to vector<1x16xf32>
    %1103 = vector.broadcast %1102 : vector<1x16xf32> to vector<8x16xf32>
    %1104 = arith.mulf %1101, %1103 : vector<8x16xf32>
    %1105 = arith.addf %1100, %1104 : vector<8x16xf32>
    %1106 = vector.extract_strided_slice %1095 {offsets = [2, 0], sizes = [8, 16], strides = [1, 1]} : vector<10x16xf32> to vector<8x16xf32>
    %1107 = vector.extract_strided_slice %4 {offsets = [8, 0], sizes = [1, 16], strides = [1, 1]} : vector<9x16xf32> to vector<1x16xf32>
    %1108 = vector.broadcast %1107 : vector<1x16xf32> to vector<8x16xf32>
    %1109 = arith.mulf %1106, %1108 : vector<8x16xf32>
    %1110 = arith.addf %1105, %1109 : vector<8x16xf32>
    %1111 = arith.truncf %1110 : vector<8x16xf32> to vector<8x16xbf16>
    %c0_75 = arith.constant 0 : index
    %c0_76 = arith.constant 0 : index
    %1112 = vector.load %arg7[%c0_75, %c0_76] : memref<16x32xbf16, #tpu.memory_space<vmem>>, vector<16x32xbf16>
    %cst_77 = arith.constant dense<0.000000e+00> : vector<8x32xf32>
    %1113 = tpu.matmul %1111, %1112, %cst_77 {dimension_numbers = #tpu.dot_dimension_numbers<[1], [0], [0], [1], [0, 0, 1, 1], [], []>} : vector<8x16xbf16>, vector<16x32xbf16>, vector<8x32xf32> -> vector<8x32xf32>
    %1114 = vector.broadcast %6 : vector<1x32xf32> to vector<8x32xf32>
    %1115 = arith.addf %1113, %1114 : vector<8x32xf32>
    %cst_78 = arith.constant 0.000000e+00 : f32
    %1116 = vector.broadcast %cst_78 : f32 to vector<8x32xf32>
    %1117 = arith.maximumf %1115, %1116 : vector<8x32xf32>
    %1118 = arith.addf %1001, %1117 : vector<8x32xf32>
    %cst_79 = arith.constant 0.000000e+00 : f32
    %1119 = vector.broadcast %cst_79 : f32 to vector<8x16xf32>
    %1120 = vector.broadcast %5 : vector<1x16xf32> to vector<8x16xf32>
    %1121 = arith.addf %1119, %1120 : vector<8x16xf32>
    %1122 = vector.extract_strided_slice %978 {offsets = [0, 0], sizes = [8, 16], strides = [1, 1]} : vector<10x16xf32> to vector<8x16xf32>
    %1123 = vector.extract_strided_slice %4 {offsets = [0, 0], sizes = [1, 16], strides = [1, 1]} : vector<9x16xf32> to vector<1x16xf32>
    %1124 = vector.broadcast %1123 : vector<1x16xf32> to vector<8x16xf32>
    %1125 = arith.mulf %1122, %1124 : vector<8x16xf32>
    %1126 = arith.addf %1121, %1125 : vector<8x16xf32>
    %1127 = vector.extract_strided_slice %978 {offsets = [1, 0], sizes = [8, 16], strides = [1, 1]} : vector<10x16xf32> to vector<8x16xf32>
    %1128 = vector.extract_strided_slice %4 {offsets = [1, 0], sizes = [1, 16], strides = [1, 1]} : vector<9x16xf32> to vector<1x16xf32>
    %1129 = vector.broadcast %1128 : vector<1x16xf32> to vector<8x16xf32>
    %1130 = arith.mulf %1127, %1129 : vector<8x16xf32>
    %1131 = arith.addf %1126, %1130 : vector<8x16xf32>
    %1132 = vector.extract_strided_slice %978 {offsets = [2, 0], sizes = [8, 16], strides = [1, 1]} : vector<10x16xf32> to vector<8x16xf32>
    %1133 = vector.extract_strided_slice %4 {offsets = [2, 0], sizes = [1, 16], strides = [1, 1]} : vector<9x16xf32> to vector<1x16xf32>
    %1134 = vector.broadcast %1133 : vector<1x16xf32> to vector<8x16xf32>
    %1135 = arith.mulf %1132, %1134 : vector<8x16xf32>
    %1136 = arith.addf %1131, %1135 : vector<8x16xf32>
    %1137 = vector.extract_strided_slice %1095 {offsets = [0, 0], sizes = [8, 16], strides = [1, 1]} : vector<10x16xf32> to vector<8x16xf32>
    %1138 = vector.extract_strided_slice %4 {offsets = [3, 0], sizes = [1, 16], strides = [1, 1]} : vector<9x16xf32> to vector<1x16xf32>
    %1139 = vector.broadcast %1138 : vector<1x16xf32> to vector<8x16xf32>
    %1140 = arith.mulf %1137, %1139 : vector<8x16xf32>
    %1141 = arith.addf %1136, %1140 : vector<8x16xf32>
    %1142 = vector.extract_strided_slice %1095 {offsets = [1, 0], sizes = [8, 16], strides = [1, 1]} : vector<10x16xf32> to vector<8x16xf32>
    %1143 = vector.extract_strided_slice %4 {offsets = [4, 0], sizes = [1, 16], strides = [1, 1]} : vector<9x16xf32> to vector<1x16xf32>
    %1144 = vector.broadcast %1143 : vector<1x16xf32> to vector<8x16xf32>
    %1145 = arith.mulf %1142, %1144 : vector<8x16xf32>
    %1146 = arith.addf %1141, %1145 : vector<8x16xf32>
    %1147 = vector.extract_strided_slice %1095 {offsets = [2, 0], sizes = [8, 16], strides = [1, 1]} : vector<10x16xf32> to vector<8x16xf32>
    %1148 = vector.extract_strided_slice %4 {offsets = [5, 0], sizes = [1, 16], strides = [1, 1]} : vector<9x16xf32> to vector<1x16xf32>
    %1149 = vector.broadcast %1148 : vector<1x16xf32> to vector<8x16xf32>
    %1150 = arith.mulf %1147, %1149 : vector<8x16xf32>
    %1151 = arith.addf %1146, %1150 : vector<8x16xf32>
    %cst_80 = arith.constant 0.000000e+00 : f32
    %1152 = vector.broadcast %cst_80 : f32 to vector<10x16xf32>
    %1153 = vector.broadcast %3 : vector<1x16xf32> to vector<10x16xf32>
    %1154 = arith.addf %1152, %1153 : vector<10x16xf32>
    %1155 = vector.extract_strided_slice %1 {offsets = [0, 10], sizes = [10, 1], strides = [1, 1]} : vector<12x18xf32> to vector<10x1xf32>
    %1156 = vector.extract_strided_slice %2 {offsets = [0, 0], sizes = [1, 16], strides = [1, 1]} : vector<9x16xf32> to vector<1x16xf32>
    %1157 = vector.broadcast %1155 : vector<10x1xf32> to vector<10x16xf32>
    %1158 = vector.broadcast %1156 : vector<1x16xf32> to vector<10x16xf32>
    %1159 = arith.mulf %1157, %1158 : vector<10x16xf32>
    %1160 = arith.addf %1154, %1159 : vector<10x16xf32>
    %1161 = vector.extract_strided_slice %1 {offsets = [1, 10], sizes = [10, 1], strides = [1, 1]} : vector<12x18xf32> to vector<10x1xf32>
    %1162 = vector.extract_strided_slice %2 {offsets = [1, 0], sizes = [1, 16], strides = [1, 1]} : vector<9x16xf32> to vector<1x16xf32>
    %1163 = vector.broadcast %1161 : vector<10x1xf32> to vector<10x16xf32>
    %1164 = vector.broadcast %1162 : vector<1x16xf32> to vector<10x16xf32>
    %1165 = arith.mulf %1163, %1164 : vector<10x16xf32>
    %1166 = arith.addf %1160, %1165 : vector<10x16xf32>
    %1167 = vector.extract_strided_slice %1 {offsets = [2, 10], sizes = [10, 1], strides = [1, 1]} : vector<12x18xf32> to vector<10x1xf32>
    %1168 = vector.extract_strided_slice %2 {offsets = [2, 0], sizes = [1, 16], strides = [1, 1]} : vector<9x16xf32> to vector<1x16xf32>
    %1169 = vector.broadcast %1167 : vector<10x1xf32> to vector<10x16xf32>
    %1170 = vector.broadcast %1168 : vector<1x16xf32> to vector<10x16xf32>
    %1171 = arith.mulf %1169, %1170 : vector<10x16xf32>
    %1172 = arith.addf %1166, %1171 : vector<10x16xf32>
    %1173 = vector.extract_strided_slice %1 {offsets = [0, 11], sizes = [10, 1], strides = [1, 1]} : vector<12x18xf32> to vector<10x1xf32>
    %1174 = vector.extract_strided_slice %2 {offsets = [3, 0], sizes = [1, 16], strides = [1, 1]} : vector<9x16xf32> to vector<1x16xf32>
    %1175 = vector.broadcast %1173 : vector<10x1xf32> to vector<10x16xf32>
    %1176 = vector.broadcast %1174 : vector<1x16xf32> to vector<10x16xf32>
    %1177 = arith.mulf %1175, %1176 : vector<10x16xf32>
    %1178 = arith.addf %1172, %1177 : vector<10x16xf32>
    %1179 = vector.extract_strided_slice %1 {offsets = [1, 11], sizes = [10, 1], strides = [1, 1]} : vector<12x18xf32> to vector<10x1xf32>
    %1180 = vector.extract_strided_slice %2 {offsets = [4, 0], sizes = [1, 16], strides = [1, 1]} : vector<9x16xf32> to vector<1x16xf32>
    %1181 = vector.broadcast %1179 : vector<10x1xf32> to vector<10x16xf32>
    %1182 = vector.broadcast %1180 : vector<1x16xf32> to vector<10x16xf32>
    %1183 = arith.mulf %1181, %1182 : vector<10x16xf32>
    %1184 = arith.addf %1178, %1183 : vector<10x16xf32>
    %1185 = vector.extract_strided_slice %1 {offsets = [2, 11], sizes = [10, 1], strides = [1, 1]} : vector<12x18xf32> to vector<10x1xf32>
    %1186 = vector.extract_strided_slice %2 {offsets = [5, 0], sizes = [1, 16], strides = [1, 1]} : vector<9x16xf32> to vector<1x16xf32>
    %1187 = vector.broadcast %1185 : vector<10x1xf32> to vector<10x16xf32>
    %1188 = vector.broadcast %1186 : vector<1x16xf32> to vector<10x16xf32>
    %1189 = arith.mulf %1187, %1188 : vector<10x16xf32>
    %1190 = arith.addf %1184, %1189 : vector<10x16xf32>
    %1191 = vector.extract_strided_slice %1 {offsets = [0, 12], sizes = [10, 1], strides = [1, 1]} : vector<12x18xf32> to vector<10x1xf32>
    %1192 = vector.extract_strided_slice %2 {offsets = [6, 0], sizes = [1, 16], strides = [1, 1]} : vector<9x16xf32> to vector<1x16xf32>
    %1193 = vector.broadcast %1191 : vector<10x1xf32> to vector<10x16xf32>
    %1194 = vector.broadcast %1192 : vector<1x16xf32> to vector<10x16xf32>
    %1195 = arith.mulf %1193, %1194 : vector<10x16xf32>
    %1196 = arith.addf %1190, %1195 : vector<10x16xf32>
    %1197 = vector.extract_strided_slice %1 {offsets = [1, 12], sizes = [10, 1], strides = [1, 1]} : vector<12x18xf32> to vector<10x1xf32>
    %1198 = vector.extract_strided_slice %2 {offsets = [7, 0], sizes = [1, 16], strides = [1, 1]} : vector<9x16xf32> to vector<1x16xf32>
    %1199 = vector.broadcast %1197 : vector<10x1xf32> to vector<10x16xf32>
    %1200 = vector.broadcast %1198 : vector<1x16xf32> to vector<10x16xf32>
    %1201 = arith.mulf %1199, %1200 : vector<10x16xf32>
    %1202 = arith.addf %1196, %1201 : vector<10x16xf32>
    %1203 = vector.extract_strided_slice %1 {offsets = [2, 12], sizes = [10, 1], strides = [1, 1]} : vector<12x18xf32> to vector<10x1xf32>
    %1204 = vector.extract_strided_slice %2 {offsets = [8, 0], sizes = [1, 16], strides = [1, 1]} : vector<9x16xf32> to vector<1x16xf32>
    %1205 = vector.broadcast %1203 : vector<10x1xf32> to vector<10x16xf32>
    %1206 = vector.broadcast %1204 : vector<1x16xf32> to vector<10x16xf32>
    %1207 = arith.mulf %1205, %1206 : vector<10x16xf32>
    %1208 = arith.addf %1202, %1207 : vector<10x16xf32>
    %cst_81 = arith.constant 0.000000e+00 : f32
    %1209 = vector.broadcast %cst_81 : f32 to vector<10x16xf32>
    %1210 = arith.maximumf %1208, %1209 : vector<10x16xf32>
    %1211 = vector.broadcast %18 : vector<10x1xf32> to vector<10x16xf32>
    %1212 = arith.mulf %1210, %1211 : vector<10x16xf32>
    %1213 = vector.extract_strided_slice %1212 {offsets = [0, 0], sizes = [8, 16], strides = [1, 1]} : vector<10x16xf32> to vector<8x16xf32>
    %1214 = vector.extract_strided_slice %4 {offsets = [6, 0], sizes = [1, 16], strides = [1, 1]} : vector<9x16xf32> to vector<1x16xf32>
    %1215 = vector.broadcast %1214 : vector<1x16xf32> to vector<8x16xf32>
    %1216 = arith.mulf %1213, %1215 : vector<8x16xf32>
    %1217 = arith.addf %1151, %1216 : vector<8x16xf32>
    %1218 = vector.extract_strided_slice %1212 {offsets = [1, 0], sizes = [8, 16], strides = [1, 1]} : vector<10x16xf32> to vector<8x16xf32>
    %1219 = vector.extract_strided_slice %4 {offsets = [7, 0], sizes = [1, 16], strides = [1, 1]} : vector<9x16xf32> to vector<1x16xf32>
    %1220 = vector.broadcast %1219 : vector<1x16xf32> to vector<8x16xf32>
    %1221 = arith.mulf %1218, %1220 : vector<8x16xf32>
    %1222 = arith.addf %1217, %1221 : vector<8x16xf32>
    %1223 = vector.extract_strided_slice %1212 {offsets = [2, 0], sizes = [8, 16], strides = [1, 1]} : vector<10x16xf32> to vector<8x16xf32>
    %1224 = vector.extract_strided_slice %4 {offsets = [8, 0], sizes = [1, 16], strides = [1, 1]} : vector<9x16xf32> to vector<1x16xf32>
    %1225 = vector.broadcast %1224 : vector<1x16xf32> to vector<8x16xf32>
    %1226 = arith.mulf %1223, %1225 : vector<8x16xf32>
    %1227 = arith.addf %1222, %1226 : vector<8x16xf32>
    %1228 = arith.truncf %1227 : vector<8x16xf32> to vector<8x16xbf16>
    %c0_82 = arith.constant 0 : index
    %c0_83 = arith.constant 0 : index
    %1229 = vector.load %arg7[%c0_82, %c0_83] : memref<16x32xbf16, #tpu.memory_space<vmem>>, vector<16x32xbf16>
    %cst_84 = arith.constant dense<0.000000e+00> : vector<8x32xf32>
    %1230 = tpu.matmul %1228, %1229, %cst_84 {dimension_numbers = #tpu.dot_dimension_numbers<[1], [0], [0], [1], [0, 0, 1, 1], [], []>} : vector<8x16xbf16>, vector<16x32xbf16>, vector<8x32xf32> -> vector<8x32xf32>
    %1231 = vector.broadcast %6 : vector<1x32xf32> to vector<8x32xf32>
    %1232 = arith.addf %1230, %1231 : vector<8x32xf32>
    %cst_85 = arith.constant 0.000000e+00 : f32
    %1233 = vector.broadcast %cst_85 : f32 to vector<8x32xf32>
    %1234 = arith.maximumf %1232, %1233 : vector<8x32xf32>
    %1235 = arith.addf %1118, %1234 : vector<8x32xf32>
    %cst_86 = arith.constant 0.000000e+00 : f32
    %1236 = vector.broadcast %cst_86 : f32 to vector<8x16xf32>
    %1237 = vector.broadcast %5 : vector<1x16xf32> to vector<8x16xf32>
    %1238 = arith.addf %1236, %1237 : vector<8x16xf32>
    %1239 = vector.extract_strided_slice %1095 {offsets = [0, 0], sizes = [8, 16], strides = [1, 1]} : vector<10x16xf32> to vector<8x16xf32>
    %1240 = vector.extract_strided_slice %4 {offsets = [0, 0], sizes = [1, 16], strides = [1, 1]} : vector<9x16xf32> to vector<1x16xf32>
    %1241 = vector.broadcast %1240 : vector<1x16xf32> to vector<8x16xf32>
    %1242 = arith.mulf %1239, %1241 : vector<8x16xf32>
    %1243 = arith.addf %1238, %1242 : vector<8x16xf32>
    %1244 = vector.extract_strided_slice %1095 {offsets = [1, 0], sizes = [8, 16], strides = [1, 1]} : vector<10x16xf32> to vector<8x16xf32>
    %1245 = vector.extract_strided_slice %4 {offsets = [1, 0], sizes = [1, 16], strides = [1, 1]} : vector<9x16xf32> to vector<1x16xf32>
    %1246 = vector.broadcast %1245 : vector<1x16xf32> to vector<8x16xf32>
    %1247 = arith.mulf %1244, %1246 : vector<8x16xf32>
    %1248 = arith.addf %1243, %1247 : vector<8x16xf32>
    %1249 = vector.extract_strided_slice %1095 {offsets = [2, 0], sizes = [8, 16], strides = [1, 1]} : vector<10x16xf32> to vector<8x16xf32>
    %1250 = vector.extract_strided_slice %4 {offsets = [2, 0], sizes = [1, 16], strides = [1, 1]} : vector<9x16xf32> to vector<1x16xf32>
    %1251 = vector.broadcast %1250 : vector<1x16xf32> to vector<8x16xf32>
    %1252 = arith.mulf %1249, %1251 : vector<8x16xf32>
    %1253 = arith.addf %1248, %1252 : vector<8x16xf32>
    %1254 = vector.extract_strided_slice %1212 {offsets = [0, 0], sizes = [8, 16], strides = [1, 1]} : vector<10x16xf32> to vector<8x16xf32>
    %1255 = vector.extract_strided_slice %4 {offsets = [3, 0], sizes = [1, 16], strides = [1, 1]} : vector<9x16xf32> to vector<1x16xf32>
    %1256 = vector.broadcast %1255 : vector<1x16xf32> to vector<8x16xf32>
    %1257 = arith.mulf %1254, %1256 : vector<8x16xf32>
    %1258 = arith.addf %1253, %1257 : vector<8x16xf32>
    %1259 = vector.extract_strided_slice %1212 {offsets = [1, 0], sizes = [8, 16], strides = [1, 1]} : vector<10x16xf32> to vector<8x16xf32>
    %1260 = vector.extract_strided_slice %4 {offsets = [4, 0], sizes = [1, 16], strides = [1, 1]} : vector<9x16xf32> to vector<1x16xf32>
    %1261 = vector.broadcast %1260 : vector<1x16xf32> to vector<8x16xf32>
    %1262 = arith.mulf %1259, %1261 : vector<8x16xf32>
    %1263 = arith.addf %1258, %1262 : vector<8x16xf32>
    %1264 = vector.extract_strided_slice %1212 {offsets = [2, 0], sizes = [8, 16], strides = [1, 1]} : vector<10x16xf32> to vector<8x16xf32>
    %1265 = vector.extract_strided_slice %4 {offsets = [5, 0], sizes = [1, 16], strides = [1, 1]} : vector<9x16xf32> to vector<1x16xf32>
    %1266 = vector.broadcast %1265 : vector<1x16xf32> to vector<8x16xf32>
    %1267 = arith.mulf %1264, %1266 : vector<8x16xf32>
    %1268 = arith.addf %1263, %1267 : vector<8x16xf32>
    %cst_87 = arith.constant 0.000000e+00 : f32
    %1269 = vector.broadcast %cst_87 : f32 to vector<10x16xf32>
    %1270 = vector.broadcast %3 : vector<1x16xf32> to vector<10x16xf32>
    %1271 = arith.addf %1269, %1270 : vector<10x16xf32>
    %1272 = vector.extract_strided_slice %1 {offsets = [0, 11], sizes = [10, 1], strides = [1, 1]} : vector<12x18xf32> to vector<10x1xf32>
    %1273 = vector.extract_strided_slice %2 {offsets = [0, 0], sizes = [1, 16], strides = [1, 1]} : vector<9x16xf32> to vector<1x16xf32>
    %1274 = vector.broadcast %1272 : vector<10x1xf32> to vector<10x16xf32>
    %1275 = vector.broadcast %1273 : vector<1x16xf32> to vector<10x16xf32>
    %1276 = arith.mulf %1274, %1275 : vector<10x16xf32>
    %1277 = arith.addf %1271, %1276 : vector<10x16xf32>
    %1278 = vector.extract_strided_slice %1 {offsets = [1, 11], sizes = [10, 1], strides = [1, 1]} : vector<12x18xf32> to vector<10x1xf32>
    %1279 = vector.extract_strided_slice %2 {offsets = [1, 0], sizes = [1, 16], strides = [1, 1]} : vector<9x16xf32> to vector<1x16xf32>
    %1280 = vector.broadcast %1278 : vector<10x1xf32> to vector<10x16xf32>
    %1281 = vector.broadcast %1279 : vector<1x16xf32> to vector<10x16xf32>
    %1282 = arith.mulf %1280, %1281 : vector<10x16xf32>
    %1283 = arith.addf %1277, %1282 : vector<10x16xf32>
    %1284 = vector.extract_strided_slice %1 {offsets = [2, 11], sizes = [10, 1], strides = [1, 1]} : vector<12x18xf32> to vector<10x1xf32>
    %1285 = vector.extract_strided_slice %2 {offsets = [2, 0], sizes = [1, 16], strides = [1, 1]} : vector<9x16xf32> to vector<1x16xf32>
    %1286 = vector.broadcast %1284 : vector<10x1xf32> to vector<10x16xf32>
    %1287 = vector.broadcast %1285 : vector<1x16xf32> to vector<10x16xf32>
    %1288 = arith.mulf %1286, %1287 : vector<10x16xf32>
    %1289 = arith.addf %1283, %1288 : vector<10x16xf32>
    %1290 = vector.extract_strided_slice %1 {offsets = [0, 12], sizes = [10, 1], strides = [1, 1]} : vector<12x18xf32> to vector<10x1xf32>
    %1291 = vector.extract_strided_slice %2 {offsets = [3, 0], sizes = [1, 16], strides = [1, 1]} : vector<9x16xf32> to vector<1x16xf32>
    %1292 = vector.broadcast %1290 : vector<10x1xf32> to vector<10x16xf32>
    %1293 = vector.broadcast %1291 : vector<1x16xf32> to vector<10x16xf32>
    %1294 = arith.mulf %1292, %1293 : vector<10x16xf32>
    %1295 = arith.addf %1289, %1294 : vector<10x16xf32>
    %1296 = vector.extract_strided_slice %1 {offsets = [1, 12], sizes = [10, 1], strides = [1, 1]} : vector<12x18xf32> to vector<10x1xf32>
    %1297 = vector.extract_strided_slice %2 {offsets = [4, 0], sizes = [1, 16], strides = [1, 1]} : vector<9x16xf32> to vector<1x16xf32>
    %1298 = vector.broadcast %1296 : vector<10x1xf32> to vector<10x16xf32>
    %1299 = vector.broadcast %1297 : vector<1x16xf32> to vector<10x16xf32>
    %1300 = arith.mulf %1298, %1299 : vector<10x16xf32>
    %1301 = arith.addf %1295, %1300 : vector<10x16xf32>
    %1302 = vector.extract_strided_slice %1 {offsets = [2, 12], sizes = [10, 1], strides = [1, 1]} : vector<12x18xf32> to vector<10x1xf32>
    %1303 = vector.extract_strided_slice %2 {offsets = [5, 0], sizes = [1, 16], strides = [1, 1]} : vector<9x16xf32> to vector<1x16xf32>
    %1304 = vector.broadcast %1302 : vector<10x1xf32> to vector<10x16xf32>
    %1305 = vector.broadcast %1303 : vector<1x16xf32> to vector<10x16xf32>
    %1306 = arith.mulf %1304, %1305 : vector<10x16xf32>
    %1307 = arith.addf %1301, %1306 : vector<10x16xf32>
    %1308 = vector.extract_strided_slice %1 {offsets = [0, 13], sizes = [10, 1], strides = [1, 1]} : vector<12x18xf32> to vector<10x1xf32>
    %1309 = vector.extract_strided_slice %2 {offsets = [6, 0], sizes = [1, 16], strides = [1, 1]} : vector<9x16xf32> to vector<1x16xf32>
    %1310 = vector.broadcast %1308 : vector<10x1xf32> to vector<10x16xf32>
    %1311 = vector.broadcast %1309 : vector<1x16xf32> to vector<10x16xf32>
    %1312 = arith.mulf %1310, %1311 : vector<10x16xf32>
    %1313 = arith.addf %1307, %1312 : vector<10x16xf32>
    %1314 = vector.extract_strided_slice %1 {offsets = [1, 13], sizes = [10, 1], strides = [1, 1]} : vector<12x18xf32> to vector<10x1xf32>
    %1315 = vector.extract_strided_slice %2 {offsets = [7, 0], sizes = [1, 16], strides = [1, 1]} : vector<9x16xf32> to vector<1x16xf32>
    %1316 = vector.broadcast %1314 : vector<10x1xf32> to vector<10x16xf32>
    %1317 = vector.broadcast %1315 : vector<1x16xf32> to vector<10x16xf32>
    %1318 = arith.mulf %1316, %1317 : vector<10x16xf32>
    %1319 = arith.addf %1313, %1318 : vector<10x16xf32>
    %1320 = vector.extract_strided_slice %1 {offsets = [2, 13], sizes = [10, 1], strides = [1, 1]} : vector<12x18xf32> to vector<10x1xf32>
    %1321 = vector.extract_strided_slice %2 {offsets = [8, 0], sizes = [1, 16], strides = [1, 1]} : vector<9x16xf32> to vector<1x16xf32>
    %1322 = vector.broadcast %1320 : vector<10x1xf32> to vector<10x16xf32>
    %1323 = vector.broadcast %1321 : vector<1x16xf32> to vector<10x16xf32>
    %1324 = arith.mulf %1322, %1323 : vector<10x16xf32>
    %1325 = arith.addf %1319, %1324 : vector<10x16xf32>
    %cst_88 = arith.constant 0.000000e+00 : f32
    %1326 = vector.broadcast %cst_88 : f32 to vector<10x16xf32>
    %1327 = arith.maximumf %1325, %1326 : vector<10x16xf32>
    %1328 = vector.broadcast %18 : vector<10x1xf32> to vector<10x16xf32>
    %1329 = arith.mulf %1327, %1328 : vector<10x16xf32>
    %1330 = vector.extract_strided_slice %1329 {offsets = [0, 0], sizes = [8, 16], strides = [1, 1]} : vector<10x16xf32> to vector<8x16xf32>
    %1331 = vector.extract_strided_slice %4 {offsets = [6, 0], sizes = [1, 16], strides = [1, 1]} : vector<9x16xf32> to vector<1x16xf32>
    %1332 = vector.broadcast %1331 : vector<1x16xf32> to vector<8x16xf32>
    %1333 = arith.mulf %1330, %1332 : vector<8x16xf32>
    %1334 = arith.addf %1268, %1333 : vector<8x16xf32>
    %1335 = vector.extract_strided_slice %1329 {offsets = [1, 0], sizes = [8, 16], strides = [1, 1]} : vector<10x16xf32> to vector<8x16xf32>
    %1336 = vector.extract_strided_slice %4 {offsets = [7, 0], sizes = [1, 16], strides = [1, 1]} : vector<9x16xf32> to vector<1x16xf32>
    %1337 = vector.broadcast %1336 : vector<1x16xf32> to vector<8x16xf32>
    %1338 = arith.mulf %1335, %1337 : vector<8x16xf32>
    %1339 = arith.addf %1334, %1338 : vector<8x16xf32>
    %1340 = vector.extract_strided_slice %1329 {offsets = [2, 0], sizes = [8, 16], strides = [1, 1]} : vector<10x16xf32> to vector<8x16xf32>
    %1341 = vector.extract_strided_slice %4 {offsets = [8, 0], sizes = [1, 16], strides = [1, 1]} : vector<9x16xf32> to vector<1x16xf32>
    %1342 = vector.broadcast %1341 : vector<1x16xf32> to vector<8x16xf32>
    %1343 = arith.mulf %1340, %1342 : vector<8x16xf32>
    %1344 = arith.addf %1339, %1343 : vector<8x16xf32>
    %1345 = arith.truncf %1344 : vector<8x16xf32> to vector<8x16xbf16>
    %c0_89 = arith.constant 0 : index
    %c0_90 = arith.constant 0 : index
    %1346 = vector.load %arg7[%c0_89, %c0_90] : memref<16x32xbf16, #tpu.memory_space<vmem>>, vector<16x32xbf16>
    %cst_91 = arith.constant dense<0.000000e+00> : vector<8x32xf32>
    %1347 = tpu.matmul %1345, %1346, %cst_91 {dimension_numbers = #tpu.dot_dimension_numbers<[1], [0], [0], [1], [0, 0, 1, 1], [], []>} : vector<8x16xbf16>, vector<16x32xbf16>, vector<8x32xf32> -> vector<8x32xf32>
    %1348 = vector.broadcast %6 : vector<1x32xf32> to vector<8x32xf32>
    %1349 = arith.addf %1347, %1348 : vector<8x32xf32>
    %cst_92 = arith.constant 0.000000e+00 : f32
    %1350 = vector.broadcast %cst_92 : f32 to vector<8x32xf32>
    %1351 = arith.maximumf %1349, %1350 : vector<8x32xf32>
    %1352 = arith.addf %1235, %1351 : vector<8x32xf32>
    %cst_93 = arith.constant 0.000000e+00 : f32
    %1353 = vector.broadcast %cst_93 : f32 to vector<8x16xf32>
    %1354 = vector.broadcast %5 : vector<1x16xf32> to vector<8x16xf32>
    %1355 = arith.addf %1353, %1354 : vector<8x16xf32>
    %1356 = vector.extract_strided_slice %1212 {offsets = [0, 0], sizes = [8, 16], strides = [1, 1]} : vector<10x16xf32> to vector<8x16xf32>
    %1357 = vector.extract_strided_slice %4 {offsets = [0, 0], sizes = [1, 16], strides = [1, 1]} : vector<9x16xf32> to vector<1x16xf32>
    %1358 = vector.broadcast %1357 : vector<1x16xf32> to vector<8x16xf32>
    %1359 = arith.mulf %1356, %1358 : vector<8x16xf32>
    %1360 = arith.addf %1355, %1359 : vector<8x16xf32>
    %1361 = vector.extract_strided_slice %1212 {offsets = [1, 0], sizes = [8, 16], strides = [1, 1]} : vector<10x16xf32> to vector<8x16xf32>
    %1362 = vector.extract_strided_slice %4 {offsets = [1, 0], sizes = [1, 16], strides = [1, 1]} : vector<9x16xf32> to vector<1x16xf32>
    %1363 = vector.broadcast %1362 : vector<1x16xf32> to vector<8x16xf32>
    %1364 = arith.mulf %1361, %1363 : vector<8x16xf32>
    %1365 = arith.addf %1360, %1364 : vector<8x16xf32>
    %1366 = vector.extract_strided_slice %1212 {offsets = [2, 0], sizes = [8, 16], strides = [1, 1]} : vector<10x16xf32> to vector<8x16xf32>
    %1367 = vector.extract_strided_slice %4 {offsets = [2, 0], sizes = [1, 16], strides = [1, 1]} : vector<9x16xf32> to vector<1x16xf32>
    %1368 = vector.broadcast %1367 : vector<1x16xf32> to vector<8x16xf32>
    %1369 = arith.mulf %1366, %1368 : vector<8x16xf32>
    %1370 = arith.addf %1365, %1369 : vector<8x16xf32>
    %1371 = vector.extract_strided_slice %1329 {offsets = [0, 0], sizes = [8, 16], strides = [1, 1]} : vector<10x16xf32> to vector<8x16xf32>
    %1372 = vector.extract_strided_slice %4 {offsets = [3, 0], sizes = [1, 16], strides = [1, 1]} : vector<9x16xf32> to vector<1x16xf32>
    %1373 = vector.broadcast %1372 : vector<1x16xf32> to vector<8x16xf32>
    %1374 = arith.mulf %1371, %1373 : vector<8x16xf32>
    %1375 = arith.addf %1370, %1374 : vector<8x16xf32>
    %1376 = vector.extract_strided_slice %1329 {offsets = [1, 0], sizes = [8, 16], strides = [1, 1]} : vector<10x16xf32> to vector<8x16xf32>
    %1377 = vector.extract_strided_slice %4 {offsets = [4, 0], sizes = [1, 16], strides = [1, 1]} : vector<9x16xf32> to vector<1x16xf32>
    %1378 = vector.broadcast %1377 : vector<1x16xf32> to vector<8x16xf32>
    %1379 = arith.mulf %1376, %1378 : vector<8x16xf32>
    %1380 = arith.addf %1375, %1379 : vector<8x16xf32>
    %1381 = vector.extract_strided_slice %1329 {offsets = [2, 0], sizes = [8, 16], strides = [1, 1]} : vector<10x16xf32> to vector<8x16xf32>
    %1382 = vector.extract_strided_slice %4 {offsets = [5, 0], sizes = [1, 16], strides = [1, 1]} : vector<9x16xf32> to vector<1x16xf32>
    %1383 = vector.broadcast %1382 : vector<1x16xf32> to vector<8x16xf32>
    %1384 = arith.mulf %1381, %1383 : vector<8x16xf32>
    %1385 = arith.addf %1380, %1384 : vector<8x16xf32>
    %cst_94 = arith.constant 0.000000e+00 : f32
    %1386 = vector.broadcast %cst_94 : f32 to vector<10x16xf32>
    %1387 = vector.broadcast %3 : vector<1x16xf32> to vector<10x16xf32>
    %1388 = arith.addf %1386, %1387 : vector<10x16xf32>
    %1389 = vector.extract_strided_slice %1 {offsets = [0, 12], sizes = [10, 1], strides = [1, 1]} : vector<12x18xf32> to vector<10x1xf32>
    %1390 = vector.extract_strided_slice %2 {offsets = [0, 0], sizes = [1, 16], strides = [1, 1]} : vector<9x16xf32> to vector<1x16xf32>
    %1391 = vector.broadcast %1389 : vector<10x1xf32> to vector<10x16xf32>
    %1392 = vector.broadcast %1390 : vector<1x16xf32> to vector<10x16xf32>
    %1393 = arith.mulf %1391, %1392 : vector<10x16xf32>
    %1394 = arith.addf %1388, %1393 : vector<10x16xf32>
    %1395 = vector.extract_strided_slice %1 {offsets = [1, 12], sizes = [10, 1], strides = [1, 1]} : vector<12x18xf32> to vector<10x1xf32>
    %1396 = vector.extract_strided_slice %2 {offsets = [1, 0], sizes = [1, 16], strides = [1, 1]} : vector<9x16xf32> to vector<1x16xf32>
    %1397 = vector.broadcast %1395 : vector<10x1xf32> to vector<10x16xf32>
    %1398 = vector.broadcast %1396 : vector<1x16xf32> to vector<10x16xf32>
    %1399 = arith.mulf %1397, %1398 : vector<10x16xf32>
    %1400 = arith.addf %1394, %1399 : vector<10x16xf32>
    %1401 = vector.extract_strided_slice %1 {offsets = [2, 12], sizes = [10, 1], strides = [1, 1]} : vector<12x18xf32> to vector<10x1xf32>
    %1402 = vector.extract_strided_slice %2 {offsets = [2, 0], sizes = [1, 16], strides = [1, 1]} : vector<9x16xf32> to vector<1x16xf32>
    %1403 = vector.broadcast %1401 : vector<10x1xf32> to vector<10x16xf32>
    %1404 = vector.broadcast %1402 : vector<1x16xf32> to vector<10x16xf32>
    %1405 = arith.mulf %1403, %1404 : vector<10x16xf32>
    %1406 = arith.addf %1400, %1405 : vector<10x16xf32>
    %1407 = vector.extract_strided_slice %1 {offsets = [0, 13], sizes = [10, 1], strides = [1, 1]} : vector<12x18xf32> to vector<10x1xf32>
    %1408 = vector.extract_strided_slice %2 {offsets = [3, 0], sizes = [1, 16], strides = [1, 1]} : vector<9x16xf32> to vector<1x16xf32>
    %1409 = vector.broadcast %1407 : vector<10x1xf32> to vector<10x16xf32>
    %1410 = vector.broadcast %1408 : vector<1x16xf32> to vector<10x16xf32>
    %1411 = arith.mulf %1409, %1410 : vector<10x16xf32>
    %1412 = arith.addf %1406, %1411 : vector<10x16xf32>
    %1413 = vector.extract_strided_slice %1 {offsets = [1, 13], sizes = [10, 1], strides = [1, 1]} : vector<12x18xf32> to vector<10x1xf32>
    %1414 = vector.extract_strided_slice %2 {offsets = [4, 0], sizes = [1, 16], strides = [1, 1]} : vector<9x16xf32> to vector<1x16xf32>
    %1415 = vector.broadcast %1413 : vector<10x1xf32> to vector<10x16xf32>
    %1416 = vector.broadcast %1414 : vector<1x16xf32> to vector<10x16xf32>
    %1417 = arith.mulf %1415, %1416 : vector<10x16xf32>
    %1418 = arith.addf %1412, %1417 : vector<10x16xf32>
    %1419 = vector.extract_strided_slice %1 {offsets = [2, 13], sizes = [10, 1], strides = [1, 1]} : vector<12x18xf32> to vector<10x1xf32>
    %1420 = vector.extract_strided_slice %2 {offsets = [5, 0], sizes = [1, 16], strides = [1, 1]} : vector<9x16xf32> to vector<1x16xf32>
    %1421 = vector.broadcast %1419 : vector<10x1xf32> to vector<10x16xf32>
    %1422 = vector.broadcast %1420 : vector<1x16xf32> to vector<10x16xf32>
    %1423 = arith.mulf %1421, %1422 : vector<10x16xf32>
    %1424 = arith.addf %1418, %1423 : vector<10x16xf32>
    %1425 = vector.extract_strided_slice %1 {offsets = [0, 14], sizes = [10, 1], strides = [1, 1]} : vector<12x18xf32> to vector<10x1xf32>
    %1426 = vector.extract_strided_slice %2 {offsets = [6, 0], sizes = [1, 16], strides = [1, 1]} : vector<9x16xf32> to vector<1x16xf32>
    %1427 = vector.broadcast %1425 : vector<10x1xf32> to vector<10x16xf32>
    %1428 = vector.broadcast %1426 : vector<1x16xf32> to vector<10x16xf32>
    %1429 = arith.mulf %1427, %1428 : vector<10x16xf32>
    %1430 = arith.addf %1424, %1429 : vector<10x16xf32>
    %1431 = vector.extract_strided_slice %1 {offsets = [1, 14], sizes = [10, 1], strides = [1, 1]} : vector<12x18xf32> to vector<10x1xf32>
    %1432 = vector.extract_strided_slice %2 {offsets = [7, 0], sizes = [1, 16], strides = [1, 1]} : vector<9x16xf32> to vector<1x16xf32>
    %1433 = vector.broadcast %1431 : vector<10x1xf32> to vector<10x16xf32>
    %1434 = vector.broadcast %1432 : vector<1x16xf32> to vector<10x16xf32>
    %1435 = arith.mulf %1433, %1434 : vector<10x16xf32>
    %1436 = arith.addf %1430, %1435 : vector<10x16xf32>
    %1437 = vector.extract_strided_slice %1 {offsets = [2, 14], sizes = [10, 1], strides = [1, 1]} : vector<12x18xf32> to vector<10x1xf32>
    %1438 = vector.extract_strided_slice %2 {offsets = [8, 0], sizes = [1, 16], strides = [1, 1]} : vector<9x16xf32> to vector<1x16xf32>
    %1439 = vector.broadcast %1437 : vector<10x1xf32> to vector<10x16xf32>
    %1440 = vector.broadcast %1438 : vector<1x16xf32> to vector<10x16xf32>
    %1441 = arith.mulf %1439, %1440 : vector<10x16xf32>
    %1442 = arith.addf %1436, %1441 : vector<10x16xf32>
    %cst_95 = arith.constant 0.000000e+00 : f32
    %1443 = vector.broadcast %cst_95 : f32 to vector<10x16xf32>
    %1444 = arith.maximumf %1442, %1443 : vector<10x16xf32>
    %1445 = vector.broadcast %18 : vector<10x1xf32> to vector<10x16xf32>
    %1446 = arith.mulf %1444, %1445 : vector<10x16xf32>
    %1447 = vector.extract_strided_slice %1446 {offsets = [0, 0], sizes = [8, 16], strides = [1, 1]} : vector<10x16xf32> to vector<8x16xf32>
    %1448 = vector.extract_strided_slice %4 {offsets = [6, 0], sizes = [1, 16], strides = [1, 1]} : vector<9x16xf32> to vector<1x16xf32>
    %1449 = vector.broadcast %1448 : vector<1x16xf32> to vector<8x16xf32>
    %1450 = arith.mulf %1447, %1449 : vector<8x16xf32>
    %1451 = arith.addf %1385, %1450 : vector<8x16xf32>
    %1452 = vector.extract_strided_slice %1446 {offsets = [1, 0], sizes = [8, 16], strides = [1, 1]} : vector<10x16xf32> to vector<8x16xf32>
    %1453 = vector.extract_strided_slice %4 {offsets = [7, 0], sizes = [1, 16], strides = [1, 1]} : vector<9x16xf32> to vector<1x16xf32>
    %1454 = vector.broadcast %1453 : vector<1x16xf32> to vector<8x16xf32>
    %1455 = arith.mulf %1452, %1454 : vector<8x16xf32>
    %1456 = arith.addf %1451, %1455 : vector<8x16xf32>
    %1457 = vector.extract_strided_slice %1446 {offsets = [2, 0], sizes = [8, 16], strides = [1, 1]} : vector<10x16xf32> to vector<8x16xf32>
    %1458 = vector.extract_strided_slice %4 {offsets = [8, 0], sizes = [1, 16], strides = [1, 1]} : vector<9x16xf32> to vector<1x16xf32>
    %1459 = vector.broadcast %1458 : vector<1x16xf32> to vector<8x16xf32>
    %1460 = arith.mulf %1457, %1459 : vector<8x16xf32>
    %1461 = arith.addf %1456, %1460 : vector<8x16xf32>
    %1462 = arith.truncf %1461 : vector<8x16xf32> to vector<8x16xbf16>
    %c0_96 = arith.constant 0 : index
    %c0_97 = arith.constant 0 : index
    %1463 = vector.load %arg7[%c0_96, %c0_97] : memref<16x32xbf16, #tpu.memory_space<vmem>>, vector<16x32xbf16>
    %cst_98 = arith.constant dense<0.000000e+00> : vector<8x32xf32>
    %1464 = tpu.matmul %1462, %1463, %cst_98 {dimension_numbers = #tpu.dot_dimension_numbers<[1], [0], [0], [1], [0, 0, 1, 1], [], []>} : vector<8x16xbf16>, vector<16x32xbf16>, vector<8x32xf32> -> vector<8x32xf32>
    %1465 = vector.broadcast %6 : vector<1x32xf32> to vector<8x32xf32>
    %1466 = arith.addf %1464, %1465 : vector<8x32xf32>
    %cst_99 = arith.constant 0.000000e+00 : f32
    %1467 = vector.broadcast %cst_99 : f32 to vector<8x32xf32>
    %1468 = arith.maximumf %1466, %1467 : vector<8x32xf32>
    %1469 = arith.addf %1352, %1468 : vector<8x32xf32>
    %cst_100 = arith.constant 0.000000e+00 : f32
    %1470 = vector.broadcast %cst_100 : f32 to vector<8x16xf32>
    %1471 = vector.broadcast %5 : vector<1x16xf32> to vector<8x16xf32>
    %1472 = arith.addf %1470, %1471 : vector<8x16xf32>
    %1473 = vector.extract_strided_slice %1329 {offsets = [0, 0], sizes = [8, 16], strides = [1, 1]} : vector<10x16xf32> to vector<8x16xf32>
    %1474 = vector.extract_strided_slice %4 {offsets = [0, 0], sizes = [1, 16], strides = [1, 1]} : vector<9x16xf32> to vector<1x16xf32>
    %1475 = vector.broadcast %1474 : vector<1x16xf32> to vector<8x16xf32>
    %1476 = arith.mulf %1473, %1475 : vector<8x16xf32>
    %1477 = arith.addf %1472, %1476 : vector<8x16xf32>
    %1478 = vector.extract_strided_slice %1329 {offsets = [1, 0], sizes = [8, 16], strides = [1, 1]} : vector<10x16xf32> to vector<8x16xf32>
    %1479 = vector.extract_strided_slice %4 {offsets = [1, 0], sizes = [1, 16], strides = [1, 1]} : vector<9x16xf32> to vector<1x16xf32>
    %1480 = vector.broadcast %1479 : vector<1x16xf32> to vector<8x16xf32>
    %1481 = arith.mulf %1478, %1480 : vector<8x16xf32>
    %1482 = arith.addf %1477, %1481 : vector<8x16xf32>
    %1483 = vector.extract_strided_slice %1329 {offsets = [2, 0], sizes = [8, 16], strides = [1, 1]} : vector<10x16xf32> to vector<8x16xf32>
    %1484 = vector.extract_strided_slice %4 {offsets = [2, 0], sizes = [1, 16], strides = [1, 1]} : vector<9x16xf32> to vector<1x16xf32>
    %1485 = vector.broadcast %1484 : vector<1x16xf32> to vector<8x16xf32>
    %1486 = arith.mulf %1483, %1485 : vector<8x16xf32>
    %1487 = arith.addf %1482, %1486 : vector<8x16xf32>
    %1488 = vector.extract_strided_slice %1446 {offsets = [0, 0], sizes = [8, 16], strides = [1, 1]} : vector<10x16xf32> to vector<8x16xf32>
    %1489 = vector.extract_strided_slice %4 {offsets = [3, 0], sizes = [1, 16], strides = [1, 1]} : vector<9x16xf32> to vector<1x16xf32>
    %1490 = vector.broadcast %1489 : vector<1x16xf32> to vector<8x16xf32>
    %1491 = arith.mulf %1488, %1490 : vector<8x16xf32>
    %1492 = arith.addf %1487, %1491 : vector<8x16xf32>
    %1493 = vector.extract_strided_slice %1446 {offsets = [1, 0], sizes = [8, 16], strides = [1, 1]} : vector<10x16xf32> to vector<8x16xf32>
    %1494 = vector.extract_strided_slice %4 {offsets = [4, 0], sizes = [1, 16], strides = [1, 1]} : vector<9x16xf32> to vector<1x16xf32>
    %1495 = vector.broadcast %1494 : vector<1x16xf32> to vector<8x16xf32>
    %1496 = arith.mulf %1493, %1495 : vector<8x16xf32>
    %1497 = arith.addf %1492, %1496 : vector<8x16xf32>
    %1498 = vector.extract_strided_slice %1446 {offsets = [2, 0], sizes = [8, 16], strides = [1, 1]} : vector<10x16xf32> to vector<8x16xf32>
    %1499 = vector.extract_strided_slice %4 {offsets = [5, 0], sizes = [1, 16], strides = [1, 1]} : vector<9x16xf32> to vector<1x16xf32>
    %1500 = vector.broadcast %1499 : vector<1x16xf32> to vector<8x16xf32>
    %1501 = arith.mulf %1498, %1500 : vector<8x16xf32>
    %1502 = arith.addf %1497, %1501 : vector<8x16xf32>
    %cst_101 = arith.constant 0.000000e+00 : f32
    %1503 = vector.broadcast %cst_101 : f32 to vector<10x16xf32>
    %1504 = vector.broadcast %3 : vector<1x16xf32> to vector<10x16xf32>
    %1505 = arith.addf %1503, %1504 : vector<10x16xf32>
    %1506 = vector.extract_strided_slice %1 {offsets = [0, 13], sizes = [10, 1], strides = [1, 1]} : vector<12x18xf32> to vector<10x1xf32>
    %1507 = vector.extract_strided_slice %2 {offsets = [0, 0], sizes = [1, 16], strides = [1, 1]} : vector<9x16xf32> to vector<1x16xf32>
    %1508 = vector.broadcast %1506 : vector<10x1xf32> to vector<10x16xf32>
    %1509 = vector.broadcast %1507 : vector<1x16xf32> to vector<10x16xf32>
    %1510 = arith.mulf %1508, %1509 : vector<10x16xf32>
    %1511 = arith.addf %1505, %1510 : vector<10x16xf32>
    %1512 = vector.extract_strided_slice %1 {offsets = [1, 13], sizes = [10, 1], strides = [1, 1]} : vector<12x18xf32> to vector<10x1xf32>
    %1513 = vector.extract_strided_slice %2 {offsets = [1, 0], sizes = [1, 16], strides = [1, 1]} : vector<9x16xf32> to vector<1x16xf32>
    %1514 = vector.broadcast %1512 : vector<10x1xf32> to vector<10x16xf32>
    %1515 = vector.broadcast %1513 : vector<1x16xf32> to vector<10x16xf32>
    %1516 = arith.mulf %1514, %1515 : vector<10x16xf32>
    %1517 = arith.addf %1511, %1516 : vector<10x16xf32>
    %1518 = vector.extract_strided_slice %1 {offsets = [2, 13], sizes = [10, 1], strides = [1, 1]} : vector<12x18xf32> to vector<10x1xf32>
    %1519 = vector.extract_strided_slice %2 {offsets = [2, 0], sizes = [1, 16], strides = [1, 1]} : vector<9x16xf32> to vector<1x16xf32>
    %1520 = vector.broadcast %1518 : vector<10x1xf32> to vector<10x16xf32>
    %1521 = vector.broadcast %1519 : vector<1x16xf32> to vector<10x16xf32>
    %1522 = arith.mulf %1520, %1521 : vector<10x16xf32>
    %1523 = arith.addf %1517, %1522 : vector<10x16xf32>
    %1524 = vector.extract_strided_slice %1 {offsets = [0, 14], sizes = [10, 1], strides = [1, 1]} : vector<12x18xf32> to vector<10x1xf32>
    %1525 = vector.extract_strided_slice %2 {offsets = [3, 0], sizes = [1, 16], strides = [1, 1]} : vector<9x16xf32> to vector<1x16xf32>
    %1526 = vector.broadcast %1524 : vector<10x1xf32> to vector<10x16xf32>
    %1527 = vector.broadcast %1525 : vector<1x16xf32> to vector<10x16xf32>
    %1528 = arith.mulf %1526, %1527 : vector<10x16xf32>
    %1529 = arith.addf %1523, %1528 : vector<10x16xf32>
    %1530 = vector.extract_strided_slice %1 {offsets = [1, 14], sizes = [10, 1], strides = [1, 1]} : vector<12x18xf32> to vector<10x1xf32>
    %1531 = vector.extract_strided_slice %2 {offsets = [4, 0], sizes = [1, 16], strides = [1, 1]} : vector<9x16xf32> to vector<1x16xf32>
    %1532 = vector.broadcast %1530 : vector<10x1xf32> to vector<10x16xf32>
    %1533 = vector.broadcast %1531 : vector<1x16xf32> to vector<10x16xf32>
    %1534 = arith.mulf %1532, %1533 : vector<10x16xf32>
    %1535 = arith.addf %1529, %1534 : vector<10x16xf32>
    %1536 = vector.extract_strided_slice %1 {offsets = [2, 14], sizes = [10, 1], strides = [1, 1]} : vector<12x18xf32> to vector<10x1xf32>
    %1537 = vector.extract_strided_slice %2 {offsets = [5, 0], sizes = [1, 16], strides = [1, 1]} : vector<9x16xf32> to vector<1x16xf32>
    %1538 = vector.broadcast %1536 : vector<10x1xf32> to vector<10x16xf32>
    %1539 = vector.broadcast %1537 : vector<1x16xf32> to vector<10x16xf32>
    %1540 = arith.mulf %1538, %1539 : vector<10x16xf32>
    %1541 = arith.addf %1535, %1540 : vector<10x16xf32>
    %1542 = vector.extract_strided_slice %1 {offsets = [0, 15], sizes = [10, 1], strides = [1, 1]} : vector<12x18xf32> to vector<10x1xf32>
    %1543 = vector.extract_strided_slice %2 {offsets = [6, 0], sizes = [1, 16], strides = [1, 1]} : vector<9x16xf32> to vector<1x16xf32>
    %1544 = vector.broadcast %1542 : vector<10x1xf32> to vector<10x16xf32>
    %1545 = vector.broadcast %1543 : vector<1x16xf32> to vector<10x16xf32>
    %1546 = arith.mulf %1544, %1545 : vector<10x16xf32>
    %1547 = arith.addf %1541, %1546 : vector<10x16xf32>
    %1548 = vector.extract_strided_slice %1 {offsets = [1, 15], sizes = [10, 1], strides = [1, 1]} : vector<12x18xf32> to vector<10x1xf32>
    %1549 = vector.extract_strided_slice %2 {offsets = [7, 0], sizes = [1, 16], strides = [1, 1]} : vector<9x16xf32> to vector<1x16xf32>
    %1550 = vector.broadcast %1548 : vector<10x1xf32> to vector<10x16xf32>
    %1551 = vector.broadcast %1549 : vector<1x16xf32> to vector<10x16xf32>
    %1552 = arith.mulf %1550, %1551 : vector<10x16xf32>
    %1553 = arith.addf %1547, %1552 : vector<10x16xf32>
    %1554 = vector.extract_strided_slice %1 {offsets = [2, 15], sizes = [10, 1], strides = [1, 1]} : vector<12x18xf32> to vector<10x1xf32>
    %1555 = vector.extract_strided_slice %2 {offsets = [8, 0], sizes = [1, 16], strides = [1, 1]} : vector<9x16xf32> to vector<1x16xf32>
    %1556 = vector.broadcast %1554 : vector<10x1xf32> to vector<10x16xf32>
    %1557 = vector.broadcast %1555 : vector<1x16xf32> to vector<10x16xf32>
    %1558 = arith.mulf %1556, %1557 : vector<10x16xf32>
    %1559 = arith.addf %1553, %1558 : vector<10x16xf32>
    %cst_102 = arith.constant 0.000000e+00 : f32
    %1560 = vector.broadcast %cst_102 : f32 to vector<10x16xf32>
    %1561 = arith.maximumf %1559, %1560 : vector<10x16xf32>
    %1562 = vector.broadcast %18 : vector<10x1xf32> to vector<10x16xf32>
    %1563 = arith.mulf %1561, %1562 : vector<10x16xf32>
    %1564 = vector.extract_strided_slice %1563 {offsets = [0, 0], sizes = [8, 16], strides = [1, 1]} : vector<10x16xf32> to vector<8x16xf32>
    %1565 = vector.extract_strided_slice %4 {offsets = [6, 0], sizes = [1, 16], strides = [1, 1]} : vector<9x16xf32> to vector<1x16xf32>
    %1566 = vector.broadcast %1565 : vector<1x16xf32> to vector<8x16xf32>
    %1567 = arith.mulf %1564, %1566 : vector<8x16xf32>
    %1568 = arith.addf %1502, %1567 : vector<8x16xf32>
    %1569 = vector.extract_strided_slice %1563 {offsets = [1, 0], sizes = [8, 16], strides = [1, 1]} : vector<10x16xf32> to vector<8x16xf32>
    %1570 = vector.extract_strided_slice %4 {offsets = [7, 0], sizes = [1, 16], strides = [1, 1]} : vector<9x16xf32> to vector<1x16xf32>
    %1571 = vector.broadcast %1570 : vector<1x16xf32> to vector<8x16xf32>
    %1572 = arith.mulf %1569, %1571 : vector<8x16xf32>
    %1573 = arith.addf %1568, %1572 : vector<8x16xf32>
    %1574 = vector.extract_strided_slice %1563 {offsets = [2, 0], sizes = [8, 16], strides = [1, 1]} : vector<10x16xf32> to vector<8x16xf32>
    %1575 = vector.extract_strided_slice %4 {offsets = [8, 0], sizes = [1, 16], strides = [1, 1]} : vector<9x16xf32> to vector<1x16xf32>
    %1576 = vector.broadcast %1575 : vector<1x16xf32> to vector<8x16xf32>
    %1577 = arith.mulf %1574, %1576 : vector<8x16xf32>
    %1578 = arith.addf %1573, %1577 : vector<8x16xf32>
    %1579 = arith.truncf %1578 : vector<8x16xf32> to vector<8x16xbf16>
    %c0_103 = arith.constant 0 : index
    %c0_104 = arith.constant 0 : index
    %1580 = vector.load %arg7[%c0_103, %c0_104] : memref<16x32xbf16, #tpu.memory_space<vmem>>, vector<16x32xbf16>
    %cst_105 = arith.constant dense<0.000000e+00> : vector<8x32xf32>
    %1581 = tpu.matmul %1579, %1580, %cst_105 {dimension_numbers = #tpu.dot_dimension_numbers<[1], [0], [0], [1], [0, 0, 1, 1], [], []>} : vector<8x16xbf16>, vector<16x32xbf16>, vector<8x32xf32> -> vector<8x32xf32>
    %1582 = vector.broadcast %6 : vector<1x32xf32> to vector<8x32xf32>
    %1583 = arith.addf %1581, %1582 : vector<8x32xf32>
    %cst_106 = arith.constant 0.000000e+00 : f32
    %1584 = vector.broadcast %cst_106 : f32 to vector<8x32xf32>
    %1585 = arith.maximumf %1583, %1584 : vector<8x32xf32>
    %1586 = arith.addf %1469, %1585 : vector<8x32xf32>
    %cst_107 = arith.constant 0.000000e+00 : f32
    %1587 = vector.broadcast %cst_107 : f32 to vector<8x16xf32>
    %1588 = vector.broadcast %5 : vector<1x16xf32> to vector<8x16xf32>
    %1589 = arith.addf %1587, %1588 : vector<8x16xf32>
    %1590 = vector.extract_strided_slice %1446 {offsets = [0, 0], sizes = [8, 16], strides = [1, 1]} : vector<10x16xf32> to vector<8x16xf32>
    %1591 = vector.extract_strided_slice %4 {offsets = [0, 0], sizes = [1, 16], strides = [1, 1]} : vector<9x16xf32> to vector<1x16xf32>
    %1592 = vector.broadcast %1591 : vector<1x16xf32> to vector<8x16xf32>
    %1593 = arith.mulf %1590, %1592 : vector<8x16xf32>
    %1594 = arith.addf %1589, %1593 : vector<8x16xf32>
    %1595 = vector.extract_strided_slice %1446 {offsets = [1, 0], sizes = [8, 16], strides = [1, 1]} : vector<10x16xf32> to vector<8x16xf32>
    %1596 = vector.extract_strided_slice %4 {offsets = [1, 0], sizes = [1, 16], strides = [1, 1]} : vector<9x16xf32> to vector<1x16xf32>
    %1597 = vector.broadcast %1596 : vector<1x16xf32> to vector<8x16xf32>
    %1598 = arith.mulf %1595, %1597 : vector<8x16xf32>
    %1599 = arith.addf %1594, %1598 : vector<8x16xf32>
    %1600 = vector.extract_strided_slice %1446 {offsets = [2, 0], sizes = [8, 16], strides = [1, 1]} : vector<10x16xf32> to vector<8x16xf32>
    %1601 = vector.extract_strided_slice %4 {offsets = [2, 0], sizes = [1, 16], strides = [1, 1]} : vector<9x16xf32> to vector<1x16xf32>
    %1602 = vector.broadcast %1601 : vector<1x16xf32> to vector<8x16xf32>
    %1603 = arith.mulf %1600, %1602 : vector<8x16xf32>
    %1604 = arith.addf %1599, %1603 : vector<8x16xf32>
    %1605 = vector.extract_strided_slice %1563 {offsets = [0, 0], sizes = [8, 16], strides = [1, 1]} : vector<10x16xf32> to vector<8x16xf32>
    %1606 = vector.extract_strided_slice %4 {offsets = [3, 0], sizes = [1, 16], strides = [1, 1]} : vector<9x16xf32> to vector<1x16xf32>
    %1607 = vector.broadcast %1606 : vector<1x16xf32> to vector<8x16xf32>
    %1608 = arith.mulf %1605, %1607 : vector<8x16xf32>
    %1609 = arith.addf %1604, %1608 : vector<8x16xf32>
    %1610 = vector.extract_strided_slice %1563 {offsets = [1, 0], sizes = [8, 16], strides = [1, 1]} : vector<10x16xf32> to vector<8x16xf32>
    %1611 = vector.extract_strided_slice %4 {offsets = [4, 0], sizes = [1, 16], strides = [1, 1]} : vector<9x16xf32> to vector<1x16xf32>
    %1612 = vector.broadcast %1611 : vector<1x16xf32> to vector<8x16xf32>
    %1613 = arith.mulf %1610, %1612 : vector<8x16xf32>
    %1614 = arith.addf %1609, %1613 : vector<8x16xf32>
    %1615 = vector.extract_strided_slice %1563 {offsets = [2, 0], sizes = [8, 16], strides = [1, 1]} : vector<10x16xf32> to vector<8x16xf32>
    %1616 = vector.extract_strided_slice %4 {offsets = [5, 0], sizes = [1, 16], strides = [1, 1]} : vector<9x16xf32> to vector<1x16xf32>
    %1617 = vector.broadcast %1616 : vector<1x16xf32> to vector<8x16xf32>
    %1618 = arith.mulf %1615, %1617 : vector<8x16xf32>
    %1619 = arith.addf %1614, %1618 : vector<8x16xf32>
    %cst_108 = arith.constant 0.000000e+00 : f32
    %1620 = vector.broadcast %cst_108 : f32 to vector<10x16xf32>
    %1621 = vector.broadcast %3 : vector<1x16xf32> to vector<10x16xf32>
    %1622 = arith.addf %1620, %1621 : vector<10x16xf32>
    %1623 = vector.extract_strided_slice %1 {offsets = [0, 14], sizes = [10, 1], strides = [1, 1]} : vector<12x18xf32> to vector<10x1xf32>
    %1624 = vector.extract_strided_slice %2 {offsets = [0, 0], sizes = [1, 16], strides = [1, 1]} : vector<9x16xf32> to vector<1x16xf32>
    %1625 = vector.broadcast %1623 : vector<10x1xf32> to vector<10x16xf32>
    %1626 = vector.broadcast %1624 : vector<1x16xf32> to vector<10x16xf32>
    %1627 = arith.mulf %1625, %1626 : vector<10x16xf32>
    %1628 = arith.addf %1622, %1627 : vector<10x16xf32>
    %1629 = vector.extract_strided_slice %1 {offsets = [1, 14], sizes = [10, 1], strides = [1, 1]} : vector<12x18xf32> to vector<10x1xf32>
    %1630 = vector.extract_strided_slice %2 {offsets = [1, 0], sizes = [1, 16], strides = [1, 1]} : vector<9x16xf32> to vector<1x16xf32>
    %1631 = vector.broadcast %1629 : vector<10x1xf32> to vector<10x16xf32>
    %1632 = vector.broadcast %1630 : vector<1x16xf32> to vector<10x16xf32>
    %1633 = arith.mulf %1631, %1632 : vector<10x16xf32>
    %1634 = arith.addf %1628, %1633 : vector<10x16xf32>
    %1635 = vector.extract_strided_slice %1 {offsets = [2, 14], sizes = [10, 1], strides = [1, 1]} : vector<12x18xf32> to vector<10x1xf32>
    %1636 = vector.extract_strided_slice %2 {offsets = [2, 0], sizes = [1, 16], strides = [1, 1]} : vector<9x16xf32> to vector<1x16xf32>
    %1637 = vector.broadcast %1635 : vector<10x1xf32> to vector<10x16xf32>
    %1638 = vector.broadcast %1636 : vector<1x16xf32> to vector<10x16xf32>
    %1639 = arith.mulf %1637, %1638 : vector<10x16xf32>
    %1640 = arith.addf %1634, %1639 : vector<10x16xf32>
    %1641 = vector.extract_strided_slice %1 {offsets = [0, 15], sizes = [10, 1], strides = [1, 1]} : vector<12x18xf32> to vector<10x1xf32>
    %1642 = vector.extract_strided_slice %2 {offsets = [3, 0], sizes = [1, 16], strides = [1, 1]} : vector<9x16xf32> to vector<1x16xf32>
    %1643 = vector.broadcast %1641 : vector<10x1xf32> to vector<10x16xf32>
    %1644 = vector.broadcast %1642 : vector<1x16xf32> to vector<10x16xf32>
    %1645 = arith.mulf %1643, %1644 : vector<10x16xf32>
    %1646 = arith.addf %1640, %1645 : vector<10x16xf32>
    %1647 = vector.extract_strided_slice %1 {offsets = [1, 15], sizes = [10, 1], strides = [1, 1]} : vector<12x18xf32> to vector<10x1xf32>
    %1648 = vector.extract_strided_slice %2 {offsets = [4, 0], sizes = [1, 16], strides = [1, 1]} : vector<9x16xf32> to vector<1x16xf32>
    %1649 = vector.broadcast %1647 : vector<10x1xf32> to vector<10x16xf32>
    %1650 = vector.broadcast %1648 : vector<1x16xf32> to vector<10x16xf32>
    %1651 = arith.mulf %1649, %1650 : vector<10x16xf32>
    %1652 = arith.addf %1646, %1651 : vector<10x16xf32>
    %1653 = vector.extract_strided_slice %1 {offsets = [2, 15], sizes = [10, 1], strides = [1, 1]} : vector<12x18xf32> to vector<10x1xf32>
    %1654 = vector.extract_strided_slice %2 {offsets = [5, 0], sizes = [1, 16], strides = [1, 1]} : vector<9x16xf32> to vector<1x16xf32>
    %1655 = vector.broadcast %1653 : vector<10x1xf32> to vector<10x16xf32>
    %1656 = vector.broadcast %1654 : vector<1x16xf32> to vector<10x16xf32>
    %1657 = arith.mulf %1655, %1656 : vector<10x16xf32>
    %1658 = arith.addf %1652, %1657 : vector<10x16xf32>
    %1659 = vector.extract_strided_slice %1 {offsets = [0, 16], sizes = [10, 1], strides = [1, 1]} : vector<12x18xf32> to vector<10x1xf32>
    %1660 = vector.extract_strided_slice %2 {offsets = [6, 0], sizes = [1, 16], strides = [1, 1]} : vector<9x16xf32> to vector<1x16xf32>
    %1661 = vector.broadcast %1659 : vector<10x1xf32> to vector<10x16xf32>
    %1662 = vector.broadcast %1660 : vector<1x16xf32> to vector<10x16xf32>
    %1663 = arith.mulf %1661, %1662 : vector<10x16xf32>
    %1664 = arith.addf %1658, %1663 : vector<10x16xf32>
    %1665 = vector.extract_strided_slice %1 {offsets = [1, 16], sizes = [10, 1], strides = [1, 1]} : vector<12x18xf32> to vector<10x1xf32>
    %1666 = vector.extract_strided_slice %2 {offsets = [7, 0], sizes = [1, 16], strides = [1, 1]} : vector<9x16xf32> to vector<1x16xf32>
    %1667 = vector.broadcast %1665 : vector<10x1xf32> to vector<10x16xf32>
    %1668 = vector.broadcast %1666 : vector<1x16xf32> to vector<10x16xf32>
    %1669 = arith.mulf %1667, %1668 : vector<10x16xf32>
    %1670 = arith.addf %1664, %1669 : vector<10x16xf32>
    %1671 = vector.extract_strided_slice %1 {offsets = [2, 16], sizes = [10, 1], strides = [1, 1]} : vector<12x18xf32> to vector<10x1xf32>
    %1672 = vector.extract_strided_slice %2 {offsets = [8, 0], sizes = [1, 16], strides = [1, 1]} : vector<9x16xf32> to vector<1x16xf32>
    %1673 = vector.broadcast %1671 : vector<10x1xf32> to vector<10x16xf32>
    %1674 = vector.broadcast %1672 : vector<1x16xf32> to vector<10x16xf32>
    %1675 = arith.mulf %1673, %1674 : vector<10x16xf32>
    %1676 = arith.addf %1670, %1675 : vector<10x16xf32>
    %cst_109 = arith.constant 0.000000e+00 : f32
    %1677 = vector.broadcast %cst_109 : f32 to vector<10x16xf32>
    %1678 = arith.maximumf %1676, %1677 : vector<10x16xf32>
    %1679 = vector.broadcast %18 : vector<10x1xf32> to vector<10x16xf32>
    %1680 = arith.mulf %1678, %1679 : vector<10x16xf32>
    %1681 = vector.extract_strided_slice %1680 {offsets = [0, 0], sizes = [8, 16], strides = [1, 1]} : vector<10x16xf32> to vector<8x16xf32>
    %1682 = vector.extract_strided_slice %4 {offsets = [6, 0], sizes = [1, 16], strides = [1, 1]} : vector<9x16xf32> to vector<1x16xf32>
    %1683 = vector.broadcast %1682 : vector<1x16xf32> to vector<8x16xf32>
    %1684 = arith.mulf %1681, %1683 : vector<8x16xf32>
    %1685 = arith.addf %1619, %1684 : vector<8x16xf32>
    %1686 = vector.extract_strided_slice %1680 {offsets = [1, 0], sizes = [8, 16], strides = [1, 1]} : vector<10x16xf32> to vector<8x16xf32>
    %1687 = vector.extract_strided_slice %4 {offsets = [7, 0], sizes = [1, 16], strides = [1, 1]} : vector<9x16xf32> to vector<1x16xf32>
    %1688 = vector.broadcast %1687 : vector<1x16xf32> to vector<8x16xf32>
    %1689 = arith.mulf %1686, %1688 : vector<8x16xf32>
    %1690 = arith.addf %1685, %1689 : vector<8x16xf32>
    %1691 = vector.extract_strided_slice %1680 {offsets = [2, 0], sizes = [8, 16], strides = [1, 1]} : vector<10x16xf32> to vector<8x16xf32>
    %1692 = vector.extract_strided_slice %4 {offsets = [8, 0], sizes = [1, 16], strides = [1, 1]} : vector<9x16xf32> to vector<1x16xf32>
    %1693 = vector.broadcast %1692 : vector<1x16xf32> to vector<8x16xf32>
    %1694 = arith.mulf %1691, %1693 : vector<8x16xf32>
    %1695 = arith.addf %1690, %1694 : vector<8x16xf32>
    %1696 = arith.truncf %1695 : vector<8x16xf32> to vector<8x16xbf16>
    %c0_110 = arith.constant 0 : index
    %c0_111 = arith.constant 0 : index
    %1697 = vector.load %arg7[%c0_110, %c0_111] : memref<16x32xbf16, #tpu.memory_space<vmem>>, vector<16x32xbf16>
    %cst_112 = arith.constant dense<0.000000e+00> : vector<8x32xf32>
    %1698 = tpu.matmul %1696, %1697, %cst_112 {dimension_numbers = #tpu.dot_dimension_numbers<[1], [0], [0], [1], [0, 0, 1, 1], [], []>} : vector<8x16xbf16>, vector<16x32xbf16>, vector<8x32xf32> -> vector<8x32xf32>
    %1699 = vector.broadcast %6 : vector<1x32xf32> to vector<8x32xf32>
    %1700 = arith.addf %1698, %1699 : vector<8x32xf32>
    %cst_113 = arith.constant 0.000000e+00 : f32
    %1701 = vector.broadcast %cst_113 : f32 to vector<8x32xf32>
    %1702 = arith.maximumf %1700, %1701 : vector<8x32xf32>
    %1703 = arith.addf %1586, %1702 : vector<8x32xf32>
    %cst_114 = arith.constant 0.000000e+00 : f32
    %1704 = vector.broadcast %cst_114 : f32 to vector<8x16xf32>
    %1705 = vector.broadcast %5 : vector<1x16xf32> to vector<8x16xf32>
    %1706 = arith.addf %1704, %1705 : vector<8x16xf32>
    %1707 = vector.extract_strided_slice %1563 {offsets = [0, 0], sizes = [8, 16], strides = [1, 1]} : vector<10x16xf32> to vector<8x16xf32>
    %1708 = vector.extract_strided_slice %4 {offsets = [0, 0], sizes = [1, 16], strides = [1, 1]} : vector<9x16xf32> to vector<1x16xf32>
    %1709 = vector.broadcast %1708 : vector<1x16xf32> to vector<8x16xf32>
    %1710 = arith.mulf %1707, %1709 : vector<8x16xf32>
    %1711 = arith.addf %1706, %1710 : vector<8x16xf32>
    %1712 = vector.extract_strided_slice %1563 {offsets = [1, 0], sizes = [8, 16], strides = [1, 1]} : vector<10x16xf32> to vector<8x16xf32>
    %1713 = vector.extract_strided_slice %4 {offsets = [1, 0], sizes = [1, 16], strides = [1, 1]} : vector<9x16xf32> to vector<1x16xf32>
    %1714 = vector.broadcast %1713 : vector<1x16xf32> to vector<8x16xf32>
    %1715 = arith.mulf %1712, %1714 : vector<8x16xf32>
    %1716 = arith.addf %1711, %1715 : vector<8x16xf32>
    %1717 = vector.extract_strided_slice %1563 {offsets = [2, 0], sizes = [8, 16], strides = [1, 1]} : vector<10x16xf32> to vector<8x16xf32>
    %1718 = vector.extract_strided_slice %4 {offsets = [2, 0], sizes = [1, 16], strides = [1, 1]} : vector<9x16xf32> to vector<1x16xf32>
    %1719 = vector.broadcast %1718 : vector<1x16xf32> to vector<8x16xf32>
    %1720 = arith.mulf %1717, %1719 : vector<8x16xf32>
    %1721 = arith.addf %1716, %1720 : vector<8x16xf32>
    %1722 = vector.extract_strided_slice %1680 {offsets = [0, 0], sizes = [8, 16], strides = [1, 1]} : vector<10x16xf32> to vector<8x16xf32>
    %1723 = vector.extract_strided_slice %4 {offsets = [3, 0], sizes = [1, 16], strides = [1, 1]} : vector<9x16xf32> to vector<1x16xf32>
    %1724 = vector.broadcast %1723 : vector<1x16xf32> to vector<8x16xf32>
    %1725 = arith.mulf %1722, %1724 : vector<8x16xf32>
    %1726 = arith.addf %1721, %1725 : vector<8x16xf32>
    %1727 = vector.extract_strided_slice %1680 {offsets = [1, 0], sizes = [8, 16], strides = [1, 1]} : vector<10x16xf32> to vector<8x16xf32>
    %1728 = vector.extract_strided_slice %4 {offsets = [4, 0], sizes = [1, 16], strides = [1, 1]} : vector<9x16xf32> to vector<1x16xf32>
    %1729 = vector.broadcast %1728 : vector<1x16xf32> to vector<8x16xf32>
    %1730 = arith.mulf %1727, %1729 : vector<8x16xf32>
    %1731 = arith.addf %1726, %1730 : vector<8x16xf32>
    %1732 = vector.extract_strided_slice %1680 {offsets = [2, 0], sizes = [8, 16], strides = [1, 1]} : vector<10x16xf32> to vector<8x16xf32>
    %1733 = vector.extract_strided_slice %4 {offsets = [5, 0], sizes = [1, 16], strides = [1, 1]} : vector<9x16xf32> to vector<1x16xf32>
    %1734 = vector.broadcast %1733 : vector<1x16xf32> to vector<8x16xf32>
    %1735 = arith.mulf %1732, %1734 : vector<8x16xf32>
    %1736 = arith.addf %1731, %1735 : vector<8x16xf32>
    %cst_115 = arith.constant 0.000000e+00 : f32
    %1737 = vector.broadcast %cst_115 : f32 to vector<10x16xf32>
    %1738 = vector.broadcast %3 : vector<1x16xf32> to vector<10x16xf32>
    %1739 = arith.addf %1737, %1738 : vector<10x16xf32>
    %1740 = vector.extract_strided_slice %1 {offsets = [0, 15], sizes = [10, 1], strides = [1, 1]} : vector<12x18xf32> to vector<10x1xf32>
    %1741 = vector.extract_strided_slice %2 {offsets = [0, 0], sizes = [1, 16], strides = [1, 1]} : vector<9x16xf32> to vector<1x16xf32>
    %1742 = vector.broadcast %1740 : vector<10x1xf32> to vector<10x16xf32>
    %1743 = vector.broadcast %1741 : vector<1x16xf32> to vector<10x16xf32>
    %1744 = arith.mulf %1742, %1743 : vector<10x16xf32>
    %1745 = arith.addf %1739, %1744 : vector<10x16xf32>
    %1746 = vector.extract_strided_slice %1 {offsets = [1, 15], sizes = [10, 1], strides = [1, 1]} : vector<12x18xf32> to vector<10x1xf32>
    %1747 = vector.extract_strided_slice %2 {offsets = [1, 0], sizes = [1, 16], strides = [1, 1]} : vector<9x16xf32> to vector<1x16xf32>
    %1748 = vector.broadcast %1746 : vector<10x1xf32> to vector<10x16xf32>
    %1749 = vector.broadcast %1747 : vector<1x16xf32> to vector<10x16xf32>
    %1750 = arith.mulf %1748, %1749 : vector<10x16xf32>
    %1751 = arith.addf %1745, %1750 : vector<10x16xf32>
    %1752 = vector.extract_strided_slice %1 {offsets = [2, 15], sizes = [10, 1], strides = [1, 1]} : vector<12x18xf32> to vector<10x1xf32>
    %1753 = vector.extract_strided_slice %2 {offsets = [2, 0], sizes = [1, 16], strides = [1, 1]} : vector<9x16xf32> to vector<1x16xf32>
    %1754 = vector.broadcast %1752 : vector<10x1xf32> to vector<10x16xf32>
    %1755 = vector.broadcast %1753 : vector<1x16xf32> to vector<10x16xf32>
    %1756 = arith.mulf %1754, %1755 : vector<10x16xf32>
    %1757 = arith.addf %1751, %1756 : vector<10x16xf32>
    %1758 = vector.extract_strided_slice %1 {offsets = [0, 16], sizes = [10, 1], strides = [1, 1]} : vector<12x18xf32> to vector<10x1xf32>
    %1759 = vector.extract_strided_slice %2 {offsets = [3, 0], sizes = [1, 16], strides = [1, 1]} : vector<9x16xf32> to vector<1x16xf32>
    %1760 = vector.broadcast %1758 : vector<10x1xf32> to vector<10x16xf32>
    %1761 = vector.broadcast %1759 : vector<1x16xf32> to vector<10x16xf32>
    %1762 = arith.mulf %1760, %1761 : vector<10x16xf32>
    %1763 = arith.addf %1757, %1762 : vector<10x16xf32>
    %1764 = vector.extract_strided_slice %1 {offsets = [1, 16], sizes = [10, 1], strides = [1, 1]} : vector<12x18xf32> to vector<10x1xf32>
    %1765 = vector.extract_strided_slice %2 {offsets = [4, 0], sizes = [1, 16], strides = [1, 1]} : vector<9x16xf32> to vector<1x16xf32>
    %1766 = vector.broadcast %1764 : vector<10x1xf32> to vector<10x16xf32>
    %1767 = vector.broadcast %1765 : vector<1x16xf32> to vector<10x16xf32>
    %1768 = arith.mulf %1766, %1767 : vector<10x16xf32>
    %1769 = arith.addf %1763, %1768 : vector<10x16xf32>
    %1770 = vector.extract_strided_slice %1 {offsets = [2, 16], sizes = [10, 1], strides = [1, 1]} : vector<12x18xf32> to vector<10x1xf32>
    %1771 = vector.extract_strided_slice %2 {offsets = [5, 0], sizes = [1, 16], strides = [1, 1]} : vector<9x16xf32> to vector<1x16xf32>
    %1772 = vector.broadcast %1770 : vector<10x1xf32> to vector<10x16xf32>
    %1773 = vector.broadcast %1771 : vector<1x16xf32> to vector<10x16xf32>
    %1774 = arith.mulf %1772, %1773 : vector<10x16xf32>
    %1775 = arith.addf %1769, %1774 : vector<10x16xf32>
    %1776 = vector.extract_strided_slice %1 {offsets = [0, 17], sizes = [10, 1], strides = [1, 1]} : vector<12x18xf32> to vector<10x1xf32>
    %1777 = vector.extract_strided_slice %2 {offsets = [6, 0], sizes = [1, 16], strides = [1, 1]} : vector<9x16xf32> to vector<1x16xf32>
    %1778 = vector.broadcast %1776 : vector<10x1xf32> to vector<10x16xf32>
    %1779 = vector.broadcast %1777 : vector<1x16xf32> to vector<10x16xf32>
    %1780 = arith.mulf %1778, %1779 : vector<10x16xf32>
    %1781 = arith.addf %1775, %1780 : vector<10x16xf32>
    %1782 = vector.extract_strided_slice %1 {offsets = [1, 17], sizes = [10, 1], strides = [1, 1]} : vector<12x18xf32> to vector<10x1xf32>
    %1783 = vector.extract_strided_slice %2 {offsets = [7, 0], sizes = [1, 16], strides = [1, 1]} : vector<9x16xf32> to vector<1x16xf32>
    %1784 = vector.broadcast %1782 : vector<10x1xf32> to vector<10x16xf32>
    %1785 = vector.broadcast %1783 : vector<1x16xf32> to vector<10x16xf32>
    %1786 = arith.mulf %1784, %1785 : vector<10x16xf32>
    %1787 = arith.addf %1781, %1786 : vector<10x16xf32>
    %1788 = vector.extract_strided_slice %1 {offsets = [2, 17], sizes = [10, 1], strides = [1, 1]} : vector<12x18xf32> to vector<10x1xf32>
    %1789 = vector.extract_strided_slice %2 {offsets = [8, 0], sizes = [1, 16], strides = [1, 1]} : vector<9x16xf32> to vector<1x16xf32>
    %1790 = vector.broadcast %1788 : vector<10x1xf32> to vector<10x16xf32>
    %1791 = vector.broadcast %1789 : vector<1x16xf32> to vector<10x16xf32>
    %1792 = arith.mulf %1790, %1791 : vector<10x16xf32>
    %1793 = arith.addf %1787, %1792 : vector<10x16xf32>
    %cst_116 = arith.constant 0.000000e+00 : f32
    %1794 = vector.broadcast %cst_116 : f32 to vector<10x16xf32>
    %1795 = arith.maximumf %1793, %1794 : vector<10x16xf32>
    %1796 = vector.broadcast %18 : vector<10x1xf32> to vector<10x16xf32>
    %1797 = arith.mulf %1795, %1796 : vector<10x16xf32>
    %1798 = vector.extract_strided_slice %1797 {offsets = [0, 0], sizes = [8, 16], strides = [1, 1]} : vector<10x16xf32> to vector<8x16xf32>
    %1799 = vector.extract_strided_slice %4 {offsets = [6, 0], sizes = [1, 16], strides = [1, 1]} : vector<9x16xf32> to vector<1x16xf32>
    %1800 = vector.broadcast %1799 : vector<1x16xf32> to vector<8x16xf32>
    %1801 = arith.mulf %1798, %1800 : vector<8x16xf32>
    %1802 = arith.addf %1736, %1801 : vector<8x16xf32>
    %1803 = vector.extract_strided_slice %1797 {offsets = [1, 0], sizes = [8, 16], strides = [1, 1]} : vector<10x16xf32> to vector<8x16xf32>
    %1804 = vector.extract_strided_slice %4 {offsets = [7, 0], sizes = [1, 16], strides = [1, 1]} : vector<9x16xf32> to vector<1x16xf32>
    %1805 = vector.broadcast %1804 : vector<1x16xf32> to vector<8x16xf32>
    %1806 = arith.mulf %1803, %1805 : vector<8x16xf32>
    %1807 = arith.addf %1802, %1806 : vector<8x16xf32>
    %1808 = vector.extract_strided_slice %1797 {offsets = [2, 0], sizes = [8, 16], strides = [1, 1]} : vector<10x16xf32> to vector<8x16xf32>
    %1809 = vector.extract_strided_slice %4 {offsets = [8, 0], sizes = [1, 16], strides = [1, 1]} : vector<9x16xf32> to vector<1x16xf32>
    %1810 = vector.broadcast %1809 : vector<1x16xf32> to vector<8x16xf32>
    %1811 = arith.mulf %1808, %1810 : vector<8x16xf32>
    %1812 = arith.addf %1807, %1811 : vector<8x16xf32>
    %1813 = arith.truncf %1812 : vector<8x16xf32> to vector<8x16xbf16>
    %c0_117 = arith.constant 0 : index
    %c0_118 = arith.constant 0 : index
    %1814 = vector.load %arg7[%c0_117, %c0_118] : memref<16x32xbf16, #tpu.memory_space<vmem>>, vector<16x32xbf16>
    %cst_119 = arith.constant dense<0.000000e+00> : vector<8x32xf32>
    %1815 = tpu.matmul %1813, %1814, %cst_119 {dimension_numbers = #tpu.dot_dimension_numbers<[1], [0], [0], [1], [0, 0, 1, 1], [], []>} : vector<8x16xbf16>, vector<16x32xbf16>, vector<8x32xf32> -> vector<8x32xf32>
    %1816 = vector.broadcast %6 : vector<1x32xf32> to vector<8x32xf32>
    %1817 = arith.addf %1815, %1816 : vector<8x32xf32>
    %cst_120 = arith.constant 0.000000e+00 : f32
    %1818 = vector.broadcast %cst_120 : f32 to vector<8x32xf32>
    %1819 = arith.maximumf %1817, %1818 : vector<8x32xf32>
    %1820 = arith.addf %1703, %1819 : vector<8x32xf32>
    %cst_121 = arith.constant 0.000000e+00 : f32
    %1821 = vector.broadcast %cst_121 : f32 to vector<8x16xf32>
    %1822 = vector.broadcast %5 : vector<1x16xf32> to vector<8x16xf32>
    %1823 = arith.addf %1821, %1822 : vector<8x16xf32>
    %1824 = vector.extract_strided_slice %1680 {offsets = [0, 0], sizes = [8, 16], strides = [1, 1]} : vector<10x16xf32> to vector<8x16xf32>
    %1825 = vector.extract_strided_slice %4 {offsets = [0, 0], sizes = [1, 16], strides = [1, 1]} : vector<9x16xf32> to vector<1x16xf32>
    %1826 = vector.broadcast %1825 : vector<1x16xf32> to vector<8x16xf32>
    %1827 = arith.mulf %1824, %1826 : vector<8x16xf32>
    %1828 = arith.addf %1823, %1827 : vector<8x16xf32>
    %1829 = vector.extract_strided_slice %1680 {offsets = [1, 0], sizes = [8, 16], strides = [1, 1]} : vector<10x16xf32> to vector<8x16xf32>
    %1830 = vector.extract_strided_slice %4 {offsets = [1, 0], sizes = [1, 16], strides = [1, 1]} : vector<9x16xf32> to vector<1x16xf32>
    %1831 = vector.broadcast %1830 : vector<1x16xf32> to vector<8x16xf32>
    %1832 = arith.mulf %1829, %1831 : vector<8x16xf32>
    %1833 = arith.addf %1828, %1832 : vector<8x16xf32>
    %1834 = vector.extract_strided_slice %1680 {offsets = [2, 0], sizes = [8, 16], strides = [1, 1]} : vector<10x16xf32> to vector<8x16xf32>
    %1835 = vector.extract_strided_slice %4 {offsets = [2, 0], sizes = [1, 16], strides = [1, 1]} : vector<9x16xf32> to vector<1x16xf32>
    %1836 = vector.broadcast %1835 : vector<1x16xf32> to vector<8x16xf32>
    %1837 = arith.mulf %1834, %1836 : vector<8x16xf32>
    %1838 = arith.addf %1833, %1837 : vector<8x16xf32>
    %1839 = vector.extract_strided_slice %1797 {offsets = [0, 0], sizes = [8, 16], strides = [1, 1]} : vector<10x16xf32> to vector<8x16xf32>
    %1840 = vector.extract_strided_slice %4 {offsets = [3, 0], sizes = [1, 16], strides = [1, 1]} : vector<9x16xf32> to vector<1x16xf32>
    %1841 = vector.broadcast %1840 : vector<1x16xf32> to vector<8x16xf32>
    %1842 = arith.mulf %1839, %1841 : vector<8x16xf32>
    %1843 = arith.addf %1838, %1842 : vector<8x16xf32>
    %1844 = vector.extract_strided_slice %1797 {offsets = [1, 0], sizes = [8, 16], strides = [1, 1]} : vector<10x16xf32> to vector<8x16xf32>
    %1845 = vector.extract_strided_slice %4 {offsets = [4, 0], sizes = [1, 16], strides = [1, 1]} : vector<9x16xf32> to vector<1x16xf32>
    %1846 = vector.broadcast %1845 : vector<1x16xf32> to vector<8x16xf32>
    %1847 = arith.mulf %1844, %1846 : vector<8x16xf32>
    %1848 = arith.addf %1843, %1847 : vector<8x16xf32>
    %1849 = vector.extract_strided_slice %1797 {offsets = [2, 0], sizes = [8, 16], strides = [1, 1]} : vector<10x16xf32> to vector<8x16xf32>
    %1850 = vector.extract_strided_slice %4 {offsets = [5, 0], sizes = [1, 16], strides = [1, 1]} : vector<9x16xf32> to vector<1x16xf32>
    %1851 = vector.broadcast %1850 : vector<1x16xf32> to vector<8x16xf32>
    %1852 = arith.mulf %1849, %1851 : vector<8x16xf32>
    %1853 = arith.addf %1848, %1852 : vector<8x16xf32>
    %1854 = arith.truncf %1853 : vector<8x16xf32> to vector<8x16xbf16>
    %c0_122 = arith.constant 0 : index
    %c0_123 = arith.constant 0 : index
    %1855 = vector.load %arg7[%c0_122, %c0_123] : memref<16x32xbf16, #tpu.memory_space<vmem>>, vector<16x32xbf16>
    %cst_124 = arith.constant dense<0.000000e+00> : vector<8x32xf32>
    %1856 = tpu.matmul %1854, %1855, %cst_124 {dimension_numbers = #tpu.dot_dimension_numbers<[1], [0], [0], [1], [0, 0, 1, 1], [], []>} : vector<8x16xbf16>, vector<16x32xbf16>, vector<8x32xf32> -> vector<8x32xf32>
    %1857 = vector.broadcast %6 : vector<1x32xf32> to vector<8x32xf32>
    %1858 = arith.addf %1856, %1857 : vector<8x32xf32>
    %cst_125 = arith.constant 0.000000e+00 : f32
    %1859 = vector.broadcast %cst_125 : f32 to vector<8x32xf32>
    %1860 = arith.maximumf %1858, %1859 : vector<8x32xf32>
    %1861 = arith.addf %1820, %1860 : vector<8x32xf32>
    %cst_126 = arith.constant 6.250000e-02 : f32
    %1862 = vector.broadcast %cst_126 : f32 to vector<8x32xf32>
    %1863 = arith.mulf %1861, %1862 : vector<8x32xf32>
    %1864 = arith.truncf %1863 : vector<8x32xf32> to vector<8x32xbf16>
    %c0_127 = arith.constant 0 : index
    %c0_128 = arith.constant 0 : index
    %1865 = vector.load %arg9[%c0_127, %c0_128] : memref<32x32xbf16, #tpu.memory_space<vmem>>, vector<32x32xbf16>
    %cst_129 = arith.constant dense<0.000000e+00> : vector<8x32xf32>
    %1866 = tpu.matmul %1864, %1865, %cst_129 {dimension_numbers = #tpu.dot_dimension_numbers<[1], [0], [0], [1], [0, 0, 1, 1], [], []>} : vector<8x32xbf16>, vector<32x32xbf16>, vector<8x32xf32> -> vector<8x32xf32>
    %c0_130 = arith.constant 0 : index
    %c0_131 = arith.constant 0 : index
    %1867 = vector.load %arg10[%c0_130, %c0_131] : memref<1x32xf32, #tpu.memory_space<vmem>>, vector<1x32xf32>
    %1868 = vector.broadcast %1867 : vector<1x32xf32> to vector<8x32xf32>
    %1869 = arith.addf %1866, %1868 : vector<8x32xf32>
    %cst_132 = arith.constant dense<0.000000e+00> : vector<8xf32>
    %1870 = vector.multi_reduction <add>, %1869, %cst_132 [1] : vector<8x32xf32> to vector<8xf32>
    %1871 = vector.shape_cast %1870 : vector<8xf32> to vector<8x1xf32>
    %cst_133 = arith.constant 3.200000e+01 : f32
    %1872 = vector.broadcast %cst_133 : f32 to vector<8x1xf32>
    %1873 = arith.divf %1871, %1872 : vector<8x1xf32>
    %1874 = vector.broadcast %1873 : vector<8x1xf32> to vector<8x32xf32>
    %1875 = arith.subf %1869, %1874 : vector<8x32xf32>
    %1876 = arith.mulf %1875, %1875 : vector<8x32xf32>
    %cst_134 = arith.constant dense<0.000000e+00> : vector<8xf32>
    %1877 = vector.multi_reduction <add>, %1876, %cst_134 [1] : vector<8x32xf32> to vector<8xf32>
    %1878 = vector.shape_cast %1877 : vector<8xf32> to vector<8x1xf32>
    %cst_135 = arith.constant 3.200000e+01 : f32
    %1879 = vector.broadcast %cst_135 : f32 to vector<8x1xf32>
    %1880 = arith.divf %1878, %1879 : vector<8x1xf32>
    %1881 = vector.broadcast %1873 : vector<8x1xf32> to vector<8x32xf32>
    %1882 = arith.subf %1869, %1881 : vector<8x32xf32>
    %cst_136 = arith.constant 9.99999974E-6 : f32
    %1883 = vector.broadcast %cst_136 : f32 to vector<8x1xf32>
    %1884 = arith.addf %1880, %1883 : vector<8x1xf32>
    %1885 = math.rsqrt %1884 : vector<8x1xf32>
    %1886 = vector.broadcast %1885 : vector<8x1xf32> to vector<8x32xf32>
    %1887 = arith.mulf %1882, %1886 : vector<8x32xf32>
    %c0_137 = arith.constant 0 : index
    %c0_138 = arith.constant 0 : index
    %1888 = vector.load %arg11[%c0_137, %c0_138] : memref<1x32xf32, #tpu.memory_space<vmem>>, vector<1x32xf32>
    %1889 = vector.broadcast %1888 : vector<1x32xf32> to vector<8x32xf32>
    %1890 = arith.mulf %1887, %1889 : vector<8x32xf32>
    %c0_139 = arith.constant 0 : index
    %c0_140 = arith.constant 0 : index
    %1891 = vector.load %arg12[%c0_139, %c0_140] : memref<1x32xf32, #tpu.memory_space<vmem>>, vector<1x32xf32>
    %1892 = vector.broadcast %1891 : vector<1x32xf32> to vector<8x32xf32>
    %1893 = arith.addf %1890, %1892 : vector<8x32xf32>
    %c0_141 = arith.constant 0 : index
    %c0_142 = arith.constant 0 : index
    %1894 = vector.load %arg13[%c0_141, %c0_142] : memref<8x32xf32, #tpu.memory_space<vmem>>, vector<8x32xf32>
    %1895 = arith.addf %1893, %1894 : vector<8x32xf32>
    %c0_143 = arith.constant 0 : index
    %c0_144 = arith.constant 0 : index
    %c0_145 = arith.constant 0 : index
    %1896 = vector.load %arg14[%c0_143, %c0_144, %c0_145] : memref<1x8x32xf32, #tpu.memory_space<vmem>>, vector<1x8x32xf32>
    %1897 = vector.shape_cast %1896 : vector<1x8x32xf32> to vector<8x32xf32>
    %1898 = vector.shape_cast %1895 : vector<8x32xf32> to vector<1x8x32xf32>
    tpu.vector_store %arg14[%c0_143, %c0_144, %c0_145], %1898 {strides = array<i32>} : memref<1x8x32xf32, #tpu.memory_space<vmem>>, vector<1x8x32xf32>,
    return
  }
  func.func @transform_0(%arg0: i32, %arg1: i32) -> (i32, i32, i32, i32) {
    %c0_i32 = arith.constant 0 : i32
    %c0_i32_0 = arith.constant 0 : i32
    %c0_i32_1 = arith.constant 0 : i32
    return %arg0, %arg1, %c0_i32, %c0_i32_0 : i32, i32, i32, i32
  }
  func.func @transform_1(%arg0: i32, %arg1: i32) -> (i32, i32) {
    %c0_i32 = arith.constant 0 : i32
    %c0_i32_0 = arith.constant 0 : i32
    %c0_i32_1 = arith.constant 0 : i32
    return %c0_i32, %c0_i32_0 : i32, i32
  }
  func.func @transform_2(%arg0: i32, %arg1: i32) -> (i32, i32) {
    %c0_i32 = arith.constant 0 : i32
    %c0_i32_0 = arith.constant 0 : i32
    %c0_i32_1 = arith.constant 0 : i32
    return %c0_i32, %c0_i32_0 : i32, i32
  }
  func.func @transform_3(%arg0: i32, %arg1: i32) -> (i32, i32) {
    %c0_i32 = arith.constant 0 : i32
    %c0_i32_0 = arith.constant 0 : i32
    %c0_i32_1 = arith.constant 0 : i32
    return %c0_i32, %c0_i32_0 : i32, i32
  }
  func.func @transform_4(%arg0: i32, %arg1: i32) -> (i32, i32) {
    %c0_i32 = arith.constant 0 : i32
    %c0_i32_0 = arith.constant 0 : i32
    %c0_i32_1 = arith.constant 0 : i32
    return %c0_i32, %c0_i32_0 : i32, i32
  }
  func.func @transform_5(%arg0: i32, %arg1: i32) -> (i32, i32) {
    %c0_i32 = arith.constant 0 : i32
    %c0_i32_0 = arith.constant 0 : i32
    %c0_i32_1 = arith.constant 0 : i32
    return %c0_i32, %c0_i32_0 : i32, i32
  }
  func.func @transform_6(%arg0: i32, %arg1: i32) -> (i32, i32) {
    %c0_i32 = arith.constant 0 : i32
    %c0_i32_0 = arith.constant 0 : i32
    %c0_i32_1 = arith.constant 0 : i32
    return %c0_i32, %c0_i32_0 : i32, i32
  }
  func.func @transform_7(%arg0: i32, %arg1: i32) -> (i32, i32) {
    %c0_i32 = arith.constant 0 : i32
    %c0_i32_0 = arith.constant 0 : i32
    %c0_i32_1 = arith.constant 0 : i32
    return %c0_i32, %c0_i32_0 : i32, i32
  }
  func.func @transform_8(%arg0: i32, %arg1: i32) -> (i32, i32) {
    %c0_i32 = arith.constant 0 : i32
    %c0_i32_0 = arith.constant 0 : i32
    %c0_i32_1 = arith.constant 0 : i32
    return %c0_i32, %c0_i32_0 : i32, i32
  }
  func.func @transform_9(%arg0: i32, %arg1: i32) -> (i32, i32) {
    %c0_i32 = arith.constant 0 : i32
    %c0_i32_0 = arith.constant 0 : i32
    %c0_i32_1 = arith.constant 0 : i32
    return %c0_i32, %c0_i32_0 : i32, i32
  }
  func.func @transform_10(%arg0: i32, %arg1: i32) -> (i32, i32) {
    %c0_i32 = arith.constant 0 : i32
    %c0_i32_0 = arith.constant 0 : i32
    %c0_i32_1 = arith.constant 0 : i32
    return %c0_i32, %c0_i32_0 : i32, i32
  }
  func.func @transform_11(%arg0: i32, %arg1: i32) -> (i32, i32) {
    %c0_i32 = arith.constant 0 : i32
    %c0_i32_0 = arith.constant 0 : i32
    return %arg1, %c0_i32 : i32, i32
  }
  func.func @transform_12(%arg0: i32, %arg1: i32) -> (i32, i32, i32) {
    %c0_i32 = arith.constant 0 : i32
    %c0_i32_0 = arith.constant 0 : i32
    return %arg0, %arg1, %c0_i32 : i32, i32, i32
  }
}

module attributes {stable_mosaic.version = 11 : i64} {
  func.func @_ln_ff_glu_kernel(%arg0: i32, %arg1: memref<8x32xf32, #tpu.memory_space<vmem>>, %arg2: memref<1x32xf32, #tpu.memory_space<vmem>>, %arg3: memref<1x32xf32, #tpu.memory_space<vmem>>, %arg4: memref<32x256xbf16, #tpu.memory_space<vmem>>, %arg5: memref<1x256xf32, #tpu.memory_space<vmem>>, %arg6: memref<128x32xbf16, #tpu.memory_space<vmem>>, %arg7: memref<1x32xf32, #tpu.memory_space<vmem>>, %arg8: memref<8x32xf32, #tpu.memory_space<vmem>>, %arg9: memref<8x32xf32, #tpu.memory_space<vmem>>) attributes {dimension_semantics = [#tpu.dimension_semantics<parallel>], iteration_bounds = array<i64: 2>, scalar_prefetch = 0 : i64, scratch_operands = 0 : i64, tpu.core_type = #tpu.core_type<tc>, window_params = [{transform_indices = @transform_0, window_bounds = array<i64: 8, 32>}, {pipeline_mode = #tpu.pipeline_mode<synchronous>, transform_indices = @transform_1, window_bounds = array<i64: 1, 32>}, {pipeline_mode = #tpu.pipeline_mode<synchronous>, transform_indices = @transform_2, window_bounds = array<i64: 1, 32>}, {pipeline_mode = #tpu.pipeline_mode<synchronous>, transform_indices = @transform_3, window_bounds = array<i64: 32, 256>}, {pipeline_mode = #tpu.pipeline_mode<synchronous>, transform_indices = @transform_4, window_bounds = array<i64: 1, 256>}, {pipeline_mode = #tpu.pipeline_mode<synchronous>, transform_indices = @transform_5, window_bounds = array<i64: 128, 32>}, {pipeline_mode = #tpu.pipeline_mode<synchronous>, transform_indices = @transform_6, window_bounds = array<i64: 1, 32>}, {transform_indices = @transform_7, window_bounds = array<i64: 8, 32>}, {transform_indices = @transform_8, window_bounds = array<i64: 8, 32>}]} {
    %c0 = arith.constant 0 : index
    %c0_0 = arith.constant 0 : index
    %0 = vector.load %arg1[%c0, %c0_0] : memref<8x32xf32, #tpu.memory_space<vmem>>, vector<8x32xf32>
    %cst = arith.constant dense<0.000000e+00> : vector<8xf32>
    %1 = vector.multi_reduction <add>, %0, %cst [1] : vector<8x32xf32> to vector<8xf32>
    %2 = vector.shape_cast %1 : vector<8xf32> to vector<8x1xf32>
    %cst_1 = arith.constant 3.200000e+01 : f32
    %3 = vector.broadcast %cst_1 : f32 to vector<8x1xf32>
    %4 = arith.divf %2, %3 : vector<8x1xf32>
    %5 = vector.broadcast %4 : vector<8x1xf32> to vector<8x32xf32>
    %6 = arith.subf %0, %5 : vector<8x32xf32>
    %7 = arith.mulf %6, %6 : vector<8x32xf32>
    %cst_2 = arith.constant dense<0.000000e+00> : vector<8xf32>
    %8 = vector.multi_reduction <add>, %7, %cst_2 [1] : vector<8x32xf32> to vector<8xf32>
    %9 = vector.shape_cast %8 : vector<8xf32> to vector<8x1xf32>
    %cst_3 = arith.constant 3.200000e+01 : f32
    %10 = vector.broadcast %cst_3 : f32 to vector<8x1xf32>
    %11 = arith.divf %9, %10 : vector<8x1xf32>
    %12 = vector.broadcast %4 : vector<8x1xf32> to vector<8x32xf32>
    %13 = arith.subf %0, %12 : vector<8x32xf32>
    %cst_4 = arith.constant 9.99999974E-6 : f32
    %14 = vector.broadcast %cst_4 : f32 to vector<8x1xf32>
    %15 = arith.addf %11, %14 : vector<8x1xf32>
    %16 = math.rsqrt %15 : vector<8x1xf32>
    %17 = vector.broadcast %16 : vector<8x1xf32> to vector<8x32xf32>
    %18 = arith.mulf %13, %17 : vector<8x32xf32>
    %c0_5 = arith.constant 0 : index
    %c0_6 = arith.constant 0 : index
    %19 = vector.load %arg2[%c0_5, %c0_6] : memref<1x32xf32, #tpu.memory_space<vmem>>, vector<1x32xf32>
    %20 = vector.broadcast %19 : vector<1x32xf32> to vector<8x32xf32>
    %21 = arith.mulf %18, %20 : vector<8x32xf32>
    %c0_7 = arith.constant 0 : index
    %c0_8 = arith.constant 0 : index
    %22 = vector.load %arg3[%c0_7, %c0_8] : memref<1x32xf32, #tpu.memory_space<vmem>>, vector<1x32xf32>
    %23 = vector.broadcast %22 : vector<1x32xf32> to vector<8x32xf32>
    %24 = arith.addf %21, %23 : vector<8x32xf32>
    %25 = arith.truncf %24 : vector<8x32xf32> to vector<8x32xbf16>
    %c0_9 = arith.constant 0 : index
    %c0_10 = arith.constant 0 : index
    %26 = vector.load %arg4[%c0_9, %c0_10] : memref<32x256xbf16, #tpu.memory_space<vmem>>, vector<32x256xbf16>
    %cst_11 = arith.constant dense<0.000000e+00> : vector<8x256xf32>
    %27 = tpu.matmul %25, %26, %cst_11 {dimension_numbers = #tpu.dot_dimension_numbers<[1], [0], [0], [1], [0, 0, 1, 1], [], []>} : vector<8x32xbf16>, vector<32x256xbf16>, vector<8x256xf32> -> vector<8x256xf32>
    %c0_12 = arith.constant 0 : index
    %c0_13 = arith.constant 0 : index
    %28 = vector.load %arg5[%c0_12, %c0_13] : memref<1x256xf32, #tpu.memory_space<vmem>>, vector<1x256xf32>
    %29 = vector.broadcast %28 : vector<1x256xf32> to vector<8x256xf32>
    %30 = arith.addf %27, %29 : vector<8x256xf32>
    %31 = vector.extract_strided_slice %30 {offsets = [0, 0], sizes = [8, 128], strides = [1, 1]} : vector<8x256xf32> to vector<8x128xf32>
    %32 = arith.mulf %31, %31 : vector<8x128xf32>
    %33 = arith.mulf %31, %32 : vector<8x128xf32>
    %cst_14 = arith.constant 4.471500e-02 : f32
    %34 = vector.broadcast %cst_14 : f32 to vector<8x128xf32>
    %35 = arith.mulf %34, %33 : vector<8x128xf32>
    %36 = arith.addf %31, %35 : vector<8x128xf32>
    %cst_15 = arith.constant 0.797884583 : f32
    %37 = vector.broadcast %cst_15 : f32 to vector<8x128xf32>
    %38 = arith.mulf %37, %36 : vector<8x128xf32>
    %39 = math.tanh %38 : vector<8x128xf32>
    %cst_16 = arith.constant 1.000000e+00 : f32
    %40 = vector.broadcast %cst_16 : f32 to vector<8x128xf32>
    %41 = arith.addf %40, %39 : vector<8x128xf32>
    %cst_17 = arith.constant 5.000000e-01 : f32
    %42 = vector.broadcast %cst_17 : f32 to vector<8x128xf32>
    %43 = arith.mulf %42, %41 : vector<8x128xf32>
    %44 = arith.mulf %31, %43 : vector<8x128xf32>
    %45 = vector.extract_strided_slice %30 {offsets = [0, 128], sizes = [8, 128], strides = [1, 1]} : vector<8x256xf32> to vector<8x128xf32>
    %46 = arith.mulf %44, %45 : vector<8x128xf32>
    %47 = arith.truncf %46 : vector<8x128xf32> to vector<8x128xbf16>
    %c0_18 = arith.constant 0 : index
    %c0_19 = arith.constant 0 : index
    %48 = vector.load %arg6[%c0_18, %c0_19] : memref<128x32xbf16, #tpu.memory_space<vmem>>, vector<128x32xbf16>
    %cst_20 = arith.constant dense<0.000000e+00> : vector<8x32xf32>
    %49 = tpu.matmul %47, %48, %cst_20 {dimension_numbers = #tpu.dot_dimension_numbers<[1], [0], [0], [1], [0, 0, 1, 1], [], []>} : vector<8x128xbf16>, vector<128x32xbf16>, vector<8x32xf32> -> vector<8x32xf32>
    %c0_21 = arith.constant 0 : index
    %c0_22 = arith.constant 0 : index
    %50 = vector.load %arg7[%c0_21, %c0_22] : memref<1x32xf32, #tpu.memory_space<vmem>>, vector<1x32xf32>
    %51 = vector.broadcast %50 : vector<1x32xf32> to vector<8x32xf32>
    %52 = arith.addf %49, %51 : vector<8x32xf32>
    %c0_23 = arith.constant 0 : index
    %c0_24 = arith.constant 0 : index
    %53 = vector.load %arg8[%c0_23, %c0_24] : memref<8x32xf32, #tpu.memory_space<vmem>>, vector<8x32xf32>
    %54 = arith.addf %52, %53 : vector<8x32xf32>
    %c0_25 = arith.constant 0 : index
    %c0_26 = arith.constant 0 : index
    %55 = vector.load %arg9[%c0_25, %c0_26] : memref<8x32xf32, #tpu.memory_space<vmem>>, vector<8x32xf32>
    tpu.vector_store %arg9[%c0_25, %c0_26], %54 {strides = array<i32>} : memref<8x32xf32, #tpu.memory_space<vmem>>, vector<8x32xf32>,
    return
  }
  func.func @transform_0(%arg0: i32) -> (i32, i32) {
    %c0_i32 = arith.constant 0 : i32
    %c0_i32_0 = arith.constant 0 : i32
    return %arg0, %c0_i32 : i32, i32
  }
  func.func @transform_1(%arg0: i32) -> (i32, i32) {
    %c0_i32 = arith.constant 0 : i32
    %c0_i32_0 = arith.constant 0 : i32
    %c0_i32_1 = arith.constant 0 : i32
    return %c0_i32, %c0_i32_0 : i32, i32
  }
  func.func @transform_2(%arg0: i32) -> (i32, i32) {
    %c0_i32 = arith.constant 0 : i32
    %c0_i32_0 = arith.constant 0 : i32
    %c0_i32_1 = arith.constant 0 : i32
    return %c0_i32, %c0_i32_0 : i32, i32
  }
  func.func @transform_3(%arg0: i32) -> (i32, i32) {
    %c0_i32 = arith.constant 0 : i32
    %c0_i32_0 = arith.constant 0 : i32
    %c0_i32_1 = arith.constant 0 : i32
    return %c0_i32, %c0_i32_0 : i32, i32
  }
  func.func @transform_4(%arg0: i32) -> (i32, i32) {
    %c0_i32 = arith.constant 0 : i32
    %c0_i32_0 = arith.constant 0 : i32
    %c0_i32_1 = arith.constant 0 : i32
    return %c0_i32, %c0_i32_0 : i32, i32
  }
  func.func @transform_5(%arg0: i32) -> (i32, i32) {
    %c0_i32 = arith.constant 0 : i32
    %c0_i32_0 = arith.constant 0 : i32
    %c0_i32_1 = arith.constant 0 : i32
    return %c0_i32, %c0_i32_0 : i32, i32
  }
  func.func @transform_6(%arg0: i32) -> (i32, i32) {
    %c0_i32 = arith.constant 0 : i32
    %c0_i32_0 = arith.constant 0 : i32
    %c0_i32_1 = arith.constant 0 : i32
    return %c0_i32, %c0_i32_0 : i32, i32
  }
  func.func @transform_7(%arg0: i32) -> (i32, i32) {
    %c0_i32 = arith.constant 0 : i32
    %c0_i32_0 = arith.constant 0 : i32
    return %arg0, %c0_i32 : i32, i32
  }
  func.func @transform_8(%arg0: i32) -> (i32, i32) {
    %c0_i32 = arith.constant 0 : i32
    %c0_i32_0 = arith.constant 0 : i32
    return %arg0, %c0_i32 : i32, i32
  }
}

module attributes {stable_mosaic.version = 11 : i64} {
  func.func @_clf_kernel(%arg0: i32, %arg1: memref<8x32xf32, #tpu.memory_space<vmem>>, %arg2: memref<8x32xf32, #tpu.memory_space<vmem>>, %arg3: memref<32x16xbf16, #tpu.memory_space<vmem>>, %arg4: memref<1x16xf32, #tpu.memory_space<vmem>>, %arg5: memref<1x16xf32, #tpu.memory_space<vmem>>, %arg6: memref<1x16xf32, #tpu.memory_space<vmem>>, %arg7: memref<16x1xbf16, #tpu.memory_space<vmem>>, %arg8: memref<1x1xf32, #tpu.memory_space<vmem>>, %arg9: memref<8x1xf32, #tpu.memory_space<vmem>>) attributes {dimension_semantics = [#tpu.dimension_semantics<parallel>], iteration_bounds = array<i64: 2>, scalar_prefetch = 0 : i64, scratch_operands = 0 : i64, tpu.core_type = #tpu.core_type<tc>, window_params = [{transform_indices = @transform_0, window_bounds = array<i64: 8, 32>}, {transform_indices = @transform_1, window_bounds = array<i64: 8, 32>}, {pipeline_mode = #tpu.pipeline_mode<synchronous>, transform_indices = @transform_2, window_bounds = array<i64: 32, 16>}, {pipeline_mode = #tpu.pipeline_mode<synchronous>, transform_indices = @transform_3, window_bounds = array<i64: 1, 16>}, {pipeline_mode = #tpu.pipeline_mode<synchronous>, transform_indices = @transform_4, window_bounds = array<i64: 1, 16>}, {pipeline_mode = #tpu.pipeline_mode<synchronous>, transform_indices = @transform_5, window_bounds = array<i64: 1, 16>}, {pipeline_mode = #tpu.pipeline_mode<synchronous>, transform_indices = @transform_6, window_bounds = array<i64: 16, 1>}, {pipeline_mode = #tpu.pipeline_mode<synchronous>, transform_indices = @transform_7, window_bounds = array<i64: 1, 1>}, {transform_indices = @transform_8, window_bounds = array<i64: 8, 1>}]} {
    %c0 = arith.constant 0 : index
    %c0_0 = arith.constant 0 : index
    %0 = vector.load %arg1[%c0, %c0_0] : memref<8x32xf32, #tpu.memory_space<vmem>>, vector<8x32xf32>
    %c0_1 = arith.constant 0 : index
    %c0_2 = arith.constant 0 : index
    %1 = vector.load %arg2[%c0_1, %c0_2] : memref<8x32xf32, #tpu.memory_space<vmem>>, vector<8x32xf32>
    %2 = arith.addf %0, %1 : vector<8x32xf32>
    %3 = arith.truncf %2 : vector<8x32xf32> to vector<8x32xbf16>
    %c0_3 = arith.constant 0 : index
    %c0_4 = arith.constant 0 : index
    %4 = vector.load %arg3[%c0_3, %c0_4] : memref<32x16xbf16, #tpu.memory_space<vmem>>, vector<32x16xbf16>
    %cst = arith.constant dense<0.000000e+00> : vector<8x16xf32>
    %5 = tpu.matmul %3, %4, %cst {dimension_numbers = #tpu.dot_dimension_numbers<[1], [0], [0], [1], [0, 0, 1, 1], [], []>} : vector<8x32xbf16>, vector<32x16xbf16>, vector<8x16xf32> -> vector<8x16xf32>
    %c0_5 = arith.constant 0 : index
    %c0_6 = arith.constant 0 : index
    %6 = vector.load %arg4[%c0_5, %c0_6] : memref<1x16xf32, #tpu.memory_space<vmem>>, vector<1x16xf32>
    %7 = vector.broadcast %6 : vector<1x16xf32> to vector<8x16xf32>
    %8 = arith.addf %5, %7 : vector<8x16xf32>
    %cst_7 = arith.constant dense<0.000000e+00> : vector<8xf32>
    %9 = vector.multi_reduction <add>, %8, %cst_7 [1] : vector<8x16xf32> to vector<8xf32>
    %10 = vector.shape_cast %9 : vector<8xf32> to vector<8x1xf32>
    %cst_8 = arith.constant 1.600000e+01 : f32
    %11 = vector.broadcast %cst_8 : f32 to vector<8x1xf32>
    %12 = arith.divf %10, %11 : vector<8x1xf32>
    %13 = vector.broadcast %12 : vector<8x1xf32> to vector<8x16xf32>
    %14 = arith.subf %8, %13 : vector<8x16xf32>
    %15 = arith.mulf %14, %14 : vector<8x16xf32>
    %cst_9 = arith.constant dense<0.000000e+00> : vector<8xf32>
    %16 = vector.multi_reduction <add>, %15, %cst_9 [1] : vector<8x16xf32> to vector<8xf32>
    %17 = vector.shape_cast %16 : vector<8xf32> to vector<8x1xf32>
    %cst_10 = arith.constant 1.600000e+01 : f32
    %18 = vector.broadcast %cst_10 : f32 to vector<8x1xf32>
    %19 = arith.divf %17, %18 : vector<8x1xf32>
    %20 = vector.broadcast %12 : vector<8x1xf32> to vector<8x16xf32>
    %21 = arith.subf %8, %20 : vector<8x16xf32>
    %cst_11 = arith.constant 9.99999974E-6 : f32
    %22 = vector.broadcast %cst_11 : f32 to vector<8x1xf32>
    %23 = arith.addf %19, %22 : vector<8x1xf32>
    %24 = math.rsqrt %23 : vector<8x1xf32>
    %25 = vector.broadcast %24 : vector<8x1xf32> to vector<8x16xf32>
    %26 = arith.mulf %21, %25 : vector<8x16xf32>
    %c0_12 = arith.constant 0 : index
    %c0_13 = arith.constant 0 : index
    %27 = vector.load %arg5[%c0_12, %c0_13] : memref<1x16xf32, #tpu.memory_space<vmem>>, vector<1x16xf32>
    %28 = vector.broadcast %27 : vector<1x16xf32> to vector<8x16xf32>
    %29 = arith.mulf %26, %28 : vector<8x16xf32>
    %c0_14 = arith.constant 0 : index
    %c0_15 = arith.constant 0 : index
    %30 = vector.load %arg6[%c0_14, %c0_15] : memref<1x16xf32, #tpu.memory_space<vmem>>, vector<1x16xf32>
    %31 = vector.broadcast %30 : vector<1x16xf32> to vector<8x16xf32>
    %32 = arith.addf %29, %31 : vector<8x16xf32>
    %cst_16 = arith.constant 0.000000e+00 : f32
    %33 = vector.broadcast %cst_16 : f32 to vector<8x16xf32>
    %34 = arith.maximumf %32, %33 : vector<8x16xf32>
    %35 = arith.truncf %34 : vector<8x16xf32> to vector<8x16xbf16>
    %c0_17 = arith.constant 0 : index
    %c0_18 = arith.constant 0 : index
    %36 = vector.load %arg7[%c0_17, %c0_18] : memref<16x1xbf16, #tpu.memory_space<vmem>>, vector<16x1xbf16>
    %cst_19 = arith.constant dense<0.000000e+00> : vector<8x1xf32>
    %37 = tpu.matmul %35, %36, %cst_19 {dimension_numbers = #tpu.dot_dimension_numbers<[1], [0], [0], [1], [0, 0, 1, 1], [], []>} : vector<8x16xbf16>, vector<16x1xbf16>, vector<8x1xf32> -> vector<8x1xf32>
    %c0_20 = arith.constant 0 : index
    %c0_21 = arith.constant 0 : index
    %38 = vector.load %arg8[%c0_20, %c0_21] : memref<1x1xf32, #tpu.memory_space<vmem>>, vector<1x1xf32>
    %39 = vector.broadcast %38 : vector<1x1xf32> to vector<8x1xf32>
    %40 = arith.addf %37, %39 : vector<8x1xf32>
    %c0_22 = arith.constant 0 : index
    %c0_23 = arith.constant 0 : index
    %41 = vector.load %arg9[%c0_22, %c0_23] : memref<8x1xf32, #tpu.memory_space<vmem>>, vector<8x1xf32>
    tpu.vector_store %arg9[%c0_22, %c0_23], %40 {strides = array<i32>} : memref<8x1xf32, #tpu.memory_space<vmem>>, vector<8x1xf32>,
    return
  }
  func.func @transform_0(%arg0: i32) -> (i32, i32) {
    %c0_i32 = arith.constant 0 : i32
    %c0_i32_0 = arith.constant 0 : i32
    return %arg0, %c0_i32 : i32, i32
  }
  func.func @transform_1(%arg0: i32) -> (i32, i32) {
    %c0_i32 = arith.constant 0 : i32
    %c0_i32_0 = arith.constant 0 : i32
    return %arg0, %c0_i32 : i32, i32
  }
  func.func @transform_2(%arg0: i32) -> (i32, i32) {
    %c0_i32 = arith.constant 0 : i32
    %c0_i32_0 = arith.constant 0 : i32
    %c0_i32_1 = arith.constant 0 : i32
    return %c0_i32, %c0_i32_0 : i32, i32
  }
  func.func @transform_3(%arg0: i32) -> (i32, i32) {
    %c0_i32 = arith.constant 0 : i32
    %c0_i32_0 = arith.constant 0 : i32
    %c0_i32_1 = arith.constant 0 : i32
    return %c0_i32, %c0_i32_0 : i32, i32
  }
  func.func @transform_4(%arg0: i32) -> (i32, i32) {
    %c0_i32 = arith.constant 0 : i32
    %c0_i32_0 = arith.constant 0 : i32
    %c0_i32_1 = arith.constant 0 : i32
    return %c0_i32, %c0_i32_0 : i32, i32
  }
  func.func @transform_5(%arg0: i32) -> (i32, i32) {
    %c0_i32 = arith.constant 0 : i32
    %c0_i32_0 = arith.constant 0 : i32
    %c0_i32_1 = arith.constant 0 : i32
    return %c0_i32, %c0_i32_0 : i32, i32
  }
  func.func @transform_6(%arg0: i32) -> (i32, i32) {
    %c0_i32 = arith.constant 0 : i32
    %c0_i32_0 = arith.constant 0 : i32
    %c0_i32_1 = arith.constant 0 : i32
    return %c0_i32, %c0_i32_0 : i32, i32
  }
  func.func @transform_7(%arg0: i32) -> (i32, i32) {
    %c0_i32 = arith.constant 0 : i32
    %c0_i32_0 = arith.constant 0 : i32
    %c0_i32_1 = arith.constant 0 : i32
    return %c0_i32, %c0_i32_0 : i32, i32
  }
  func.func @transform_8(%arg0: i32) -> (i32, i32) {
    %c0_i32 = arith.constant 0 : i32
    %c0_i32_0 = arith.constant 0 : i32
    return %arg0, %c0_i32 : i32, i32
  }
}

</mosaic_0001>

<llo_original>
// kernel: mel_performer_forward.9
$region0: #{mel_performer_forward.9}
  #allocation0 [shape = 'u32[]', space=smem, size = 0x4, offset = 0x4, fixed_abs, tag = 'smem constant byte address 0x4 - core index']
  #allocation1 [shape = 'u32[72,128]{1,0:T(1,128)}', space=vmem, size = 0x9000, scoped, tag = 'internal scratch']
  %s0 = inlined_call_operand.vmem [shape: f32[16,32], index: 0, kind: input, shape index: {}]
  %s1 = inlined_call_operand.vmem [shape: f32[1,32], index: 1, kind: input, shape index: {}]
  %s2 = inlined_call_operand.vmem [shape: f32[1,32], index: 2, kind: input, shape index: {}]
  %s3 = inlined_call_operand.vmem [shape: bf16[32,96], index: 3, kind: input, shape index: {}]
  %s4 = inlined_call_operand.vmem [shape: f32[1,96], index: 4, kind: input, shape index: {}]
  %s5 = inlined_call_operand.vmem [shape: f32[16,96], index: 5, kind: output, shape index: {}]
  %s6 = sld [smem:[#allocation0]]
  $region53: #{mel_performer_forward.9} parent=0
    _
  %s8 = ssub.s32 1, %s6
  %s9 = scalar_select 0, %s8, %s6
  loop: start=0, step=1, limit=4
  $region2: #{mel_performer_forward.9} parent=0 // loop_pre_header
    _
  $region3: #{mel_performer_forward.9} parent=0 // loop_header
    %s11 = sphi 0, %s15
    %p12 = scmp.ge.s32.totalorder %s11, 4
    %s21 = sphi 0, %s23
    %s24 = sphi 0, %s21
    %s25 = sphi 0, %s24
    %s41 = sphi 0, %s25
    %s45 = sphi 0, %s45
    %s47 = sphi 0, %s45
    %s48 = sphi 0, %s47
    %s62 = sphi 0, %s48
    %s66 = sphi 0, %s66
    %s68 = sphi 0, %s66
    %s69 = sphi 0, %s68
    %s83 = sphi 0, %s69
    %s87 = sphi 0, %s87
    %s89 = sphi 0, %s87
    %s90 = sphi 0, %s89
    %s104 = sphi 0, %s90
    %s108 = sphi 0, %s108
    %s110 = sphi 0, %s108
    %s111 = sphi 0, %s110
    %s125 = sphi 0, %s111
    %s131 = sphi 0, %s133
    %s134 = sphi 0, %s131
    %s135 = sphi 0, %s134
    %s151 = sphi 0, %s135
  $region4: #{mel_performer_forward.9} parent=0 // loop_header_branch
    %14 = sbr.rel (%p12) target = $region8
  $region5: #{mel_performer_forward.9} parent=0 // loop_body
    %s16 = ssub.s32 %s11, 1
    %s17 = ssub.s32 %s11, 2
    %s18 = sadd.s32 %s11, 1
    %s19 = ssub.s32 %s11, %s18
    %p20 = scmp.eq.s32.totalorder %s19, 0
    %s22 = sadd.s32 %s21, 1
    %s23 = scalar_select %p20, %s21, %s22
    %p26 = pneg %p20
    %p27 = scmp.eq.s32.totalorder %s11, 1
    %p28 = por %p26, %p27
    %p29 = scmp.ne.s32.totalorder %s21, %s24
    %p30 = scmp.eq.s32.totalorder %s11, 0
    %p31 = por %p29, %p30
    %p32 = scmp.ne.s32.totalorder %s21, %s24
    %p33 = scmp.eq.s32.totalorder %s16, 1
    %p34 = por %p32, %p33
    %p35 = scmp.ne.s32.totalorder %s24, %s25
    %p36 = scmp.eq.s32.totalorder %s16, 0
    %p37 = por %p35, %p36
    %p38 = scmp.ne.s32.totalorder %s24, %s25
    %p39 = scmp.eq.s32.totalorder %s17, 1
    %p40 = por %p38, %p39
    %p42 = scmp.ne.s32.totalorder %s25, %s41
    %p43 = scmp.eq.s32.totalorder %s17, 0
    %p44 = por %p42, %p43
    %s46 = sadd.s32 %s45, 1
    %p49 = scmp.eq.s32.totalorder %s11, 1
    %p50 = scmp.ne.s32.totalorder %s45, %s47
    %p51 = scmp.eq.s32.totalorder %s11, 0
    %p52 = por %p50, %p51
    %p53 = scmp.ne.s32.totalorder %s45, %s47
    %p54 = scmp.eq.s32.totalorder %s16, 1
    %p55 = por %p53, %p54
    %p56 = scmp.ne.s32.totalorder %s47, %s48
    %p57 = scmp.eq.s32.totalorder %s16, 0
    %p58 = por %p56, %p57
    %p59 = scmp.ne.s32.totalorder %s47, %s48
    %p60 = scmp.eq.s32.totalorder %s17, 1
    %p61 = por %p59, %p60
    %p63 = scmp.ne.s32.totalorder %s48, %s62
    %p64 = scmp.eq.s32.totalorder %s17, 0
    %p65 = por %p63, %p64
    %s67 = sadd.s32 %s66, 1
    %p70 = scmp.eq.s32.totalorder %s11, 1
    %p71 = scmp.ne.s32.totalorder %s66, %s68
    %p72 = scmp.eq.s32.totalorder %s11, 0
    %p73 = por %p71, %p72
    %p74 = scmp.ne.s32.totalorder %s66, %s68
    %p75 = scmp.eq.s32.totalorder %s16, 1
    %p76 = por %p74, %p75
    %p77 = scmp.ne.s32.totalorder %s68, %s69
    %p78 = scmp.eq.s32.totalorder %s16, 0
    %p79 = por %p77, %p78
    %p80 = scmp.ne.s32.totalorder %s68, %s69
    %p81 = scmp.eq.s32.totalorder %s17, 1
    %p82 = por %p80, %p81
    %p84 = scmp.ne.s32.totalorder %s69, %s83
    %p85 = scmp.eq.s32.totalorder %s17, 0
    %p86 = por %p84, %p85
    %s88 = sadd.s32 %s87, 1
    %p91 = scmp.eq.s32.totalorder %s11, 1
    %p92 = scmp.ne.s32.totalorder %s87, %s89
    %p93 = scmp.eq.s32.totalorder %s11, 0
    %p94 = por %p92, %p93
    %p95 = scmp.ne.s32.totalorder %s87, %s89
    %p96 = scmp.eq.s32.totalorder %s16, 1
    %p97 = por %p95, %p96
    %p98 = scmp.ne.s32.totalorder %s89, %s90
    %p99 = scmp.eq.s32.totalorder %s16, 0
    %p100 = por %p98, %p99
    %p101 = scmp.ne.s32.totalorder %s89, %s90
    %p102 = scmp.eq.s32.totalorder %s17, 1
    %p103 = por %p101, %p102
    %p105 = scmp.ne.s32.totalorder %s90, %s104
    %p106 = scmp.eq.s32.totalorder %s17, 0
    %p107 = por %p105, %p106
    %s109 = sadd.s32 %s108, 1
    %p112 = scmp.eq.s32.totalorder %s11, 1
    %p113 = scmp.ne.s32.totalorder %s108, %s110
    %p114 = scmp.eq.s32.totalorder %s11, 0
    %p115 = por %p113, %p114
    %p116 = scmp.ne.s32.totalorder %s108, %s110
    %p117 = scmp.eq.s32.totalorder %s16, 1
    %p118 = por %p116, %p117
    %p119 = scmp.ne.s32.totalorder %s110, %s111
    %p120 = scmp.eq.s32.totalorder %s16, 0
    %p121 = por %p119, %p120
    %p122 = scmp.ne.s32.totalorder %s110, %s111
    %p123 = scmp.eq.s32.totalorder %s17, 1
    %p124 = por %p122, %p123
    %p126 = scmp.ne.s32.totalorder %s111, %s125
    %p127 = scmp.eq.s32.totalorder %s17, 0
    %p128 = por %p126, %p127
    %s129 = ssub.s32 %s11, %s18
    %p130 = scmp.eq.s32.totalorder %s129, 0
    %s132 = sadd.s32 %s131, 1
    %s133 = scalar_select %p130, %s131, %s132
    %p136 = pneg %p130
    %p137 = scmp.eq.s32.totalorder %s11, 1
    %p138 = por %p136, %p137
    %p139 = scmp.ne.s32.totalorder %s131, %s134
    %p140 = scmp.eq.s32.totalorder %s11, 0
    %p141 = por %p139, %p140
    %p142 = scmp.ne.s32.totalorder %s131, %s134
    %p143 = scmp.eq.s32.totalorder %s16, 1
    %p144 = por %p142, %p143
    %p145 = scmp.ne.s32.totalorder %s134, %s135
    %p146 = scmp.eq.s32.totalorder %s16, 0
    %p147 = por %p145, %p146
    %p148 = scmp.ne.s32.totalorder %s134, %s135
    %p149 = scmp.eq.s32.totalorder %s17, 1
    %p150 = por %p148, %p149
    %p152 = scmp.ne.s32.totalorder %s135, %s151
    %p153 = scmp.eq.s32.totalorder %s17, 0
    %p154 = por %p152, %p153
    %p155 = scmp.le.s32.totalorder 1, %s11
    %p156 = scmp.lt.s32.totalorder %s11, 3
    %p157 = pnand %p155, %p156
    %p158 = pneg %p157
    // Predicated region
    $region9: #{mel_performer_forward.9} parent=5 // pred_check
      _
    $region10: #{mel_performer_forward.9} parent=5 // pred_check_branch
      %160 = sbr.rel (%p157) target = $region12
    $region11: #{mel_performer_forward.9} parent=5 // pred_region
      %s161 = ssub.s32 %s11, 1
      // Predicated region
      $region13: #{mel_performer_forward.9} parent=11 // pred_check
        %p162 = pneg %p58
      $region14: #{mel_performer_forward.9} parent=11 // pred_check_branch
        %164 = sbr.rel (%p162) target = $region16
      $region15: #{mel_performer_forward.9} parent=11 // pred_region
        _
      $region16: #{mel_performer_forward.9} parent=11 // pred_fallthru
        _
      // Predicated region
      $region17: #{mel_performer_forward.9} parent=11 // pred_check
        %p165 = pneg %p79
      $region18: #{mel_performer_forward.9} parent=11 // pred_check_branch
        %167 = sbr.rel (%p165) target = $region20
      $region19: #{mel_performer_forward.9} parent=11 // pred_region
        _
      $region20: #{mel_performer_forward.9} parent=11 // pred_fallthru
        _
      // Predicated region
      $region21: #{mel_performer_forward.9} parent=11 // pred_check
        %p168 = pneg %p100
      $region22: #{mel_performer_forward.9} parent=11 // pred_check_branch
        %170 = sbr.rel (%p168) target = $region24
      $region23: #{mel_performer_forward.9} parent=11 // pred_region
        _
      $region24: #{mel_performer_forward.9} parent=11 // pred_fallthru
        _
      // Predicated region
      $region25: #{mel_performer_forward.9} parent=11 // pred_check
        %p171 = pneg %p121
      $region26: #{mel_performer_forward.9} parent=11 // pred_check_branch
        %173 = sbr.rel (%p171) target = $region28
      $region27: #{mel_performer_forward.9} parent=11 // pred_region
        _
      $region28: #{mel_performer_forward.9} parent=11 // pred_fallthru
        _
    $region12: #{mel_performer_forward.9} parent=5 // pred_fallthru
      _
    %p174 = scmp.lt.s32.totalorder %s11, 2
    // Predicated region
    $region29: #{mel_performer_forward.9} parent=5 // pred_check
      %p175 = pneg %p174
    $region30: #{mel_performer_forward.9} parent=5 // pred_check_branch
      %177 = sbr.rel (%p175) target = $region32
    $region31: #{mel_performer_forward.9} parent=5 // pred_region
      // Predicated region
      $region33: #{mel_performer_forward.9} parent=31 // pred_check
        %p178 = pneg %p31
      $region34: #{mel_performer_forward.9} parent=31 // pred_check_branch
        %180 = sbr.rel (%p178) target = $region36
      $region35: #{mel_performer_forward.9} parent=31 // pred_region
        %p181 = scmp.lt.s32.totalorder %s11, 1
        %s182 = scalar_select %p181, %s11, 1
        %s183 = smul.addr %s182, 8
        %s184 = scalar_lea.vmem %s0, %s183
      $region36: #{mel_performer_forward.9} parent=31 // pred_fallthru
        _
    $region32: #{mel_performer_forward.9} parent=5 // pred_fallthru
      _
    %p185 = scmp.le.s32.totalorder 1, %s11
    %p186 = scmp.lt.s32.totalorder %s11, 3
    %p187 = pnand %p185, %p186
    %p188 = pneg %p187
    // Predicated region
    $region37: #{mel_performer_forward.9} parent=5 // pred_check
      _
    $region38: #{mel_performer_forward.9} parent=5 // pred_check_branch
      %190 = sbr.rel (%p187) target = $region40
    $region39: #{mel_performer_forward.9} parent=5 // pred_region
      %s191 = ssub.s32 %s11, 1
      %p192 = scmp.lt.s32.totalorder %s16, 1
      %s193 = scalar_select %p192, %s16, 1
      %s194 = smul.addr %s193, 8
      %s195 = scalar_lea.vmem %s0, %s194
      %p196 = pneg %p37
      %p197 = pneg %p34
      %p198 = pneg %p58
      %p199 = pneg %p55
      %p200 = pneg %p79
      %p201 = pneg %p76
      %p202 = pneg %p100
      %p203 = pneg %p97
      %p204 = pneg %p121
      %p205 = pneg %p118
      %p206 = pneg %p147
      %p207 = pneg %p144
      %p208 = scmp.lt.s32.totalorder %s16, 1
      %s209 = scalar_select %p208, %s16, 1
      %s210 = smul.addr %s209, 8
      %s211 = scalar_lea.vmem %s5, %s210
      %p212 = scmp.lt.s32.totalorder %s16, 1
      %s213 = scalar_select %p212, %s16, 1
      %s214 = smul.addr %s213, 8
      %s215 = scalar_lea.vmem %s0, %s214
      %p216 = scmp.lt.s32.totalorder %s16, 1
      %s217 = scalar_select %p216, %s16, 1
      %s218 = smul.addr %s217, 8
      %s219 = scalar_lea.vmem %s5, %s218
      %v221 = vld [vmem:[%s215] sm:$0xff]
      %vm222 = vcmask 261120
      %v223 = vsel %vm222, %v221, 0.0
      %224 = vadd.xlane.f32.xlu0 %v223
      %v225 = vpop.xlane.xlu0 %224
      %v226 = vrcp.pop 32.0
      %v227 = vmul.f32 32.0, %v226
      %v228 = vsub.f32 1.0, %v227
      %v229 = vmul.f32 %v226, %v228
      %v230 = vadd.f32 %v226, %v229
      %vm231 = vweird.f32 %v226
      %v232 = vsel %vm231, %v226, %v230
      %v233 = vmul.f32 %v225, %v232
      %v234 = vsub.f32 %v221, %v233
      %v235 = vmul.f32 %v234, %v234
      %v236 = vsel %vm222, %v235, 0.0
      %237 = vadd.xlane.f32.xlu0 %v236
      %v238 = vpop.xlane.xlu0 %237
      %v239 = vmul.f32 %v238, %v232
      %v240 = vadd.f32 %v239, 1e-05
      %v241 = vrsqrt.pop %v240
      %v242 = vmul.f32 %v241, %v240
      %v243 = vmul.f32 %v242, %v241
      %v244 = vmul.f32 0.5, %v243
      %v245 = vsub.f32 1.5, %v244
      %v246 = vmul.f32 %v241, %v245
      %vm247 = vweird.f32 %v240
      %vm248 = vweird.f32 %v241
      %vm249 = vmor %vm247, %vm248
      %v250 = vsel %vm249, %v241, %v246
      %v251 = vmul.f32 %v234, %v250
      %v252 = vld [vmem:[%s1] sm:$0x1]
      %v254 = vperm.slane %v252, 0
      %v256 = vmul.f32 %v251, %v254
      %v257 = vld [vmem:[%s2] sm:$0x1]
      %v259 = vperm.slane %v257, 0
      %v261 = vadd.f32 %v256, %v259
      %v262 = vpack.c.bf16 %v261, %v261
      %v263 = vld [vmem:[%s3] sm:$0xf]
      %v264 = vld [vmem:[%s3 + $0x4] sm:$0xf]
      %v265 = vld [vmem:[%s3 + $0x8] sm:$0xf]
      %v266 = vld [vmem:[%s3 + $0xc] sm:$0xf]
      %v267 = vld [vmem:[%s4] sm:$0x1]
      %v269 = vperm.slane %v267, 0
      %v275 = vunpack.c.l.b16 %v263
      %v276 = vunpack.c.l.b16 %v264
      %v277 = vunpack.c.l.b16 %v265
      %v278 = vunpack.c.l.b16 %v266
      %v279 = vpack.c.b16 %v276, %v275
      %v280 = vpack.c.b16 %v278, %v277
      %v284 = vsel %vm222, %v262, 0
      %286 = vmatpush.bf16.msra.mxu0 0
      %287 = vmatpush.bf16.msra.mxu0 0
      %288 = vmatpush.bf16.msra.mxu0 0
      %289 = vmatpush.bf16.msra.mxu0 0
      %290 = vmatpush.bf16.msra.mxu0 0
      %291 = vmatpush.bf16.msra.mxu0 0
      %292 = vmatpush.bf16.msra.mxu0 %v280
      %293 = vmatpush.bf16.msra.mxu0 %v279
      %294 = vmatmul.bf16.gmra.mxu0 %v284
      %v295 = vpop.f32.mrf.mxu0
      %v296 = vadd.f32 %v269, %v295
      %v297 = vpop.f32.mrf.mxu0
      %298 = vdwg.mxu0
      %vm299 = vcmask 785408
      %300 = vst.msk [vmem:[%s219] sm:$0xff] %vm299, %v296
      %p301 = scmp.lt.s32.totalorder %s16, 1
      %s302 = scalar_select %p301, %s16, 1
      %s303 = smul.addr %s302, 8
      %s304 = scalar_lea.vmem %s5, %s303
      // Predicated region
      $region41: #{mel_performer_forward.9} parent=39 // pred_check
        %p305 = pneg %p144
      $region42: #{mel_performer_forward.9} parent=39 // pred_check_branch
        %307 = sbr.rel (%p305) target = $region44
      $region43: #{mel_performer_forward.9} parent=39 // pred_region
        _
      $region44: #{mel_performer_forward.9} parent=39 // pred_fallthru
        _
    $region40: #{mel_performer_forward.9} parent=5 // pred_fallthru
      _
    %p308 = scmp.le.s32.totalorder 2, %s11
    // Predicated region
    $region45: #{mel_performer_forward.9} parent=5 // pred_check
      %p309 = pneg %p308
    $region46: #{mel_performer_forward.9} parent=5 // pred_check_branch
      %311 = sbr.rel (%p309) target = $region48
    $region47: #{mel_performer_forward.9} parent=5 // pred_region
      %s312 = ssub.s32 %s11, 2
      // Predicated region
      $region49: #{mel_performer_forward.9} parent=47 // pred_check
        %p313 = pneg %p150
      $region50: #{mel_performer_forward.9} parent=47 // pred_check_branch
        %315 = sbr.rel (%p313) target = $region52
      $region51: #{mel_performer_forward.9} parent=47 // pred_region
        %p316 = scmp.lt.s32.totalorder %s17, 1
        %s317 = scalar_select %p316, %s17, 1
        %s318 = smul.addr %s317, 8
        %s319 = scalar_lea.vmem %s5, %s318
      $region52: #{mel_performer_forward.9} parent=47 // pred_fallthru
        _
    $region48: #{mel_performer_forward.9} parent=5 // pred_fallthru
      _
  $region6: #{mel_performer_forward.9} parent=0 // loop_footer
    %s15 = sadd.s32 1, %s11
  $region7: #{mel_performer_forward.9} parent=0 // loop_footer_branch
    %10 = sbr.rel target = $region3
  $region8: #{mel_performer_forward.9} parent=0 // loop_exit
    _

// kernel: mel_performer_forward.10
$region0: #{mel_performer_forward.10}
  #allocation0 [shape = 'u32[]', space=smem, size = 0x4, offset = 0x4, fixed_abs, tag = 'smem constant byte address 0x4 - core index']
  #allocation1 [shape = 'u32[72,128]{1,0:T(1,128)}', space=vmem, size = 0x9000, scoped, tag = 'internal scratch']
  %s0 = inlined_call_operand.vmem [shape: f32[2,8,96], index: 0, kind: input, shape index: {}]
  %s1 = inlined_call_operand.vmem [shape: f32[2,8,32], index: 1, kind: input, shape index: {}]
  %s2 = inlined_call_operand.vmem [shape: bf16[8,32], index: 2, kind: input, shape index: {}]
  %s3 = inlined_call_operand.vmem [shape: bf16[32,32], index: 3, kind: input, shape index: {}]
  %s4 = inlined_call_operand.vmem [shape: f32[1,32], index: 4, kind: input, shape index: {}]
  %s5 = inlined_call_operand.vmem [shape: f32[2,8,32], index: 5, kind: output, shape index: {}]
  %s6 = sld [smem:[#allocation0]]
  $region53: #{mel_performer_forward.10} parent=0
    _
  %s8 = ssub.s32 1, %s6
  %s9 = scalar_select 0, %s8, %s6
  loop: start=0, step=1, limit=4
  $region2: #{mel_performer_forward.10} parent=0 // loop_pre_header
    _
  $region3: #{mel_performer_forward.10} parent=0 // loop_header
    %s11 = sphi 0, %s15
    %p12 = scmp.ge.s32.totalorder %s11, 4
    %s21 = sphi 0, %s23
    %s24 = sphi 0, %s21
    %s25 = sphi 0, %s24
    %s41 = sphi 0, %s25
    %s47 = sphi 0, %s49
    %s50 = sphi 0, %s47
    %s51 = sphi 0, %s50
    %s67 = sphi 0, %s51
    %s71 = sphi 0, %s71
    %s73 = sphi 0, %s71
    %s74 = sphi 0, %s73
    %s88 = sphi 0, %s74
    %s92 = sphi 0, %s92
    %s94 = sphi 0, %s92
    %s95 = sphi 0, %s94
    %s109 = sphi 0, %s95
    %s113 = sphi 0, %s113
    %s115 = sphi 0, %s113
    %s116 = sphi 0, %s115
    %s130 = sphi 0, %s116
    %s136 = sphi 0, %s138
    %s139 = sphi 0, %s136
    %s140 = sphi 0, %s139
    %s156 = sphi 0, %s140
  $region4: #{mel_performer_forward.10} parent=0 // loop_header_branch
    %14 = sbr.rel (%p12) target = $region8
  $region5: #{mel_performer_forward.10} parent=0 // loop_body
    %s16 = ssub.s32 %s11, 1
    %s17 = ssub.s32 %s11, 2
    %s18 = sadd.s32 %s11, 1
    %s19 = ssub.s32 %s11, %s18
    %p20 = scmp.eq.s32.totalorder %s19, 0
    %s22 = sadd.s32 %s21, 1
    %s23 = scalar_select %p20, %s21, %s22
    %p26 = pneg %p20
    %p27 = scmp.eq.s32.totalorder %s11, 1
    %p28 = por %p26, %p27
    %p29 = scmp.ne.s32.totalorder %s21, %s24
    %p30 = scmp.eq.s32.totalorder %s11, 0
    %p31 = por %p29, %p30
    %p32 = scmp.ne.s32.totalorder %s21, %s24
    %p33 = scmp.eq.s32.totalorder %s16, 1
    %p34 = por %p32, %p33
    %p35 = scmp.ne.s32.totalorder %s24, %s25
    %p36 = scmp.eq.s32.totalorder %s16, 0
    %p37 = por %p35, %p36
    %p38 = scmp.ne.s32.totalorder %s24, %s25
    %p39 = scmp.eq.s32.totalorder %s17, 1
    %p40 = por %p38, %p39
    %p42 = scmp.ne.s32.totalorder %s25, %s41
    %p43 = scmp.eq.s32.totalorder %s17, 0
    %p44 = por %p42, %p43
    %s45 = ssub.s32 %s11, %s18
    %p46 = scmp.eq.s32.totalorder %s45, 0
    %s48 = sadd.s32 %s47, 1
    %s49 = scalar_select %p46, %s47, %s48
    %p52 = pneg %p46
    %p53 = scmp.eq.s32.totalorder %s11, 1
    %p54 = por %p52, %p53
    %p55 = scmp.ne.s32.totalorder %s47, %s50
    %p56 = scmp.eq.s32.totalorder %s11, 0
    %p57 = por %p55, %p56
    %p58 = scmp.ne.s32.totalorder %s47, %s50
    %p59 = scmp.eq.s32.totalorder %s16, 1
    %p60 = por %p58, %p59
    %p61 = scmp.ne.s32.totalorder %s50, %s51
    %p62 = scmp.eq.s32.totalorder %s16, 0
    %p63 = por %p61, %p62
    %p64 = scmp.ne.s32.totalorder %s50, %s51
    %p65 = scmp.eq.s32.totalorder %s17, 1
    %p66 = por %p64, %p65
    %p68 = scmp.ne.s32.totalorder %s51, %s67
    %p69 = scmp.eq.s32.totalorder %s17, 0
    %p70 = por %p68, %p69
    %s72 = sadd.s32 %s71, 1
    %p75 = scmp.eq.s32.totalorder %s11, 1
    %p76 = scmp.ne.s32.totalorder %s71, %s73
    %p77 = scmp.eq.s32.totalorder %s11, 0
    %p78 = por %p76, %p77
    %p79 = scmp.ne.s32.totalorder %s71, %s73
    %p80 = scmp.eq.s32.totalorder %s16, 1
    %p81 = por %p79, %p80
    %p82 = scmp.ne.s32.totalorder %s73, %s74
    %p83 = scmp.eq.s32.totalorder %s16, 0
    %p84 = por %p82, %p83
    %p85 = scmp.ne.s32.totalorder %s73, %s74
    %p86 = scmp.eq.s32.totalorder %s17, 1
    %p87 = por %p85, %p86
    %p89 = scmp.ne.s32.totalorder %s74, %s88
    %p90 = scmp.eq.s32.totalorder %s17, 0
    %p91 = por %p89, %p90
    %s93 = sadd.s32 %s92, 1
    %p96 = scmp.eq.s32.totalorder %s11, 1
    %p97 = scmp.ne.s32.totalorder %s92, %s94
    %p98 = scmp.eq.s32.totalorder %s11, 0
    %p99 = por %p97, %p98
    %p100 = scmp.ne.s32.totalorder %s92, %s94
    %p101 = scmp.eq.s32.totalorder %s16, 1
    %p102 = por %p100, %p101
    %p103 = scmp.ne.s32.totalorder %s94, %s95
    %p104 = scmp.eq.s32.totalorder %s16, 0
    %p105 = por %p103, %p104
    %p106 = scmp.ne.s32.totalorder %s94, %s95
    %p107 = scmp.eq.s32.totalorder %s17, 1
    %p108 = por %p106, %p107
    %p110 = scmp.ne.s32.totalorder %s95, %s109
    %p111 = scmp.eq.s32.totalorder %s17, 0
    %p112 = por %p110, %p111
    %s114 = sadd.s32 %s113, 1
    %p117 = scmp.eq.s32.totalorder %s11, 1
    %p118 = scmp.ne.s32.totalorder %s113, %s115
    %p119 = scmp.eq.s32.totalorder %s11, 0
    %p120 = por %p118, %p119
    %p121 = scmp.ne.s32.totalorder %s113, %s115
    %p122 = scmp.eq.s32.totalorder %s16, 1
    %p123 = por %p121, %p122
    %p124 = scmp.ne.s32.totalorder %s115, %s116
    %p125 = scmp.eq.s32.totalorder %s16, 0
    %p126 = por %p124, %p125
    %p127 = scmp.ne.s32.totalorder %s115, %s116
    %p128 = scmp.eq.s32.totalorder %s17, 1
    %p129 = por %p127, %p128
    %p131 = scmp.ne.s32.totalorder %s116, %s130
    %p132 = scmp.eq.s32.totalorder %s17, 0
    %p133 = por %p131, %p132
    %s134 = ssub.s32 %s11, %s18
    %p135 = scmp.eq.s32.totalorder %s134, 0
    %s137 = sadd.s32 %s136, 1
    %s138 = scalar_select %p135, %s136, %s137
    %p141 = pneg %p135
    %p142 = scmp.eq.s32.totalorder %s11, 1
    %p143 = por %p141, %p142
    %p144 = scmp.ne.s32.totalorder %s136, %s139
    %p145 = scmp.eq.s32.totalorder %s11, 0
    %p146 = por %p144, %p145
    %p147 = scmp.ne.s32.totalorder %s136, %s139
    %p148 = scmp.eq.s32.totalorder %s16, 1
    %p149 = por %p147, %p148
    %p150 = scmp.ne.s32.totalorder %s139, %s140
    %p151 = scmp.eq.s32.totalorder %s16, 0
    %p152 = por %p150, %p151
    %p153 = scmp.ne.s32.totalorder %s139, %s140
    %p154 = scmp.eq.s32.totalorder %s17, 1
    %p155 = por %p153, %p154
    %p157 = scmp.ne.s32.totalorder %s140, %s156
    %p158 = scmp.eq.s32.totalorder %s17, 0
    %p159 = por %p157, %p158
    %p160 = scmp.le.s32.totalorder 1, %s11
    %p161 = scmp.lt.s32.totalorder %s11, 3
    %p162 = pnand %p160, %p161
    %p163 = pneg %p162
    // Predicated region
    $region9: #{mel_performer_forward.10} parent=5 // pred_check
      _
    $region10: #{mel_performer_forward.10} parent=5 // pred_check_branch
      %165 = sbr.rel (%p162) target = $region12
    $region11: #{mel_performer_forward.10} parent=5 // pred_region
      %s166 = ssub.s32 %s11, 1
      // Predicated region
      $region13: #{mel_performer_forward.10} parent=11 // pred_check
        %p167 = pneg %p84
      $region14: #{mel_performer_forward.10} parent=11 // pred_check_branch
        %169 = sbr.rel (%p167) target = $region16
      $region15: #{mel_performer_forward.10} parent=11 // pred_region
        _
      $region16: #{mel_performer_forward.10} parent=11 // pred_fallthru
        _
      // Predicated region
      $region17: #{mel_performer_forward.10} parent=11 // pred_check
        %p170 = pneg %p105
      $region18: #{mel_performer_forward.10} parent=11 // pred_check_branch
        %172 = sbr.rel (%p170) target = $region20
      $region19: #{mel_performer_forward.10} parent=11 // pred_region
        _
      $region20: #{mel_performer_forward.10} parent=11 // pred_fallthru
        _
      // Predicated region
      $region21: #{mel_performer_forward.10} parent=11 // pred_check
        %p173 = pneg %p126
      $region22: #{mel_performer_forward.10} parent=11 // pred_check_branch
        %175 = sbr.rel (%p173) target = $region24
      $region23: #{mel_performer_forward.10} parent=11 // pred_region
        _
      $region24: #{mel_performer_forward.10} parent=11 // pred_fallthru
        _
    $region12: #{mel_performer_forward.10} parent=5 // pred_fallthru
      _
    %p176 = scmp.lt.s32.totalorder %s11, 2
    // Predicated region
    $region25: #{mel_performer_forward.10} parent=5 // pred_check
      %p177 = pneg %p176
    $region26: #{mel_performer_forward.10} parent=5 // pred_check_branch
      %179 = sbr.rel (%p177) target = $region28
    $region27: #{mel_performer_forward.10} parent=5 // pred_region
      // Predicated region
      $region29: #{mel_performer_forward.10} parent=27 // pred_check
        %p180 = pneg %p31
      $region30: #{mel_performer_forward.10} parent=27 // pred_check_branch
        %182 = sbr.rel (%p180) target = $region32
      $region31: #{mel_performer_forward.10} parent=27 // pred_region
        %p183 = scmp.lt.s32.totalorder %s11, 1
        %s184 = scalar_select %p183, %s11, 1
        %s185 = smul.addr %s184, 8
        %s186 = scalar_lea.vmem %s0, %s185
      $region32: #{mel_performer_forward.10} parent=27 // pred_fallthru
        _
      // Predicated region
      $region33: #{mel_performer_forward.10} parent=27 // pred_check
        %p187 = pneg %p57
      $region34: #{mel_performer_forward.10} parent=27 // pred_check_branch
        %189 = sbr.rel (%p187) target = $region36
      $region35: #{mel_performer_forward.10} parent=27 // pred_region
        %p190 = scmp.lt.s32.totalorder %s11, 1
        %s191 = scalar_select %p190, %s11, 1
        %s192 = smul.addr %s191, 8
        %s193 = scalar_lea.vmem %s1, %s192
      $region36: #{mel_performer_forward.10} parent=27 // pred_fallthru
        _
    $region28: #{mel_performer_forward.10} parent=5 // pred_fallthru
      _
    %p194 = scmp.le.s32.totalorder 1, %s11
    %p195 = scmp.lt.s32.totalorder %s11, 3
    %p196 = pnand %p194, %p195
    %p197 = pneg %p196
    // Predicated region
    $region37: #{mel_performer_forward.10} parent=5 // pred_check
      _
    $region38: #{mel_performer_forward.10} parent=5 // pred_check_branch
      %199 = sbr.rel (%p196) target = $region40
    $region39: #{mel_performer_forward.10} parent=5 // pred_region
      %s200 = ssub.s32 %s11, 1
      %p201 = scmp.lt.s32.totalorder %s16, 1
      %s202 = scalar_select %p201, %s16, 1
      %s203 = smul.addr %s202, 8
      %s204 = scalar_lea.vmem %s0, %s203
      %p205 = pneg %p37
      %p206 = pneg %p34
      %p207 = scmp.lt.s32.totalorder %s16, 1
      %s208 = scalar_select %p207, %s16, 1
      %s209 = smul.addr %s208, 8
      %s210 = scalar_lea.vmem %s1, %s209
      %p211 = pneg %p63
      %p212 = pneg %p60
      %p213 = pneg %p84
      %p214 = pneg %p81
      %p215 = pneg %p105
      %p216 = pneg %p102
      %p217 = pneg %p126
      %p218 = pneg %p123
      %p219 = pneg %p152
      %p220 = pneg %p149
      %p221 = scmp.lt.s32.totalorder %s16, 1
      %s222 = scalar_select %p221, %s16, 1
      %s223 = smul.addr %s222, 8
      %s224 = scalar_lea.vmem %s5, %s223
      %p225 = scmp.lt.s32.totalorder %s16, 1
      %s226 = scalar_select %p225, %s16, 1
      %s227 = smul.addr %s226, 8
      %s228 = scalar_lea.vmem %s0, %s227
      %p229 = scmp.lt.s32.totalorder %s16, 1
      %s230 = scalar_select %p229, %s16, 1
      %s231 = smul.addr %s230, 8
      %s232 = scalar_lea.vmem %s1, %s231
      %p233 = scmp.lt.s32.totalorder %s16, 1
      %s234 = scalar_select %p233, %s16, 1
      %s235 = smul.addr %s234, 8
      %s236 = scalar_lea.vmem %s5, %s235
      %v238 = vld [vmem:[%s228] sm:$0xff]
      %v239 = vmul.f32 %v238, 0.59460354
      %v240 = vpack.c.bf16 %v239, %v239
      %v241 = vld [vmem:[%s2] sm:$0xf]
      %vm242 = vcmask 64512
      %v244 = vsel %vm242, %v240, 0
      %vm246 = vcmask 1043456
      %v248 = vsel %vm246, %v241, 0
      %250 = vmatpush.bf16.msra.mxu0 0
      %251 = vmatpush.bf16.msra.mxu0 0
      %252 = vmatpush.bf16.msra.mxu0 0
      %253 = vmatpush.bf16.msra.mxu0 0
      %254 = vmatpush.bf16.msra.mxu0 0
      %255 = vmatpush.bf16.msra.mxu0 0
      %256 = vmatpush.bf16.msra.mxu0 0
      %257 = vmatpush.bf16.msra.mxu0 %v248
      %258 = vmatmul.bf16.gmra.mxu0 %v244
      %v259 = vpop.f32.mrf.mxu0
      %v260 = vadd.f32 0.0, %v259
      %v261 = vpop.f32.mrf.mxu0
      %262 = vdwg.mxu0
      %v263 = vmax.f32 %v260, 0.0
      %v264 = vadd.f32 %v263, 0.001
      %266 = vrot.lane.b32.xlu0 %v240, 96
      %v267 = vpop.permute.xlu0 %266
      %v269 = vsel %vm242, %v267, 0
      %271 = vmatpush.bf16.msra.mxu0 0
      %272 = vmatpush.bf16.msra.mxu0 0
      %273 = vmatpush.bf16.msra.mxu0 0
      %274 = vmatpush.bf16.msra.mxu0 0
      %275 = vmatpush.bf16.msra.mxu0 0
      %276 = vmatpush.bf16.msra.mxu0 0
      %277 = vmatpush.bf16.msra.mxu0 0
      %278 = vmatpush.bf16.msra.mxu0 %v248
      %279 = vmatmul.bf16.gmra.mxu0 %v269
      %v280 = vpop.f32.mrf.mxu0
      %v281 = vadd.f32 0.0, %v280
      %v282 = vpop.f32.mrf.mxu0
      %283 = vdwg.mxu0
      %v284 = vmax.f32 %v281, 0.0
      %v285 = vadd.f32 %v284, 0.001
      %287 = vrot.lane.b32.xlu0 %v238, 64
      %v288 = vpop.permute.xlu0 %287
      %v290 = vsel %vm242, %v288, 1.0
      %v291 = vpack.c.bf16 %v285, %v285
      %v292 = vpack.c.bf16 %v290, %v290
      %293 = vxpose.xlu0.c.b16.start [1/8] %v291, 128
      %294 = vxpose.xlu0.c.b16.cont [2/8] 0, 128
      %295 = vxpose.xlu0.c.b16.cont [3/8] 0, 128
      %296 = vxpose.xlu0.c.b16.cont [4/8] 0, 128
      %297 = vxpose.xlu0.c.b16.cont [5/8] 0, 128
      %298 = vxpose.xlu0.c.b16.cont [6/8] 0, 128
      %299 = vxpose.xlu0.c.b16.cont [7/8] 0, 128
      %300 = vxpose.xlu0.c.b16.end [8/8] 0, 128
      %v301 = vpop.trf.xlu0
      %v302 = vpop.trf.xlu0
      %v303 = vpop.trf.xlu0
      %v304 = vpop.trf.xlu0
      %v305 = vpop.trf.xlu0
      %v306 = vpop.trf.xlu0
      %v307 = vpop.trf.xlu0
      %v308 = vpop.trf.xlu0
      %v310 = vsel %vm242, %v301, 0
      %v313 = vsel %vm242, %v302, 0
      %v316 = vsel %vm246, %v292, 0
      %318 = vmatpush.bf16.msra.mxu0 0
      %319 = vmatpush.bf16.msra.mxu0 0
      %320 = vmatpush.bf16.msra.mxu0 0
      %321 = vmatpush.bf16.msra.mxu0 0
      %322 = vmatpush.bf16.msra.mxu0 0
      %323 = vmatpush.bf16.msra.mxu0 0
      %324 = vmatpush.bf16.msra.mxu0 0
      %325 = vmatpush.bf16.msra.mxu0 %v316
      %326 = vmatmul.bf16.gmra.mxu0 %v310
      %v327 = vpop.f32.mrf.mxu0
      %v328 = vadd.f32 0.0, %v327
      %v329 = vpop.f32.mrf.mxu0
      %v330 = vadd.f32 0.0, %v329
      %331 = vmatmul.bf16.gmra.mxu0 %v313
      %v332 = vpop.f32.mrf.mxu0
      %v333 = vadd.f32 0.0, %v332
      %v334 = vpop.f32.mrf.mxu0
      %v335 = vadd.f32 0.0, %v334
      %336 = vdwg.mxu0
      %v337 = vpack.c.bf16 %v264, %v264
      %v338 = vpack.c.bf16 %v330, %v328
      %v339 = vpack.c.bf16 %v335, %v333
      %vm340 = vcmask 261120
      %v342 = vsel %vm340, %v337, 0
      %344 = vmatpush.bf16.msra.mxu0 0
      %345 = vmatpush.bf16.msra.mxu0 0
      %346 = vmatpush.bf16.msra.mxu0 0
      %347 = vmatpush.bf16.msra.mxu0 0
      %348 = vmatpush.bf16.msra.mxu0 0
      %349 = vmatpush.bf16.msra.mxu0 0
      %350 = vmatpush.bf16.msra.mxu0 %v339
      %351 = vmatpush.bf16.msra.mxu0 %v338
      %352 = vmatmul.bf16.gmra.mxu0 %v342
      %v353 = vpop.f32.mrf.mxu0
      %v354 = vadd.f32 0.0, %v353
      %v355 = vpop.f32.mrf.mxu0
      %356 = vdwg.mxu0
      %v357 = vrcp.pop %v354
      %359 = vset.pattern.permute.xlu0 8
      %360 = vperm.xlu0 %359, %v357
      %v361 = vpop.permute.xlu0 %360
      %v363 = vmul.f32 %v354, %v361
      %364 = vrot.lane.b32.xlu0 %v240, 120
      %v365 = vpop.permute.xlu0 %364
      %v367 = vsel %vm242, %v365, 0
      %369 = vmatpush.bf16.msra.mxu0 0
      %370 = vmatpush.bf16.msra.mxu0 0
      %371 = vmatpush.bf16.msra.mxu0 0
      %372 = vmatpush.bf16.msra.mxu0 0
      %373 = vmatpush.bf16.msra.mxu0 0
      %374 = vmatpush.bf16.msra.mxu0 0
      %375 = vmatpush.bf16.msra.mxu0 0
      %376 = vmatpush.bf16.msra.mxu0 %v248
      %377 = vmatmul.bf16.gmra.mxu0 %v367
      %v378 = vpop.f32.mrf.mxu0
      %v379 = vadd.f32 0.0, %v378
      %v380 = vpop.f32.mrf.mxu0
      %381 = vdwg.mxu0
      %v382 = vmax.f32 %v379, 0.0
      %v383 = vadd.f32 %v382, 0.001
      %384 = vrot.lane.b32.xlu0 %v240, 88
      %v385 = vpop.permute.xlu0 %384
      %v387 = vsel %vm242, %v385, 0
      %389 = vmatpush.bf16.msra.mxu0 0
      %390 = vmatpush.bf16.msra.mxu0 0
      %391 = vmatpush.bf16.msra.mxu0 0
      %392 = vmatpush.bf16.msra.mxu0 0
      %393 = vmatpush.bf16.msra.mxu0 0
      %394 = vmatpush.bf16.msra.mxu0 0
      %395 = vmatpush.bf16.msra.mxu0 0
      %396 = vmatpush.bf16.msra.mxu0 %v248
      %397 = vmatmul.bf16.gmra.mxu0 %v387
      %v398 = vpop.f32.mrf.mxu0
      %v399 = vadd.f32 0.0, %v398
      %v400 = vpop.f32.mrf.mxu0
      %401 = vdwg.mxu0
      %v402 = vmax.f32 %v399, 0.0
      %v403 = vadd.f32 %v402, 0.001
      %404 = vrot.lane.b32.xlu0 %v238, 56
      %v405 = vpop.permute.xlu0 %404
      %v407 = vsel %vm242, %v405, 1.0
      %v408 = vpack.c.bf16 %v403, %v403
      %v409 = vpack.c.bf16 %v407, %v407
      %410 = vxpose.xlu0.c.b16.start [1/8] %v408, 128
      %411 = vxpose.xlu0.c.b16.cont [2/8] 0, 128
      %412 = vxpose.xlu0.c.b16.cont [3/8] 0, 128
      %413 = vxpose.xlu0.c.b16.cont [4/8] 0, 128
      %414 = vxpose.xlu0.c.b16.cont [5/8] 0, 128
      %415 = vxpose.xlu0.c.b16.cont [6/8] 0, 128
      %416 = vxpose.xlu0.c.b16.cont [7/8] 0, 128
      %417 = vxpose.xlu0.c.b16.end [8/8] 0, 128
      %v418 = vpop.trf.xlu0
      %v419 = vpop.trf.xlu0
      %v420 = vpop.trf.xlu0
      %v421 = vpop.trf.xlu0
      %v422 = vpop.trf.xlu0
      %v423 = vpop.trf.xlu0
      %v424 = vpop.trf.xlu0
      %v425 = vpop.trf.xlu0
      %v427 = vsel %vm242, %v418, 0
      %v430 = vsel %vm242, %v419, 0
      %v433 = vsel %vm246, %v409, 0
      %435 = vmatpush.bf16.msra.mxu0 0
      %436 = vmatpush.bf16.msra.mxu0 0
      %437 = vmatpush.bf16.msra.mxu0 0
      %438 = vmatpush.bf16.msra.mxu0 0
      %439 = vmatpush.bf16.msra.mxu0 0
      %440 = vmatpush.bf16.msra.mxu0 0
      %441 = vmatpush.bf16.msra.mxu0 0
      %442 = vmatpush.bf16.msra.mxu0 %v433
      %443 = vmatmul.bf16.gmra.mxu0 %v427
      %v444 = vpop.f32.mrf.mxu0
      %v445 = vadd.f32 0.0, %v444
      %v446 = vpop.f32.mrf.mxu0
      %v447 = vadd.f32 0.0, %v446
      %448 = vmatmul.bf16.gmra.mxu0 %v430
      %v449 = vpop.f32.mrf.mxu0
      %v450 = vadd.f32 0.0, %v449
      %v451 = vpop.f32.mrf.mxu0
      %v452 = vadd.f32 0.0, %v451
      %453 = vdwg.mxu0
      %v454 = vpack.c.bf16 %v383, %v383
      %v455 = vpack.c.bf16 %v447, %v445
      %v456 = vpack.c.bf16 %v452, %v450
      %v458 = vsel %vm340, %v454, 0
      %460 = vmatpush.bf16.msra.mxu0 0
      %461 = vmatpush.bf16.msra.mxu0 0
      %462 = vmatpush.bf16.msra.mxu0 0
      %463 = vmatpush.bf16.msra.mxu0 0
      %464 = vmatpush.bf16.msra.mxu0 0
      %465 = vmatpush.bf16.msra.mxu0 0
      %466 = vmatpush.bf16.msra.mxu0 %v456
      %467 = vmatpush.bf16.msra.mxu0 %v455
      %468 = vmatmul.bf16.gmra.mxu0 %v458
      %v469 = vpop.f32.mrf.mxu0
      %v470 = vadd.f32 0.0, %v469
      %v471 = vpop.f32.mrf.mxu0
      %472 = vdwg.mxu0
      %v473 = vrcp.pop %v470
      %475 = vset.pattern.permute.xlu0 8
      %476 = vperm.xlu0 %475, %v473
      %v477 = vpop.permute.xlu0 %476
      %v479 = vmul.f32 %v470, %v477
      %480 = vrot.lane.b32.xlu0 %v240, 112
      %v481 = vpop.permute.xlu0 %480
      %v483 = vsel %vm242, %v481, 0
      %485 = vmatpush.bf16.msra.mxu0 0
      %486 = vmatpush.bf16.msra.mxu0 0
      %487 = vmatpush.bf16.msra.mxu0 0
      %488 = vmatpush.bf16.msra.mxu0 0
      %489 = vmatpush.bf16.msra.mxu0 0
      %490 = vmatpush.bf16.msra.mxu0 0
      %491 = vmatpush.bf16.msra.mxu0 0
      %492 = vmatpush.bf16.msra.mxu0 %v248
      %493 = vmatmul.bf16.gmra.mxu0 %v483
      %v494 = vpop.f32.mrf.mxu0
      %v495 = vadd.f32 0.0, %v494
      %v496 = vpop.f32.mrf.mxu0
      %497 = vdwg.mxu0
      %v498 = vmax.f32 %v495, 0.0
      %v499 = vadd.f32 %v498, 0.001
      %500 = vrot.lane.b32.xlu0 %v240, 80
      %v501 = vpop.permute.xlu0 %500
      %v503 = vsel %vm242, %v501, 0
      %505 = vmatpush.bf16.msra.mxu0 0
      %506 = vmatpush.bf16.msra.mxu0 0
      %507 = vmatpush.bf16.msra.mxu0 0
      %508 = vmatpush.bf16.msra.mxu0 0
      %509 = vmatpush.bf16.msra.mxu0 0
      %510 = vmatpush.bf16.msra.mxu0 0
      %511 = vmatpush.bf16.msra.mxu0 0
      %512 = vmatpush.bf16.msra.mxu0 %v248
      %513 = vmatmul.bf16.gmra.mxu0 %v503
      %v514 = vpop.f32.mrf.mxu0
      %v515 = vadd.f32 0.0, %v514
      %v516 = vpop.f32.mrf.mxu0
      %517 = vdwg.mxu0
      %v518 = vmax.f32 %v515, 0.0
      %v519 = vadd.f32 %v518, 0.001
      %520 = vrot.lane.b32.xlu0 %v238, 48
      %v521 = vpop.permute.xlu0 %520
      %v523 = vsel %vm242, %v521, 1.0
      %v524 = vpack.c.bf16 %v519, %v519
      %v525 = vpack.c.bf16 %v523, %v523
      %526 = vxpose.xlu0.c.b16.start [1/8] %v524, 128
      %527 = vxpose.xlu0.c.b16.cont [2/8] 0, 128
      %528 = vxpose.xlu0.c.b16.cont [3/8] 0, 128
      %529 = vxpose.xlu0.c.b16.cont [4/8] 0, 128
      %530 = vxpose.xlu0.c.b16.cont [5/8] 0, 128
      %531 = vxpose.xlu0.c.b16.cont [6/8] 0, 128
      %532 = vxpose.xlu0.c.b16.cont [7/8] 0, 128
      %533 = vxpose.xlu0.c.b16.end [8/8] 0, 128
      %v534 = vpop.trf.xlu0
      %v535 = vpop.trf.xlu0
      %v536 = vpop.trf.xlu0
      %v537 = vpop.trf.xlu0
      %v538 = vpop.trf.xlu0
      %v539 = vpop.trf.xlu0
      %v540 = vpop.trf.xlu0
      %v541 = vpop.trf.xlu0
      %v543 = vsel %vm242, %v534, 0
      %v546 = vsel %vm242, %v535, 0
      %v549 = vsel %vm246, %v525, 0
      %551 = vmatpush.bf16.msra.mxu0 0
      %552 = vmatpush.bf16.msra.mxu0 0
      %553 = vmatpush.bf16.msra.mxu0 0
      %554 = vmatpush.bf16.msra.mxu0 0
      %555 = vmatpush.bf16.msra.mxu0 0
      %556 = vmatpush.bf16.msra.mxu0 0
      %557 = vmatpush.bf16.msra.mxu0 0
      %558 = vmatpush.bf16.msra.mxu0 %v549
      %559 = vmatmul.bf16.gmra.mxu0 %v543
      %v560 = vpop.f32.mrf.mxu0
      %v561 = vadd.f32 0.0, %v560
      %v562 = vpop.f32.mrf.mxu0
      %v563 = vadd.f32 0.0, %v562
      %564 = vmatmul.bf16.gmra.mxu0 %v546
      %v565 = vpop.f32.mrf.mxu0
      %v566 = vadd.f32 0.0, %v565
      %v567 = vpop.f32.mrf.mxu0
      %v568 = vadd.f32 0.0, %v567
      %569 = vdwg.mxu0
      %v570 = vpack.c.bf16 %v499, %v499
      %v571 = vpack.c.bf16 %v563, %v561
      %v572 = vpack.c.bf16 %v568, %v566
      %v574 = vsel %vm340, %v570, 0
      %576 = vmatpush.bf16.msra.mxu0 0
      %577 = vmatpush.bf16.msra.mxu0 0
      %578 = vmatpush.bf16.msra.mxu0 0
      %579 = vmatpush.bf16.msra.mxu0 0
      %580 = vmatpush.bf16.msra.mxu0 0
      %581 = vmatpush.bf16.msra.mxu0 0
      %582 = vmatpush.bf16.msra.mxu0 %v572
      %583 = vmatpush.bf16.msra.mxu0 %v571
      %584 = vmatmul.bf16.gmra.mxu0 %v574
      %v585 = vpop.f32.mrf.mxu0
      %v586 = vadd.f32 0.0, %v585
      %v587 = vpop.f32.mrf.mxu0
      %588 = vdwg.mxu0
      %v589 = vrcp.pop %v586
      %591 = vset.pattern.permute.xlu0 8
      %592 = vperm.xlu0 %591, %v589
      %v593 = vpop.permute.xlu0 %592
      %v595 = vmul.f32 %v586, %v593
      %596 = vrot.lane.b32.xlu0 %v240, 104
      %v597 = vpop.permute.xlu0 %596
      %v599 = vsel %vm242, %v597, 0
      %601 = vmatpush.bf16.msra.mxu0 0
      %602 = vmatpush.bf16.msra.mxu0 0
      %603 = vmatpush.bf16.msra.mxu0 0
      %604 = vmatpush.bf16.msra.mxu0 0
      %605 = vmatpush.bf16.msra.mxu0 0
      %606 = vmatpush.bf16.msra.mxu0 0
      %607 = vmatpush.bf16.msra.mxu0 0
      %608 = vmatpush.bf16.msra.mxu0 %v248
      %609 = vmatmul.bf16.gmra.mxu0 %v599
      %v610 = vpop.f32.mrf.mxu0
      %v611 = vadd.f32 0.0, %v610
      %v612 = vpop.f32.mrf.mxu0
      %613 = vdwg.mxu0
      %v614 = vmax.f32 %v611, 0.0
      %v615 = vadd.f32 %v614, 0.001
      %616 = vrot.lane.b32.xlu0 %v240, 72
      %v617 = vpop.permute.xlu0 %616
      %v619 = vsel %vm242, %v617, 0
      %621 = vmatpush.bf16.msra.mxu0 0
      %622 = vmatpush.bf16.msra.mxu0 0
      %623 = vmatpush.bf16.msra.mxu0 0
      %624 = vmatpush.bf16.msra.mxu0 0
      %625 = vmatpush.bf16.msra.mxu0 0
      %626 = vmatpush.bf16.msra.mxu0 0
      %627 = vmatpush.bf16.msra.mxu0 0
      %628 = vmatpush.bf16.msra.mxu0 %v248
      %629 = vmatmul.bf16.gmra.mxu0 %v619
      %v630 = vpop.f32.mrf.mxu0
      %v631 = vadd.f32 0.0, %v630
      %v632 = vpop.f32.mrf.mxu0
      %633 = vdwg.mxu0
      %v634 = vmax.f32 %v631, 0.0
      %v635 = vadd.f32 %v634, 0.001
      %636 = vrot.lane.b32.xlu0 %v238, 40
      %v637 = vpop.permute.xlu0 %636
      %v639 = vsel %vm242, %v637, 1.0
      %v640 = vpack.c.bf16 %v635, %v635
      %v641 = vpack.c.bf16 %v639, %v639
      %642 = vxpose.xlu0.c.b16.start [1/8] %v640, 128
      %643 = vxpose.xlu0.c.b16.cont [2/8] 0, 128
      %644 = vxpose.xlu0.c.b16.cont [3/8] 0, 128
      %645 = vxpose.xlu0.c.b16.cont [4/8] 0, 128
      %646 = vxpose.xlu0.c.b16.cont [5/8] 0, 128
      %647 = vxpose.xlu0.c.b16.cont [6/8] 0, 128
      %648 = vxpose.xlu0.c.b16.cont [7/8] 0, 128
      %649 = vxpose.xlu0.c.b16.end [8/8] 0, 128
      %v650 = vpop.trf.xlu0
      %v651 = vpop.trf.xlu0
      %v652 = vpop.trf.xlu0
      %v653 = vpop.trf.xlu0
      %v654 = vpop.trf.xlu0
      %v655 = vpop.trf.xlu0
      %v656 = vpop.trf.xlu0
      %v657 = vpop.trf.xlu0
      %v659 = vsel %vm242, %v650, 0
      %v662 = vsel %vm242, %v651, 0
      %v665 = vsel %vm246, %v641, 0
      %667 = vmatpush.bf16.msra.mxu0 0
      %668 = vmatpush.bf16.msra.mxu0 0
      %669 = vmatpush.bf16.msra.mxu0 0
      %670 = vmatpush.bf16.msra.mxu0 0
      %671 = vmatpush.bf16.msra.mxu0 0
      %672 = vmatpush.bf16.msra.mxu0 0
      %673 = vmatpush.bf16.msra.mxu0 0
      %674 = vmatpush.bf16.msra.mxu0 %v665
      %675 = vmatmul.bf16.gmra.mxu0 %v659
      %v676 = vpop.f32.mrf.mxu0
      %v677 = vadd.f32 0.0, %v676
      %v678 = vpop.f32.mrf.mxu0
      %v679 = vadd.f32 0.0, %v678
      %680 = vmatmul.bf16.gmra.mxu0 %v662
      %v681 = vpop.f32.mrf.mxu0
      %v682 = vadd.f32 0.0, %v681
      %v683 = vpop.f32.mrf.mxu0
      %v684 = vadd.f32 0.0, %v683
      %685 = vdwg.mxu0
      %v686 = vpack.c.bf16 %v615, %v615
      %v687 = vpack.c.bf16 %v679, %v677
      %v688 = vpack.c.bf16 %v684, %v682
      %v690 = vsel %vm340, %v686, 0
      %692 = vmatpush.bf16.msra.mxu0 0
      %693 = vmatpush.bf16.msra.mxu0 0
      %694 = vmatpush.bf16.msra.mxu0 0
      %695 = vmatpush.bf16.msra.mxu0 0
      %696 = vmatpush.bf16.msra.mxu0 0
      %697 = vmatpush.bf16.msra.mxu0 0
      %698 = vmatpush.bf16.msra.mxu0 %v688
      %699 = vmatpush.bf16.msra.mxu0 %v687
      %700 = vmatmul.bf16.gmra.mxu0 %v690
      %v701 = vpop.f32.mrf.mxu0
      %v702 = vadd.f32 0.0, %v701
      %v703 = vpop.f32.mrf.mxu0
      %704 = vdwg.mxu0
      %v705 = vrcp.pop %v702
      %707 = vset.pattern.permute.xlu0 8
      %708 = vperm.xlu0 %707, %v705
      %v709 = vpop.permute.xlu0 %708
      %v711 = vmul.f32 %v702, %v709
      %713 = vrot.lane.b32.xlu0 %v479, 8
      %v714 = vpop.permute.xlu0 %713
      %717 = vrot.lane.b32.xlu0 %v595, 16
      %v718 = vpop.permute.xlu0 %717
      %721 = vrot.lane.b32.xlu0 %v711, 24
      %v722 = vpop.permute.xlu0 %721
      %v724 = vsel %vm242, %v363, %v714
      %vm725 = vcmask 130048
      %v726 = vsel %vm725, %v724, %v718
      %vm727 = vcmask 195584
      %v728 = vsel %vm727, %v726, %v722
      %v729 = vpack.c.bf16 %v728, %v728
      %v730 = vld [vmem:[%s3] sm:$0xf]
      %v731 = vld [vmem:[%s3 + $0x4] sm:$0xf]
      %v732 = vld [vmem:[%s3 + $0x8] sm:$0xf]
      %v733 = vld [vmem:[%s3 + $0xc] sm:$0xf]
      %v734 = vld [vmem:[%s4] sm:$0x1]
      %v736 = vperm.slane %v734, 0
      %v742 = vunpack.c.l.b16 %v730
      %v743 = vunpack.c.l.b16 %v731
      %v744 = vunpack.c.l.b16 %v732
      %v745 = vunpack.c.l.b16 %v733
      %v746 = vpack.c.b16 %v743, %v742
      %v747 = vpack.c.b16 %v745, %v744
      %v751 = vsel %vm340, %v729, 0
      %753 = vmatpush.bf16.msra.mxu0 0
      %754 = vmatpush.bf16.msra.mxu0 0
      %755 = vmatpush.bf16.msra.mxu0 0
      %756 = vmatpush.bf16.msra.mxu0 0
      %757 = vmatpush.bf16.msra.mxu0 0
      %758 = vmatpush.bf16.msra.mxu0 0
      %759 = vmatpush.bf16.msra.mxu0 %v747
      %760 = vmatpush.bf16.msra.mxu0 %v746
      %761 = vmatmul.bf16.gmra.mxu0 %v751
      %v762 = vpop.f32.mrf.mxu0
      %v763 = vadd.f32 %v736, %v762
      %v764 = vpop.f32.mrf.mxu0
      %765 = vdwg.mxu0
      %v766 = vld [vmem:[%s232] sm:$0xff]
      %v767 = vadd.f32 %v763, %v766
      %768 = vst.msk [vmem:[%s236] sm:$0xff] %vm340, %v767
      %p769 = scmp.lt.s32.totalorder %s16, 1
      %s770 = scalar_select %p769, %s16, 1
      %s771 = smul.addr %s770, 8
      %s772 = scalar_lea.vmem %s5, %s771
      // Predicated region
      $region41: #{mel_performer_forward.10} parent=39 // pred_check
        %p773 = pneg %p149
      $region42: #{mel_performer_forward.10} parent=39 // pred_check_branch
        %775 = sbr.rel (%p773) target = $region44
      $region43: #{mel_performer_forward.10} parent=39 // pred_region
        _
      $region44: #{mel_performer_forward.10} parent=39 // pred_fallthru
        _
    $region40: #{mel_performer_forward.10} parent=5 // pred_fallthru
      _
    %p776 = scmp.le.s32.totalorder 2, %s11
    // Predicated region
    $region45: #{mel_performer_forward.10} parent=5 // pred_check
      %p777 = pneg %p776
    $region46: #{mel_performer_forward.10} parent=5 // pred_check_branch
      %779 = sbr.rel (%p777) target = $region48
    $region47: #{mel_performer_forward.10} parent=5 // pred_region
      %s780 = ssub.s32 %s11, 2
      // Predicated region
      $region49: #{mel_performer_forward.10} parent=47 // pred_check
        %p781 = pneg %p155
      $region50: #{mel_performer_forward.10} parent=47 // pred_check_branch
        %783 = sbr.rel (%p781) target = $region52
      $region51: #{mel_performer_forward.10} parent=47 // pred_region
        %p784 = scmp.lt.s32.totalorder %s17, 1
        %s785 = scalar_select %p784, %s17, 1
        %s786 = smul.addr %s785, 8
        %s787 = scalar_lea.vmem %s5, %s786
      $region52: #{mel_performer_forward.10} parent=47 // pred_fallthru
        _
    $region48: #{mel_performer_forward.10} parent=5 // pred_fallthru
      _
  $region6: #{mel_performer_forward.10} parent=0 // loop_footer
    %s15 = sadd.s32 1, %s11
  $region7: #{mel_performer_forward.10} parent=0 // loop_footer_branch
    %10 = sbr.rel target = $region3
  $region8: #{mel_performer_forward.10} parent=0 // loop_exit
    _

// kernel: mel_performer_forward.11
$region0: #{mel_performer_forward.11}
  #allocation0 [shape = 'u32[]', space=smem, size = 0x4, offset = 0x4, fixed_abs, tag = 'smem constant byte address 0x4 - core index']
  #allocation1 [shape = 'u32[72,128]{1,0:T(1,128)}', space=vmem, size = 0x9000, scoped, tag = 'internal scratch']
  %s0 = inlined_call_operand.vmem [shape: f32[16,32], index: 0, kind: input, shape index: {}]
  %s1 = inlined_call_operand.vmem [shape: f32[1,32], index: 1, kind: input, shape index: {}]
  %s2 = inlined_call_operand.vmem [shape: f32[1,32], index: 2, kind: input, shape index: {}]
  %s3 = inlined_call_operand.vmem [shape: bf16[32,256], index: 3, kind: input, shape index: {}]
  %s4 = inlined_call_operand.vmem [shape: f32[1,256], index: 4, kind: input, shape index: {}]
  %s5 = inlined_call_operand.vmem [shape: bf16[128,32], index: 5, kind: input, shape index: {}]
  %s6 = inlined_call_operand.vmem [shape: f32[1,32], index: 6, kind: input, shape index: {}]
  %s7 = inlined_call_operand.vmem [shape: f32[16,32], index: 7, kind: input, shape index: {}]
  %s8 = inlined_call_operand.vmem [shape: f32[16,32], index: 8, kind: output, shape index: {}]
  %s9 = sld [smem:[#allocation0]]
  $region65: #{mel_performer_forward.11} parent=0
    _
  %s11 = ssub.s32 1, %s9
  %s12 = scalar_select 0, %s11, %s9
  loop: start=0, step=1, limit=4
  $region2: #{mel_performer_forward.11} parent=0 // loop_pre_header
    _
  $region3: #{mel_performer_forward.11} parent=0 // loop_header
    %s14 = sphi 0, %s18
    %p15 = scmp.ge.s32.totalorder %s14, 4
    %s24 = sphi 0, %s26
    %s27 = sphi 0, %s24
    %s28 = sphi 0, %s27
    %s44 = sphi 0, %s28
    %s48 = sphi 0, %s48
    %s50 = sphi 0, %s48
    %s51 = sphi 0, %s50
    %s65 = sphi 0, %s51
    %s69 = sphi 0, %s69
    %s71 = sphi 0, %s69
    %s72 = sphi 0, %s71
    %s86 = sphi 0, %s72
    %s90 = sphi 0, %s90
    %s92 = sphi 0, %s90
    %s93 = sphi 0, %s92
    %s107 = sphi 0, %s93
    %s111 = sphi 0, %s111
    %s113 = sphi 0, %s111
    %s114 = sphi 0, %s113
    %s128 = sphi 0, %s114
    %s132 = sphi 0, %s132
    %s134 = sphi 0, %s132
    %s135 = sphi 0, %s134
    %s149 = sphi 0, %s135
    %s153 = sphi 0, %s153
    %s155 = sphi 0, %s153
    %s156 = sphi 0, %s155
    %s170 = sphi 0, %s156
    %s176 = sphi 0, %s178
    %s179 = sphi 0, %s176
    %s180 = sphi 0, %s179
    %s196 = sphi 0, %s180
    %s202 = sphi 0, %s204
    %s205 = sphi 0, %s202
    %s206 = sphi 0, %s205
    %s222 = sphi 0, %s206
  $region4: #{mel_performer_forward.11} parent=0 // loop_header_branch
    %17 = sbr.rel (%p15) target = $region8
  $region5: #{mel_performer_forward.11} parent=0 // loop_body
    %s19 = ssub.s32 %s14, 1
    %s20 = ssub.s32 %s14, 2
    %s21 = sadd.s32 %s14, 1
    %s22 = ssub.s32 %s14, %s21
    %p23 = scmp.eq.s32.totalorder %s22, 0
    %s25 = sadd.s32 %s24, 1
    %s26 = scalar_select %p23, %s24, %s25
    %p29 = pneg %p23
    %p30 = scmp.eq.s32.totalorder %s14, 1
    %p31 = por %p29, %p30
    %p32 = scmp.ne.s32.totalorder %s24, %s27
    %p33 = scmp.eq.s32.totalorder %s14, 0
    %p34 = por %p32, %p33
    %p35 = scmp.ne.s32.totalorder %s24, %s27
    %p36 = scmp.eq.s32.totalorder %s19, 1
    %p37 = por %p35, %p36
    %p38 = scmp.ne.s32.totalorder %s27, %s28
    %p39 = scmp.eq.s32.totalorder %s19, 0
    %p40 = por %p38, %p39
    %p41 = scmp.ne.s32.totalorder %s27, %s28
    %p42 = scmp.eq.s32.totalorder %s20, 1
    %p43 = por %p41, %p42
    %p45 = scmp.ne.s32.totalorder %s28, %s44
    %p46 = scmp.eq.s32.totalorder %s20, 0
    %p47 = por %p45, %p46
    %s49 = sadd.s32 %s48, 1
    %p52 = scmp.eq.s32.totalorder %s14, 1
    %p53 = scmp.ne.s32.totalorder %s48, %s50
    %p54 = scmp.eq.s32.totalorder %s14, 0
    %p55 = por %p53, %p54
    %p56 = scmp.ne.s32.totalorder %s48, %s50
    %p57 = scmp.eq.s32.totalorder %s19, 1
    %p58 = por %p56, %p57
    %p59 = scmp.ne.s32.totalorder %s50, %s51
    %p60 = scmp.eq.s32.totalorder %s19, 0
    %p61 = por %p59, %p60
    %p62 = scmp.ne.s32.totalorder %s50, %s51
    %p63 = scmp.eq.s32.totalorder %s20, 1
    %p64 = por %p62, %p63
    %p66 = scmp.ne.s32.totalorder %s51, %s65
    %p67 = scmp.eq.s32.totalorder %s20, 0
    %p68 = por %p66, %p67
    %s70 = sadd.s32 %s69, 1
    %p73 = scmp.eq.s32.totalorder %s14, 1
    %p74 = scmp.ne.s32.totalorder %s69, %s71
    %p75 = scmp.eq.s32.totalorder %s14, 0
    %p76 = por %p74, %p75
    %p77 = scmp.ne.s32.totalorder %s69, %s71
    %p78 = scmp.eq.s32.totalorder %s19, 1
    %p79 = por %p77, %p78
    %p80 = scmp.ne.s32.totalorder %s71, %s72
    %p81 = scmp.eq.s32.totalorder %s19, 0
    %p82 = por %p80, %p81
    %p83 = scmp.ne.s32.totalorder %s71, %s72
    %p84 = scmp.eq.s32.totalorder %s20, 1
    %p85 = por %p83, %p84
    %p87 = scmp.ne.s32.totalorder %s72, %s86
    %p88 = scmp.eq.s32.totalorder %s20, 0
    %p89 = por %p87, %p88
    %s91 = sadd.s32 %s90, 1
    %p94 = scmp.eq.s32.totalorder %s14, 1
    %p95 = scmp.ne.s32.totalorder %s90, %s92
    %p96 = scmp.eq.s32.totalorder %s14, 0
    %p97 = por %p95, %p96
    %p98 = scmp.ne.s32.totalorder %s90, %s92
    %p99 = scmp.eq.s32.totalorder %s19, 1
    %p100 = por %p98, %p99
    %p101 = scmp.ne.s32.totalorder %s92, %s93
    %p102 = scmp.eq.s32.totalorder %s19, 0
    %p103 = por %p101, %p102
    %p104 = scmp.ne.s32.totalorder %s92, %s93
    %p105 = scmp.eq.s32.totalorder %s20, 1
    %p106 = por %p104, %p105
    %p108 = scmp.ne.s32.totalorder %s93, %s107
    %p109 = scmp.eq.s32.totalorder %s20, 0
    %p110 = por %p108, %p109
    %s112 = sadd.s32 %s111, 1
    %p115 = scmp.eq.s32.totalorder %s14, 1
    %p116 = scmp.ne.s32.totalorder %s111, %s113
    %p117 = scmp.eq.s32.totalorder %s14, 0
    %p118 = por %p116, %p117
    %p119 = scmp.ne.s32.totalorder %s111, %s113
    %p120 = scmp.eq.s32.totalorder %s19, 1
    %p121 = por %p119, %p120
    %p122 = scmp.ne.s32.totalorder %s113, %s114
    %p123 = scmp.eq.s32.totalorder %s19, 0
    %p124 = por %p122, %p123
    %p125 = scmp.ne.s32.totalorder %s113, %s114
    %p126 = scmp.eq.s32.totalorder %s20, 1
    %p127 = por %p125, %p126
    %p129 = scmp.ne.s32.totalorder %s114, %s128
    %p130 = scmp.eq.s32.totalorder %s20, 0
    %p131 = por %p129, %p130
    %s133 = sadd.s32 %s132, 1
    %p136 = scmp.eq.s32.totalorder %s14, 1
    %p137 = scmp.ne.s32.totalorder %s132, %s134
    %p138 = scmp.eq.s32.totalorder %s14, 0
    %p139 = por %p137, %p138
    %p140 = scmp.ne.s32.totalorder %s132, %s134
    %p141 = scmp.eq.s32.totalorder %s19, 1
    %p142 = por %p140, %p141
    %p143 = scmp.ne.s32.totalorder %s134, %s135
    %p144 = scmp.eq.s32.totalorder %s19, 0
    %p145 = por %p143, %p144
    %p146 = scmp.ne.s32.totalorder %s134, %s135
    %p147 = scmp.eq.s32.totalorder %s20, 1
    %p148 = por %p146, %p147
    %p150 = scmp.ne.s32.totalorder %s135, %s149
    %p151 = scmp.eq.s32.totalorder %s20, 0
    %p152 = por %p150, %p151
    %s154 = sadd.s32 %s153, 1
    %p157 = scmp.eq.s32.totalorder %s14, 1
    %p158 = scmp.ne.s32.totalorder %s153, %s155
    %p159 = scmp.eq.s32.totalorder %s14, 0
    %p160 = por %p158, %p159
    %p161 = scmp.ne.s32.totalorder %s153, %s155
    %p162 = scmp.eq.s32.totalorder %s19, 1
    %p163 = por %p161, %p162
    %p164 = scmp.ne.s32.totalorder %s155, %s156
    %p165 = scmp.eq.s32.totalorder %s19, 0
    %p166 = por %p164, %p165
    %p167 = scmp.ne.s32.totalorder %s155, %s156
    %p168 = scmp.eq.s32.totalorder %s20, 1
    %p169 = por %p167, %p168
    %p171 = scmp.ne.s32.totalorder %s156, %s170
    %p172 = scmp.eq.s32.totalorder %s20, 0
    %p173 = por %p171, %p172
    %s174 = ssub.s32 %s14, %s21
    %p175 = scmp.eq.s32.totalorder %s174, 0
    %s177 = sadd.s32 %s176, 1
    %s178 = scalar_select %p175, %s176, %s177
    %p181 = pneg %p175
    %p182 = scmp.eq.s32.totalorder %s14, 1
    %p183 = por %p181, %p182
    %p184 = scmp.ne.s32.totalorder %s176, %s179
    %p185 = scmp.eq.s32.totalorder %s14, 0
    %p186 = por %p184, %p185
    %p187 = scmp.ne.s32.totalorder %s176, %s179
    %p188 = scmp.eq.s32.totalorder %s19, 1
    %p189 = por %p187, %p188
    %p190 = scmp.ne.s32.totalorder %s179, %s180
    %p191 = scmp.eq.s32.totalorder %s19, 0
    %p192 = por %p190, %p191
    %p193 = scmp.ne.s32.totalorder %s179, %s180
    %p194 = scmp.eq.s32.totalorder %s20, 1
    %p195 = por %p193, %p194
    %p197 = scmp.ne.s32.totalorder %s180, %s196
    %p198 = scmp.eq.s32.totalorder %s20, 0
    %p199 = por %p197, %p198
    %s200 = ssub.s32 %s14, %s21
    %p201 = scmp.eq.s32.totalorder %s200, 0
    %s203 = sadd.s32 %s202, 1
    %s204 = scalar_select %p201, %s202, %s203
    %p207 = pneg %p201
    %p208 = scmp.eq.s32.totalorder %s14, 1
    %p209 = por %p207, %p208
    %p210 = scmp.ne.s32.totalorder %s202, %s205
    %p211 = scmp.eq.s32.totalorder %s14, 0
    %p212 = por %p210, %p211
    %p213 = scmp.ne.s32.totalorder %s202, %s205
    %p214 = scmp.eq.s32.totalorder %s19, 1
    %p215 = por %p213, %p214
    %p216 = scmp.ne.s32.totalorder %s205, %s206
    %p217 = scmp.eq.s32.totalorder %s19, 0
    %p218 = por %p216, %p217
    %p219 = scmp.ne.s32.totalorder %s205, %s206
    %p220 = scmp.eq.s32.totalorder %s20, 1
    %p221 = por %p219, %p220
    %p223 = scmp.ne.s32.totalorder %s206, %s222
    %p224 = scmp.eq.s32.totalorder %s20, 0
    %p225 = por %p223, %p224
    %p226 = scmp.le.s32.totalorder 1, %s14
    %p227 = scmp.lt.s32.totalorder %s14, 3
    %p228 = pnand %p226, %p227
    %p229 = pneg %p228
    // Predicated region
    $region9: #{mel_performer_forward.11} parent=5 // pred_check
      _
    $region10: #{mel_performer_forward.11} parent=5 // pred_check_branch
      %231 = sbr.rel (%p228) target = $region12
    $region11: #{mel_performer_forward.11} parent=5 // pred_region
      %s232 = ssub.s32 %s14, 1
      // Predicated region
      $region13: #{mel_performer_forward.11} parent=11 // pred_check
        %p233 = pneg %p61
      $region14: #{mel_performer_forward.11} parent=11 // pred_check_branch
        %235 = sbr.rel (%p233) target = $region16
      $region15: #{mel_performer_forward.11} parent=11 // pred_region
        _
      $region16: #{mel_performer_forward.11} parent=11 // pred_fallthru
        _
      // Predicated region
      $region17: #{mel_performer_forward.11} parent=11 // pred_check
        %p236 = pneg %p82
      $region18: #{mel_performer_forward.11} parent=11 // pred_check_branch
        %238 = sbr.rel (%p236) target = $region20
      $region19: #{mel_performer_forward.11} parent=11 // pred_region
        _
      $region20: #{mel_performer_forward.11} parent=11 // pred_fallthru
        _
      // Predicated region
      $region21: #{mel_performer_forward.11} parent=11 // pred_check
        %p239 = pneg %p103
      $region22: #{mel_performer_forward.11} parent=11 // pred_check_branch
        %241 = sbr.rel (%p239) target = $region24
      $region23: #{mel_performer_forward.11} parent=11 // pred_region
        _
      $region24: #{mel_performer_forward.11} parent=11 // pred_fallthru
        _
      // Predicated region
      $region25: #{mel_performer_forward.11} parent=11 // pred_check
        %p242 = pneg %p124
      $region26: #{mel_performer_forward.11} parent=11 // pred_check_branch
        %244 = sbr.rel (%p242) target = $region28
      $region27: #{mel_performer_forward.11} parent=11 // pred_region
        _
      $region28: #{mel_performer_forward.11} parent=11 // pred_fallthru
        _
      // Predicated region
      $region29: #{mel_performer_forward.11} parent=11 // pred_check
        %p245 = pneg %p145
      $region30: #{mel_performer_forward.11} parent=11 // pred_check_branch
        %247 = sbr.rel (%p245) target = $region32
      $region31: #{mel_performer_forward.11} parent=11 // pred_region
        _
      $region32: #{mel_performer_forward.11} parent=11 // pred_fallthru
        _
      // Predicated region
      $region33: #{mel_performer_forward.11} parent=11 // pred_check
        %p248 = pneg %p166
      $region34: #{mel_performer_forward.11} parent=11 // pred_check_branch
        %250 = sbr.rel (%p248) target = $region36
      $region35: #{mel_performer_forward.11} parent=11 // pred_region
        _
      $region36: #{mel_performer_forward.11} parent=11 // pred_fallthru
        _
    $region12: #{mel_performer_forward.11} parent=5 // pred_fallthru
      _
    %p251 = scmp.lt.s32.totalorder %s14, 2
    // Predicated region
    $region37: #{mel_performer_forward.11} parent=5 // pred_check
      %p252 = pneg %p251
    $region38: #{mel_performer_forward.11} parent=5 // pred_check_branch
      %254 = sbr.rel (%p252) target = $region40
    $region39: #{mel_performer_forward.11} parent=5 // pred_region
      // Predicated region
      $region41: #{mel_performer_forward.11} parent=39 // pred_check
        %p255 = pneg %p34
      $region42: #{mel_performer_forward.11} parent=39 // pred_check_branch
        %257 = sbr.rel (%p255) target = $region44
      $region43: #{mel_performer_forward.11} parent=39 // pred_region
        %p258 = scmp.lt.s32.totalorder %s14, 1
        %s259 = scalar_select %p258, %s14, 1
        %s260 = smul.addr %s259, 8
        %s261 = scalar_lea.vmem %s0, %s260
      $region44: #{mel_performer_forward.11} parent=39 // pred_fallthru
        _
      // Predicated region
      $region45: #{mel_performer_forward.11} parent=39 // pred_check
        %p262 = pneg %p186
      $region46: #{mel_performer_forward.11} parent=39 // pred_check_branch
        %264 = sbr.rel (%p262) target = $region48
      $region47: #{mel_performer_forward.11} parent=39 // pred_region
        %p265 = scmp.lt.s32.totalorder %s14, 1
        %s266 = scalar_select %p265, %s14, 1
        %s267 = smul.addr %s266, 8
        %s268 = scalar_lea.vmem %s7, %s267
      $region48: #{mel_performer_forward.11} parent=39 // pred_fallthru
        _
    $region40: #{mel_performer_forward.11} parent=5 // pred_fallthru
      _
    %p269 = scmp.le.s32.totalorder 1, %s14
    %p270 = scmp.lt.s32.totalorder %s14, 3
    %p271 = pnand %p269, %p270
    %p272 = pneg %p271
    // Predicated region
    $region49: #{mel_performer_forward.11} parent=5 // pred_check
      _
    $region50: #{mel_performer_forward.11} parent=5 // pred_check_branch
      %274 = sbr.rel (%p271) target = $region52
    $region51: #{mel_performer_forward.11} parent=5 // pred_region
      %s275 = ssub.s32 %s14, 1
      %p276 = scmp.lt.s32.totalorder %s19, 1
      %s277 = scalar_select %p276, %s19, 1
      %s278 = smul.addr %s277, 8
      %s279 = scalar_lea.vmem %s0, %s278
      %p280 = pneg %p40
      %p281 = pneg %p37
      %p282 = pneg %p61
      %p283 = pneg %p58
      %p284 = pneg %p82
      %p285 = pneg %p79
      %p286 = pneg %p103
      %p287 = pneg %p100
      %p288 = pneg %p124
      %p289 = pneg %p121
      %p290 = pneg %p145
      %p291 = pneg %p142
      %p292 = pneg %p166
      %p293 = pneg %p163
      %p294 = scmp.lt.s32.totalorder %s19, 1
      %s295 = scalar_select %p294, %s19, 1
      %s296 = smul.addr %s295, 8
      %s297 = scalar_lea.vmem %s7, %s296
      %p298 = pneg %p192
      %p299 = pneg %p189
      %p300 = pneg %p218
      %p301 = pneg %p215
      %p302 = scmp.lt.s32.totalorder %s19, 1
      %s303 = scalar_select %p302, %s19, 1
      %s304 = smul.addr %s303, 8
      %s305 = scalar_lea.vmem %s8, %s304
      %p306 = scmp.lt.s32.totalorder %s19, 1
      %s307 = scalar_select %p306, %s19, 1
      %s308 = smul.addr %s307, 8
      %s309 = scalar_lea.vmem %s0, %s308
      %p310 = scmp.lt.s32.totalorder %s19, 1
      %s311 = scalar_select %p310, %s19, 1
      %s312 = smul.addr %s311, 8
      %s313 = scalar_lea.vmem %s7, %s312
      %p314 = scmp.lt.s32.totalorder %s19, 1
      %s315 = scalar_select %p314, %s19, 1
      %s316 = smul.addr %s315, 8
      %s317 = scalar_lea.vmem %s8, %s316
      %v319 = vld [vmem:[%s309] sm:$0xff]
      %vm320 = vcmask 261120
      %v321 = vsel %vm320, %v319, 0.0
      %322 = vadd.xlane.f32.xlu0 %v321
      %v323 = vpop.xlane.xlu0 %322
      %v324 = vrcp.pop 32.0
      %v325 = vmul.f32 32.0, %v324
      %v326 = vsub.f32 1.0, %v325
      %v327 = vmul.f32 %v324, %v326
      %v328 = vadd.f32 %v324, %v327
      %vm329 = vweird.f32 %v324
      %v330 = vsel %vm329, %v324, %v328
      %v331 = vmul.f32 %v323, %v330
      %v332 = vsub.f32 %v319, %v331
      %v333 = vmul.f32 %v332, %v332
      %v334 = vsel %vm320, %v333, 0.0
      %335 = vadd.xlane.f32.xlu0 %v334
      %v336 = vpop.xlane.xlu0 %335
      %v337 = vmul.f32 %v336, %v330
      %v338 = vadd.f32 %v337, 1e-05
      %v339 = vrsqrt.pop %v338
      %v340 = vmul.f32 %v339, %v338
      %v341 = vmul.f32 %v340, %v339
      %v342 = vmul.f32 0.5, %v341
      %v343 = vsub.f32 1.5, %v342
      %v344 = vmul.f32 %v339, %v343
      %vm345 = vweird.f32 %v338
      %vm346 = vweird.f32 %v339
      %vm347 = vmor %vm345, %vm346
      %v348 = vsel %vm347, %v339, %v344
      %v349 = vmul.f32 %v332, %v348
      %v350 = vld [vmem:[%s1] sm:$0x1]
      %v352 = vperm.slane %v350, 0
      %v354 = vmul.f32 %v349, %v352
      %v355 = vld [vmem:[%s2] sm:$0x1]
      %v357 = vperm.slane %v355, 0
      %v359 = vadd.f32 %v354, %v357
      %v360 = vpack.c.bf16 %v359, %v359
      %v361 = vld [vmem:[%s3] sm:$0xff]
      %v362 = vld [vmem:[%s3 + $0x8] sm:$0xff]
      %v363 = vld [vmem:[%s3 + $0x10] sm:$0xff]
      %v364 = vld [vmem:[%s3 + $0x18] sm:$0xff]
      %v365 = vld [vmem:[%s4] sm:$0x3]
      %v367 = vperm.slane %v365, 0
      %v368 = vperm.slane %v365, 1
      %v375 = vunpack.c.l.b16 %v361
      %v376 = vunpack.c.h.b16 %v361
      %v377 = vunpack.c.l.b16 %v362
      %v378 = vunpack.c.h.b16 %v362
      %v379 = vunpack.c.l.b16 %v363
      %v380 = vunpack.c.h.b16 %v363
      %v381 = vunpack.c.l.b16 %v364
      %v382 = vunpack.c.h.b16 %v364
      %v383 = vpack.c.b16 %v377, %v375
      %v384 = vpack.c.b16 %v378, %v376
      %v385 = vpack.c.b16 %v381, %v379
      %v386 = vpack.c.b16 %v382, %v380
      %v392 = vsel %vm320, %v360, 0
      %394 = vmatpush.bf16.msra.mxu0 0
      %395 = vmatpush.bf16.msra.mxu0 0
      %396 = vmatpush.bf16.msra.mxu0 0
      %397 = vmatpush.bf16.msra.mxu0 0
      %398 = vmatpush.bf16.msra.mxu0 0
      %399 = vmatpush.bf16.msra.mxu0 0
      %400 = vmatpush.bf16.msra.mxu0 %v385
      %401 = vmatpush.bf16.msra.mxu0 %v383
      %402 = vmatmul.bf16.gmra.mxu0 %v392
      %v403 = vpop.f32.mrf.mxu0
      %v404 = vadd.f32 %v367, %v403
      %v405 = vpop.f32.mrf.mxu0
      %406 = vdwg.mxu0
      %407 = vmatpush.bf16.msra.mxu0 0
      %408 = vmatpush.bf16.msra.mxu0 0
      %409 = vmatpush.bf16.msra.mxu0 0
      %410 = vmatpush.bf16.msra.mxu0 0
      %411 = vmatpush.bf16.msra.mxu0 0
      %412 = vmatpush.bf16.msra.mxu0 0
      %413 = vmatpush.bf16.msra.mxu0 %v386
      %414 = vmatpush.bf16.msra.mxu0 %v384
      %415 = vmatmul.bf16.gmra.mxu0 %v392
      %v416 = vpop.f32.mrf.mxu0
      %v417 = vadd.f32 %v368, %v416
      %v418 = vpop.f32.mrf.mxu0
      %419 = vdwg.mxu0
      %v420 = vmul.f32 %v404, %v404
      %v421 = vmul.f32 %v404, %v420
      %v422 = vmul.f32 %v421, 0.044715
      %v423 = vadd.f32 %v404, %v422
      %v424 = vmul.f32 %v423, 0.7978846
      %v425 = vtanh.pop %v424
      %v426 = vadd.f32 %v425, 1.0
      %v427 = vmul.f32 %v426, 0.5
      %v428 = vmul.f32 %v404, %v427
      %v429 = vmul.f32 %v428, %v417
      %v430 = vpack.c.bf16 %v429, %v429
      %v431 = vld [vmem:[%s5] sm:$0xf]
      %v432 = vld [vmem:[%s5 + $0x4] sm:$0xf]
      %v433 = vld [vmem:[%s5 + $0x8] sm:$0xf]
      %v434 = vld [vmem:[%s5 + $0xc] sm:$0xf]
      %v435 = vld [vmem:[%s5 + $0x10] sm:$0xf]
      %v436 = vld [vmem:[%s5 + $0x14] sm:$0xf]
      %v437 = vld [vmem:[%s5 + $0x18] sm:$0xf]
      %v438 = vld [vmem:[%s5 + $0x1c] sm:$0xf]
      %v439 = vld [vmem:[%s5 + $0x20] sm:$0xf]
      %v440 = vld [vmem:[%s5 + $0x24] sm:$0xf]
      %v441 = vld [vmem:[%s5 + $0x28] sm:$0xf]
      %v442 = vld [vmem:[%s5 + $0x2c] sm:$0xf]
      %v443 = vld [vmem:[%s5 + $0x30] sm:$0xf]
      %v444 = vld [vmem:[%s5 + $0x34] sm:$0xf]
      %v445 = vld [vmem:[%s5 + $0x38] sm:$0xf]
      %v446 = vld [vmem:[%s5 + $0x3c] sm:$0xf]
      %v447 = vld [vmem:[%s6] sm:$0x1]
      %v449 = vperm.slane %v447, 0
      %v467 = vunpack.c.l.b16 %v431
      %v468 = vunpack.c.l.b16 %v432
      %v469 = vunpack.c.l.b16 %v433
      %v470 = vunpack.c.l.b16 %v434
      %v471 = vunpack.c.l.b16 %v435
      %v472 = vunpack.c.l.b16 %v436
      %v473 = vunpack.c.l.b16 %v437
      %v474 = vunpack.c.l.b16 %v438
      %v475 = vunpack.c.l.b16 %v439
      %v476 = vunpack.c.l.b16 %v440
      %v477 = vunpack.c.l.b16 %v441
      %v478 = vunpack.c.l.b16 %v442
      %v479 = vunpack.c.l.b16 %v443
      %v480 = vunpack.c.l.b16 %v444
      %v481 = vunpack.c.l.b16 %v445
      %v482 = vunpack.c.l.b16 %v446
      %v483 = vpack.c.b16 %v468, %v467
      %v484 = vpack.c.b16 %v470, %v469
      %v485 = vpack.c.b16 %v472, %v471
      %v486 = vpack.c.b16 %v474, %v473
      %v487 = vpack.c.b16 %v476, %v475
      %v488 = vpack.c.b16 %v478, %v477
      %v489 = vpack.c.b16 %v480, %v479
      %v490 = vpack.c.b16 %v482, %v481
      %499 = vmatpush.bf16.msra.mxu0 %v490
      %500 = vmatpush.bf16.msra.mxu0 %v489
      %501 = vmatpush.bf16.msra.mxu0 %v488
      %502 = vmatpush.bf16.msra.mxu0 %v487
      %503 = vmatpush.bf16.msra.mxu0 %v486
      %504 = vmatpush.bf16.msra.mxu0 %v485
      %505 = vmatpush.bf16.msra.mxu0 %v484
      %506 = vmatpush.bf16.msra.mxu0 %v483
      %507 = vmatmul.bf16.gmra.mxu0 %v430
      %v508 = vpop.f32.mrf.mxu0
      %v509 = vadd.f32 %v449, %v508
      %v510 = vpop.f32.mrf.mxu0
      %511 = vdwg.mxu0
      %v512 = vld [vmem:[%s313] sm:$0xff]
      %v513 = vadd.f32 %v509, %v512
      %514 = vst.msk [vmem:[%s317] sm:$0xff] %vm320, %v513
      %p515 = scmp.lt.s32.totalorder %s19, 1
      %s516 = scalar_select %p515, %s19, 1
      %s517 = smul.addr %s516, 8
      %s518 = scalar_lea.vmem %s8, %s517
      // Predicated region
      $region53: #{mel_performer_forward.11} parent=51 // pred_check
        %p519 = pneg %p215
      $region54: #{mel_performer_forward.11} parent=51 // pred_check_branch
        %521 = sbr.rel (%p519) target = $region56
      $region55: #{mel_performer_forward.11} parent=51 // pred_region
        _
      $region56: #{mel_performer_forward.11} parent=51 // pred_fallthru
        _
    $region52: #{mel_performer_forward.11} parent=5 // pred_fallthru
      _
    %p522 = scmp.le.s32.totalorder 2, %s14
    // Predicated region
    $region57: #{mel_performer_forward.11} parent=5 // pred_check
      %p523 = pneg %p522
    $region58: #{mel_performer_forward.11} parent=5 // pred_check_branch
      %525 = sbr.rel (%p523) target = $region60
    $region59: #{mel_performer_forward.11} parent=5 // pred_region
      %s526 = ssub.s32 %s14, 2
      // Predicated region
      $region61: #{mel_performer_forward.11} parent=59 // pred_check
        %p527 = pneg %p221
      $region62: #{mel_performer_forward.11} parent=59 // pred_check_branch
        %529 = sbr.rel (%p527) target = $region64
      $region63: #{mel_performer_forward.11} parent=59 // pred_region
        %p530 = scmp.lt.s32.totalorder %s20, 1
        %s531 = scalar_select %p530, %s20, 1
        %s532 = smul.addr %s531, 8
        %s533 = scalar_lea.vmem %s8, %s532
      $region64: #{mel_performer_forward.11} parent=59 // pred_fallthru
        _
    $region60: #{mel_performer_forward.11} parent=5 // pred_fallthru
      _
  $region6: #{mel_performer_forward.11} parent=0 // loop_footer
    %s18 = sadd.s32 1, %s14
  $region7: #{mel_performer_forward.11} parent=0 // loop_footer_branch
    %13 = sbr.rel target = $region3
  $region8: #{mel_performer_forward.11} parent=0 // loop_exit
    _

// kernel: mel_performer_forward.15
$region0: #{mel_performer_forward.15}
  #allocation0 [shape = 'u32[]', space=smem, size = 0x4, offset = 0x4, fixed_abs, tag = 'smem constant byte address 0x4 - core index']
  #allocation1 [shape = 'u32[72,128]{1,0:T(1,128)}', space=vmem, size = 0x9000, scoped, tag = 'internal scratch']
  #allocation2 [shape = 'f32[1,1]{1,0:T(1,128)S(1)}', space=vmem, size = 0x200, scoped, tag = 'scoped memory for mel_performer_forward.15']
  %s0 = inlined_call_operand.vmem [shape: f32[16,32], index: 0, kind: input, shape index: {}]
  %s1 = inlined_call_operand.vmem [shape: f32[16,32], index: 1, kind: input, shape index: {}]
  %s2 = inlined_call_operand.vmem [shape: bf16[32,16], index: 2, kind: input, shape index: {}]
  %s3 = inlined_call_operand.vmem [shape: f32[1,16], index: 3, kind: input, shape index: {}]
  %s4 = inlined_call_operand.vmem [shape: f32[1,16], index: 4, kind: input, shape index: {}]
  %s5 = inlined_call_operand.vmem [shape: f32[1,16], index: 5, kind: input, shape index: {}]
  %s6 = inlined_call_operand.vmem [shape: bf16[16,1], index: 6, kind: input, shape index: {}]
  %s7 = inlined_call_operand.<no memory space> [shape: f32[1,1], index: 7, kind: input, shape index: {}]
  %s8 = inlined_call_operand.vmem [shape: f32[16,1], index: 8, kind: output, shape index: {}]
  %s9 = sld [smem:[#allocation0]]
  $region65: #{mel_performer_forward.15} parent=0
    _
  %s11 = ssub.s32 1, %s9
  %s12 = scalar_select 0, %s11, %s9
  %v13 = vstv %s7
  %14 = vst [vmem:[#allocation2] sm:$0x1] %v13
  loop: start=0, step=1, limit=4
  $region2: #{mel_performer_forward.15} parent=0 // loop_pre_header
    _
  $region3: #{mel_performer_forward.15} parent=0 // loop_header
    %s16 = sphi 0, %s20
    %p17 = scmp.ge.s32.totalorder %s16, 4
    %s26 = sphi 0, %s28
    %s29 = sphi 0, %s26
    %s30 = sphi 0, %s29
    %s46 = sphi 0, %s30
    %s52 = sphi 0, %s54
    %s55 = sphi 0, %s52
    %s56 = sphi 0, %s55
    %s72 = sphi 0, %s56
    %s76 = sphi 0, %s76
    %s78 = sphi 0, %s76
    %s79 = sphi 0, %s78
    %s93 = sphi 0, %s79
    %s97 = sphi 0, %s97
    %s99 = sphi 0, %s97
    %s100 = sphi 0, %s99
    %s114 = sphi 0, %s100
    %s118 = sphi 0, %s118
    %s120 = sphi 0, %s118
    %s121 = sphi 0, %s120
    %s135 = sphi 0, %s121
    %s139 = sphi 0, %s139
    %s141 = sphi 0, %s139
    %s142 = sphi 0, %s141
    %s156 = sphi 0, %s142
    %s160 = sphi 0, %s160
    %s162 = sphi 0, %s160
    %s163 = sphi 0, %s162
    %s177 = sphi 0, %s163
    %s181 = sphi 0, %s181
    %s183 = sphi 0, %s181
    %s184 = sphi 0, %s183
    %s198 = sphi 0, %s184
    %s204 = sphi 0, %s206
    %s207 = sphi 0, %s204
    %s208 = sphi 0, %s207
    %s224 = sphi 0, %s208
  $region4: #{mel_performer_forward.15} parent=0 // loop_header_branch
    %19 = sbr.rel (%p17) target = $region8
  $region5: #{mel_performer_forward.15} parent=0 // loop_body
    %s21 = ssub.s32 %s16, 1
    %s22 = ssub.s32 %s16, 2
    %s23 = sadd.s32 %s16, 1
    %s24 = ssub.s32 %s16, %s23
    %p25 = scmp.eq.s32.totalorder %s24, 0
    %s27 = sadd.s32 %s26, 1
    %s28 = scalar_select %p25, %s26, %s27
    %p31 = pneg %p25
    %p32 = scmp.eq.s32.totalorder %s16, 1
    %p33 = por %p31, %p32
    %p34 = scmp.ne.s32.totalorder %s26, %s29
    %p35 = scmp.eq.s32.totalorder %s16, 0
    %p36 = por %p34, %p35
    %p37 = scmp.ne.s32.totalorder %s26, %s29
    %p38 = scmp.eq.s32.totalorder %s21, 1
    %p39 = por %p37, %p38
    %p40 = scmp.ne.s32.totalorder %s29, %s30
    %p41 = scmp.eq.s32.totalorder %s21, 0
    %p42 = por %p40, %p41
    %p43 = scmp.ne.s32.totalorder %s29, %s30
    %p44 = scmp.eq.s32.totalorder %s22, 1
    %p45 = por %p43, %p44
    %p47 = scmp.ne.s32.totalorder %s30, %s46
    %p48 = scmp.eq.s32.totalorder %s22, 0
    %p49 = por %p47, %p48
    %s50 = ssub.s32 %s16, %s23
    %p51 = scmp.eq.s32.totalorder %s50, 0
    %s53 = sadd.s32 %s52, 1
    %s54 = scalar_select %p51, %s52, %s53
    %p57 = pneg %p51
    %p58 = scmp.eq.s32.totalorder %s16, 1
    %p59 = por %p57, %p58
    %p60 = scmp.ne.s32.totalorder %s52, %s55
    %p61 = scmp.eq.s32.totalorder %s16, 0
    %p62 = por %p60, %p61
    %p63 = scmp.ne.s32.totalorder %s52, %s55
    %p64 = scmp.eq.s32.totalorder %s21, 1
    %p65 = por %p63, %p64
    %p66 = scmp.ne.s32.totalorder %s55, %s56
    %p67 = scmp.eq.s32.totalorder %s21, 0
    %p68 = por %p66, %p67
    %p69 = scmp.ne.s32.totalorder %s55, %s56
    %p70 = scmp.eq.s32.totalorder %s22, 1
    %p71 = por %p69, %p70
    %p73 = scmp.ne.s32.totalorder %s56, %s72
    %p74 = scmp.eq.s32.totalorder %s22, 0
    %p75 = por %p73, %p74
    %s77 = sadd.s32 %s76, 1
    %p80 = scmp.eq.s32.totalorder %s16, 1
    %p81 = scmp.ne.s32.totalorder %s76, %s78
    %p82 = scmp.eq.s32.totalorder %s16, 0
    %p83 = por %p81, %p82
    %p84 = scmp.ne.s32.totalorder %s76, %s78
    %p85 = scmp.eq.s32.totalorder %s21, 1
    %p86 = por %p84, %p85
    %p87 = scmp.ne.s32.totalorder %s78, %s79
    %p88 = scmp.eq.s32.totalorder %s21, 0
    %p89 = por %p87, %p88
    %p90 = scmp.ne.s32.totalorder %s78, %s79
    %p91 = scmp.eq.s32.totalorder %s22, 1
    %p92 = por %p90, %p91
    %p94 = scmp.ne.s32.totalorder %s79, %s93
    %p95 = scmp.eq.s32.totalorder %s22, 0
    %p96 = por %p94, %p95
    %s98 = sadd.s32 %s97, 1
    %p101 = scmp.eq.s32.totalorder %s16, 1
    %p102 = scmp.ne.s32.totalorder %s97, %s99
    %p103 = scmp.eq.s32.totalorder %s16, 0
    %p104 = por %p102, %p103
    %p105 = scmp.ne.s32.totalorder %s97, %s99
    %p106 = scmp.eq.s32.totalorder %s21, 1
    %p107 = por %p105, %p106
    %p108 = scmp.ne.s32.totalorder %s99, %s100
    %p109 = scmp.eq.s32.totalorder %s21, 0
    %p110 = por %p108, %p109
    %p111 = scmp.ne.s32.totalorder %s99, %s100
    %p112 = scmp.eq.s32.totalorder %s22, 1
    %p113 = por %p111, %p112
    %p115 = scmp.ne.s32.totalorder %s100, %s114
    %p116 = scmp.eq.s32.totalorder %s22, 0
    %p117 = por %p115, %p116
    %s119 = sadd.s32 %s118, 1
    %p122 = scmp.eq.s32.totalorder %s16, 1
    %p123 = scmp.ne.s32.totalorder %s118, %s120
    %p124 = scmp.eq.s32.totalorder %s16, 0
    %p125 = por %p123, %p124
    %p126 = scmp.ne.s32.totalorder %s118, %s120
    %p127 = scmp.eq.s32.totalorder %s21, 1
    %p128 = por %p126, %p127
    %p129 = scmp.ne.s32.totalorder %s120, %s121
    %p130 = scmp.eq.s32.totalorder %s21, 0
    %p131 = por %p129, %p130
    %p132 = scmp.ne.s32.totalorder %s120, %s121
    %p133 = scmp.eq.s32.totalorder %s22, 1
    %p134 = por %p132, %p133
    %p136 = scmp.ne.s32.totalorder %s121, %s135
    %p137 = scmp.eq.s32.totalorder %s22, 0
    %p138 = por %p136, %p137
    %s140 = sadd.s32 %s139, 1
    %p143 = scmp.eq.s32.totalorder %s16, 1
    %p144 = scmp.ne.s32.totalorder %s139, %s141
    %p145 = scmp.eq.s32.totalorder %s16, 0
    %p146 = por %p144, %p145
    %p147 = scmp.ne.s32.totalorder %s139, %s141
    %p148 = scmp.eq.s32.totalorder %s21, 1
    %p149 = por %p147, %p148
    %p150 = scmp.ne.s32.totalorder %s141, %s142
    %p151 = scmp.eq.s32.totalorder %s21, 0
    %p152 = por %p150, %p151
    %p153 = scmp.ne.s32.totalorder %s141, %s142
    %p154 = scmp.eq.s32.totalorder %s22, 1
    %p155 = por %p153, %p154
    %p157 = scmp.ne.s32.totalorder %s142, %s156
    %p158 = scmp.eq.s32.totalorder %s22, 0
    %p159 = por %p157, %p158
    %s161 = sadd.s32 %s160, 1
    %p164 = scmp.eq.s32.totalorder %s16, 1
    %p165 = scmp.ne.s32.totalorder %s160, %s162
    %p166 = scmp.eq.s32.totalorder %s16, 0
    %p167 = por %p165, %p166
    %p168 = scmp.ne.s32.totalorder %s160, %s162
    %p169 = scmp.eq.s32.totalorder %s21, 1
    %p170 = por %p168, %p169
    %p171 = scmp.ne.s32.totalorder %s162, %s163
    %p172 = scmp.eq.s32.totalorder %s21, 0
    %p173 = por %p171, %p172
    %p174 = scmp.ne.s32.totalorder %s162, %s163
    %p175 = scmp.eq.s32.totalorder %s22, 1
    %p176 = por %p174, %p175
    %p178 = scmp.ne.s32.totalorder %s163, %s177
    %p179 = scmp.eq.s32.totalorder %s22, 0
    %p180 = por %p178, %p179
    %s182 = sadd.s32 %s181, 1
    %p185 = scmp.eq.s32.totalorder %s16, 1
    %p186 = scmp.ne.s32.totalorder %s181, %s183
    %p187 = scmp.eq.s32.totalorder %s16, 0
    %p188 = por %p186, %p187
    %p189 = scmp.ne.s32.totalorder %s181, %s183
    %p190 = scmp.eq.s32.totalorder %s21, 1
    %p191 = por %p189, %p190
    %p192 = scmp.ne.s32.totalorder %s183, %s184
    %p193 = scmp.eq.s32.totalorder %s21, 0
    %p194 = por %p192, %p193
    %p195 = scmp.ne.s32.totalorder %s183, %s184
    %p196 = scmp.eq.s32.totalorder %s22, 1
    %p197 = por %p195, %p196
    %p199 = scmp.ne.s32.totalorder %s184, %s198
    %p200 = scmp.eq.s32.totalorder %s22, 0
    %p201 = por %p199, %p200
    %s202 = ssub.s32 %s16, %s23
    %p203 = scmp.eq.s32.totalorder %s202, 0
    %s205 = sadd.s32 %s204, 1
    %s206 = scalar_select %p203, %s204, %s205
    %p209 = pneg %p203
    %p210 = scmp.eq.s32.totalorder %s16, 1
    %p211 = por %p209, %p210
    %p212 = scmp.ne.s32.totalorder %s204, %s207
    %p213 = scmp.eq.s32.totalorder %s16, 0
    %p214 = por %p212, %p213
    %p215 = scmp.ne.s32.totalorder %s204, %s207
    %p216 = scmp.eq.s32.totalorder %s21, 1
    %p217 = por %p215, %p216
    %p218 = scmp.ne.s32.totalorder %s207, %s208
    %p219 = scmp.eq.s32.totalorder %s21, 0
    %p220 = por %p218, %p219
    %p221 = scmp.ne.s32.totalorder %s207, %s208
    %p222 = scmp.eq.s32.totalorder %s22, 1
    %p223 = por %p221, %p222
    %p225 = scmp.ne.s32.totalorder %s208, %s224
    %p226 = scmp.eq.s32.totalorder %s22, 0
    %p227 = por %p225, %p226
    %p228 = scmp.le.s32.totalorder 1, %s16
    %p229 = scmp.lt.s32.totalorder %s16, 3
    %p230 = pnand %p228, %p229
    %p231 = pneg %p230
    // Predicated region
    $region9: #{mel_performer_forward.15} parent=5 // pred_check
      _
    $region10: #{mel_performer_forward.15} parent=5 // pred_check_branch
      %233 = sbr.rel (%p230) target = $region12
    $region11: #{mel_performer_forward.15} parent=5 // pred_region
      %s234 = ssub.s32 %s16, 1
      // Predicated region
      $region13: #{mel_performer_forward.15} parent=11 // pred_check
        %p235 = pneg %p89
      $region14: #{mel_performer_forward.15} parent=11 // pred_check_branch
        %237 = sbr.rel (%p235) target = $region16
      $region15: #{mel_performer_forward.15} parent=11 // pred_region
        _
      $region16: #{mel_performer_forward.15} parent=11 // pred_fallthru
        _
      // Predicated region
      $region17: #{mel_performer_forward.15} parent=11 // pred_check
        %p238 = pneg %p110
      $region18: #{mel_performer_forward.15} parent=11 // pred_check_branch
        %240 = sbr.rel (%p238) target = $region20
      $region19: #{mel_performer_forward.15} parent=11 // pred_region
        _
      $region20: #{mel_performer_forward.15} parent=11 // pred_fallthru
        _
      // Predicated region
      $region21: #{mel_performer_forward.15} parent=11 // pred_check
        %p241 = pneg %p131
      $region22: #{mel_performer_forward.15} parent=11 // pred_check_branch
        %243 = sbr.rel (%p241) target = $region24
      $region23: #{mel_performer_forward.15} parent=11 // pred_region
        _
      $region24: #{mel_performer_forward.15} parent=11 // pred_fallthru
        _
      // Predicated region
      $region25: #{mel_performer_forward.15} parent=11 // pred_check
        %p244 = pneg %p152
      $region26: #{mel_performer_forward.15} parent=11 // pred_check_branch
        %246 = sbr.rel (%p244) target = $region28
      $region27: #{mel_performer_forward.15} parent=11 // pred_region
        _
      $region28: #{mel_performer_forward.15} parent=11 // pred_fallthru
        _
      // Predicated region
      $region29: #{mel_performer_forward.15} parent=11 // pred_check
        %p247 = pneg %p173
      $region30: #{mel_performer_forward.15} parent=11 // pred_check_branch
        %249 = sbr.rel (%p247) target = $region32
      $region31: #{mel_performer_forward.15} parent=11 // pred_region
        _
      $region32: #{mel_performer_forward.15} parent=11 // pred_fallthru
        _
      // Predicated region
      $region33: #{mel_performer_forward.15} parent=11 // pred_check
        %p250 = pneg %p194
      $region34: #{mel_performer_forward.15} parent=11 // pred_check_branch
        %252 = sbr.rel (%p250) target = $region36
      $region35: #{mel_performer_forward.15} parent=11 // pred_region
        _
      $region36: #{mel_performer_forward.15} parent=11 // pred_fallthru
        _
    $region12: #{mel_performer_forward.15} parent=5 // pred_fallthru
      _
    %p253 = scmp.lt.s32.totalorder %s16, 2
    // Predicated region
    $region37: #{mel_performer_forward.15} parent=5 // pred_check
      %p254 = pneg %p253
    $region38: #{mel_performer_forward.15} parent=5 // pred_check_branch
      %256 = sbr.rel (%p254) target = $region40
    $region39: #{mel_performer_forward.15} parent=5 // pred_region
      // Predicated region
      $region41: #{mel_performer_forward.15} parent=39 // pred_check
        %p257 = pneg %p36
      $region42: #{mel_performer_forward.15} parent=39 // pred_check_branch
        %259 = sbr.rel (%p257) target = $region44
      $region43: #{mel_performer_forward.15} parent=39 // pred_region
        %p260 = scmp.lt.s32.totalorder %s16, 1
        %s261 = scalar_select %p260, %s16, 1
        %s262 = smul.addr %s261, 8
        %s263 = scalar_lea.vmem %s0, %s262
      $region44: #{mel_performer_forward.15} parent=39 // pred_fallthru
        _
      // Predicated region
      $region45: #{mel_performer_forward.15} parent=39 // pred_check
        %p264 = pneg %p62
      $region46: #{mel_performer_forward.15} parent=39 // pred_check_branch
        %266 = sbr.rel (%p264) target = $region48
      $region47: #{mel_performer_forward.15} parent=39 // pred_region
        %p267 = scmp.lt.s32.totalorder %s16, 1
        %s268 = scalar_select %p267, %s16, 1
        %s269 = smul.addr %s268, 8
        %s270 = scalar_lea.vmem %s1, %s269
      $region48: #{mel_performer_forward.15} parent=39 // pred_fallthru
        _
    $region40: #{mel_performer_forward.15} parent=5 // pred_fallthru
      _
    %p271 = scmp.le.s32.totalorder 1, %s16
    %p272 = scmp.lt.s32.totalorder %s16, 3
    %p273 = pnand %p271, %p272
    %p274 = pneg %p273
    // Predicated region
    $region49: #{mel_performer_forward.15} parent=5 // pred_check
      _
    $region50: #{mel_performer_forward.15} parent=5 // pred_check_branch
      %276 = sbr.rel (%p273) target = $region52
    $region51: #{mel_performer_forward.15} parent=5 // pred_region
      %s277 = ssub.s32 %s16, 1
      %p278 = scmp.lt.s32.totalorder %s21, 1
      %s279 = scalar_select %p278, %s21, 1
      %s280 = smul.addr %s279, 8
      %s281 = scalar_lea.vmem %s0, %s280
      %p282 = pneg %p42
      %p283 = pneg %p39
      %p284 = scmp.lt.s32.totalorder %s21, 1
      %s285 = scalar_select %p284, %s21, 1
      %s286 = smul.addr %s285, 8
      %s287 = scalar_lea.vmem %s1, %s286
      %p288 = pneg %p68
      %p289 = pneg %p65
      %p290 = pneg %p89
      %p291 = pneg %p86
      %p292 = pneg %p110
      %p293 = pneg %p107
      %p294 = pneg %p131
      %p295 = pneg %p128
      %p296 = pneg %p152
      %p297 = pneg %p149
      %p298 = pneg %p173
      %p299 = pneg %p170
      %p300 = pneg %p194
      %p301 = pneg %p191
      %p302 = pneg %p220
      %p303 = pneg %p217
      %p304 = scmp.lt.s32.totalorder %s21, 1
      %s305 = scalar_select %p304, %s21, 1
      %s306 = smul.addr %s305, 8
      %s307 = scalar_lea.vmem %s8, %s306
      %p308 = scmp.lt.s32.totalorder %s21, 1
      %s309 = scalar_select %p308, %s21, 1
      %s310 = smul.addr %s309, 8
      %s311 = scalar_lea.vmem %s0, %s310
      %p312 = scmp.lt.s32.totalorder %s21, 1
      %s313 = scalar_select %p312, %s21, 1
      %s314 = smul.addr %s313, 8
      %s315 = scalar_lea.vmem %s1, %s314
      %p316 = scmp.lt.s32.totalorder %s21, 1
      %s317 = scalar_select %p316, %s21, 1
      %s318 = smul.addr %s317, 8
      %s319 = scalar_lea.vmem %s8, %s318
      %v321 = vld [vmem:[%s311] sm:$0xff]
      %v322 = vld [vmem:[%s315] sm:$0xff]
      %v323 = vadd.f32 %v321, %v322
      %v324 = vpack.c.bf16 %v323, %v323
      %v325 = vld [vmem:[%s2] sm:$0xf]
      %v326 = vld [vmem:[%s2 + $0x4] sm:$0xf]
      %v327 = vld [vmem:[%s2 + $0x8] sm:$0xf]
      %v328 = vld [vmem:[%s2 + $0xc] sm:$0xf]
      %v329 = vld [vmem:[%s3] sm:$0x1]
      %v331 = vperm.slane %v329, 0
      %v337 = vunpack.c.l.b16 %v325
      %v338 = vunpack.c.l.b16 %v326
      %v339 = vunpack.c.l.b16 %v327
      %v340 = vunpack.c.l.b16 %v328
      %v341 = vpack.c.b16 %v338, %v337
      %v342 = vpack.c.b16 %v340, %v339
      %vm345 = vcmask 261120
      %v347 = vsel %vm345, %v324, 0
      %349 = vmatpush.bf16.msra.mxu0 0
      %350 = vmatpush.bf16.msra.mxu0 0
      %351 = vmatpush.bf16.msra.mxu0 0
      %352 = vmatpush.bf16.msra.mxu0 0
      %353 = vmatpush.bf16.msra.mxu0 0
      %354 = vmatpush.bf16.msra.mxu0 0
      %355 = vmatpush.bf16.msra.mxu0 %v342
      %356 = vmatpush.bf16.msra.mxu0 %v341
      %357 = vmatmul.bf16.gmra.mxu0 %v347
      %v358 = vpop.f32.mrf.mxu0
      %v359 = vadd.f32 %v331, %v358
      %v360 = vpop.f32.mrf.mxu0
      %361 = vdwg.mxu0
      %vm362 = vcmask 130048
      %v363 = vsel %vm362, %v359, 0.0
      %364 = vadd.xlane.f32.xlu0 %v363
      %v365 = vpop.xlane.xlu0 %364
      %v366 = vrcp.pop 16.0
      %v367 = vmul.f32 16.0, %v366
      %v368 = vsub.f32 1.0, %v367
      %v369 = vmul.f32 %v366, %v368
      %v370 = vadd.f32 %v366, %v369
      %vm371 = vweird.f32 %v366
      %v372 = vsel %vm371, %v366, %v370
      %v373 = vmul.f32 %v365, %v372
      %v374 = vsub.f32 %v359, %v373
      %v375 = vmul.f32 %v374, %v374
      %v376 = vsel %vm362, %v375, 0.0
      %377 = vadd.xlane.f32.xlu0 %v376
      %v378 = vpop.xlane.xlu0 %377
      %v379 = vmul.f32 %v378, %v372
      %v380 = vadd.f32 %v379, 1e-05
      %v381 = vrsqrt.pop %v380
      %v382 = vmul.f32 %v381, %v380
      %v383 = vmul.f32 %v382, %v381
      %v384 = vmul.f32 0.5, %v383
      %v385 = vsub.f32 1.5, %v384
      %v386 = vmul.f32 %v381, %v385
      %vm387 = vweird.f32 %v380
      %vm388 = vweird.f32 %v381
      %vm389 = vmor %vm387, %vm388
      %v390 = vsel %vm389, %v381, %v386
      %v391 = vmul.f32 %v374, %v390
      %v392 = vld [vmem:[%s4] sm:$0x1]
      %v394 = vperm.slane %v392, 0
      %v396 = vmul.f32 %v391, %v394
      %v397 = vld [vmem:[%s5] sm:$0x1]
      %v399 = vperm.slane %v397, 0
      %v401 = vadd.f32 %v396, %v399
      %v402 = vmax.f32 %v401, 0.0
      %v403 = vpack.c.bf16 %v402, %v402
      %v404 = vld [vmem:[%s6] sm:$0xf]
      %v405 = vld [vmem:[%s6 + $0x4] sm:$0xf]
      %v406 = vld [vmem:[#allocation2] sm:$0x1]
      %v408 = vperm.slane %v406, 0
      %v412 = vunpack.c.l.b16 %v404
      %v413 = vunpack.c.l.b16 %v405
      %v414 = vpack.c.b16 %v413, %v412
      %v417 = vsel %vm362, %v403, 0
      %419 = vmatpush.bf16.msra.mxu0 0
      %420 = vmatpush.bf16.msra.mxu0 0
      %421 = vmatpush.bf16.msra.mxu0 0
      %422 = vmatpush.bf16.msra.mxu0 0
      %423 = vmatpush.bf16.msra.mxu0 0
      %424 = vmatpush.bf16.msra.mxu0 0
      %425 = vmatpush.bf16.msra.mxu0 0
      %426 = vmatpush.bf16.msra.mxu0 %v414
      %427 = vmatmul.bf16.gmra.mxu0 %v417
      %v428 = vpop.f32.mrf.mxu0
      %v429 = vadd.f32 %v408, %v428
      %v430 = vpop.f32.mrf.mxu0
      %431 = vdwg.mxu0
      %vm432 = vcmask 7168
      %433 = vst.msk [vmem:[%s319] sm:$0xff] %vm432, %v429
      %p434 = scmp.lt.s32.totalorder %s21, 1
      %s435 = scalar_select %p434, %s21, 1
      %s436 = smul.addr %s435, 8
      %s437 = scalar_lea.vmem %s8, %s436
      // Predicated region
      $region53: #{mel_performer_forward.15} parent=51 // pred_check
        %p438 = pneg %p217
      $region54: #{mel_performer_forward.15} parent=51 // pred_check_branch
        %440 = sbr.rel (%p438) target = $region56
      $region55: #{mel_performer_forward.15} parent=51 // pred_region
        _
      $region56: #{mel_performer_forward.15} parent=51 // pred_fallthru
        _
    $region52: #{mel_performer_forward.15} parent=5 // pred_fallthru
      _
    %p441 = scmp.le.s32.totalorder 2, %s16
    // Predicated region
    $region57: #{mel_performer_forward.15} parent=5 // pred_check
      %p442 = pneg %p441
    $region58: #{mel_performer_forward.15} parent=5 // pred_check_branch
      %444 = sbr.rel (%p442) target = $region60
    $region59: #{mel_performer_forward.15} parent=5 // pred_region
      %s445 = ssub.s32 %s16, 2
      // Predicated region
      $region61: #{mel_performer_forward.15} parent=59 // pred_check
        %p446 = pneg %p223
      $region62: #{mel_performer_forward.15} parent=59 // pred_check_branch
        %448 = sbr.rel (%p446) target = $region64
      $region63: #{mel_performer_forward.15} parent=59 // pred_region
        %p449 = scmp.lt.s32.totalorder %s22, 1
        %s450 = scalar_select %p449, %s22, 1
        %s451 = smul.addr %s450, 8
        %s452 = scalar_lea.vmem %s8, %s451
      $region64: #{mel_performer_forward.15} parent=59 // pred_fallthru
        _
    $region60: #{mel_performer_forward.15} parent=5 // pred_fallthru
      _
  $region6: #{mel_performer_forward.15} parent=0 // loop_footer
    %s20 = sadd.s32 1, %s16
  $region7: #{mel_performer_forward.15} parent=0 // loop_footer_branch
    %15 = sbr.rel target = $region3
  $region8: #{mel_performer_forward.15} parent=0 // loop_exit
    _

// kernel: mel_performer_forward.8
$region0: #{mel_performer_forward.8}
  #allocation0 [shape = 'u32[]', space=smem, size = 0x4, offset = 0x4, fixed_abs, tag = 'smem constant byte address 0x4 - core index']
  #allocation1 [shape = 'u32[72,128]{1,0:T(1,128)}', space=vmem, size = 0x9000, scoped, tag = 'internal scratch']
  %s0 = inlined_call_operand.vmem [shape: f32[2,1,12,18], index: 0, kind: input, shape index: {}]
  %s1 = inlined_call_operand.vmem [shape: f32[9,16], index: 1, kind: input, shape index: {}]
  %s2 = inlined_call_operand.vmem [shape: f32[1,16], index: 2, kind: input, shape index: {}]
  %s3 = inlined_call_operand.vmem [shape: f32[9,16], index: 3, kind: input, shape index: {}]
  %s4 = inlined_call_operand.vmem [shape: f32[1,16], index: 4, kind: input, shape index: {}]
  %s5 = inlined_call_operand.vmem [shape: bf16[16,32], index: 5, kind: input, shape index: {}]
  %s6 = inlined_call_operand.vmem [shape: f32[1,32], index: 6, kind: input, shape index: {}]
  %s7 = inlined_call_operand.vmem [shape: bf16[32,32], index: 7, kind: input, shape index: {}]
  %s8 = inlined_call_operand.vmem [shape: f32[1,32], index: 8, kind: input, shape index: {}]
  %s9 = inlined_call_operand.vmem [shape: f32[1,32], index: 9, kind: input, shape index: {}]
  %s10 = inlined_call_operand.vmem [shape: f32[1,32], index: 10, kind: input, shape index: {}]
  %s11 = inlined_call_operand.vmem [shape: f32[8,32], index: 11, kind: input, shape index: {}]
  %s12 = inlined_call_operand.vmem [shape: f32[2,8,32], index: 12, kind: output, shape index: {}]
  %s13 = sld [smem:[#allocation0]]
  $region81: #{mel_performer_forward.8} parent=0
    _
  %s15 = ssub.s32 1, %s13
  %s16 = scalar_select 0, %s15, %s13
  loop: start=0, step=1, limit=4
  $region2: #{mel_performer_forward.8} parent=0 // loop_pre_header
    _
  $region3: #{mel_performer_forward.8} parent=0 // loop_header
    %s18 = sphi 0, %s22
    %p19 = scmp.ge.s32.totalorder %s18, 4
    %s25 = sphi 0, %s37
    %s26 = sphi 0, %s33
    %s27 = sphi 0, %s25
    %s28 = sphi 0, %s26
    %s29 = sphi 0, %s27
    %s30 = sphi 0, %s28
    %s42 = sphi 0, %s44
    %s45 = sphi 0, %s42
    %s46 = sphi 0, %s45
    %s62 = sphi 0, %s46
    %s66 = sphi 0, %s66
    %s68 = sphi 0, %s66
    %s69 = sphi 0, %s68
    %s83 = sphi 0, %s69
    %s87 = sphi 0, %s87
    %s89 = sphi 0, %s87
    %s90 = sphi 0, %s89
    %s104 = sphi 0, %s90
    %s108 = sphi 0, %s108
    %s110 = sphi 0, %s108
    %s111 = sphi 0, %s110
    %s125 = sphi 0, %s111
    %s129 = sphi 0, %s129
    %s131 = sphi 0, %s129
    %s132 = sphi 0, %s131
    %s146 = sphi 0, %s132
    %s150 = sphi 0, %s150
    %s152 = sphi 0, %s150
    %s153 = sphi 0, %s152
    %s167 = sphi 0, %s153
    %s171 = sphi 0, %s171
    %s173 = sphi 0, %s171
    %s174 = sphi 0, %s173
    %s188 = sphi 0, %s174
    %s192 = sphi 0, %s192
    %s194 = sphi 0, %s192
    %s195 = sphi 0, %s194
    %s209 = sphi 0, %s195
    %s213 = sphi 0, %s213
    %s215 = sphi 0, %s213
    %s216 = sphi 0, %s215
    %s230 = sphi 0, %s216
    %s234 = sphi 0, %s234
    %s236 = sphi 0, %s234
    %s237 = sphi 0, %s236
    %s251 = sphi 0, %s237
    %s255 = sphi 0, %s255
    %s257 = sphi 0, %s255
    %s258 = sphi 0, %s257
    %s272 = sphi 0, %s258
    %s278 = sphi 0, %s280
    %s281 = sphi 0, %s278
    %s282 = sphi 0, %s281
    %s298 = sphi 0, %s282
    %s306 = sphi 0, %s308
    %s309 = sphi 0, %s306
    %s310 = sphi 0, %s309
    %s326 = sphi 0, %s310
  $region4: #{mel_performer_forward.8} parent=0 // loop_header_branch
    %21 = sbr.rel (%p19) target = $region8
  $region5: #{mel_performer_forward.8} parent=0 // loop_body
    %s23 = ssub.s32 %s18, 1
    %s24 = ssub.s32 %s18, 2
    %s31 = sadd.s32 1, %s26
    %p32 = scmp.ge.s32.totalorder %s31, 1
    %s33 = scalar_select %p32, 0, %s31
    %s34 = sadd.s32 1, %s25
    %s35 = scalar_select %p32, %s34, %s25
    %p36 = scmp.ge.s32.totalorder %s35, 2
    %s37 = scalar_select %p36, 0, %s35
    %s38 = ssub.s32 %s25, %s37
    %s39 = ssub.s32 %s26, %s33
    %s40 = sor.u32 %s38, %s39
    %p41 = scmp.eq.s32.totalorder %s40, 0
    %s43 = sadd.s32 %s42, 1
    %s44 = scalar_select %p41, %s42, %s43
    %p47 = pneg %p41
    %p48 = scmp.eq.s32.totalorder %s18, 1
    %p49 = por %p47, %p48
    %p50 = scmp.ne.s32.totalorder %s42, %s45
    %p51 = scmp.eq.s32.totalorder %s18, 0
    %p52 = por %p50, %p51
    %p53 = scmp.ne.s32.totalorder %s42, %s45
    %p54 = scmp.eq.s32.totalorder %s23, 1
    %p55 = por %p53, %p54
    %p56 = scmp.ne.s32.totalorder %s45, %s46
    %p57 = scmp.eq.s32.totalorder %s23, 0
    %p58 = por %p56, %p57
    %p59 = scmp.ne.s32.totalorder %s45, %s46
    %p60 = scmp.eq.s32.totalorder %s24, 1
    %p61 = por %p59, %p60
    %p63 = scmp.ne.s32.totalorder %s46, %s62
    %p64 = scmp.eq.s32.totalorder %s24, 0
    %p65 = por %p63, %p64
    %s67 = sadd.s32 %s66, 1
    %p70 = scmp.eq.s32.totalorder %s18, 1
    %p71 = scmp.ne.s32.totalorder %s66, %s68
    %p72 = scmp.eq.s32.totalorder %s18, 0
    %p73 = por %p71, %p72
    %p74 = scmp.ne.s32.totalorder %s66, %s68
    %p75 = scmp.eq.s32.totalorder %s23, 1
    %p76 = por %p74, %p75
    %p77 = scmp.ne.s32.totalorder %s68, %s69
    %p78 = scmp.eq.s32.totalorder %s23, 0
    %p79 = por %p77, %p78
    %p80 = scmp.ne.s32.totalorder %s68, %s69
    %p81 = scmp.eq.s32.totalorder %s24, 1
    %p82 = por %p80, %p81
    %p84 = scmp.ne.s32.totalorder %s69, %s83
    %p85 = scmp.eq.s32.totalorder %s24, 0
    %p86 = por %p84, %p85
    %s88 = sadd.s32 %s87, 1
    %p91 = scmp.eq.s32.totalorder %s18, 1
    %p92 = scmp.ne.s32.totalorder %s87, %s89
    %p93 = scmp.eq.s32.totalorder %s18, 0
    %p94 = por %p92, %p93
    %p95 = scmp.ne.s32.totalorder %s87, %s89
    %p96 = scmp.eq.s32.totalorder %s23, 1
    %p97 = por %p95, %p96
    %p98 = scmp.ne.s32.totalorder %s89, %s90
    %p99 = scmp.eq.s32.totalorder %s23, 0
    %p100 = por %p98, %p99
    %p101 = scmp.ne.s32.totalorder %s89, %s90
    %p102 = scmp.eq.s32.totalorder %s24, 1
    %p103 = por %p101, %p102
    %p105 = scmp.ne.s32.totalorder %s90, %s104
    %p106 = scmp.eq.s32.totalorder %s24, 0
    %p107 = por %p105, %p106
    %s109 = sadd.s32 %s108, 1
    %p112 = scmp.eq.s32.totalorder %s18, 1
    %p113 = scmp.ne.s32.totalorder %s108, %s110
    %p114 = scmp.eq.s32.totalorder %s18, 0
    %p115 = por %p113, %p114
    %p116 = scmp.ne.s32.totalorder %s108, %s110
    %p117 = scmp.eq.s32.totalorder %s23, 1
    %p118 = por %p116, %p117
    %p119 = scmp.ne.s32.totalorder %s110, %s111
    %p120 = scmp.eq.s32.totalorder %s23, 0
    %p121 = por %p119, %p120
    %p122 = scmp.ne.s32.totalorder %s110, %s111
    %p123 = scmp.eq.s32.totalorder %s24, 1
    %p124 = por %p122, %p123
    %p126 = scmp.ne.s32.totalorder %s111, %s125
    %p127 = scmp.eq.s32.totalorder %s24, 0
    %p128 = por %p126, %p127
    %s130 = sadd.s32 %s129, 1
    %p133 = scmp.eq.s32.totalorder %s18, 1
    %p134 = scmp.ne.s32.totalorder %s129, %s131
    %p135 = scmp.eq.s32.totalorder %s18, 0
    %p136 = por %p134, %p135
    %p137 = scmp.ne.s32.totalorder %s129, %s131
    %p138 = scmp.eq.s32.totalorder %s23, 1
    %p139 = por %p137, %p138
    %p140 = scmp.ne.s32.totalorder %s131, %s132
    %p141 = scmp.eq.s32.totalorder %s23, 0
    %p142 = por %p140, %p141
    %p143 = scmp.ne.s32.totalorder %s131, %s132
    %p144 = scmp.eq.s32.totalorder %s24, 1
    %p145 = por %p143, %p144
    %p147 = scmp.ne.s32.totalorder %s132, %s146
    %p148 = scmp.eq.s32.totalorder %s24, 0
    %p149 = por %p147, %p148
    %s151 = sadd.s32 %s150, 1
    %p154 = scmp.eq.s32.totalorder %s18, 1
    %p155 = scmp.ne.s32.totalorder %s150, %s152
    %p156 = scmp.eq.s32.totalorder %s18, 0
    %p157 = por %p155, %p156
    %p158 = scmp.ne.s32.totalorder %s150, %s152
    %p159 = scmp.eq.s32.totalorder %s23, 1
    %p160 = por %p158, %p159
    %p161 = scmp.ne.s32.totalorder %s152, %s153
    %p162 = scmp.eq.s32.totalorder %s23, 0
    %p163 = por %p161, %p162
    %p164 = scmp.ne.s32.totalorder %s152, %s153
    %p165 = scmp.eq.s32.totalorder %s24, 1
    %p166 = por %p164, %p165
    %p168 = scmp.ne.s32.totalorder %s153, %s167
    %p169 = scmp.eq.s32.totalorder %s24, 0
    %p170 = por %p168, %p169
    %s172 = sadd.s32 %s171, 1
    %p175 = scmp.eq.s32.totalorder %s18, 1
    %p176 = scmp.ne.s32.totalorder %s171, %s173
    %p177 = scmp.eq.s32.totalorder %s18, 0
    %p178 = por %p176, %p177
    %p179 = scmp.ne.s32.totalorder %s171, %s173
    %p180 = scmp.eq.s32.totalorder %s23, 1
    %p181 = por %p179, %p180
    %p182 = scmp.ne.s32.totalorder %s173, %s174
    %p183 = scmp.eq.s32.totalorder %s23, 0
    %p184 = por %p182, %p183
    %p185 = scmp.ne.s32.totalorder %s173, %s174
    %p186 = scmp.eq.s32.totalorder %s24, 1
    %p187 = por %p185, %p186
    %p189 = scmp.ne.s32.totalorder %s174, %s188
    %p190 = scmp.eq.s32.totalorder %s24, 0
    %p191 = por %p189, %p190
    %s193 = sadd.s32 %s192, 1
    %p196 = scmp.eq.s32.totalorder %s18, 1
    %p197 = scmp.ne.s32.totalorder %s192, %s194
    %p198 = scmp.eq.s32.totalorder %s18, 0
    %p199 = por %p197, %p198
    %p200 = scmp.ne.s32.totalorder %s192, %s194
    %p201 = scmp.eq.s32.totalorder %s23, 1
    %p202 = por %p200, %p201
    %p203 = scmp.ne.s32.totalorder %s194, %s195
    %p204 = scmp.eq.s32.totalorder %s23, 0
    %p205 = por %p203, %p204
    %p206 = scmp.ne.s32.totalorder %s194, %s195
    %p207 = scmp.eq.s32.totalorder %s24, 1
    %p208 = por %p206, %p207
    %p210 = scmp.ne.s32.totalorder %s195, %s209
    %p211 = scmp.eq.s32.totalorder %s24, 0
    %p212 = por %p210, %p211
    %s214 = sadd.s32 %s213, 1
    %p217 = scmp.eq.s32.totalorder %s18, 1
    %p218 = scmp.ne.s32.totalorder %s213, %s215
    %p219 = scmp.eq.s32.totalorder %s18, 0
    %p220 = por %p218, %p219
    %p221 = scmp.ne.s32.totalorder %s213, %s215
    %p222 = scmp.eq.s32.totalorder %s23, 1
    %p223 = por %p221, %p222
    %p224 = scmp.ne.s32.totalorder %s215, %s216
    %p225 = scmp.eq.s32.totalorder %s23, 0
    %p226 = por %p224, %p225
    %p227 = scmp.ne.s32.totalorder %s215, %s216
    %p228 = scmp.eq.s32.totalorder %s24, 1
    %p229 = por %p227, %p228
    %p231 = scmp.ne.s32.totalorder %s216, %s230
    %p232 = scmp.eq.s32.totalorder %s24, 0
    %p233 = por %p231, %p232
    %s235 = sadd.s32 %s234, 1
    %p238 = scmp.eq.s32.totalorder %s18, 1
    %p239 = scmp.ne.s32.totalorder %s234, %s236
    %p240 = scmp.eq.s32.totalorder %s18, 0
    %p241 = por %p239, %p240
    %p242 = scmp.ne.s32.totalorder %s234, %s236
    %p243 = scmp.eq.s32.totalorder %s23, 1
    %p244 = por %p242, %p243
    %p245 = scmp.ne.s32.totalorder %s236, %s237
    %p246 = scmp.eq.s32.totalorder %s23, 0
    %p247 = por %p245, %p246
    %p248 = scmp.ne.s32.totalorder %s236, %s237
    %p249 = scmp.eq.s32.totalorder %s24, 1
    %p250 = por %p248, %p249
    %p252 = scmp.ne.s32.totalorder %s237, %s251
    %p253 = scmp.eq.s32.totalorder %s24, 0
    %p254 = por %p252, %p253
    %s256 = sadd.s32 %s255, 1
    %p259 = scmp.eq.s32.totalorder %s18, 1
    %p260 = scmp.ne.s32.totalorder %s255, %s257
    %p261 = scmp.eq.s32.totalorder %s18, 0
    %p262 = por %p260, %p261
    %p263 = scmp.ne.s32.totalorder %s255, %s257
    %p264 = scmp.eq.s32.totalorder %s23, 1
    %p265 = por %p263, %p264
    %p266 = scmp.ne.s32.totalorder %s257, %s258
    %p267 = scmp.eq.s32.totalorder %s23, 0
    %p268 = por %p266, %p267
    %p269 = scmp.ne.s32.totalorder %s257, %s258
    %p270 = scmp.eq.s32.totalorder %s24, 1
    %p271 = por %p269, %p270
    %p273 = scmp.ne.s32.totalorder %s258, %s272
    %p274 = scmp.eq.s32.totalorder %s24, 0
    %p275 = por %p273, %p274
    %s276 = ssub.s32 %s26, %s33
    %p277 = scmp.eq.s32.totalorder %s276, 0
    %s279 = sadd.s32 %s278, 1
    %s280 = scalar_select %p277, %s278, %s279
    %p283 = pneg %p277
    %p284 = scmp.eq.s32.totalorder %s18, 1
    %p285 = por %p283, %p284
    %p286 = scmp.ne.s32.totalorder %s278, %s281
    %p287 = scmp.eq.s32.totalorder %s18, 0
    %p288 = por %p286, %p287
    %p289 = scmp.ne.s32.totalorder %s278, %s281
    %p290 = scmp.eq.s32.totalorder %s23, 1
    %p291 = por %p289, %p290
    %p292 = scmp.ne.s32.totalorder %s281, %s282
    %p293 = scmp.eq.s32.totalorder %s23, 0
    %p294 = por %p292, %p293
    %p295 = scmp.ne.s32.totalorder %s281, %s282
    %p296 = scmp.eq.s32.totalorder %s24, 1
    %p297 = por %p295, %p296
    %p299 = scmp.ne.s32.totalorder %s282, %s298
    %p300 = scmp.eq.s32.totalorder %s24, 0
    %p301 = por %p299, %p300
    %s302 = ssub.s32 %s25, %s37
    %s303 = ssub.s32 %s26, %s33
    %s304 = sor.u32 %s302, %s303
    %p305 = scmp.eq.s32.totalorder %s304, 0
    %s307 = sadd.s32 %s306, 1
    %s308 = scalar_select %p305, %s306, %s307
    %p311 = pneg %p305
    %p312 = scmp.eq.s32.totalorder %s18, 1
    %p313 = por %p311, %p312
    %p314 = scmp.ne.s32.totalorder %s306, %s309
    %p315 = scmp.eq.s32.totalorder %s18, 0
    %p316 = por %p314, %p315
    %p317 = scmp.ne.s32.totalorder %s306, %s309
    %p318 = scmp.eq.s32.totalorder %s23, 1
    %p319 = por %p317, %p318
    %p320 = scmp.ne.s32.totalorder %s309, %s310
    %p321 = scmp.eq.s32.totalorder %s23, 0
    %p322 = por %p320, %p321
    %p323 = scmp.ne.s32.totalorder %s309, %s310
    %p324 = scmp.eq.s32.totalorder %s24, 1
    %p325 = por %p323, %p324
    %p327 = scmp.ne.s32.totalorder %s310, %s326
    %p328 = scmp.eq.s32.totalorder %s24, 0
    %p329 = por %p327, %p328
    %p330 = scmp.le.s32.totalorder 1, %s18
    %p331 = scmp.lt.s32.totalorder %s18, 3
    %p332 = pnand %p330, %p331
    %p333 = pneg %p332
    // Predicated region
    $region9: #{mel_performer_forward.8} parent=5 // pred_check
      _
    $region10: #{mel_performer_forward.8} parent=5 // pred_check_branch
      %335 = sbr.rel (%p332) target = $region12
    $region11: #{mel_performer_forward.8} parent=5 // pred_region
      %s336 = ssub.s32 %s18, 1
      // Predicated region
      $region13: #{mel_performer_forward.8} parent=11 // pred_check
        %p337 = pneg %p79
      $region14: #{mel_performer_forward.8} parent=11 // pred_check_branch
        %339 = sbr.rel (%p337) target = $region16
      $region15: #{mel_performer_forward.8} parent=11 // pred_region
        _
      $region16: #{mel_performer_forward.8} parent=11 // pred_fallthru
        _
      // Predicated region
      $region17: #{mel_performer_forward.8} parent=11 // pred_check
        %p340 = pneg %p100
      $region18: #{mel_performer_forward.8} parent=11 // pred_check_branch
        %342 = sbr.rel (%p340) target = $region20
      $region19: #{mel_performer_forward.8} parent=11 // pred_region
        _
      $region20: #{mel_performer_forward.8} parent=11 // pred_fallthru
        _
      // Predicated region
      $region21: #{mel_performer_forward.8} parent=11 // pred_check
        %p343 = pneg %p121
      $region22: #{mel_performer_forward.8} parent=11 // pred_check_branch
        %345 = sbr.rel (%p343) target = $region24
      $region23: #{mel_performer_forward.8} parent=11 // pred_region
        _
      $region24: #{mel_performer_forward.8} parent=11 // pred_fallthru
        _
      // Predicated region
      $region25: #{mel_performer_forward.8} parent=11 // pred_check
        %p346 = pneg %p142
      $region26: #{mel_performer_forward.8} parent=11 // pred_check_branch
        %348 = sbr.rel (%p346) target = $region28
      $region27: #{mel_performer_forward.8} parent=11 // pred_region
        _
      $region28: #{mel_performer_forward.8} parent=11 // pred_fallthru
        _
      // Predicated region
      $region29: #{mel_performer_forward.8} parent=11 // pred_check
        %p349 = pneg %p163
      $region30: #{mel_performer_forward.8} parent=11 // pred_check_branch
        %351 = sbr.rel (%p349) target = $region32
      $region31: #{mel_performer_forward.8} parent=11 // pred_region
        _
      $region32: #{mel_performer_forward.8} parent=11 // pred_fallthru
        _
      // Predicated region
      $region33: #{mel_performer_forward.8} parent=11 // pred_check
        %p352 = pneg %p184
      $region34: #{mel_performer_forward.8} parent=11 // pred_check_branch
        %354 = sbr.rel (%p352) target = $region36
      $region35: #{mel_performer_forward.8} parent=11 // pred_region
        _
      $region36: #{mel_performer_forward.8} parent=11 // pred_fallthru
        _
      // Predicated region
      $region37: #{mel_performer_forward.8} parent=11 // pred_check
        %p355 = pneg %p205
      $region38: #{mel_performer_forward.8} parent=11 // pred_check_branch
        %357 = sbr.rel (%p355) target = $region40
      $region39: #{mel_performer_forward.8} parent=11 // pred_region
        _
      $region40: #{mel_performer_forward.8} parent=11 // pred_fallthru
        _
      // Predicated region
      $region41: #{mel_performer_forward.8} parent=11 // pred_check
        %p358 = pneg %p226
      $region42: #{mel_performer_forward.8} parent=11 // pred_check_branch
        %360 = sbr.rel (%p358) target = $region44
      $region43: #{mel_performer_forward.8} parent=11 // pred_region
        _
      $region44: #{mel_performer_forward.8} parent=11 // pred_fallthru
        _
      // Predicated region
      $region45: #{mel_performer_forward.8} parent=11 // pred_check
        %p361 = pneg %p247
      $region46: #{mel_performer_forward.8} parent=11 // pred_check_branch
        %363 = sbr.rel (%p361) target = $region48
      $region47: #{mel_performer_forward.8} parent=11 // pred_region
        _
      $region48: #{mel_performer_forward.8} parent=11 // pred_fallthru
        _
      // Predicated region
      $region49: #{mel_performer_forward.8} parent=11 // pred_check
        %p364 = pneg %p268
      $region50: #{mel_performer_forward.8} parent=11 // pred_check_branch
        %366 = sbr.rel (%p364) target = $region52
      $region51: #{mel_performer_forward.8} parent=11 // pred_region
        _
      $region52: #{mel_performer_forward.8} parent=11 // pred_fallthru
        _
      // Predicated region
      $region53: #{mel_performer_forward.8} parent=11 // pred_check
        %p367 = pneg %p294
      $region54: #{mel_performer_forward.8} parent=11 // pred_check_branch
        %369 = sbr.rel (%p367) target = $region56
      $region55: #{mel_performer_forward.8} parent=11 // pred_region
        %p370 = scmp.lt.s32.totalorder %s28, 0
        %s371 = scalar_select %p370, %s28, 0
        %s372 = smul.addr %s371, 8
        %s373 = scalar_lea.vmem %s11, %s372
      $region56: #{mel_performer_forward.8} parent=11 // pred_fallthru
        _
    $region12: #{mel_performer_forward.8} parent=5 // pred_fallthru
      _
    %p374 = scmp.lt.s32.totalorder %s18, 2
    // Predicated region
    $region57: #{mel_performer_forward.8} parent=5 // pred_check
      %p375 = pneg %p374
    $region58: #{mel_performer_forward.8} parent=5 // pred_check_branch
      %377 = sbr.rel (%p375) target = $region60
    $region59: #{mel_performer_forward.8} parent=5 // pred_region
      // Predicated region
      $region61: #{mel_performer_forward.8} parent=59 // pred_check
        %p378 = pneg %p52
      $region62: #{mel_performer_forward.8} parent=59 // pred_check_branch
        %380 = sbr.rel (%p378) target = $region64
      $region63: #{mel_performer_forward.8} parent=59 // pred_region
        %p381 = scmp.lt.s32.totalorder %s25, 1
        %s382 = scalar_select %p381, %s25, 1
        %p383 = scmp.lt.s32.totalorder %s26, 0
        %s384 = scalar_select %p383, %s26, 0
        %s385 = smul.addr %s384, 2
        %s386 = smul.addr %s382, 2
        %s387 = sadd.s32 %s385, %s386
        %s388 = smul.addr %s387, 8
        %s389 = scalar_lea.vmem %s0, %s388
      $region64: #{mel_performer_forward.8} parent=59 // pred_fallthru
        _
    $region60: #{mel_performer_forward.8} parent=5 // pred_fallthru
      _
    %p390 = scmp.le.s32.totalorder 1, %s18
    %p391 = scmp.lt.s32.totalorder %s18, 3
    %p392 = pnand %p390, %p391
    %p393 = pneg %p392
    // Predicated region
    $region65: #{mel_performer_forward.8} parent=5 // pred_check
      _
    $region66: #{mel_performer_forward.8} parent=5 // pred_check_branch
      %395 = sbr.rel (%p392) target = $region68
    $region67: #{mel_performer_forward.8} parent=5 // pred_region
      %s396 = ssub.s32 %s18, 1
      %p397 = scmp.lt.s32.totalorder %s27, 1
      %s398 = scalar_select %p397, %s27, 1
      %p399 = scmp.lt.s32.totalorder %s28, 0
      %s400 = scalar_select %p399, %s28, 0
      %s401 = smul.addr %s400, 2
      %s402 = smul.addr %s398, 2
      %s403 = sadd.s32 %s401, %s402
      %s404 = smul.addr %s403, 8
      %s405 = scalar_lea.vmem %s0, %s404
      %p406 = pneg %p58
      %p407 = pneg %p55
      %p408 = pneg %p79
      %p409 = pneg %p76
      %p410 = pneg %p100
      %p411 = pneg %p97
      %p412 = pneg %p121
      %p413 = pneg %p118
      %p414 = pneg %p142
      %p415 = pneg %p139
      %p416 = pneg %p163
      %p417 = pneg %p160
      %p418 = pneg %p184
      %p419 = pneg %p181
      %p420 = pneg %p205
      %p421 = pneg %p202
      %p422 = pneg %p226
      %p423 = pneg %p223
      %p424 = pneg %p247
      %p425 = pneg %p244
      %p426 = pneg %p268
      %p427 = pneg %p265
      %p428 = scmp.lt.s32.totalorder %s28, 0
      %s429 = scalar_select %p428, %s28, 0
      %s430 = smul.addr %s429, 8
      %s431 = scalar_lea.vmem %s11, %s430
      %p432 = pneg %p294
      %p433 = pneg %p291
      %p434 = pneg %p322
      %p435 = pneg %p319
      %p436 = scmp.lt.s32.totalorder %s27, 1
      %s437 = scalar_select %p436, %s27, 1
      %p438 = scmp.lt.s32.totalorder %s28, 0
      %s439 = scalar_select %p438, %s28, 0
      %s440 = sadd.s32 %s439, %s437
      %s441 = smul.addr %s440, 8
      %s442 = scalar_lea.vmem %s12, %s441
      %p443 = scmp.lt.s32.totalorder %s27, 1
      %s444 = scalar_select %p443, %s27, 1
      %p445 = scmp.lt.s32.totalorder %s28, 0
      %s446 = scalar_select %p445, %s28, 0
      %s447 = smul.addr %s446, 2
      %s448 = smul.addr %s444, 2
      %s449 = sadd.s32 %s447, %s448
      %s450 = smul.addr %s449, 8
      %s451 = scalar_lea.vmem %s0, %s450
      %p452 = scmp.lt.s32.totalorder %s28, 0
      %s453 = scalar_select %p452, %s28, 0
      %s454 = smul.addr %s453, 8
      %s455 = scalar_lea.vmem %s11, %s454
      %p456 = scmp.lt.s32.totalorder %s27, 1
      %s457 = scalar_select %p456, %s27, 1
      %p458 = scmp.lt.s32.totalorder %s28, 0
      %s459 = scalar_select %p458, %s28, 0
      %s460 = sadd.s32 %s459, %s457
      %s461 = smul.addr %s460, 8
      %s462 = scalar_lea.vmem %s12, %s461
      %v464 = vld [vmem:[%s451] sm:$0xff]
      %v465 = vld [vmem:[%s451 + $0x8] sm:$0xf]
      %v466 = vld [vmem:[%s1] sm:$0xff]
      %v467 = vld [vmem:[%s1 + $0x8] sm:$0x1]
      %v468 = vld [vmem:[%s2] sm:$0x1]
      %v469 = vld [vmem:[%s3] sm:$0xff]
      %v470 = vld [vmem:[%s3 + $0x8] sm:$0x1]
      %v471 = vld [vmem:[%s4] sm:$0x1]
      %v472 = vld [vmem:[%s6] sm:$0x1]
      %s473 = smul.u32 %s28, 8
      %s474 = ssub.s32 %s473, 1
      %v475 = vlaneseq
      %v476 = vshrl.u32 %v475, 7
      %v477 = vadd.s32 %v476, 8
      %v478 = vstv %s474
      %v479 = vadd.s32 %v478, %v476
      %v480 = vadd.s32 %v478, %v477
      %vm481 = vcmp.ge.s32.totalorder %v479, 0
      %vm482 = vcmp.ge.s32.totalorder %v480, 0
      %vm483 = vcmp.lt.s32.totalorder %v479, 8
      %vm484 = vcmp.lt.s32.totalorder %v480, 8
      %vm485 = vmand %vm481, %vm483
      %vm486 = vmand %vm482, %vm484
      %v487 = vsel %vm485, 1, 0
      %v488 = vsel %vm486, 1, 0
      %v489 = vcvt.s32.f32 %v487
      %v490 = vcvt.s32.f32 %v488
      %v492 = vperm.slane %v471, 0
      %v494 = vadd.f32 %v492, 0.0
      %v496 = vperm.slane %v468, 0
      %v498 = vadd.f32 %v496, 0.0
      %500 = vset.pattern.permute.xlu0 0
      %501 = vperm.xlu0 %500, %v464
      %v502 = vpop.permute.xlu0 %501
      %505 = vset.pattern.permute.xlu0 0
      %506 = vperm.xlu0 %505, %v465
      %v507 = vpop.permute.xlu0 %506
      %v509 = vperm.slane %v466, 0
      %v510 = vmul.f32 %v502, %v509
      %v511 = vmul.f32 %v507, %v509
      %v512 = vadd.f32 %v498, %v510
      %v513 = vadd.f32 %v498, %v511
      %v514 = vperm.slane %v466, 1
      %v515 = vmul.f32 %v502, %v514
      %v516 = vmul.f32 %v507, %v514
      %vm519 = vcmask 1046528
      %v520 = vrot.slane %v515, 1
      %v521 = vrot.slane %v516, 1
      %v522 = vsel %vm519, %v520, %v521
      %v525 = vadd.f32 %v512, %v522
      %v526 = vadd.f32 %v513, %v521
      %v527 = vperm.slane %v466, 2
      %v528 = vmul.f32 %v502, %v527
      %v529 = vmul.f32 %v507, %v527
      %vm532 = vcmask 1045504
      %v533 = vrot.slane %v528, 2
      %v534 = vrot.slane %v529, 2
      %v535 = vsel %vm532, %v533, %v534
      %v538 = vadd.f32 %v525, %v535
      %v539 = vadd.f32 %v526, %v534
      %540 = vset.pattern.permute.xlu0 1
      %541 = vperm.xlu0 %540, %v464
      %v542 = vpop.permute.xlu0 %541
      %544 = vset.pattern.permute.xlu0 1
      %545 = vperm.xlu0 %544, %v465
      %v546 = vpop.permute.xlu0 %545
      %v548 = vperm.slane %v466, 3
      %v549 = vmul.f32 %v542, %v548
      %v550 = vmul.f32 %v546, %v548
      %v551 = vadd.f32 %v538, %v549
      %v552 = vadd.f32 %v539, %v550
      %v553 = vperm.slane %v466, 4
      %v554 = vmul.f32 %v542, %v553
      %v555 = vmul.f32 %v546, %v553
      %v558 = vrot.slane %v554, 1
      %v559 = vrot.slane %v555, 1
      %v560 = vsel %vm519, %v558, %v559
      %v563 = vadd.f32 %v551, %v560
      %v564 = vadd.f32 %v552, %v559
      %v565 = vperm.slane %v466, 5
      %v566 = vmul.f32 %v542, %v565
      %v567 = vmul.f32 %v546, %v565
      %v570 = vrot.slane %v566, 2
      %v571 = vrot.slane %v567, 2
      %v572 = vsel %vm532, %v570, %v571
      %v575 = vadd.f32 %v563, %v572
      %v576 = vadd.f32 %v564, %v571
      %577 = vset.pattern.permute.xlu0 2
      %578 = vperm.xlu0 %577, %v464
      %v579 = vpop.permute.xlu0 %578
      %581 = vset.pattern.permute.xlu0 2
      %582 = vperm.xlu0 %581, %v465
      %v583 = vpop.permute.xlu0 %582
      %v585 = vperm.slane %v466, 6
      %v586 = vmul.f32 %v579, %v585
      %v587 = vmul.f32 %v583, %v585
      %v588 = vadd.f32 %v575, %v586
      %v589 = vadd.f32 %v576, %v587
      %v590 = vperm.slane %v466, 7
      %v591 = vmul.f32 %v579, %v590
      %v592 = vmul.f32 %v583, %v590
      %v595 = vrot.slane %v591, 1
      %v596 = vrot.slane %v592, 1
      %v597 = vsel %vm519, %v595, %v596
      %v600 = vadd.f32 %v588, %v597
      %v601 = vadd.f32 %v589, %v596
      %v602 = vperm.slane %v467, 0
      %v603 = vmul.f32 %v579, %v602
      %v604 = vmul.f32 %v583, %v602
      %v607 = vrot.slane %v603, 2
      %v608 = vrot.slane %v604, 2
      %v609 = vsel %vm532, %v607, %v608
      %v612 = vadd.f32 %v600, %v609
      %v613 = vadd.f32 %v601, %v608
      %v614 = vmax.f32 %v612, 0.0
      %v615 = vmax.f32 %v613, 0.0
      %v616 = vmul.f32 %v614, %v489
      %v617 = vmul.f32 %v615, %v490
      %v618 = vperm.slane %v469, 3
      %v619 = vmul.f32 %v616, %v618
      %v620 = vadd.f32 %v494, %v619
      %v621 = vperm.slane %v469, 4
      %v622 = vmul.f32 %v616, %v621
      %v623 = vmul.f32 %v617, %v621
      %v626 = vrot.slane %v622, 1
      %v627 = vrot.slane %v623, 1
      %v628 = vsel %vm519, %v626, %v627
      %v630 = vadd.f32 %v620, %v628
      %v631 = vperm.slane %v469, 5
      %v632 = vmul.f32 %v616, %v631
      %v633 = vmul.f32 %v617, %v631
      %v636 = vrot.slane %v632, 2
      %v637 = vrot.slane %v633, 2
      %v638 = vsel %vm532, %v636, %v637
      %v640 = vadd.f32 %v630, %v638
      %v641 = vmul.f32 %v542, %v509
      %v642 = vmul.f32 %v546, %v509
      %v643 = vadd.f32 %v498, %v641
      %v644 = vadd.f32 %v498, %v642
      %v645 = vmul.f32 %v542, %v514
      %v646 = vmul.f32 %v546, %v514
      %v649 = vrot.slane %v645, 1
      %v650 = vrot.slane %v646, 1
      %v651 = vsel %vm519, %v649, %v650
      %v654 = vadd.f32 %v643, %v651
      %v655 = vadd.f32 %v644, %v650
      %v656 = vmul.f32 %v542, %v527
      %v657 = vmul.f32 %v546, %v527
      %v660 = vrot.slane %v656, 2
      %v661 = vrot.slane %v657, 2
      %v662 = vsel %vm532, %v660, %v661
      %v665 = vadd.f32 %v654, %v662
      %v666 = vadd.f32 %v655, %v661
      %v667 = vmul.f32 %v579, %v548
      %v668 = vmul.f32 %v583, %v548
      %v669 = vadd.f32 %v665, %v667
      %v670 = vadd.f32 %v666, %v668
      %v671 = vmul.f32 %v579, %v553
      %v672 = vmul.f32 %v583, %v553
      %v675 = vrot.slane %v671, 1
      %v676 = vrot.slane %v672, 1
      %v677 = vsel %vm519, %v675, %v676
      %v680 = vadd.f32 %v669, %v677
      %v681 = vadd.f32 %v670, %v676
      %v682 = vmul.f32 %v579, %v565
      %v683 = vmul.f32 %v583, %v565
      %v686 = vrot.slane %v682, 2
      %v687 = vrot.slane %v683, 2
      %v688 = vsel %vm532, %v686, %v687
      %v691 = vadd.f32 %v680, %v688
      %v692 = vadd.f32 %v681, %v687
      %693 = vset.pattern.permute.xlu0 3
      %694 = vperm.xlu0 %693, %v464
      %v695 = vpop.permute.xlu0 %694
      %697 = vset.pattern.permute.xlu0 3
      %698 = vperm.xlu0 %697, %v465
      %v699 = vpop.permute.xlu0 %698
      %v701 = vmul.f32 %v695, %v585
      %v702 = vmul.f32 %v699, %v585
      %v703 = vadd.f32 %v691, %v701
      %v704 = vadd.f32 %v692, %v702
      %v705 = vmul.f32 %v695, %v590
      %v706 = vmul.f32 %v699, %v590
      %v709 = vrot.slane %v705, 1
      %v710 = vrot.slane %v706, 1
      %v711 = vsel %vm519, %v709, %v710
      %v714 = vadd.f32 %v703, %v711
      %v715 = vadd.f32 %v704, %v710
      %v716 = vmul.f32 %v695, %v602
      %v717 = vmul.f32 %v699, %v602
      %v720 = vrot.slane %v716, 2
      %v721 = vrot.slane %v717, 2
      %v722 = vsel %vm532, %v720, %v721
      %v725 = vadd.f32 %v714, %v722
      %v726 = vadd.f32 %v715, %v721
      %v727 = vmax.f32 %v725, 0.0
      %v728 = vmax.f32 %v726, 0.0
      %v729 = vmul.f32 %v727, %v489
      %v730 = vmul.f32 %v728, %v490
      %v731 = vperm.slane %v469, 6
      %v732 = vmul.f32 %v729, %v731
      %v733 = vadd.f32 %v640, %v732
      %v734 = vperm.slane %v469, 7
      %v735 = vmul.f32 %v729, %v734
      %v736 = vmul.f32 %v730, %v734
      %v739 = vrot.slane %v735, 1
      %v740 = vrot.slane %v736, 1
      %v741 = vsel %vm519, %v739, %v740
      %v743 = vadd.f32 %v733, %v741
      %v744 = vperm.slane %v470, 0
      %v745 = vmul.f32 %v729, %v744
      %v746 = vmul.f32 %v730, %v744
      %v749 = vrot.slane %v745, 2
      %v750 = vrot.slane %v746, 2
      %v751 = vsel %vm532, %v749, %v750
      %v753 = vadd.f32 %v743, %v751
      %v754 = vpack.c.bf16 %v753, %v753
      %v755 = vld [vmem:[%s5] sm:$0xf]
      %v756 = vld [vmem:[%s5 + $0x4] sm:$0xf]
      %v758 = vperm.slane %v472, 0
      %v762 = vunpack.c.l.b16 %v755
      %v763 = vunpack.c.l.b16 %v756
      %v764 = vpack.c.b16 %v763, %v762
      %vm766 = vcmask 130048
      %v768 = vsel %vm766, %v754, 0
      %770 = vmatpush.bf16.msra.mxu0 0
      %771 = vmatpush.bf16.msra.mxu0 0
      %772 = vmatpush.bf16.msra.mxu0 0
      %773 = vmatpush.bf16.msra.mxu0 0
      %774 = vmatpush.bf16.msra.mxu0 0
      %775 = vmatpush.bf16.msra.mxu0 0
      %776 = vmatpush.bf16.msra.mxu0 0
      %777 = vmatpush.bf16.msra.mxu0 %v764
      %778 = vmatmul.bf16.gmra.mxu0 %v768
      %v779 = vpop.f32.mrf.mxu0
      %v780 = vadd.f32 %v758, %v779
      %v781 = vpop.f32.mrf.mxu0
      %782 = vdwg.mxu0
      %v783 = vmax.f32 %v780, 0.0
      %v784 = vadd.f32 %v783, 0.0
      %v785 = vperm.slane %v469, 0
      %v786 = vmul.f32 %v616, %v785
      %v787 = vadd.f32 %v494, %v786
      %v788 = vperm.slane %v469, 1
      %v789 = vmul.f32 %v616, %v788
      %v790 = vmul.f32 %v617, %v788
      %v793 = vrot.slane %v789, 1
      %v794 = vrot.slane %v790, 1
      %v795 = vsel %vm519, %v793, %v794
      %v797 = vadd.f32 %v787, %v795
      %v798 = vperm.slane %v469, 2
      %v799 = vmul.f32 %v616, %v798
      %v800 = vmul.f32 %v617, %v798
      %v803 = vrot.slane %v799, 2
      %v804 = vrot.slane %v800, 2
      %v805 = vsel %vm532, %v803, %v804
      %v807 = vadd.f32 %v797, %v805
      %v808 = vmul.f32 %v729, %v618
      %v809 = vadd.f32 %v807, %v808
      %v810 = vmul.f32 %v729, %v621
      %v811 = vmul.f32 %v730, %v621
      %v814 = vrot.slane %v810, 1
      %v815 = vrot.slane %v811, 1
      %v816 = vsel %vm519, %v814, %v815
      %v818 = vadd.f32 %v809, %v816
      %v819 = vmul.f32 %v729, %v631
      %v820 = vmul.f32 %v730, %v631
      %v823 = vrot.slane %v819, 2
      %v824 = vrot.slane %v820, 2
      %v825 = vsel %vm532, %v823, %v824
      %v827 = vadd.f32 %v818, %v825
      %v828 = vmul.f32 %v579, %v509
      %v829 = vmul.f32 %v583, %v509
      %v830 = vadd.f32 %v498, %v828
      %v831 = vadd.f32 %v498, %v829
      %v832 = vmul.f32 %v579, %v514
      %v833 = vmul.f32 %v583, %v514
      %v836 = vrot.slane %v832, 1
      %v837 = vrot.slane %v833, 1
      %v838 = vsel %vm519, %v836, %v837
      %v841 = vadd.f32 %v830, %v838
      %v842 = vadd.f32 %v831, %v837
      %v843 = vmul.f32 %v579, %v527
      %v844 = vmul.f32 %v583, %v527
      %v847 = vrot.slane %v843, 2
      %v848 = vrot.slane %v844, 2
      %v849 = vsel %vm532, %v847, %v848
      %v852 = vadd.f32 %v841, %v849
      %v853 = vadd.f32 %v842, %v848
      %v854 = vmul.f32 %v695, %v548
      %v855 = vmul.f32 %v699, %v548
      %v856 = vadd.f32 %v852, %v854
      %v857 = vadd.f32 %v853, %v855
      %v858 = vmul.f32 %v695, %v553
      %v859 = vmul.f32 %v699, %v553
      %v862 = vrot.slane %v858, 1
      %v863 = vrot.slane %v859, 1
      %v864 = vsel %vm519, %v862, %v863
      %v867 = vadd.f32 %v856, %v864
      %v868 = vadd.f32 %v857, %v863
      %v869 = vmul.f32 %v695, %v565
      %v870 = vmul.f32 %v699, %v565
      %v873 = vrot.slane %v869, 2
      %v874 = vrot.slane %v870, 2
      %v875 = vsel %vm532, %v873, %v874
      %v878 = vadd.f32 %v867, %v875
      %v879 = vadd.f32 %v868, %v874
      %880 = vset.pattern.permute.xlu0 4
      %881 = vperm.xlu0 %880, %v464
      %v882 = vpop.permute.xlu0 %881
      %884 = vset.pattern.permute.xlu0 4
      %885 = vperm.xlu0 %884, %v465
      %v886 = vpop.permute.xlu0 %885
      %v888 = vmul.f32 %v882, %v585
      %v889 = vmul.f32 %v886, %v585
      %v890 = vadd.f32 %v878, %v888
      %v891 = vadd.f32 %v879, %v889
      %v892 = vmul.f32 %v882, %v590
      %v893 = vmul.f32 %v886, %v590
      %v896 = vrot.slane %v892, 1
      %v897 = vrot.slane %v893, 1
      %v898 = vsel %vm519, %v896, %v897
      %v901 = vadd.f32 %v890, %v898
      %v902 = vadd.f32 %v891, %v897
      %v903 = vmul.f32 %v882, %v602
      %v904 = vmul.f32 %v886, %v602
      %v907 = vrot.slane %v903, 2
      %v908 = vrot.slane %v904, 2
      %v909 = vsel %vm532, %v907, %v908
      %v912 = vadd.f32 %v901, %v909
      %v913 = vadd.f32 %v902, %v908
      %v914 = vmax.f32 %v912, 0.0
      %v915 = vmax.f32 %v913, 0.0
      %v916 = vmul.f32 %v914, %v489
      %v917 = vmul.f32 %v915, %v490
      %v918 = vmul.f32 %v916, %v731
      %v919 = vadd.f32 %v827, %v918
      %v920 = vmul.f32 %v916, %v734
      %v921 = vmul.f32 %v917, %v734
      %v924 = vrot.slane %v920, 1
      %v925 = vrot.slane %v921, 1
      %v926 = vsel %vm519, %v924, %v925
      %v928 = vadd.f32 %v919, %v926
      %v929 = vmul.f32 %v916, %v744
      %v930 = vmul.f32 %v917, %v744
      %v933 = vrot.slane %v929, 2
      %v934 = vrot.slane %v930, 2
      %v935 = vsel %vm532, %v933, %v934
      %v937 = vadd.f32 %v928, %v935
      %v938 = vpack.c.bf16 %v937, %v937
      %v940 = vsel %vm766, %v938, 0
      %942 = vmatpush.bf16.msra.mxu0 0
      %943 = vmatpush.bf16.msra.mxu0 0
      %944 = vmatpush.bf16.msra.mxu0 0
      %945 = vmatpush.bf16.msra.mxu0 0
      %946 = vmatpush.bf16.msra.mxu0 0
      %947 = vmatpush.bf16.msra.mxu0 0
      %948 = vmatpush.bf16.msra.mxu0 0
      %949 = vmatpush.bf16.msra.mxu0 %v764
      %950 = vmatmul.bf16.gmra.mxu0 %v940
      %v951 = vpop.f32.mrf.mxu0
      %v952 = vadd.f32 %v758, %v951
      %v953 = vpop.f32.mrf.mxu0
      %954 = vdwg.mxu0
      %v955 = vmax.f32 %v952, 0.0
      %v956 = vadd.f32 %v784, %v955
      %v957 = vmul.f32 %v729, %v785
      %v958 = vadd.f32 %v494, %v957
      %v959 = vmul.f32 %v729, %v788
      %v960 = vmul.f32 %v730, %v788
      %v963 = vrot.slane %v959, 1
      %v964 = vrot.slane %v960, 1
      %v965 = vsel %vm519, %v963, %v964
      %v967 = vadd.f32 %v958, %v965
      %v968 = vmul.f32 %v729, %v798
      %v969 = vmul.f32 %v730, %v798
      %v972 = vrot.slane %v968, 2
      %v973 = vrot.slane %v969, 2
      %v974 = vsel %vm532, %v972, %v973
      %v976 = vadd.f32 %v967, %v974
      %v977 = vmul.f32 %v916, %v618
      %v978 = vadd.f32 %v976, %v977
      %v979 = vmul.f32 %v916, %v621
      %v980 = vmul.f32 %v917, %v621
      %v983 = vrot.slane %v979, 1
      %v984 = vrot.slane %v980, 1
      %v985 = vsel %vm519, %v983, %v984
      %v987 = vadd.f32 %v978, %v985
      %v988 = vmul.f32 %v916, %v631
      %v989 = vmul.f32 %v917, %v631
      %v992 = vrot.slane %v988, 2
      %v993 = vrot.slane %v989, 2
      %v994 = vsel %vm532, %v992, %v993
      %v996 = vadd.f32 %v987, %v994
      %v997 = vmul.f32 %v695, %v509
      %v998 = vmul.f32 %v699, %v509
      %v999 = vadd.f32 %v498, %v997
      %v1000 = vadd.f32 %v498, %v998
      %v1001 = vmul.f32 %v695, %v514
      %v1002 = vmul.f32 %v699, %v514
      %v1005 = vrot.slane %v1001, 1
      %v1006 = vrot.slane %v1002, 1
      %v1007 = vsel %vm519, %v1005, %v1006
      %v1010 = vadd.f32 %v999, %v1007
      %v1011 = vadd.f32 %v1000, %v1006
      %v1012 = vmul.f32 %v695, %v527
      %v1013 = vmul.f32 %v699, %v527
      %v1016 = vrot.slane %v1012, 2
      %v1017 = vrot.slane %v1013, 2
      %v1018 = vsel %vm532, %v1016, %v1017
      %v1021 = vadd.f32 %v1010, %v1018
      %v1022 = vadd.f32 %v1011, %v1017
      %v1023 = vmul.f32 %v882, %v548
      %v1024 = vmul.f32 %v886, %v548
      %v1025 = vadd.f32 %v1021, %v1023
      %v1026 = vadd.f32 %v1022, %v1024
      %v1027 = vmul.f32 %v882, %v553
      %v1028 = vmul.f32 %v886, %v553
      %v1031 = vrot.slane %v1027, 1
      %v1032 = vrot.slane %v1028, 1
      %v1033 = vsel %vm519, %v1031, %v1032
      %v1036 = vadd.f32 %v1025, %v1033
      %v1037 = vadd.f32 %v1026, %v1032
      %v1038 = vmul.f32 %v882, %v565
      %v1039 = vmul.f32 %v886, %v565
      %v1042 = vrot.slane %v1038, 2
      %v1043 = vrot.slane %v1039, 2
      %v1044 = vsel %vm532, %v1042, %v1043
      %v1047 = vadd.f32 %v1036, %v1044
      %v1048 = vadd.f32 %v1037, %v1043
      %1049 = vset.pattern.permute.xlu0 5
      %1050 = vperm.xlu0 %1049, %v464
      %v1051 = vpop.permute.xlu0 %1050
      %1053 = vset.pattern.permute.xlu0 5
      %1054 = vperm.xlu0 %1053, %v465
      %v1055 = vpop.permute.xlu0 %1054
      %v1057 = vmul.f32 %v1051, %v585
      %v1058 = vmul.f32 %v1055, %v585
      %v1059 = vadd.f32 %v1047, %v1057
      %v1060 = vadd.f32 %v1048, %v1058
      %v1061 = vmul.f32 %v1051, %v590
      %v1062 = vmul.f32 %v1055, %v590
      %v1065 = vrot.slane %v1061, 1
      %v1066 = vrot.slane %v1062, 1
      %v1067 = vsel %vm519, %v1065, %v1066
      %v1070 = vadd.f32 %v1059, %v1067
      %v1071 = vadd.f32 %v1060, %v1066
      %v1072 = vmul.f32 %v1051, %v602
      %v1073 = vmul.f32 %v1055, %v602
      %v1076 = vrot.slane %v1072, 2
      %v1077 = vrot.slane %v1073, 2
      %v1078 = vsel %vm532, %v1076, %v1077
      %v1081 = vadd.f32 %v1070, %v1078
      %v1082 = vadd.f32 %v1071, %v1077
      %v1083 = vmax.f32 %v1081, 0.0
      %v1084 = vmax.f32 %v1082, 0.0
      %v1085 = vmul.f32 %v1083, %v489
      %v1086 = vmul.f32 %v1084, %v490
      %v1087 = vmul.f32 %v1085, %v731
      %v1088 = vadd.f32 %v996, %v1087
      %v1089 = vmul.f32 %v1085, %v734
      %v1090 = vmul.f32 %v1086, %v734
      %v1093 = vrot.slane %v1089, 1
      %v1094 = vrot.slane %v1090, 1
      %v1095 = vsel %vm519, %v1093, %v1094
      %v1097 = vadd.f32 %v1088, %v1095
      %v1098 = vmul.f32 %v1085, %v744
      %v1099 = vmul.f32 %v1086, %v744
      %v1102 = vrot.slane %v1098, 2
      %v1103 = vrot.slane %v1099, 2
      %v1104 = vsel %vm532, %v1102, %v1103
      %v1106 = vadd.f32 %v1097, %v1104
      %v1107 = vpack.c.bf16 %v1106, %v1106
      %v1109 = vsel %vm766, %v1107, 0
      %1111 = vmatpush.bf16.msra.mxu0 0
      %1112 = vmatpush.bf16.msra.mxu0 0
      %1113 = vmatpush.bf16.msra.mxu0 0
      %1114 = vmatpush.bf16.msra.mxu0 0
      %1115 = vmatpush.bf16.msra.mxu0 0
      %1116 = vmatpush.bf16.msra.mxu0 0
      %1117 = vmatpush.bf16.msra.mxu0 0
      %1118 = vmatpush.bf16.msra.mxu0 %v764
      %1119 = vmatmul.bf16.gmra.mxu0 %v1109
      %v1120 = vpop.f32.mrf.mxu0
      %v1121 = vadd.f32 %v758, %v1120
      %v1122 = vpop.f32.mrf.mxu0
      %1123 = vdwg.mxu0
      %v1124 = vmax.f32 %v1121, 0.0
      %v1125 = vadd.f32 %v956, %v1124
      %v1126 = vmul.f32 %v916, %v785
      %v1127 = vadd.f32 %v494, %v1126
      %v1128 = vmul.f32 %v916, %v788
      %v1129 = vmul.f32 %v917, %v788
      %v1132 = vrot.slane %v1128, 1
      %v1133 = vrot.slane %v1129, 1
      %v1134 = vsel %vm519, %v1132, %v1133
      %v1136 = vadd.f32 %v1127, %v1134
      %v1137 = vmul.f32 %v916, %v798
      %v1138 = vmul.f32 %v917, %v798
      %v1141 = vrot.slane %v1137, 2
      %v1142 = vrot.slane %v1138, 2
      %v1143 = vsel %vm532, %v1141, %v1142
      %v1145 = vadd.f32 %v1136, %v1143
      %v1146 = vmul.f32 %v1085, %v618
      %v1147 = vadd.f32 %v1145, %v1146
      %v1148 = vmul.f32 %v1085, %v621
      %v1149 = vmul.f32 %v1086, %v621
      %v1152 = vrot.slane %v1148, 1
      %v1153 = vrot.slane %v1149, 1
      %v1154 = vsel %vm519, %v1152, %v1153
      %v1156 = vadd.f32 %v1147, %v1154
      %v1157 = vmul.f32 %v1085, %v631
      %v1158 = vmul.f32 %v1086, %v631
      %v1161 = vrot.slane %v1157, 2
      %v1162 = vrot.slane %v1158, 2
      %v1163 = vsel %vm532, %v1161, %v1162
      %v1165 = vadd.f32 %v1156, %v1163
      %v1166 = vmul.f32 %v882, %v509
      %v1167 = vmul.f32 %v886, %v509
      %v1168 = vadd.f32 %v498, %v1166
      %v1169 = vadd.f32 %v498, %v1167
      %v1170 = vmul.f32 %v882, %v514
      %v1171 = vmul.f32 %v886, %v514
      %v1174 = vrot.slane %v1170, 1
      %v1175 = vrot.slane %v1171, 1
      %v1176 = vsel %vm519, %v1174, %v1175
      %v1179 = vadd.f32 %v1168, %v1176
      %v1180 = vadd.f32 %v1169, %v1175
      %v1181 = vmul.f32 %v882, %v527
      %v1182 = vmul.f32 %v886, %v527
      %v1185 = vrot.slane %v1181, 2
      %v1186 = vrot.slane %v1182, 2
      %v1187 = vsel %vm532, %v1185, %v1186
      %v1190 = vadd.f32 %v1179, %v1187
      %v1191 = vadd.f32 %v1180, %v1186
      %v1192 = vmul.f32 %v1051, %v548
      %v1193 = vmul.f32 %v1055, %v548
      %v1194 = vadd.f32 %v1190, %v1192
      %v1195 = vadd.f32 %v1191, %v1193
      %v1196 = vmul.f32 %v1051, %v553
      %v1197 = vmul.f32 %v1055, %v553
      %v1200 = vrot.slane %v1196, 1
      %v1201 = vrot.slane %v1197, 1
      %v1202 = vsel %vm519, %v1200, %v1201
      %v1205 = vadd.f32 %v1194, %v1202
      %v1206 = vadd.f32 %v1195, %v1201
      %v1207 = vmul.f32 %v1051, %v565
      %v1208 = vmul.f32 %v1055, %v565
      %v1211 = vrot.slane %v1207, 2
      %v1212 = vrot.slane %v1208, 2
      %v1213 = vsel %vm532, %v1211, %v1212
      %v1216 = vadd.f32 %v1205, %v1213
      %v1217 = vadd.f32 %v1206, %v1212
      %1218 = vset.pattern.permute.xlu0 6
      %1219 = vperm.xlu0 %1218, %v464
      %v1220 = vpop.permute.xlu0 %1219
      %1222 = vset.pattern.permute.xlu0 6
      %1223 = vperm.xlu0 %1222, %v465
      %v1224 = vpop.permute.xlu0 %1223
      %v1226 = vmul.f32 %v1220, %v585
      %v1227 = vmul.f32 %v1224, %v585
      %v1228 = vadd.f32 %v1216, %v1226
      %v1229 = vadd.f32 %v1217, %v1227
      %v1230 = vmul.f32 %v1220, %v590
      %v1231 = vmul.f32 %v1224, %v590
      %v1234 = vrot.slane %v1230, 1
      %v1235 = vrot.slane %v1231, 1
      %v1236 = vsel %vm519, %v1234, %v1235
      %v1239 = vadd.f32 %v1228, %v1236
      %v1240 = vadd.f32 %v1229, %v1235
      %v1241 = vmul.f32 %v1220, %v602
      %v1242 = vmul.f32 %v1224, %v602
      %v1245 = vrot.slane %v1241, 2
      %v1246 = vrot.slane %v1242, 2
      %v1247 = vsel %vm532, %v1245, %v1246
      %v1250 = vadd.f32 %v1239, %v1247
      %v1251 = vadd.f32 %v1240, %v1246
      %v1252 = vmax.f32 %v1250, 0.0
      %v1253 = vmax.f32 %v1251, 0.0
      %v1254 = vmul.f32 %v1252, %v489
      %v1255 = vmul.f32 %v1253, %v490
      %v1256 = vmul.f32 %v1254, %v731
      %v1257 = vadd.f32 %v1165, %v1256
      %v1258 = vmul.f32 %v1254, %v734
      %v1259 = vmul.f32 %v1255, %v734
      %v1262 = vrot.slane %v1258, 1
      %v1263 = vrot.slane %v1259, 1
      %v1264 = vsel %vm519, %v1262, %v1263
      %v1266 = vadd.f32 %v1257, %v1264
      %v1267 = vmul.f32 %v1254, %v744
      %v1268 = vmul.f32 %v1255, %v744
      %v1271 = vrot.slane %v1267, 2
      %v1272 = vrot.slane %v1268, 2
      %v1273 = vsel %vm532, %v1271, %v1272
      %v1275 = vadd.f32 %v1266, %v1273
      %v1276 = vpack.c.bf16 %v1275, %v1275
      %v1278 = vsel %vm766, %v1276, 0
      %1280 = vmatpush.bf16.msra.mxu0 0
      %1281 = vmatpush.bf16.msra.mxu0 0
      %1282 = vmatpush.bf16.msra.mxu0 0
      %1283 = vmatpush.bf16.msra.mxu0 0
      %1284 = vmatpush.bf16.msra.mxu0 0
      %1285 = vmatpush.bf16.msra.mxu0 0
      %1286 = vmatpush.bf16.msra.mxu0 0
      %1287 = vmatpush.bf16.msra.mxu0 %v764
      %1288 = vmatmul.bf16.gmra.mxu0 %v1278
      %v1289 = vpop.f32.mrf.mxu0
      %v1290 = vadd.f32 %v758, %v1289
      %v1291 = vpop.f32.mrf.mxu0
      %1292 = vdwg.mxu0
      %v1293 = vmax.f32 %v1290, 0.0
      %v1294 = vadd.f32 %v1125, %v1293
      %v1295 = vmul.f32 %v1085, %v785
      %v1296 = vadd.f32 %v494, %v1295
      %v1297 = vmul.f32 %v1085, %v788
      %v1298 = vmul.f32 %v1086, %v788
      %v1301 = vrot.slane %v1297, 1
      %v1302 = vrot.slane %v1298, 1
      %v1303 = vsel %vm519, %v1301, %v1302
      %v1305 = vadd.f32 %v1296, %v1303
      %v1306 = vmul.f32 %v1085, %v798
      %v1307 = vmul.f32 %v1086, %v798
      %v1310 = vrot.slane %v1306, 2
      %v1311 = vrot.slane %v1307, 2
      %v1312 = vsel %vm532, %v1310, %v1311
      %v1314 = vadd.f32 %v1305, %v1312
      %v1315 = vmul.f32 %v1254, %v618
      %v1316 = vadd.f32 %v1314, %v1315
      %v1317 = vmul.f32 %v1254, %v621
      %v1318 = vmul.f32 %v1255, %v621
      %v1321 = vrot.slane %v1317, 1
      %v1322 = vrot.slane %v1318, 1
      %v1323 = vsel %vm519, %v1321, %v1322
      %v1325 = vadd.f32 %v1316, %v1323
      %v1326 = vmul.f32 %v1254, %v631
      %v1327 = vmul.f32 %v1255, %v631
      %v1330 = vrot.slane %v1326, 2
      %v1331 = vrot.slane %v1327, 2
      %v1332 = vsel %vm532, %v1330, %v1331
      %v1334 = vadd.f32 %v1325, %v1332
      %v1335 = vmul.f32 %v1051, %v509
      %v1336 = vmul.f32 %v1055, %v509
      %v1337 = vadd.f32 %v498, %v1335
      %v1338 = vadd.f32 %v498, %v1336
      %v1339 = vmul.f32 %v1051, %v514
      %v1340 = vmul.f32 %v1055, %v514
      %v1343 = vrot.slane %v1339, 1
      %v1344 = vrot.slane %v1340, 1
      %v1345 = vsel %vm519, %v1343, %v1344
      %v1348 = vadd.f32 %v1337, %v1345
      %v1349 = vadd.f32 %v1338, %v1344
      %v1350 = vmul.f32 %v1051, %v527
      %v1351 = vmul.f32 %v1055, %v527
      %v1354 = vrot.slane %v1350, 2
      %v1355 = vrot.slane %v1351, 2
      %v1356 = vsel %vm532, %v1354, %v1355
      %v1359 = vadd.f32 %v1348, %v1356
      %v1360 = vadd.f32 %v1349, %v1355
      %v1361 = vmul.f32 %v1220, %v548
      %v1362 = vmul.f32 %v1224, %v548
      %v1363 = vadd.f32 %v1359, %v1361
      %v1364 = vadd.f32 %v1360, %v1362
      %v1365 = vmul.f32 %v1220, %v553
      %v1366 = vmul.f32 %v1224, %v553
      %v1369 = vrot.slane %v1365, 1
      %v1370 = vrot.slane %v1366, 1
      %v1371 = vsel %vm519, %v1369, %v1370
      %v1374 = vadd.f32 %v1363, %v1371
      %v1375 = vadd.f32 %v1364, %v1370
      %v1376 = vmul.f32 %v1220, %v565
      %v1377 = vmul.f32 %v1224, %v565
      %v1380 = vrot.slane %v1376, 2
      %v1381 = vrot.slane %v1377, 2
      %v1382 = vsel %vm532, %v1380, %v1381
      %v1385 = vadd.f32 %v1374, %v1382
      %v1386 = vadd.f32 %v1375, %v1381
      %1387 = vset.pattern.permute.xlu0 7
      %1388 = vperm.xlu0 %1387, %v464
      %v1389 = vpop.permute.xlu0 %1388
      %1391 = vset.pattern.permute.xlu0 7
      %1392 = vperm.xlu0 %1391, %v465
      %v1393 = vpop.permute.xlu0 %1392
      %v1395 = vmul.f32 %v1389, %v585
      %v1396 = vmul.f32 %v1393, %v585
      %v1397 = vadd.f32 %v1385, %v1395
      %v1398 = vadd.f32 %v1386, %v1396
      %v1399 = vmul.f32 %v1389, %v590
      %v1400 = vmul.f32 %v1393, %v590
      %v1403 = vrot.slane %v1399, 1
      %v1404 = vrot.slane %v1400, 1
      %v1405 = vsel %vm519, %v1403, %v1404
      %v1408 = vadd.f32 %v1397, %v1405
      %v1409 = vadd.f32 %v1398, %v1404
      %v1410 = vmul.f32 %v1389, %v602
      %v1411 = vmul.f32 %v1393, %v602
      %v1414 = vrot.slane %v1410, 2
      %v1415 = vrot.slane %v1411, 2
      %v1416 = vsel %vm532, %v1414, %v1415
      %v1419 = vadd.f32 %v1408, %v1416
      %v1420 = vadd.f32 %v1409, %v1415
      %v1421 = vmax.f32 %v1419, 0.0
      %v1422 = vmax.f32 %v1420, 0.0
      %v1423 = vmul.f32 %v1421, %v489
      %v1424 = vmul.f32 %v1422, %v490
      %v1425 = vmul.f32 %v1423, %v731
      %v1426 = vadd.f32 %v1334, %v1425
      %v1427 = vmul.f32 %v1423, %v734
      %v1428 = vmul.f32 %v1424, %v734
      %v1431 = vrot.slane %v1427, 1
      %v1432 = vrot.slane %v1428, 1
      %v1433 = vsel %vm519, %v1431, %v1432
      %v1435 = vadd.f32 %v1426, %v1433
      %v1436 = vmul.f32 %v1423, %v744
      %v1437 = vmul.f32 %v1424, %v744
      %v1440 = vrot.slane %v1436, 2
      %v1441 = vrot.slane %v1437, 2
      %v1442 = vsel %vm532, %v1440, %v1441
      %v1444 = vadd.f32 %v1435, %v1442
      %v1445 = vpack.c.bf16 %v1444, %v1444
      %v1447 = vsel %vm766, %v1445, 0
      %1449 = vmatpush.bf16.msra.mxu0 0
      %1450 = vmatpush.bf16.msra.mxu0 0
      %1451 = vmatpush.bf16.msra.mxu0 0
      %1452 = vmatpush.bf16.msra.mxu0 0
      %1453 = vmatpush.bf16.msra.mxu0 0
      %1454 = vmatpush.bf16.msra.mxu0 0
      %1455 = vmatpush.bf16.msra.mxu0 0
      %1456 = vmatpush.bf16.msra.mxu0 %v764
      %1457 = vmatmul.bf16.gmra.mxu0 %v1447
      %v1458 = vpop.f32.mrf.mxu0
      %v1459 = vadd.f32 %v758, %v1458
      %v1460 = vpop.f32.mrf.mxu0
      %1461 = vdwg.mxu0
      %v1462 = vmax.f32 %v1459, 0.0
      %v1463 = vadd.f32 %v1294, %v1462
      %v1464 = vmul.f32 %v1254, %v785
      %v1465 = vadd.f32 %v494, %v1464
      %v1466 = vmul.f32 %v1254, %v788
      %v1467 = vmul.f32 %v1255, %v788
      %v1470 = vrot.slane %v1466, 1
      %v1471 = vrot.slane %v1467, 1
      %v1472 = vsel %vm519, %v1470, %v1471
      %v1474 = vadd.f32 %v1465, %v1472
      %v1475 = vmul.f32 %v1254, %v798
      %v1476 = vmul.f32 %v1255, %v798
      %v1479 = vrot.slane %v1475, 2
      %v1480 = vrot.slane %v1476, 2
      %v1481 = vsel %vm532, %v1479, %v1480
      %v1483 = vadd.f32 %v1474, %v1481
      %v1484 = vmul.f32 %v1423, %v618
      %v1485 = vadd.f32 %v1483, %v1484
      %v1486 = vmul.f32 %v1423, %v621
      %v1487 = vmul.f32 %v1424, %v621
      %v1490 = vrot.slane %v1486, 1
      %v1491 = vrot.slane %v1487, 1
      %v1492 = vsel %vm519, %v1490, %v1491
      %v1494 = vadd.f32 %v1485, %v1492
      %v1495 = vmul.f32 %v1423, %v631
      %v1496 = vmul.f32 %v1424, %v631
      %v1499 = vrot.slane %v1495, 2
      %v1500 = vrot.slane %v1496, 2
      %v1501 = vsel %vm532, %v1499, %v1500
      %v1503 = vadd.f32 %v1494, %v1501
      %v1504 = vmul.f32 %v1220, %v509
      %v1505 = vmul.f32 %v1224, %v509
      %v1506 = vadd.f32 %v498, %v1504
      %v1507 = vadd.f32 %v498, %v1505
      %v1508 = vmul.f32 %v1220, %v514
      %v1509 = vmul.f32 %v1224, %v514
      %v1512 = vrot.slane %v1508, 1
      %v1513 = vrot.slane %v1509, 1
      %v1514 = vsel %vm519, %v1512, %v1513
      %v1517 = vadd.f32 %v1506, %v1514
      %v1518 = vadd.f32 %v1507, %v1513
      %v1519 = vmul.f32 %v1220, %v527
      %v1520 = vmul.f32 %v1224, %v527
      %v1523 = vrot.slane %v1519, 2
      %v1524 = vrot.slane %v1520, 2
      %v1525 = vsel %vm532, %v1523, %v1524
      %v1528 = vadd.f32 %v1517, %v1525
      %v1529 = vadd.f32 %v1518, %v1524
      %v1530 = vmul.f32 %v1389, %v548
      %v1531 = vmul.f32 %v1393, %v548
      %v1532 = vadd.f32 %v1528, %v1530
      %v1533 = vadd.f32 %v1529, %v1531
      %v1534 = vmul.f32 %v1389, %v553
      %v1535 = vmul.f32 %v1393, %v553
      %v1538 = vrot.slane %v1534, 1
      %v1539 = vrot.slane %v1535, 1
      %v1540 = vsel %vm519, %v1538, %v1539
      %v1543 = vadd.f32 %v1532, %v1540
      %v1544 = vadd.f32 %v1533, %v1539
      %v1545 = vmul.f32 %v1389, %v565
      %v1546 = vmul.f32 %v1393, %v565
      %v1549 = vrot.slane %v1545, 2
      %v1550 = vrot.slane %v1546, 2
      %v1551 = vsel %vm532, %v1549, %v1550
      %v1554 = vadd.f32 %v1543, %v1551
      %v1555 = vadd.f32 %v1544, %v1550
      %1556 = vset.pattern.permute.xlu0 8
      %1557 = vperm.xlu0 %1556, %v464
      %v1558 = vpop.permute.xlu0 %1557
      %1560 = vset.pattern.permute.xlu0 8
      %1561 = vperm.xlu0 %1560, %v465
      %v1562 = vpop.permute.xlu0 %1561
      %v1564 = vmul.f32 %v1558, %v585
      %v1565 = vmul.f32 %v1562, %v585
      %v1566 = vadd.f32 %v1554, %v1564
      %v1567 = vadd.f32 %v1555, %v1565
      %v1568 = vmul.f32 %v1558, %v590
      %v1569 = vmul.f32 %v1562, %v590
      %v1572 = vrot.slane %v1568, 1
      %v1573 = vrot.slane %v1569, 1
      %v1574 = vsel %vm519, %v1572, %v1573
      %v1577 = vadd.f32 %v1566, %v1574
      %v1578 = vadd.f32 %v1567, %v1573
      %v1579 = vmul.f32 %v1558, %v602
      %v1580 = vmul.f32 %v1562, %v602
      %v1583 = vrot.slane %v1579, 2
      %v1584 = vrot.slane %v1580, 2
      %v1585 = vsel %vm532, %v1583, %v1584
      %v1588 = vadd.f32 %v1577, %v1585
      %v1589 = vadd.f32 %v1578, %v1584
      %v1590 = vmax.f32 %v1588, 0.0
      %v1591 = vmax.f32 %v1589, 0.0
      %v1592 = vmul.f32 %v1590, %v489
      %v1593 = vmul.f32 %v1591, %v490
      %v1594 = vmul.f32 %v1592, %v731
      %v1595 = vadd.f32 %v1503, %v1594
      %v1596 = vmul.f32 %v1592, %v734
      %v1597 = vmul.f32 %v1593, %v734
      %v1600 = vrot.slane %v1596, 1
      %v1601 = vrot.slane %v1597, 1
      %v1602 = vsel %vm519, %v1600, %v1601
      %v1604 = vadd.f32 %v1595, %v1602
      %v1605 = vmul.f32 %v1592, %v744
      %v1606 = vmul.f32 %v1593, %v744
      %v1609 = vrot.slane %v1605, 2
      %v1610 = vrot.slane %v1606, 2
      %v1611 = vsel %vm532, %v1609, %v1610
      %v1613 = vadd.f32 %v1604, %v1611
      %v1614 = vpack.c.bf16 %v1613, %v1613
      %v1616 = vsel %vm766, %v1614, 0
      %1618 = vmatpush.bf16.msra.mxu0 0
      %1619 = vmatpush.bf16.msra.mxu0 0
      %1620 = vmatpush.bf16.msra.mxu0 0
      %1621 = vmatpush.bf16.msra.mxu0 0
      %1622 = vmatpush.bf16.msra.mxu0 0
      %1623 = vmatpush.bf16.msra.mxu0 0
      %1624 = vmatpush.bf16.msra.mxu0 0
      %1625 = vmatpush.bf16.msra.mxu0 %v764
      %1626 = vmatmul.bf16.gmra.mxu0 %v1616
      %v1627 = vpop.f32.mrf.mxu0
      %v1628 = vadd.f32 %v758, %v1627
      %v1629 = vpop.f32.mrf.mxu0
      %1630 = vdwg.mxu0
      %v1631 = vmax.f32 %v1628, 0.0
      %v1632 = vadd.f32 %v1463, %v1631
      %v1633 = vmul.f32 %v1423, %v785
      %v1634 = vadd.f32 %v494, %v1633
      %v1635 = vmul.f32 %v1423, %v788
      %v1636 = vmul.f32 %v1424, %v788
      %v1639 = vrot.slane %v1635, 1
      %v1640 = vrot.slane %v1636, 1
      %v1641 = vsel %vm519, %v1639, %v1640
      %v1643 = vadd.f32 %v1634, %v1641
      %v1644 = vmul.f32 %v1423, %v798
      %v1645 = vmul.f32 %v1424, %v798
      %v1648 = vrot.slane %v1644, 2
      %v1649 = vrot.slane %v1645, 2
      %v1650 = vsel %vm532, %v1648, %v1649
      %v1652 = vadd.f32 %v1643, %v1650
      %v1653 = vmul.f32 %v1592, %v618
      %v1654 = vadd.f32 %v1652, %v1653
      %v1655 = vmul.f32 %v1592, %v621
      %v1656 = vmul.f32 %v1593, %v621
      %v1659 = vrot.slane %v1655, 1
      %v1660 = vrot.slane %v1656, 1
      %v1661 = vsel %vm519, %v1659, %v1660
      %v1663 = vadd.f32 %v1654, %v1661
      %v1664 = vmul.f32 %v1592, %v631
      %v1665 = vmul.f32 %v1593, %v631
      %v1668 = vrot.slane %v1664, 2
      %v1669 = vrot.slane %v1665, 2
      %v1670 = vsel %vm532, %v1668, %v1669
      %v1672 = vadd.f32 %v1663, %v1670
      %v1673 = vmul.f32 %v1389, %v509
      %v1674 = vmul.f32 %v1393, %v509
      %v1675 = vadd.f32 %v498, %v1673
      %v1676 = vadd.f32 %v498, %v1674
      %v1677 = vmul.f32 %v1389, %v514
      %v1678 = vmul.f32 %v1393, %v514
      %v1681 = vrot.slane %v1677, 1
      %v1682 = vrot.slane %v1678, 1
      %v1683 = vsel %vm519, %v1681, %v1682
      %v1686 = vadd.f32 %v1675, %v1683
      %v1687 = vadd.f32 %v1676, %v1682
      %v1688 = vmul.f32 %v1389, %v527
      %v1689 = vmul.f32 %v1393, %v527
      %v1692 = vrot.slane %v1688, 2
      %v1693 = vrot.slane %v1689, 2
      %v1694 = vsel %vm532, %v1692, %v1693
      %v1697 = vadd.f32 %v1686, %v1694
      %v1698 = vadd.f32 %v1687, %v1693
      %v1699 = vmul.f32 %v1558, %v548
      %v1700 = vmul.f32 %v1562, %v548
      %v1701 = vadd.f32 %v1697, %v1699
      %v1702 = vadd.f32 %v1698, %v1700
      %v1703 = vmul.f32 %v1558, %v553
      %v1704 = vmul.f32 %v1562, %v553
      %v1707 = vrot.slane %v1703, 1
      %v1708 = vrot.slane %v1704, 1
      %v1709 = vsel %vm519, %v1707, %v1708
      %v1712 = vadd.f32 %v1701, %v1709
      %v1713 = vadd.f32 %v1702, %v1708
      %v1714 = vmul.f32 %v1558, %v565
      %v1715 = vmul.f32 %v1562, %v565
      %v1718 = vrot.slane %v1714, 2
      %v1719 = vrot.slane %v1715, 2
      %v1720 = vsel %vm532, %v1718, %v1719
      %v1723 = vadd.f32 %v1712, %v1720
      %v1724 = vadd.f32 %v1713, %v1719
      %1725 = vset.pattern.permute.xlu0 9
      %1726 = vperm.xlu0 %1725, %v464
      %v1727 = vpop.permute.xlu0 %1726
      %1729 = vset.pattern.permute.xlu0 9
      %1730 = vperm.xlu0 %1729, %v465
      %v1731 = vpop.permute.xlu0 %1730
      %v1733 = vmul.f32 %v1727, %v585
      %v1734 = vmul.f32 %v1731, %v585
      %v1735 = vadd.f32 %v1723, %v1733
      %v1736 = vadd.f32 %v1724, %v1734
      %v1737 = vmul.f32 %v1727, %v590
      %v1738 = vmul.f32 %v1731, %v590
      %v1741 = vrot.slane %v1737, 1
      %v1742 = vrot.slane %v1738, 1
      %v1743 = vsel %vm519, %v1741, %v1742
      %v1746 = vadd.f32 %v1735, %v1743
      %v1747 = vadd.f32 %v1736, %v1742
      %v1748 = vmul.f32 %v1727, %v602
      %v1749 = vmul.f32 %v1731, %v602
      %v1752 = vrot.slane %v1748, 2
      %v1753 = vrot.slane %v1749, 2
      %v1754 = vsel %vm532, %v1752, %v1753
      %v1757 = vadd.f32 %v1746, %v1754
      %v1758 = vadd.f32 %v1747, %v1753
      %v1759 = vmax.f32 %v1757, 0.0
      %v1760 = vmax.f32 %v1758, 0.0
      %v1761 = vmul.f32 %v1759, %v489
      %v1762 = vmul.f32 %v1760, %v490
      %v1763 = vmul.f32 %v1761, %v731
      %v1764 = vadd.f32 %v1672, %v1763
      %v1765 = vmul.f32 %v1761, %v734
      %v1766 = vmul.f32 %v1762, %v734
      %v1769 = vrot.slane %v1765, 1
      %v1770 = vrot.slane %v1766, 1
      %v1771 = vsel %vm519, %v1769, %v1770
      %v1773 = vadd.f32 %v1764, %v1771
      %v1774 = vmul.f32 %v1761, %v744
      %v1775 = vmul.f32 %v1762, %v744
      %v1778 = vrot.slane %v1774, 2
      %v1779 = vrot.slane %v1775, 2
      %v1780 = vsel %vm532, %v1778, %v1779
      %v1782 = vadd.f32 %v1773, %v1780
      %v1783 = vpack.c.bf16 %v1782, %v1782
      %v1785 = vsel %vm766, %v1783, 0
      %1787 = vmatpush.bf16.msra.mxu0 0
      %1788 = vmatpush.bf16.msra.mxu0 0
      %1789 = vmatpush.bf16.msra.mxu0 0
      %1790 = vmatpush.bf16.msra.mxu0 0
      %1791 = vmatpush.bf16.msra.mxu0 0
      %1792 = vmatpush.bf16.msra.mxu0 0
      %1793 = vmatpush.bf16.msra.mxu0 0
      %1794 = vmatpush.bf16.msra.mxu0 %v764
      %1795 = vmatmul.bf16.gmra.mxu0 %v1785
      %v1796 = vpop.f32.mrf.mxu0
      %v1797 = vadd.f32 %v758, %v1796
      %v1798 = vpop.f32.mrf.mxu0
      %1799 = vdwg.mxu0
      %v1800 = vmax.f32 %v1797, 0.0
      %v1801 = vadd.f32 %v1632, %v1800
      %v1802 = vmul.f32 %v1592, %v785
      %v1803 = vadd.f32 %v494, %v1802
      %v1804 = vmul.f32 %v1592, %v788
      %v1805 = vmul.f32 %v1593, %v788
      %v1808 = vrot.slane %v1804, 1
      %v1809 = vrot.slane %v1805, 1
      %v1810 = vsel %vm519, %v1808, %v1809
      %v1812 = vadd.f32 %v1803, %v1810
      %v1813 = vmul.f32 %v1592, %v798
      %v1814 = vmul.f32 %v1593, %v798
      %v1817 = vrot.slane %v1813, 2
      %v1818 = vrot.slane %v1814, 2
      %v1819 = vsel %vm532, %v1817, %v1818
      %v1821 = vadd.f32 %v1812, %v1819
      %v1822 = vmul.f32 %v1761, %v618
      %v1823 = vadd.f32 %v1821, %v1822
      %v1824 = vmul.f32 %v1761, %v621
      %v1825 = vmul.f32 %v1762, %v621
      %v1828 = vrot.slane %v1824, 1
      %v1829 = vrot.slane %v1825, 1
      %v1830 = vsel %vm519, %v1828, %v1829
      %v1832 = vadd.f32 %v1823, %v1830
      %v1833 = vmul.f32 %v1761, %v631
      %v1834 = vmul.f32 %v1762, %v631
      %v1837 = vrot.slane %v1833, 2
      %v1838 = vrot.slane %v1834, 2
      %v1839 = vsel %vm532, %v1837, %v1838
      %v1841 = vadd.f32 %v1832, %v1839
      %v1842 = vmul.f32 %v1558, %v509
      %v1843 = vmul.f32 %v1562, %v509
      %v1844 = vadd.f32 %v498, %v1842
      %v1845 = vadd.f32 %v498, %v1843
      %v1846 = vmul.f32 %v1558, %v514
      %v1847 = vmul.f32 %v1562, %v514
      %v1850 = vrot.slane %v1846, 1
      %v1851 = vrot.slane %v1847, 1
      %v1852 = vsel %vm519, %v1850, %v1851
      %v1855 = vadd.f32 %v1844, %v1852
      %v1856 = vadd.f32 %v1845, %v1851
      %v1857 = vmul.f32 %v1558, %v527
      %v1858 = vmul.f32 %v1562, %v527
      %v1861 = vrot.slane %v1857, 2
      %v1862 = vrot.slane %v1858, 2
      %v1863 = vsel %vm532, %v1861, %v1862
      %v1866 = vadd.f32 %v1855, %v1863
      %v1867 = vadd.f32 %v1856, %v1862
      %v1868 = vmul.f32 %v1727, %v548
      %v1869 = vmul.f32 %v1731, %v548
      %v1870 = vadd.f32 %v1866, %v1868
      %v1871 = vadd.f32 %v1867, %v1869
      %v1872 = vmul.f32 %v1727, %v553
      %v1873 = vmul.f32 %v1731, %v553
      %v1876 = vrot.slane %v1872, 1
      %v1877 = vrot.slane %v1873, 1
      %v1878 = vsel %vm519, %v1876, %v1877
      %v1881 = vadd.f32 %v1870, %v1878
      %v1882 = vadd.f32 %v1871, %v1877
      %v1883 = vmul.f32 %v1727, %v565
      %v1884 = vmul.f32 %v1731, %v565
      %v1887 = vrot.slane %v1883, 2
      %v1888 = vrot.slane %v1884, 2
      %v1889 = vsel %vm532, %v1887, %v1888
      %v1892 = vadd.f32 %v1881, %v1889
      %v1893 = vadd.f32 %v1882, %v1888
      %1894 = vset.pattern.permute.xlu0 10
      %1895 = vperm.xlu0 %1894, %v464
      %v1896 = vpop.permute.xlu0 %1895
      %1898 = vset.pattern.permute.xlu0 10
      %1899 = vperm.xlu0 %1898, %v465
      %v1900 = vpop.permute.xlu0 %1899
      %v1902 = vmul.f32 %v1896, %v585
      %v1903 = vmul.f32 %v1900, %v585
      %v1904 = vadd.f32 %v1892, %v1902
      %v1905 = vadd.f32 %v1893, %v1903
      %v1906 = vmul.f32 %v1896, %v590
      %v1907 = vmul.f32 %v1900, %v590
      %v1910 = vrot.slane %v1906, 1
      %v1911 = vrot.slane %v1907, 1
      %v1912 = vsel %vm519, %v1910, %v1911
      %v1915 = vadd.f32 %v1904, %v1912
      %v1916 = vadd.f32 %v1905, %v1911
      %v1917 = vmul.f32 %v1896, %v602
      %v1918 = vmul.f32 %v1900, %v602
      %v1921 = vrot.slane %v1917, 2
      %v1922 = vrot.slane %v1918, 2
      %v1923 = vsel %vm532, %v1921, %v1922
      %v1926 = vadd.f32 %v1915, %v1923
      %v1927 = vadd.f32 %v1916, %v1922
      %v1928 = vmax.f32 %v1926, 0.0
      %v1929 = vmax.f32 %v1927, 0.0
      %v1930 = vmul.f32 %v1928, %v489
      %v1931 = vmul.f32 %v1929, %v490
      %v1932 = vmul.f32 %v1930, %v731
      %v1933 = vadd.f32 %v1841, %v1932
      %v1934 = vmul.f32 %v1930, %v734
      %v1935 = vmul.f32 %v1931, %v734
      %v1938 = vrot.slane %v1934, 1
      %v1939 = vrot.slane %v1935, 1
      %v1940 = vsel %vm519, %v1938, %v1939
      %v1942 = vadd.f32 %v1933, %v1940
      %v1943 = vmul.f32 %v1930, %v744
      %v1944 = vmul.f32 %v1931, %v744
      %v1947 = vrot.slane %v1943, 2
      %v1948 = vrot.slane %v1944, 2
      %v1949 = vsel %vm532, %v1947, %v1948
      %v1951 = vadd.f32 %v1942, %v1949
      %v1952 = vpack.c.bf16 %v1951, %v1951
      %v1954 = vsel %vm766, %v1952, 0
      %1956 = vmatpush.bf16.msra.mxu0 0
      %1957 = vmatpush.bf16.msra.mxu0 0
      %1958 = vmatpush.bf16.msra.mxu0 0
      %1959 = vmatpush.bf16.msra.mxu0 0
      %1960 = vmatpush.bf16.msra.mxu0 0
      %1961 = vmatpush.bf16.msra.mxu0 0
      %1962 = vmatpush.bf16.msra.mxu0 0
      %1963 = vmatpush.bf16.msra.mxu0 %v764
      %1964 = vmatmul.bf16.gmra.mxu0 %v1954
      %v1965 = vpop.f32.mrf.mxu0
      %v1966 = vadd.f32 %v758, %v1965
      %v1967 = vpop.f32.mrf.mxu0
      %1968 = vdwg.mxu0
      %v1969 = vmax.f32 %v1966, 0.0
      %v1970 = vadd.f32 %v1801, %v1969
      %v1971 = vmul.f32 %v1761, %v785
      %v1972 = vadd.f32 %v494, %v1971
      %v1973 = vmul.f32 %v1761, %v788
      %v1974 = vmul.f32 %v1762, %v788
      %v1977 = vrot.slane %v1973, 1
      %v1978 = vrot.slane %v1974, 1
      %v1979 = vsel %vm519, %v1977, %v1978
      %v1981 = vadd.f32 %v1972, %v1979
      %v1982 = vmul.f32 %v1761, %v798
      %v1983 = vmul.f32 %v1762, %v798
      %v1986 = vrot.slane %v1982, 2
      %v1987 = vrot.slane %v1983, 2
      %v1988 = vsel %vm532, %v1986, %v1987
      %v1990 = vadd.f32 %v1981, %v1988
      %v1991 = vmul.f32 %v1930, %v618
      %v1992 = vadd.f32 %v1990, %v1991
      %v1993 = vmul.f32 %v1930, %v621
      %v1994 = vmul.f32 %v1931, %v621
      %v1997 = vrot.slane %v1993, 1
      %v1998 = vrot.slane %v1994, 1
      %v1999 = vsel %vm519, %v1997, %v1998
      %v2001 = vadd.f32 %v1992, %v1999
      %v2002 = vmul.f32 %v1930, %v631
      %v2003 = vmul.f32 %v1931, %v631
      %v2006 = vrot.slane %v2002, 2
      %v2007 = vrot.slane %v2003, 2
      %v2008 = vsel %vm532, %v2006, %v2007
      %v2010 = vadd.f32 %v2001, %v2008
      %v2011 = vmul.f32 %v1727, %v509
      %v2012 = vmul.f32 %v1731, %v509
      %v2013 = vadd.f32 %v498, %v2011
      %v2014 = vadd.f32 %v498, %v2012
      %v2015 = vmul.f32 %v1727, %v514
      %v2016 = vmul.f32 %v1731, %v514
      %v2019 = vrot.slane %v2015, 1
      %v2020 = vrot.slane %v2016, 1
      %v2021 = vsel %vm519, %v2019, %v2020
      %v2024 = vadd.f32 %v2013, %v2021
      %v2025 = vadd.f32 %v2014, %v2020
      %v2026 = vmul.f32 %v1727, %v527
      %v2027 = vmul.f32 %v1731, %v527
      %v2030 = vrot.slane %v2026, 2
      %v2031 = vrot.slane %v2027, 2
      %v2032 = vsel %vm532, %v2030, %v2031
      %v2035 = vadd.f32 %v2024, %v2032
      %v2036 = vadd.f32 %v2025, %v2031
      %v2037 = vmul.f32 %v1896, %v548
      %v2038 = vmul.f32 %v1900, %v548
      %v2039 = vadd.f32 %v2035, %v2037
      %v2040 = vadd.f32 %v2036, %v2038
      %v2041 = vmul.f32 %v1896, %v553
      %v2042 = vmul.f32 %v1900, %v553
      %v2045 = vrot.slane %v2041, 1
      %v2046 = vrot.slane %v2042, 1
      %v2047 = vsel %vm519, %v2045, %v2046
      %v2050 = vadd.f32 %v2039, %v2047
      %v2051 = vadd.f32 %v2040, %v2046
      %v2052 = vmul.f32 %v1896, %v565
      %v2053 = vmul.f32 %v1900, %v565
      %v2056 = vrot.slane %v2052, 2
      %v2057 = vrot.slane %v2053, 2
      %v2058 = vsel %vm532, %v2056, %v2057
      %v2061 = vadd.f32 %v2050, %v2058
      %v2062 = vadd.f32 %v2051, %v2057
      %2063 = vset.pattern.permute.xlu0 11
      %2064 = vperm.xlu0 %2063, %v464
      %v2065 = vpop.permute.xlu0 %2064
      %2067 = vset.pattern.permute.xlu0 11
      %2068 = vperm.xlu0 %2067, %v465
      %v2069 = vpop.permute.xlu0 %2068
      %v2071 = vmul.f32 %v2065, %v585
      %v2072 = vmul.f32 %v2069, %v585
      %v2073 = vadd.f32 %v2061, %v2071
      %v2074 = vadd.f32 %v2062, %v2072
      %v2075 = vmul.f32 %v2065, %v590
      %v2076 = vmul.f32 %v2069, %v590
      %v2079 = vrot.slane %v2075, 1
      %v2080 = vrot.slane %v2076, 1
      %v2081 = vsel %vm519, %v2079, %v2080
      %v2084 = vadd.f32 %v2073, %v2081
      %v2085 = vadd.f32 %v2074, %v2080
      %v2086 = vmul.f32 %v2065, %v602
      %v2087 = vmul.f32 %v2069, %v602
      %v2090 = vrot.slane %v2086, 2
      %v2091 = vrot.slane %v2087, 2
      %v2092 = vsel %vm532, %v2090, %v2091
      %v2095 = vadd.f32 %v2084, %v2092
      %v2096 = vadd.f32 %v2085, %v2091
      %v2097 = vmax.f32 %v2095, 0.0
      %v2098 = vmax.f32 %v2096, 0.0
      %v2099 = vmul.f32 %v2097, %v489
      %v2100 = vmul.f32 %v2098, %v490
      %v2101 = vmul.f32 %v2099, %v731
      %v2102 = vadd.f32 %v2010, %v2101
      %v2103 = vmul.f32 %v2099, %v734
      %v2104 = vmul.f32 %v2100, %v734
      %v2107 = vrot.slane %v2103, 1
      %v2108 = vrot.slane %v2104, 1
      %v2109 = vsel %vm519, %v2107, %v2108
      %v2111 = vadd.f32 %v2102, %v2109
      %v2112 = vmul.f32 %v2099, %v744
      %v2113 = vmul.f32 %v2100, %v744
      %v2116 = vrot.slane %v2112, 2
      %v2117 = vrot.slane %v2113, 2
      %v2118 = vsel %vm532, %v2116, %v2117
      %v2120 = vadd.f32 %v2111, %v2118
      %v2121 = vpack.c.bf16 %v2120, %v2120
      %v2123 = vsel %vm766, %v2121, 0
      %2125 = vmatpush.bf16.msra.mxu0 0
      %2126 = vmatpush.bf16.msra.mxu0 0
      %2127 = vmatpush.bf16.msra.mxu0 0
      %2128 = vmatpush.bf16.msra.mxu0 0
      %2129 = vmatpush.bf16.msra.mxu0 0
      %2130 = vmatpush.bf16.msra.mxu0 0
      %2131 = vmatpush.bf16.msra.mxu0 0
      %2132 = vmatpush.bf16.msra.mxu0 %v764
      %2133 = vmatmul.bf16.gmra.mxu0 %v2123
      %v2134 = vpop.f32.mrf.mxu0
      %v2135 = vadd.f32 %v758, %v2134
      %v2136 = vpop.f32.mrf.mxu0
      %2137 = vdwg.mxu0
      %v2138 = vmax.f32 %v2135, 0.0
      %v2139 = vadd.f32 %v1970, %v2138
      %v2140 = vmul.f32 %v1930, %v785
      %v2141 = vadd.f32 %v494, %v2140
      %v2142 = vmul.f32 %v1930, %v788
      %v2143 = vmul.f32 %v1931, %v788
      %v2146 = vrot.slane %v2142, 1
      %v2147 = vrot.slane %v2143, 1
      %v2148 = vsel %vm519, %v2146, %v2147
      %v2150 = vadd.f32 %v2141, %v2148
      %v2151 = vmul.f32 %v1930, %v798
      %v2152 = vmul.f32 %v1931, %v798
      %v2155 = vrot.slane %v2151, 2
      %v2156 = vrot.slane %v2152, 2
      %v2157 = vsel %vm532, %v2155, %v2156
      %v2159 = vadd.f32 %v2150, %v2157
      %v2160 = vmul.f32 %v2099, %v618
      %v2161 = vadd.f32 %v2159, %v2160
      %v2162 = vmul.f32 %v2099, %v621
      %v2163 = vmul.f32 %v2100, %v621
      %v2166 = vrot.slane %v2162, 1
      %v2167 = vrot.slane %v2163, 1
      %v2168 = vsel %vm519, %v2166, %v2167
      %v2170 = vadd.f32 %v2161, %v2168
      %v2171 = vmul.f32 %v2099, %v631
      %v2172 = vmul.f32 %v2100, %v631
      %v2175 = vrot.slane %v2171, 2
      %v2176 = vrot.slane %v2172, 2
      %v2177 = vsel %vm532, %v2175, %v2176
      %v2179 = vadd.f32 %v2170, %v2177
      %v2180 = vmul.f32 %v1896, %v509
      %v2181 = vmul.f32 %v1900, %v509
      %v2182 = vadd.f32 %v498, %v2180
      %v2183 = vadd.f32 %v498, %v2181
      %v2184 = vmul.f32 %v1896, %v514
      %v2185 = vmul.f32 %v1900, %v514
      %v2188 = vrot.slane %v2184, 1
      %v2189 = vrot.slane %v2185, 1
      %v2190 = vsel %vm519, %v2188, %v2189
      %v2193 = vadd.f32 %v2182, %v2190
      %v2194 = vadd.f32 %v2183, %v2189
      %v2195 = vmul.f32 %v1896, %v527
      %v2196 = vmul.f32 %v1900, %v527
      %v2199 = vrot.slane %v2195, 2
      %v2200 = vrot.slane %v2196, 2
      %v2201 = vsel %vm532, %v2199, %v2200
      %v2204 = vadd.f32 %v2193, %v2201
      %v2205 = vadd.f32 %v2194, %v2200
      %v2206 = vmul.f32 %v2065, %v548
      %v2207 = vmul.f32 %v2069, %v548
      %v2208 = vadd.f32 %v2204, %v2206
      %v2209 = vadd.f32 %v2205, %v2207
      %v2210 = vmul.f32 %v2065, %v553
      %v2211 = vmul.f32 %v2069, %v553
      %v2214 = vrot.slane %v2210, 1
      %v2215 = vrot.slane %v2211, 1
      %v2216 = vsel %vm519, %v2214, %v2215
      %v2219 = vadd.f32 %v2208, %v2216
      %v2220 = vadd.f32 %v2209, %v2215
      %v2221 = vmul.f32 %v2065, %v565
      %v2222 = vmul.f32 %v2069, %v565
      %v2225 = vrot.slane %v2221, 2
      %v2226 = vrot.slane %v2222, 2
      %v2227 = vsel %vm532, %v2225, %v2226
      %v2230 = vadd.f32 %v2219, %v2227
      %v2231 = vadd.f32 %v2220, %v2226
      %2232 = vset.pattern.permute.xlu0 12
      %2233 = vperm.xlu0 %2232, %v464
      %v2234 = vpop.permute.xlu0 %2233
      %2236 = vset.pattern.permute.xlu0 12
      %2237 = vperm.xlu0 %2236, %v465
      %v2238 = vpop.permute.xlu0 %2237
      %v2240 = vmul.f32 %v2234, %v585
      %v2241 = vmul.f32 %v2238, %v585
      %v2242 = vadd.f32 %v2230, %v2240
      %v2243 = vadd.f32 %v2231, %v2241
      %v2244 = vmul.f32 %v2234, %v590
      %v2245 = vmul.f32 %v2238, %v590
      %v2248 = vrot.slane %v2244, 1
      %v2249 = vrot.slane %v2245, 1
      %v2250 = vsel %vm519, %v2248, %v2249
      %v2253 = vadd.f32 %v2242, %v2250
      %v2254 = vadd.f32 %v2243, %v2249
      %v2255 = vmul.f32 %v2234, %v602
      %v2256 = vmul.f32 %v2238, %v602
      %v2259 = vrot.slane %v2255, 2
      %v2260 = vrot.slane %v2256, 2
      %v2261 = vsel %vm532, %v2259, %v2260
      %v2264 = vadd.f32 %v2253, %v2261
      %v2265 = vadd.f32 %v2254, %v2260
      %v2266 = vmax.f32 %v2264, 0.0
      %v2267 = vmax.f32 %v2265, 0.0
      %v2268 = vmul.f32 %v2266, %v489
      %v2269 = vmul.f32 %v2267, %v490
      %v2270 = vmul.f32 %v2268, %v731
      %v2271 = vadd.f32 %v2179, %v2270
      %v2272 = vmul.f32 %v2268, %v734
      %v2273 = vmul.f32 %v2269, %v734
      %v2276 = vrot.slane %v2272, 1
      %v2277 = vrot.slane %v2273, 1
      %v2278 = vsel %vm519, %v2276, %v2277
      %v2280 = vadd.f32 %v2271, %v2278
      %v2281 = vmul.f32 %v2268, %v744
      %v2282 = vmul.f32 %v2269, %v744
      %v2285 = vrot.slane %v2281, 2
      %v2286 = vrot.slane %v2282, 2
      %v2287 = vsel %vm532, %v2285, %v2286
      %v2289 = vadd.f32 %v2280, %v2287
      %v2290 = vpack.c.bf16 %v2289, %v2289
      %v2292 = vsel %vm766, %v2290, 0
      %2294 = vmatpush.bf16.msra.mxu0 0
      %2295 = vmatpush.bf16.msra.mxu0 0
      %2296 = vmatpush.bf16.msra.mxu0 0
      %2297 = vmatpush.bf16.msra.mxu0 0
      %2298 = vmatpush.bf16.msra.mxu0 0
      %2299 = vmatpush.bf16.msra.mxu0 0
      %2300 = vmatpush.bf16.msra.mxu0 0
      %2301 = vmatpush.bf16.msra.mxu0 %v764
      %2302 = vmatmul.bf16.gmra.mxu0 %v2292
      %v2303 = vpop.f32.mrf.mxu0
      %v2304 = vadd.f32 %v758, %v2303
      %v2305 = vpop.f32.mrf.mxu0
      %2306 = vdwg.mxu0
      %v2307 = vmax.f32 %v2304, 0.0
      %v2308 = vadd.f32 %v2139, %v2307
      %v2309 = vmul.f32 %v2099, %v785
      %v2310 = vadd.f32 %v494, %v2309
      %v2311 = vmul.f32 %v2099, %v788
      %v2312 = vmul.f32 %v2100, %v788
      %v2315 = vrot.slane %v2311, 1
      %v2316 = vrot.slane %v2312, 1
      %v2317 = vsel %vm519, %v2315, %v2316
      %v2319 = vadd.f32 %v2310, %v2317
      %v2320 = vmul.f32 %v2099, %v798
      %v2321 = vmul.f32 %v2100, %v798
      %v2324 = vrot.slane %v2320, 2
      %v2325 = vrot.slane %v2321, 2
      %v2326 = vsel %vm532, %v2324, %v2325
      %v2328 = vadd.f32 %v2319, %v2326
      %v2329 = vmul.f32 %v2268, %v618
      %v2330 = vadd.f32 %v2328, %v2329
      %v2331 = vmul.f32 %v2268, %v621
      %v2332 = vmul.f32 %v2269, %v621
      %v2335 = vrot.slane %v2331, 1
      %v2336 = vrot.slane %v2332, 1
      %v2337 = vsel %vm519, %v2335, %v2336
      %v2339 = vadd.f32 %v2330, %v2337
      %v2340 = vmul.f32 %v2268, %v631
      %v2341 = vmul.f32 %v2269, %v631
      %v2344 = vrot.slane %v2340, 2
      %v2345 = vrot.slane %v2341, 2
      %v2346 = vsel %vm532, %v2344, %v2345
      %v2348 = vadd.f32 %v2339, %v2346
      %v2349 = vmul.f32 %v2065, %v509
      %v2350 = vmul.f32 %v2069, %v509
      %v2351 = vadd.f32 %v498, %v2349
      %v2352 = vadd.f32 %v498, %v2350
      %v2353 = vmul.f32 %v2065, %v514
      %v2354 = vmul.f32 %v2069, %v514
      %v2357 = vrot.slane %v2353, 1
      %v2358 = vrot.slane %v2354, 1
      %v2359 = vsel %vm519, %v2357, %v2358
      %v2362 = vadd.f32 %v2351, %v2359
      %v2363 = vadd.f32 %v2352, %v2358
      %v2364 = vmul.f32 %v2065, %v527
      %v2365 = vmul.f32 %v2069, %v527
      %v2368 = vrot.slane %v2364, 2
      %v2369 = vrot.slane %v2365, 2
      %v2370 = vsel %vm532, %v2368, %v2369
      %v2373 = vadd.f32 %v2362, %v2370
      %v2374 = vadd.f32 %v2363, %v2369
      %v2375 = vmul.f32 %v2234, %v548
      %v2376 = vmul.f32 %v2238, %v548
      %v2377 = vadd.f32 %v2373, %v2375
      %v2378 = vadd.f32 %v2374, %v2376
      %v2379 = vmul.f32 %v2234, %v553
      %v2380 = vmul.f32 %v2238, %v553
      %v2383 = vrot.slane %v2379, 1
      %v2384 = vrot.slane %v2380, 1
      %v2385 = vsel %vm519, %v2383, %v2384
      %v2388 = vadd.f32 %v2377, %v2385
      %v2389 = vadd.f32 %v2378, %v2384
      %v2390 = vmul.f32 %v2234, %v565
      %v2391 = vmul.f32 %v2238, %v565
      %v2394 = vrot.slane %v2390, 2
      %v2395 = vrot.slane %v2391, 2
      %v2396 = vsel %vm532, %v2394, %v2395
      %v2399 = vadd.f32 %v2388, %v2396
      %v2400 = vadd.f32 %v2389, %v2395
      %2401 = vset.pattern.permute.xlu0 13
      %2402 = vperm.xlu0 %2401, %v464
      %v2403 = vpop.permute.xlu0 %2402
      %2405 = vset.pattern.permute.xlu0 13
      %2406 = vperm.xlu0 %2405, %v465
      %v2407 = vpop.permute.xlu0 %2406
      %v2409 = vmul.f32 %v2403, %v585
      %v2410 = vmul.f32 %v2407, %v585
      %v2411 = vadd.f32 %v2399, %v2409
      %v2412 = vadd.f32 %v2400, %v2410
      %v2413 = vmul.f32 %v2403, %v590
      %v2414 = vmul.f32 %v2407, %v590
      %v2417 = vrot.slane %v2413, 1
      %v2418 = vrot.slane %v2414, 1
      %v2419 = vsel %vm519, %v2417, %v2418
      %v2422 = vadd.f32 %v2411, %v2419
      %v2423 = vadd.f32 %v2412, %v2418
      %v2424 = vmul.f32 %v2403, %v602
      %v2425 = vmul.f32 %v2407, %v602
      %v2428 = vrot.slane %v2424, 2
      %v2429 = vrot.slane %v2425, 2
      %v2430 = vsel %vm532, %v2428, %v2429
      %v2433 = vadd.f32 %v2422, %v2430
      %v2434 = vadd.f32 %v2423, %v2429
      %v2435 = vmax.f32 %v2433, 0.0
      %v2436 = vmax.f32 %v2434, 0.0
      %v2437 = vmul.f32 %v2435, %v489
      %v2438 = vmul.f32 %v2436, %v490
      %v2439 = vmul.f32 %v2437, %v731
      %v2440 = vadd.f32 %v2348, %v2439
      %v2441 = vmul.f32 %v2437, %v734
      %v2442 = vmul.f32 %v2438, %v734
      %v2445 = vrot.slane %v2441, 1
      %v2446 = vrot.slane %v2442, 1
      %v2447 = vsel %vm519, %v2445, %v2446
      %v2449 = vadd.f32 %v2440, %v2447
      %v2450 = vmul.f32 %v2437, %v744
      %v2451 = vmul.f32 %v2438, %v744
      %v2454 = vrot.slane %v2450, 2
      %v2455 = vrot.slane %v2451, 2
      %v2456 = vsel %vm532, %v2454, %v2455
      %v2458 = vadd.f32 %v2449, %v2456
      %v2459 = vpack.c.bf16 %v2458, %v2458
      %v2461 = vsel %vm766, %v2459, 0
      %2463 = vmatpush.bf16.msra.mxu0 0
      %2464 = vmatpush.bf16.msra.mxu0 0
      %2465 = vmatpush.bf16.msra.mxu0 0
      %2466 = vmatpush.bf16.msra.mxu0 0
      %2467 = vmatpush.bf16.msra.mxu0 0
      %2468 = vmatpush.bf16.msra.mxu0 0
      %2469 = vmatpush.bf16.msra.mxu0 0
      %2470 = vmatpush.bf16.msra.mxu0 %v764
      %2471 = vmatmul.bf16.gmra.mxu0 %v2461
      %v2472 = vpop.f32.mrf.mxu0
      %v2473 = vadd.f32 %v758, %v2472
      %v2474 = vpop.f32.mrf.mxu0
      %2475 = vdwg.mxu0
      %v2476 = vmax.f32 %v2473, 0.0
      %v2477 = vadd.f32 %v2308, %v2476
      %v2478 = vmul.f32 %v2268, %v785
      %v2479 = vadd.f32 %v494, %v2478
      %v2480 = vmul.f32 %v2268, %v788
      %v2481 = vmul.f32 %v2269, %v788
      %v2484 = vrot.slane %v2480, 1
      %v2485 = vrot.slane %v2481, 1
      %v2486 = vsel %vm519, %v2484, %v2485
      %v2488 = vadd.f32 %v2479, %v2486
      %v2489 = vmul.f32 %v2268, %v798
      %v2490 = vmul.f32 %v2269, %v798
      %v2493 = vrot.slane %v2489, 2
      %v2494 = vrot.slane %v2490, 2
      %v2495 = vsel %vm532, %v2493, %v2494
      %v2497 = vadd.f32 %v2488, %v2495
      %v2498 = vmul.f32 %v2437, %v618
      %v2499 = vadd.f32 %v2497, %v2498
      %v2500 = vmul.f32 %v2437, %v621
      %v2501 = vmul.f32 %v2438, %v621
      %v2504 = vrot.slane %v2500, 1
      %v2505 = vrot.slane %v2501, 1
      %v2506 = vsel %vm519, %v2504, %v2505
      %v2508 = vadd.f32 %v2499, %v2506
      %v2509 = vmul.f32 %v2437, %v631
      %v2510 = vmul.f32 %v2438, %v631
      %v2513 = vrot.slane %v2509, 2
      %v2514 = vrot.slane %v2510, 2
      %v2515 = vsel %vm532, %v2513, %v2514
      %v2517 = vadd.f32 %v2508, %v2515
      %v2518 = vmul.f32 %v2234, %v509
      %v2519 = vmul.f32 %v2238, %v509
      %v2520 = vadd.f32 %v498, %v2518
      %v2521 = vadd.f32 %v498, %v2519
      %v2522 = vmul.f32 %v2234, %v514
      %v2523 = vmul.f32 %v2238, %v514
      %v2526 = vrot.slane %v2522, 1
      %v2527 = vrot.slane %v2523, 1
      %v2528 = vsel %vm519, %v2526, %v2527
      %v2531 = vadd.f32 %v2520, %v2528
      %v2532 = vadd.f32 %v2521, %v2527
      %v2533 = vmul.f32 %v2234, %v527
      %v2534 = vmul.f32 %v2238, %v527
      %v2537 = vrot.slane %v2533, 2
      %v2538 = vrot.slane %v2534, 2
      %v2539 = vsel %vm532, %v2537, %v2538
      %v2542 = vadd.f32 %v2531, %v2539
      %v2543 = vadd.f32 %v2532, %v2538
      %v2544 = vmul.f32 %v2403, %v548
      %v2545 = vmul.f32 %v2407, %v548
      %v2546 = vadd.f32 %v2542, %v2544
      %v2547 = vadd.f32 %v2543, %v2545
      %v2548 = vmul.f32 %v2403, %v553
      %v2549 = vmul.f32 %v2407, %v553
      %v2552 = vrot.slane %v2548, 1
      %v2553 = vrot.slane %v2549, 1
      %v2554 = vsel %vm519, %v2552, %v2553
      %v2557 = vadd.f32 %v2546, %v2554
      %v2558 = vadd.f32 %v2547, %v2553
      %v2559 = vmul.f32 %v2403, %v565
      %v2560 = vmul.f32 %v2407, %v565
      %v2563 = vrot.slane %v2559, 2
      %v2564 = vrot.slane %v2560, 2
      %v2565 = vsel %vm532, %v2563, %v2564
      %v2568 = vadd.f32 %v2557, %v2565
      %v2569 = vadd.f32 %v2558, %v2564
      %2570 = vset.pattern.permute.xlu0 14
      %2571 = vperm.xlu0 %2570, %v464
      %v2572 = vpop.permute.xlu0 %2571
      %2574 = vset.pattern.permute.xlu0 14
      %2575 = vperm.xlu0 %2574, %v465
      %v2576 = vpop.permute.xlu0 %2575
      %v2578 = vmul.f32 %v2572, %v585
      %v2579 = vmul.f32 %v2576, %v585
      %v2580 = vadd.f32 %v2568, %v2578
      %v2581 = vadd.f32 %v2569, %v2579
      %v2582 = vmul.f32 %v2572, %v590
      %v2583 = vmul.f32 %v2576, %v590
      %v2586 = vrot.slane %v2582, 1
      %v2587 = vrot.slane %v2583, 1
      %v2588 = vsel %vm519, %v2586, %v2587
      %v2591 = vadd.f32 %v2580, %v2588
      %v2592 = vadd.f32 %v2581, %v2587
      %v2593 = vmul.f32 %v2572, %v602
      %v2594 = vmul.f32 %v2576, %v602
      %v2597 = vrot.slane %v2593, 2
      %v2598 = vrot.slane %v2594, 2
      %v2599 = vsel %vm532, %v2597, %v2598
      %v2602 = vadd.f32 %v2591, %v2599
      %v2603 = vadd.f32 %v2592, %v2598
      %v2604 = vmax.f32 %v2602, 0.0
      %v2605 = vmax.f32 %v2603, 0.0
      %v2606 = vmul.f32 %v2604, %v489
      %v2607 = vmul.f32 %v2605, %v490
      %v2608 = vmul.f32 %v2606, %v731
      %v2609 = vadd.f32 %v2517, %v2608
      %v2610 = vmul.f32 %v2606, %v734
      %v2611 = vmul.f32 %v2607, %v734
      %v2614 = vrot.slane %v2610, 1
      %v2615 = vrot.slane %v2611, 1
      %v2616 = vsel %vm519, %v2614, %v2615
      %v2618 = vadd.f32 %v2609, %v2616
      %v2619 = vmul.f32 %v2606, %v744
      %v2620 = vmul.f32 %v2607, %v744
      %v2623 = vrot.slane %v2619, 2
      %v2624 = vrot.slane %v2620, 2
      %v2625 = vsel %vm532, %v2623, %v2624
      %v2627 = vadd.f32 %v2618, %v2625
      %v2628 = vpack.c.bf16 %v2627, %v2627
      %v2630 = vsel %vm766, %v2628, 0
      %2632 = vmatpush.bf16.msra.mxu0 0
      %2633 = vmatpush.bf16.msra.mxu0 0
      %2634 = vmatpush.bf16.msra.mxu0 0
      %2635 = vmatpush.bf16.msra.mxu0 0
      %2636 = vmatpush.bf16.msra.mxu0 0
      %2637 = vmatpush.bf16.msra.mxu0 0
      %2638 = vmatpush.bf16.msra.mxu0 0
      %2639 = vmatpush.bf16.msra.mxu0 %v764
      %2640 = vmatmul.bf16.gmra.mxu0 %v2630
      %v2641 = vpop.f32.mrf.mxu0
      %v2642 = vadd.f32 %v758, %v2641
      %v2643 = vpop.f32.mrf.mxu0
      %2644 = vdwg.mxu0
      %v2645 = vmax.f32 %v2642, 0.0
      %v2646 = vadd.f32 %v2477, %v2645
      %v2647 = vmul.f32 %v2437, %v785
      %v2648 = vadd.f32 %v494, %v2647
      %v2649 = vmul.f32 %v2437, %v788
      %v2650 = vmul.f32 %v2438, %v788
      %v2653 = vrot.slane %v2649, 1
      %v2654 = vrot.slane %v2650, 1
      %v2655 = vsel %vm519, %v2653, %v2654
      %v2657 = vadd.f32 %v2648, %v2655
      %v2658 = vmul.f32 %v2437, %v798
      %v2659 = vmul.f32 %v2438, %v798
      %v2662 = vrot.slane %v2658, 2
      %v2663 = vrot.slane %v2659, 2
      %v2664 = vsel %vm532, %v2662, %v2663
      %v2666 = vadd.f32 %v2657, %v2664
      %v2667 = vmul.f32 %v2606, %v618
      %v2668 = vadd.f32 %v2666, %v2667
      %v2669 = vmul.f32 %v2606, %v621
      %v2670 = vmul.f32 %v2607, %v621
      %v2673 = vrot.slane %v2669, 1
      %v2674 = vrot.slane %v2670, 1
      %v2675 = vsel %vm519, %v2673, %v2674
      %v2677 = vadd.f32 %v2668, %v2675
      %v2678 = vmul.f32 %v2606, %v631
      %v2679 = vmul.f32 %v2607, %v631
      %v2682 = vrot.slane %v2678, 2
      %v2683 = vrot.slane %v2679, 2
      %v2684 = vsel %vm532, %v2682, %v2683
      %v2686 = vadd.f32 %v2677, %v2684
      %v2687 = vmul.f32 %v2403, %v509
      %v2688 = vmul.f32 %v2407, %v509
      %v2689 = vadd.f32 %v498, %v2687
      %v2690 = vadd.f32 %v498, %v2688
      %v2691 = vmul.f32 %v2403, %v514
      %v2692 = vmul.f32 %v2407, %v514
      %v2695 = vrot.slane %v2691, 1
      %v2696 = vrot.slane %v2692, 1
      %v2697 = vsel %vm519, %v2695, %v2696
      %v2700 = vadd.f32 %v2689, %v2697
      %v2701 = vadd.f32 %v2690, %v2696
      %v2702 = vmul.f32 %v2403, %v527
      %v2703 = vmul.f32 %v2407, %v527
      %v2706 = vrot.slane %v2702, 2
      %v2707 = vrot.slane %v2703, 2
      %v2708 = vsel %vm532, %v2706, %v2707
      %v2711 = vadd.f32 %v2700, %v2708
      %v2712 = vadd.f32 %v2701, %v2707
      %v2713 = vmul.f32 %v2572, %v548
      %v2714 = vmul.f32 %v2576, %v548
      %v2715 = vadd.f32 %v2711, %v2713
      %v2716 = vadd.f32 %v2712, %v2714
      %v2717 = vmul.f32 %v2572, %v553
      %v2718 = vmul.f32 %v2576, %v553
      %v2721 = vrot.slane %v2717, 1
      %v2722 = vrot.slane %v2718, 1
      %v2723 = vsel %vm519, %v2721, %v2722
      %v2726 = vadd.f32 %v2715, %v2723
      %v2727 = vadd.f32 %v2716, %v2722
      %v2728 = vmul.f32 %v2572, %v565
      %v2729 = vmul.f32 %v2576, %v565
      %v2732 = vrot.slane %v2728, 2
      %v2733 = vrot.slane %v2729, 2
      %v2734 = vsel %vm532, %v2732, %v2733
      %v2737 = vadd.f32 %v2726, %v2734
      %v2738 = vadd.f32 %v2727, %v2733
      %2739 = vset.pattern.permute.xlu0 15
      %2740 = vperm.xlu0 %2739, %v464
      %v2741 = vpop.permute.xlu0 %2740
      %2743 = vset.pattern.permute.xlu0 15
      %2744 = vperm.xlu0 %2743, %v465
      %v2745 = vpop.permute.xlu0 %2744
      %v2747 = vmul.f32 %v2741, %v585
      %v2748 = vmul.f32 %v2745, %v585
      %v2749 = vadd.f32 %v2737, %v2747
      %v2750 = vadd.f32 %v2738, %v2748
      %v2751 = vmul.f32 %v2741, %v590
      %v2752 = vmul.f32 %v2745, %v590
      %v2755 = vrot.slane %v2751, 1
      %v2756 = vrot.slane %v2752, 1
      %v2757 = vsel %vm519, %v2755, %v2756
      %v2760 = vadd.f32 %v2749, %v2757
      %v2761 = vadd.f32 %v2750, %v2756
      %v2762 = vmul.f32 %v2741, %v602
      %v2763 = vmul.f32 %v2745, %v602
      %v2766 = vrot.slane %v2762, 2
      %v2767 = vrot.slane %v2763, 2
      %v2768 = vsel %vm532, %v2766, %v2767
      %v2771 = vadd.f32 %v2760, %v2768
      %v2772 = vadd.f32 %v2761, %v2767
      %v2773 = vmax.f32 %v2771, 0.0
      %v2774 = vmax.f32 %v2772, 0.0
      %v2775 = vmul.f32 %v2773, %v489
      %v2776 = vmul.f32 %v2774, %v490
      %v2777 = vmul.f32 %v2775, %v731
      %v2778 = vadd.f32 %v2686, %v2777
      %v2779 = vmul.f32 %v2775, %v734
      %v2780 = vmul.f32 %v2776, %v734
      %v2783 = vrot.slane %v2779, 1
      %v2784 = vrot.slane %v2780, 1
      %v2785 = vsel %vm519, %v2783, %v2784
      %v2787 = vadd.f32 %v2778, %v2785
      %v2788 = vmul.f32 %v2775, %v744
      %v2789 = vmul.f32 %v2776, %v744
      %v2792 = vrot.slane %v2788, 2
      %v2793 = vrot.slane %v2789, 2
      %v2794 = vsel %vm532, %v2792, %v2793
      %v2796 = vadd.f32 %v2787, %v2794
      %v2797 = vpack.c.bf16 %v2796, %v2796
      %v2799 = vsel %vm766, %v2797, 0
      %2801 = vmatpush.bf16.msra.mxu0 0
      %2802 = vmatpush.bf16.msra.mxu0 0
      %2803 = vmatpush.bf16.msra.mxu0 0
      %2804 = vmatpush.bf16.msra.mxu0 0
      %2805 = vmatpush.bf16.msra.mxu0 0
      %2806 = vmatpush.bf16.msra.mxu0 0
      %2807 = vmatpush.bf16.msra.mxu0 0
      %2808 = vmatpush.bf16.msra.mxu0 %v764
      %2809 = vmatmul.bf16.gmra.mxu0 %v2799
      %v2810 = vpop.f32.mrf.mxu0
      %v2811 = vadd.f32 %v758, %v2810
      %v2812 = vpop.f32.mrf.mxu0
      %2813 = vdwg.mxu0
      %v2814 = vmax.f32 %v2811, 0.0
      %v2815 = vadd.f32 %v2646, %v2814
      %v2816 = vmul.f32 %v2606, %v785
      %v2817 = vadd.f32 %v494, %v2816
      %v2818 = vmul.f32 %v2606, %v788
      %v2819 = vmul.f32 %v2607, %v788
      %v2822 = vrot.slane %v2818, 1
      %v2823 = vrot.slane %v2819, 1
      %v2824 = vsel %vm519, %v2822, %v2823
      %v2826 = vadd.f32 %v2817, %v2824
      %v2827 = vmul.f32 %v2606, %v798
      %v2828 = vmul.f32 %v2607, %v798
      %v2831 = vrot.slane %v2827, 2
      %v2832 = vrot.slane %v2828, 2
      %v2833 = vsel %vm532, %v2831, %v2832
      %v2835 = vadd.f32 %v2826, %v2833
      %v2836 = vmul.f32 %v2775, %v618
      %v2837 = vadd.f32 %v2835, %v2836
      %v2838 = vmul.f32 %v2775, %v621
      %v2839 = vmul.f32 %v2776, %v621
      %v2842 = vrot.slane %v2838, 1
      %v2843 = vrot.slane %v2839, 1
      %v2844 = vsel %vm519, %v2842, %v2843
      %v2846 = vadd.f32 %v2837, %v2844
      %v2847 = vmul.f32 %v2775, %v631
      %v2848 = vmul.f32 %v2776, %v631
      %v2851 = vrot.slane %v2847, 2
      %v2852 = vrot.slane %v2848, 2
      %v2853 = vsel %vm532, %v2851, %v2852
      %v2855 = vadd.f32 %v2846, %v2853
      %v2856 = vmul.f32 %v2572, %v509
      %v2857 = vmul.f32 %v2576, %v509
      %v2858 = vadd.f32 %v498, %v2856
      %v2859 = vadd.f32 %v498, %v2857
      %v2860 = vmul.f32 %v2572, %v514
      %v2861 = vmul.f32 %v2576, %v514
      %v2864 = vrot.slane %v2860, 1
      %v2865 = vrot.slane %v2861, 1
      %v2866 = vsel %vm519, %v2864, %v2865
      %v2869 = vadd.f32 %v2858, %v2866
      %v2870 = vadd.f32 %v2859, %v2865
      %v2871 = vmul.f32 %v2572, %v527
      %v2872 = vmul.f32 %v2576, %v527
      %v2875 = vrot.slane %v2871, 2
      %v2876 = vrot.slane %v2872, 2
      %v2877 = vsel %vm532, %v2875, %v2876
      %v2880 = vadd.f32 %v2869, %v2877
      %v2881 = vadd.f32 %v2870, %v2876
      %v2882 = vmul.f32 %v2741, %v548
      %v2883 = vmul.f32 %v2745, %v548
      %v2884 = vadd.f32 %v2880, %v2882
      %v2885 = vadd.f32 %v2881, %v2883
      %v2886 = vmul.f32 %v2741, %v553
      %v2887 = vmul.f32 %v2745, %v553
      %v2890 = vrot.slane %v2886, 1
      %v2891 = vrot.slane %v2887, 1
      %v2892 = vsel %vm519, %v2890, %v2891
      %v2895 = vadd.f32 %v2884, %v2892
      %v2896 = vadd.f32 %v2885, %v2891
      %v2897 = vmul.f32 %v2741, %v565
      %v2898 = vmul.f32 %v2745, %v565
      %v2901 = vrot.slane %v2897, 2
      %v2902 = vrot.slane %v2898, 2
      %v2903 = vsel %vm532, %v2901, %v2902
      %v2906 = vadd.f32 %v2895, %v2903
      %v2907 = vadd.f32 %v2896, %v2902
      %2908 = vset.pattern.permute.xlu0 16
      %2909 = vperm.xlu0 %2908, %v464
      %v2910 = vpop.permute.xlu0 %2909
      %2912 = vset.pattern.permute.xlu0 16
      %2913 = vperm.xlu0 %2912, %v465
      %v2914 = vpop.permute.xlu0 %2913
      %v2916 = vmul.f32 %v2910, %v585
      %v2917 = vmul.f32 %v2914, %v585
      %v2918 = vadd.f32 %v2906, %v2916
      %v2919 = vadd.f32 %v2907, %v2917
      %v2920 = vmul.f32 %v2910, %v590
      %v2921 = vmul.f32 %v2914, %v590
      %v2924 = vrot.slane %v2920, 1
      %v2925 = vrot.slane %v2921, 1
      %v2926 = vsel %vm519, %v2924, %v2925
      %v2929 = vadd.f32 %v2918, %v2926
      %v2930 = vadd.f32 %v2919, %v2925
      %v2931 = vmul.f32 %v2910, %v602
      %v2932 = vmul.f32 %v2914, %v602
      %v2935 = vrot.slane %v2931, 2
      %v2936 = vrot.slane %v2932, 2
      %v2937 = vsel %vm532, %v2935, %v2936
      %v2940 = vadd.f32 %v2929, %v2937
      %v2941 = vadd.f32 %v2930, %v2936
      %v2942 = vmax.f32 %v2940, 0.0
      %v2943 = vmax.f32 %v2941, 0.0
      %v2944 = vmul.f32 %v2942, %v489
      %v2945 = vmul.f32 %v2943, %v490
      %v2946 = vmul.f32 %v2944, %v731
      %v2947 = vadd.f32 %v2855, %v2946
      %v2948 = vmul.f32 %v2944, %v734
      %v2949 = vmul.f32 %v2945, %v734
      %v2952 = vrot.slane %v2948, 1
      %v2953 = vrot.slane %v2949, 1
      %v2954 = vsel %vm519, %v2952, %v2953
      %v2956 = vadd.f32 %v2947, %v2954
      %v2957 = vmul.f32 %v2944, %v744
      %v2958 = vmul.f32 %v2945, %v744
      %v2961 = vrot.slane %v2957, 2
      %v2962 = vrot.slane %v2958, 2
      %v2963 = vsel %vm532, %v2961, %v2962
      %v2965 = vadd.f32 %v2956, %v2963
      %v2966 = vpack.c.bf16 %v2965, %v2965
      %v2968 = vsel %vm766, %v2966, 0
      %2970 = vmatpush.bf16.msra.mxu0 0
      %2971 = vmatpush.bf16.msra.mxu0 0
      %2972 = vmatpush.bf16.msra.mxu0 0
      %2973 = vmatpush.bf16.msra.mxu0 0
      %2974 = vmatpush.bf16.msra.mxu0 0
      %2975 = vmatpush.bf16.msra.mxu0 0
      %2976 = vmatpush.bf16.msra.mxu0 0
      %2977 = vmatpush.bf16.msra.mxu0 %v764
      %2978 = vmatmul.bf16.gmra.mxu0 %v2968
      %v2979 = vpop.f32.mrf.mxu0
      %v2980 = vadd.f32 %v758, %v2979
      %v2981 = vpop.f32.mrf.mxu0
      %2982 = vdwg.mxu0
      %v2983 = vmax.f32 %v2980, 0.0
      %v2984 = vadd.f32 %v2815, %v2983
      %v2985 = vmul.f32 %v2775, %v785
      %v2986 = vadd.f32 %v494, %v2985
      %v2987 = vmul.f32 %v2775, %v788
      %v2988 = vmul.f32 %v2776, %v788
      %v2991 = vrot.slane %v2987, 1
      %v2992 = vrot.slane %v2988, 1
      %v2993 = vsel %vm519, %v2991, %v2992
      %v2995 = vadd.f32 %v2986, %v2993
      %v2996 = vmul.f32 %v2775, %v798
      %v2997 = vmul.f32 %v2776, %v798
      %v3000 = vrot.slane %v2996, 2
      %v3001 = vrot.slane %v2997, 2
      %v3002 = vsel %vm532, %v3000, %v3001
      %v3004 = vadd.f32 %v2995, %v3002
      %v3005 = vmul.f32 %v2944, %v618
      %v3006 = vadd.f32 %v3004, %v3005
      %v3007 = vmul.f32 %v2944, %v621
      %v3008 = vmul.f32 %v2945, %v621
      %v3011 = vrot.slane %v3007, 1
      %v3012 = vrot.slane %v3008, 1
      %v3013 = vsel %vm519, %v3011, %v3012
      %v3015 = vadd.f32 %v3006, %v3013
      %v3016 = vmul.f32 %v2944, %v631
      %v3017 = vmul.f32 %v2945, %v631
      %v3020 = vrot.slane %v3016, 2
      %v3021 = vrot.slane %v3017, 2
      %v3022 = vsel %vm532, %v3020, %v3021
      %v3024 = vadd.f32 %v3015, %v3022
      %v3025 = vmul.f32 %v2741, %v509
      %v3026 = vmul.f32 %v2745, %v509
      %v3027 = vadd.f32 %v498, %v3025
      %v3028 = vadd.f32 %v498, %v3026
      %v3029 = vmul.f32 %v2741, %v514
      %v3030 = vmul.f32 %v2745, %v514
      %v3033 = vrot.slane %v3029, 1
      %v3034 = vrot.slane %v3030, 1
      %v3035 = vsel %vm519, %v3033, %v3034
      %v3038 = vadd.f32 %v3027, %v3035
      %v3039 = vadd.f32 %v3028, %v3034
      %v3040 = vmul.f32 %v2741, %v527
      %v3041 = vmul.f32 %v2745, %v527
      %v3044 = vrot.slane %v3040, 2
      %v3045 = vrot.slane %v3041, 2
      %v3046 = vsel %vm532, %v3044, %v3045
      %v3049 = vadd.f32 %v3038, %v3046
      %v3050 = vadd.f32 %v3039, %v3045
      %v3051 = vmul.f32 %v2910, %v548
      %v3052 = vmul.f32 %v2914, %v548
      %v3053 = vadd.f32 %v3049, %v3051
      %v3054 = vadd.f32 %v3050, %v3052
      %v3055 = vmul.f32 %v2910, %v553
      %v3056 = vmul.f32 %v2914, %v553
      %v3059 = vrot.slane %v3055, 1
      %v3060 = vrot.slane %v3056, 1
      %v3061 = vsel %vm519, %v3059, %v3060
      %v3064 = vadd.f32 %v3053, %v3061
      %v3065 = vadd.f32 %v3054, %v3060
      %v3066 = vmul.f32 %v2910, %v565
      %v3067 = vmul.f32 %v2914, %v565
      %v3070 = vrot.slane %v3066, 2
      %v3071 = vrot.slane %v3067, 2
      %v3072 = vsel %vm532, %v3070, %v3071
      %v3075 = vadd.f32 %v3064, %v3072
      %v3076 = vadd.f32 %v3065, %v3071
      %3077 = vset.pattern.permute.xlu0 17
      %3078 = vperm.xlu0 %3077, %v464
      %v3079 = vpop.permute.xlu0 %3078
      %3081 = vset.pattern.permute.xlu0 17
      %3082 = vperm.xlu0 %3081, %v465
      %v3083 = vpop.permute.xlu0 %3082
      %v3085 = vmul.f32 %v3079, %v585
      %v3086 = vmul.f32 %v3083, %v585
      %v3087 = vadd.f32 %v3075, %v3085
      %v3088 = vadd.f32 %v3076, %v3086
      %v3089 = vmul.f32 %v3079, %v590
      %v3090 = vmul.f32 %v3083, %v590
      %v3093 = vrot.slane %v3089, 1
      %v3094 = vrot.slane %v3090, 1
      %v3095 = vsel %vm519, %v3093, %v3094
      %v3098 = vadd.f32 %v3087, %v3095
      %v3099 = vadd.f32 %v3088, %v3094
      %v3100 = vmul.f32 %v3079, %v602
      %v3101 = vmul.f32 %v3083, %v602
      %v3104 = vrot.slane %v3100, 2
      %v3105 = vrot.slane %v3101, 2
      %v3106 = vsel %vm532, %v3104, %v3105
      %v3109 = vadd.f32 %v3098, %v3106
      %v3110 = vadd.f32 %v3099, %v3105
      %v3111 = vmax.f32 %v3109, 0.0
      %v3112 = vmax.f32 %v3110, 0.0
      %v3113 = vmul.f32 %v3111, %v489
      %v3114 = vmul.f32 %v3112, %v490
      %v3115 = vmul.f32 %v3113, %v731
      %v3116 = vadd.f32 %v3024, %v3115
      %v3117 = vmul.f32 %v3113, %v734
      %v3118 = vmul.f32 %v3114, %v734
      %v3121 = vrot.slane %v3117, 1
      %v3122 = vrot.slane %v3118, 1
      %v3123 = vsel %vm519, %v3121, %v3122
      %v3125 = vadd.f32 %v3116, %v3123
      %v3126 = vmul.f32 %v3113, %v744
      %v3127 = vmul.f32 %v3114, %v744
      %v3130 = vrot.slane %v3126, 2
      %v3131 = vrot.slane %v3127, 2
      %v3132 = vsel %vm532, %v3130, %v3131
      %v3134 = vadd.f32 %v3125, %v3132
      %v3135 = vpack.c.bf16 %v3134, %v3134
      %v3137 = vsel %vm766, %v3135, 0
      %3139 = vmatpush.bf16.msra.mxu0 0
      %3140 = vmatpush.bf16.msra.mxu0 0
      %3141 = vmatpush.bf16.msra.mxu0 0
      %3142 = vmatpush.bf16.msra.mxu0 0
      %3143 = vmatpush.bf16.msra.mxu0 0
      %3144 = vmatpush.bf16.msra.mxu0 0
      %3145 = vmatpush.bf16.msra.mxu0 0
      %3146 = vmatpush.bf16.msra.mxu0 %v764
      %3147 = vmatmul.bf16.gmra.mxu0 %v3137
      %v3148 = vpop.f32.mrf.mxu0
      %v3149 = vadd.f32 %v758, %v3148
      %v3150 = vpop.f32.mrf.mxu0
      %3151 = vdwg.mxu0
      %v3152 = vmax.f32 %v3149, 0.0
      %v3153 = vadd.f32 %v2984, %v3152
      %v3154 = vmul.f32 %v2944, %v785
      %v3155 = vadd.f32 %v494, %v3154
      %v3156 = vmul.f32 %v2944, %v788
      %v3157 = vmul.f32 %v2945, %v788
      %v3160 = vrot.slane %v3156, 1
      %v3161 = vrot.slane %v3157, 1
      %v3162 = vsel %vm519, %v3160, %v3161
      %v3164 = vadd.f32 %v3155, %v3162
      %v3165 = vmul.f32 %v2944, %v798
      %v3166 = vmul.f32 %v2945, %v798
      %v3169 = vrot.slane %v3165, 2
      %v3170 = vrot.slane %v3166, 2
      %v3171 = vsel %vm532, %v3169, %v3170
      %v3173 = vadd.f32 %v3164, %v3171
      %v3174 = vmul.f32 %v3113, %v618
      %v3175 = vadd.f32 %v3173, %v3174
      %v3176 = vmul.f32 %v3113, %v621
      %v3177 = vmul.f32 %v3114, %v621
      %v3180 = vrot.slane %v3176, 1
      %v3181 = vrot.slane %v3177, 1
      %v3182 = vsel %vm519, %v3180, %v3181
      %v3184 = vadd.f32 %v3175, %v3182
      %v3185 = vmul.f32 %v3113, %v631
      %v3186 = vmul.f32 %v3114, %v631
      %v3189 = vrot.slane %v3185, 2
      %v3190 = vrot.slane %v3186, 2
      %v3191 = vsel %vm532, %v3189, %v3190
      %v3193 = vadd.f32 %v3184, %v3191
      %v3194 = vpack.c.bf16 %v3193, %v3193
      %v3196 = vsel %vm766, %v3194, 0
      %3198 = vmatpush.bf16.msra.mxu0 0
      %3199 = vmatpush.bf16.msra.mxu0 0
      %3200 = vmatpush.bf16.msra.mxu0 0
      %3201 = vmatpush.bf16.msra.mxu0 0
      %3202 = vmatpush.bf16.msra.mxu0 0
      %3203 = vmatpush.bf16.msra.mxu0 0
      %3204 = vmatpush.bf16.msra.mxu0 0
      %3205 = vmatpush.bf16.msra.mxu0 %v764
      %3206 = vmatmul.bf16.gmra.mxu0 %v3196
      %v3207 = vpop.f32.mrf.mxu0
      %v3208 = vadd.f32 %v758, %v3207
      %v3209 = vpop.f32.mrf.mxu0
      %3210 = vdwg.mxu0
      %v3211 = vmax.f32 %v3208, 0.0
      %v3212 = vadd.f32 %v3153, %v3211
      %v3213 = vmul.f32 %v3212, 0.0625
      %v3214 = vpack.c.bf16 %v3213, %v3213
      %v3215 = vld [vmem:[%s7] sm:$0xf]
      %v3216 = vld [vmem:[%s7 + $0x4] sm:$0xf]
      %v3217 = vld [vmem:[%s7 + $0x8] sm:$0xf]
      %v3218 = vld [vmem:[%s7 + $0xc] sm:$0xf]
      %v3219 = vld [vmem:[%s8] sm:$0x1]
      %v3221 = vperm.slane %v3219, 0
      %v3227 = vunpack.c.l.b16 %v3215
      %v3228 = vunpack.c.l.b16 %v3216
      %v3229 = vunpack.c.l.b16 %v3217
      %v3230 = vunpack.c.l.b16 %v3218
      %v3231 = vpack.c.b16 %v3228, %v3227
      %v3232 = vpack.c.b16 %v3230, %v3229
      %vm3235 = vcmask 261120
      %v3237 = vsel %vm3235, %v3214, 0
      %3239 = vmatpush.bf16.msra.mxu0 0
      %3240 = vmatpush.bf16.msra.mxu0 0
      %3241 = vmatpush.bf16.msra.mxu0 0
      %3242 = vmatpush.bf16.msra.mxu0 0
      %3243 = vmatpush.bf16.msra.mxu0 0
      %3244 = vmatpush.bf16.msra.mxu0 0
      %3245 = vmatpush.bf16.msra.mxu0 %v3232
      %3246 = vmatpush.bf16.msra.mxu0 %v3231
      %3247 = vmatmul.bf16.gmra.mxu0 %v3237
      %v3248 = vpop.f32.mrf.mxu0
      %v3249 = vadd.f32 %v3221, %v3248
      %v3250 = vpop.f32.mrf.mxu0
      %3251 = vdwg.mxu0
      %v3252 = vsel %vm3235, %v3249, 0.0
      %3253 = vadd.xlane.f32.xlu0 %v3252
      %v3254 = vpop.xlane.xlu0 %3253
      %v3255 = vrcp.pop 32.0
      %v3256 = vmul.f32 32.0, %v3255
      %v3257 = vsub.f32 1.0, %v3256
      %v3258 = vmul.f32 %v3255, %v3257
      %v3259 = vadd.f32 %v3255, %v3258
      %vm3260 = vweird.f32 %v3255
      %v3261 = vsel %vm3260, %v3255, %v3259
      %v3262 = vmul.f32 %v3254, %v3261
      %v3263 = vsub.f32 %v3249, %v3262
      %v3264 = vmul.f32 %v3263, %v3263
      %v3265 = vsel %vm3235, %v3264, 0.0
      %3266 = vadd.xlane.f32.xlu0 %v3265
      %v3267 = vpop.xlane.xlu0 %3266
      %v3268 = vmul.f32 %v3267, %v3261
      %v3269 = vadd.f32 %v3268, 1e-05
      %v3270 = vrsqrt.pop %v3269
      %v3271 = vmul.f32 %v3270, %v3269
      %v3272 = vmul.f32 %v3271, %v3270
      %v3273 = vmul.f32 0.5, %v3272
      %v3274 = vsub.f32 1.5, %v3273
      %v3275 = vmul.f32 %v3270, %v3274
      %vm3276 = vweird.f32 %v3269
      %vm3277 = vweird.f32 %v3270
      %vm3278 = vmor %vm3276, %vm3277
      %v3279 = vsel %vm3278, %v3270, %v3275
      %v3280 = vmul.f32 %v3263, %v3279
      %v3281 = vld [vmem:[%s9] sm:$0x1]
      %v3283 = vperm.slane %v3281, 0
      %v3285 = vmul.f32 %v3280, %v3283
      %v3286 = vld [vmem:[%s10] sm:$0x1]
      %v3288 = vperm.slane %v3286, 0
      %v3290 = vadd.f32 %v3285, %v3288
      %v3291 = vld [vmem:[%s455] sm:$0xff]
      %v3292 = vadd.f32 %v3290, %v3291
      %3293 = vst.msk [vmem:[%s462] sm:$0xff] %vm3235, %v3292
      %p3294 = scmp.lt.s32.totalorder %s27, 1
      %s3295 = scalar_select %p3294, %s27, 1
      %p3296 = scmp.lt.s32.totalorder %s28, 0
      %s3297 = scalar_select %p3296, %s28, 0
      %s3298 = sadd.s32 %s3297, %s3295
      %s3299 = smul.addr %s3298, 8
      %s3300 = scalar_lea.vmem %s12, %s3299
      // Predicated region
      $region69: #{mel_performer_forward.8} parent=67 // pred_check
        %p3301 = pneg %p319
      $region70: #{mel_performer_forward.8} parent=67 // pred_check_branch
        %3303 = sbr.rel (%p3301) target = $region72
      $region71: #{mel_performer_forward.8} parent=67 // pred_region
        _
      $region72: #{mel_performer_forward.8} parent=67 // pred_fallthru
        _
    $region68: #{mel_performer_forward.8} parent=5 // pred_fallthru
      _
    %p3304 = scmp.le.s32.totalorder 2, %s18
    // Predicated region
    $region73: #{mel_performer_forward.8} parent=5 // pred_check
      %p3305 = pneg %p3304
    $region74: #{mel_performer_forward.8} parent=5 // pred_check_branch
      %3307 = sbr.rel (%p3305) target = $region76
    $region75: #{mel_performer_forward.8} parent=5 // pred_region
      %s3308 = ssub.s32 %s18, 2
      // Predicated region
      $region77: #{mel_performer_forward.8} parent=75 // pred_check
        %p3309 = pneg %p325
      $region78: #{mel_performer_forward.8} parent=75 // pred_check_branch
        %3311 = sbr.rel (%p3309) target = $region80
      $region79: #{mel_performer_forward.8} parent=75 // pred_region
        %p3312 = scmp.lt.s32.totalorder %s29, 1
        %s3313 = scalar_select %p3312, %s29, 1
        %p3314 = scmp.lt.s32.totalorder %s30, 0
        %s3315 = scalar_select %p3314, %s30, 0
        %s3316 = sadd.s32 %s3315, %s3313
        %s3317 = smul.addr %s3316, 8
        %s3318 = scalar_lea.vmem %s12, %s3317
      $region80: #{mel_performer_forward.8} parent=75 // pred_fallthru
        _
    $region76: #{mel_performer_forward.8} parent=5 // pred_fallthru
      _
  $region6: #{mel_performer_forward.8} parent=0 // loop_footer
    %s22 = sadd.s32 1, %s18
  $region7: #{mel_performer_forward.8} parent=0 // loop_footer_branch
    %17 = sbr.rel target = $region3
  $region8: #{mel_performer_forward.8} parent=0 // loop_exit
    _

</llo_original>
